<compile_context>
chip_gen: v7x
topology: tpu7x:2x2x1
jax: 0.10.0
libtpu: 0.0.40
codegen_flags: <defaults>
</compile_context>

<pallas_src>
import math
import functools

import numpy as np
import jax
import jax.numpy as jnp
from jax.experimental import pallas as pl
from jax.experimental.pallas import tpu as pltpu

_TOP_KEYS = ('mid_w', 'mid_b', 'cond_w', 'cond_b', 'out_w', 'out_b')
_TL_KEYS = ('in_w', 'in_b', 'out_w', 'out_b', 'ff1_w', 'ff1_b', 'ff2_w', 'ff2_b',
            'n1_w', 'n1_b', 'n2_w', 'n2_b')
_LN_EPS = 1e-5
_INV_SQRT2 = 1.0 / math.sqrt(2.0)


# ----------------------------- in-kernel helpers ----------------------------

def _erf(x):
    # Abramowitz & Stegun 7.1.26, |err| <= 1.5e-7 (f32 noise level).
    # TODO(synk): switch to jax.lax.erf once Mosaic erf lowering is guaranteed.
    a1, a2, a3, a4, a5 = 0.254829592, -0.284496736, 1.421413741, -1.453152027, 1.061405429
    p = 0.3275911
    ax = jnp.abs(x)
    t = 1.0 / (1.0 + p * ax)          # exact divide: keeps GELU at ~1e-7 accuracy
    poly = ((((a5 * t + a4) * t + a3) * t + a2) * t + a1) * t
    y = 1.0 - poly * jnp.exp(-(ax * ax))
    return jnp.where(x >= 0, y, -y)


def _gelu_exact(x):
    # PyTorch activation='gelu' (exact erf form).
    return 0.5 * x * (1.0 + _erf(x * (1.0 / math.sqrt(2.0))))


def _layernorm(x, gamma, beta, eps=_LN_EPS):
    mean = jnp.mean(x, axis=-1, keepdims=True)
    xc = x - mean
    var = jnp.mean(xc * xc, axis=-1, keepdims=True)
    return xc * jax.lax.rsqrt(var + eps) * gamma + beta


def _encoder_layer(tokens, group_mask, head_sel, w, nheads, head_dim):
    """PyTorch nn.TransformerEncoderLayer (post-LN, exact-erf GELU, eval dropout).

    tokens:     (N, C)    channel-last tokens.
    group_mask: (H*N, N)  bool; True where query row (h*N + i) may attend key j.
    head_sel:   (H, 1, C) f32; 1.0 where channel c belongs to head h.

    All heads are computed with two wide matmuls: queries are head-expanded onto
    the sublane axis (q_exp[h*N+i, c] = q[i, c] * [c in head h]) so one
    (H*N, C) x (C, N) matmul yields every per-head score and one
    (H*N, N) x (N, C) matmul yields every per-head output; per-head results are
    folded back into their channel slices with a masked sum (VPU only).  Masked
    channels contribute exact zeros, so this is equivalent to per-head slicing.
    """
    N, C = tokens.shape
    H = nheads
    scale = 1.0 / math.sqrt(head_dim)

    qkv = jnp.dot(tokens, w['in_w'][...], preferred_element_type=jnp.float32) + w['in_b'][...]
    q = qkv[:, :C] * scale
    k = qkv[:, C:2 * C]
    v = qkv[:, 2 * C:]

    q_exp = (q[None, :, :] * head_sel).reshape(H * N, C)             # (H*N, C)

    # Scores for all heads in one matmul; k contracted on its last dim once
    # (no per-head transposes, no tiny head_dim-deep contractions).
    s = jax.lax.dot_general(q_exp, k, (((1,), (1,)), ((), ())),
                            preferred_element_type=jnp.float32)      # (H*N, N)
    s = jnp.where(group_mask, s, -jnp.inf)                           # exact zero cross-group leak
    s = s - jnp.max(s, axis=-1, keepdims=True)
    p = jnp.exp(s)
    p = p * pl.reciprocal(jnp.sum(p, axis=-1, keepdims=True), approx=True)

    o_all = jnp.dot(p, v, preferred_element_type=jnp.float32)        # (H*N, C)
    attn = jnp.sum(o_all.reshape(H, N, C) * head_sel, axis=0)        # (N, C) head fold

    attn = jnp.dot(attn, w['out_w'][...], preferred_element_type=jnp.float32) + w['out_b'][...]
    # TODO(synk): dropout layers omitted (eval-mode identity semantics).
    h1 = _layernorm(tokens + attn, w['n1_w'][...], w['n1_b'][...])

    ff = jnp.dot(h1, w['ff1_w'][...], preferred_element_type=jnp.float32) + w['ff1_b'][...]
    ff = _gelu_exact(ff)
    ff = jnp.dot(ff, w['ff2_w'][...], preferred_element_type=jnp.float32) + w['ff2_b'][...]
    return _layernorm(h1 + ff, w['n2_w'][...], w['n2_b'][...])


# ------------------------------- fused kernel -------------------------------

def _residual_block_kernel(x_ref, cond_ref, demb_ref,
                           tgrp_row_ref, tgrp_col_ref, fgrp_row_ref, fgrp_col_ref,
                           *refs,
                           channels, nheads, apply_time, apply_feature):
    C = channels
    H = nheads
    dh = C // H
    n_top, n_tl = len(_TOP_KEYS), len(_TL_KEYS)
    wrefs = refs[:n_top + 2 * n_tl]
    out_ref = refs[n_top + 2 * n_tl]
    top = dict(zip(_TOP_KEYS, wrefs[:n_top]))
    time_w = dict(zip(_TL_KEYS, wrefs[n_top:n_top + n_tl]))
    feat_w = dict(zip(_TL_KEYS, wrefs[n_top + n_tl:]))

    bt, T, _ = x_ref.shape
    N = bt * T
    side = cond_ref.shape[-1]

    x3 = x_ref[...].astype(jnp.float32)                               # (bt, T, C)
    x = x3.reshape(N, C)
    cond = cond_ref[...].astype(jnp.float32).reshape(N, side)
    y = (x3 + demb_ref[...].astype(jnp.float32)).reshape(N, C)        # + diffusion emb

    # Head selector (H, 1, C): channel c belongs to head h  <=>  h*dh <= c < (h+1)*dh.
    lane_c = jax.lax.broadcasted_iota(jnp.int32, (H, 1, C), 2)
    head_h = jax.lax.broadcasted_iota(jnp.int32, (H, 1, C), 0)
    head_sel = ((lane_c >= head_h * dh) & (lane_c < (head_h + 1) * dh)).astype(jnp.float32)

    if apply_time:     # attention along L within each (sub-batch, k) group (skipped when L == 1)
        y = _encoder_layer(y, tgrp_row_ref[...] == tgrp_col_ref[...], head_sel, time_w, H, dh)
    if apply_feature:  # attention along K within each (sub-batch, l) group (skipped when K == 1)
        y = _encoder_layer(y, fgrp_row_ref[...] == fgrp_col_ref[...], head_sel, feat_w, H, dh)

    # Epilogue: mid 1x1 conv + cond 1x1 conv + sigmoid*tanh gate + out 1x1 conv.
    z = (jnp.dot(y, top['mid_w'][...], preferred_element_type=jnp.float32) + top['mid_b'][...]
         + jnp.dot(cond, top['cond_w'][...], preferred_element_type=jnp.float32) + top['cond_b'][...])
    g = jax.nn.sigmoid(z[:, :C]) * jnp.tanh(z[:, C:])
    o = jnp.dot(g, top['out_w'][...], preferred_element_type=jnp.float32) + top['out_b'][...]  # (N, 2C)

    # Single lane-dense (N, 2C) store: [:, :C] = (x + residual)/sqrt(2), [:, C:] = skip.
    res = (x + o[:, :C]) * _INV_SQRT2
    out = jnp.concatenate([res, o[:, C:]], axis=-1)
    out_ref[...] = out.reshape(bt, T, 2 * C).astype(out_ref.dtype)


# ------------------------------- host wrapper --------------------------------

def _pick_batch_tile(B, T):
    """Sub-batches folded per grid step: aim for >=128 token rows per step
    (sublane-full MXU operands, fewer ~0.35us grid-step overheads) while keeping
    >=2 grid steps when possible so v7x's two TensorCores both get work."""
    bt = min(B, max(1, 128 // T))
    while B % bt:
        bt -= 1
    while bt > 1 and B // bt < 2:
        bt -= 1
        while B % bt:
            bt -= 1
    return bt


def residual_block_forward(x, cond_info, diffusion_emb, params, nheads, batch_tile=None):
    B, C, K, L = x.shape
    T = K * L
    side_dim = cond_info.shape[1]
    bt = _pick_batch_tile(B, T) if batch_tile is None else batch_tile
    assert B % bt == 0, "batch_tile must divide batch"
    N = bt * T
    H = nheads

    # Channel-last, lane-dense token layout; one relayout per tensor.
    # TODO(synk): in a stacked CSDI model keep activations channel-last across all
    # residual blocks and drop these transposes (and the final ones) entirely.
    x_cl = x.transpose(0, 2, 3, 1).reshape(B, T, C)
    cond_cl = cond_info.transpose(0, 2, 3, 1).reshape(B, T, side_dim)

    # Diffusion-embedding projection hoisted out of the kernel.
    demb = (jnp.dot(diffusion_emb, params['diff_w'], preferred_element_type=jnp.float32)
            + params['diff_b']).reshape(B, 1, C).astype(x.dtype)

    # O(N) per-token group ids (replaces O(N^2) dense attention masks in HBM).
    # Flat token index t = bsub*T + k*L + l.
    tok = np.arange(N)
    gt = tok // L                              # equal  <=>  same (sub-batch, k)
    gf = (tok // T) * L + (tok % L)            # equal  <=>  same (sub-batch, l)
    tgrp_col = jnp.asarray(gt[None, :], jnp.int32)                  # (1, N) key tokens
    fgrp_col = jnp.asarray(gf[None, :], jnp.int32)
    tgrp_row = jnp.asarray(np.tile(gt, H)[:, None], jnp.int32)      # (H*N, 1) query rows
    fgrp_row = jnp.asarray(np.tile(gf, H)[:, None], jnp.int32)

    weights = ([params[k] for k in _TOP_KEYS]
               + [params['time_layer'][k] for k in _TL_KEYS]
               + [params['feature_layer'][k] for k in _TL_KEYS])

    kernel = functools.partial(_residual_block_kernel, channels=C, nheads=nheads,
                               apply_time=(L > 1), apply_feature=(K > 1))

    in_specs = [
        pl.BlockSpec((bt, T, C), lambda b: (b, 0, 0)),
        pl.BlockSpec((bt, T, side_dim), lambda b: (b, 0, 0)),
        pl.BlockSpec((bt, 1, C), lambda b: (b, 0, 0)),
        pl.BlockSpec((H * N, 1), lambda b: (0, 0)),
        pl.BlockSpec((1, N), lambda b: (0, 0)),
        pl.BlockSpec((H * N, 1), lambda b: (0, 0)),
        pl.BlockSpec((1, N), lambda b: (0, 0)),
    ] + [pl.BlockSpec(w.shape, lambda b: (0, 0)) for w in weights]

    out_specs = pl.BlockSpec((bt, T, 2 * C), lambda b: (b, 0, 0))

    res_skip = pl.pallas_call(
        kernel,
        out_shape=jax.ShapeDtypeStruct((B, T, 2 * C), x.dtype),
        grid_spec=pltpu.PrefetchScalarGridSpec(
            num_scalar_prefetch=0,
            grid=(B // bt,),
            in_specs=in_specs,
            out_specs=out_specs),
        compiler_params=pltpu.CompilerParams(dimension_semantics=("parallel",)),
    )(x_cl, cond_cl, demb, tgrp_row, tgrp_col, fgrp_row, fgrp_col, *weights)

    res = res_skip[..., :C].reshape(B, K, L, C).transpose(0, 3, 1, 2)
    skip = res_skip[..., C:].reshape(B, K, L, C).transpose(0, 3, 1, 2)
    return res, skip


# ----------------------------- parameter init --------------------------------

def init_params(key, side_dim, channels, diffusion_embedding_dim, d_ff=64):
    """All weights stored pre-transposed as (in, out); biases as (1, out)."""
    C = channels
    keys = iter(jax.random.split(key, 16))

    def dense(shape, fan_in):
        return jax.random.normal(next(keys), shape, jnp.float32) * (1.0 / math.sqrt(fan_in))

    def transformer_params():
        return dict(
            in_w=dense((C, 3 * C), C),
            in_b=jnp.zeros((1, 3 * C), jnp.float32),
            out_w=dense((C, C), C),
            out_b=jnp.zeros((1, C), jnp.float32),
            ff1_w=dense((C, d_ff), C),
            ff1_b=jnp.zeros((1, d_ff), jnp.float32),
            ff2_w=dense((d_ff, C), d_ff),
            ff2_b=jnp.zeros((1, C), jnp.float32),
            n1_w=jnp.ones((1, C), jnp.float32),
            n1_b=jnp.zeros((1, C), jnp.float32),
            n2_w=jnp.ones((1, C), jnp.float32),
            n2_b=jnp.zeros((1, C), jnp.float32),
        )

    return dict(
        diff_w=dense((diffusion_embedding_dim, C), diffusion_embedding_dim),   # Linear
        diff_b=jnp.zeros((1, C), jnp.float32),
        cond_w=dense((side_dim, 2 * C), side_dim),                             # Conv1d k=1
        cond_b=jnp.zeros((1, 2 * C), jnp.float32),
        mid_w=dense((C, 2 * C), C),                                            # Conv1d k=1
        mid_b=jnp.zeros((1, 2 * C), jnp.float32),
        out_w=dense((C, 2 * C), C),                                            # Conv1d k=1
        out_b=jnp.zeros((1, 2 * C), jnp.float32),
        time_layer=transformer_params(),
        feature_layer=transformer_params(),
    )


# ------------------------- pure-JAX reference (checks) -----------------------

def _ref_layernorm(x, g, b, eps=_LN_EPS):
    m = jnp.mean(x, axis=-1, keepdims=True)
    v = jnp.mean((x - m) ** 2, axis=-1, keepdims=True)
    return (x - m) / jnp.sqrt(v + eps) * g + b


def _ref_encoder_layer(x, w, nheads):
    """x: (groups, seq, C); PyTorch TransformerEncoderLayer, post-LN, exact GELU, eval."""
    G, S, C = x.shape
    dh = C // nheads
    qkv = x @ w['in_w'] + w['in_b']
    q, k, v = qkv[..., :C], qkv[..., C:2 * C], qkv[..., 2 * C:]

    def split(t):
        return t.reshape(G, S, nheads, dh).transpose(0, 2, 1, 3)

    q, k, v = split(q) / math.sqrt(dh), split(k), split(v)
    a = jax.nn.softmax(q @ jnp.swapaxes(k, -1, -2), axis=-1)
    o = (a @ v).transpose(0, 2, 1, 3).reshape(G, S, C)
    o = o @ w['out_w'] + w['out_b']
    h = _ref_layernorm(x + o, w['n1_w'], w['n1_b'])
    ff = jax.nn.gelu(h @ w['ff1_w'] + w['ff1_b'], approximate=False)
    ff = ff @ w['ff2_w'] + w['ff2_b']
    return _ref_layernorm(h + ff, w['n2_w'], w['n2_b'])


def residual_block_reference(x, cond_info, diffusion_emb, params, nheads):
    """Pure-JAX replica of the PyTorch ResidualBlock.forward (eval mode)."""
    B, C, K, L = x.shape
    demb = diffusion_emb @ params['diff_w'] + params['diff_b']       # (B, C)
    y = x + demb[:, :, None, None]
    if L > 1:
        yt = y.transpose(0, 2, 3, 1).reshape(B * K, L, C)
        yt = _ref_encoder_layer(yt, params['time_layer'], nheads)
        y = yt.reshape(B, K, L, C).transpose(0, 3, 1, 2)
    if K > 1:
        yf = y.transpose(0, 3, 2, 1).reshape(B * L, K, C)
        yf = _ref_encoder_layer(yf, params['feature_layer'], nheads)
        y = yf.reshape(B, L, K, C).transpose(0, 3, 2, 1)
    ycl = y.transpose(0, 2, 3, 1)
    ccl = cond_info.transpose(0, 2, 3, 1)
    z = ycl @ params['mid_w'] + params['mid_b'] + ccl @ params['cond_w'] + params['cond_b']
    g = jax.nn.sigmoid(z[..., :C]) * jnp.tanh(z[..., C:])
    o = g @ params['out_w'] + params['out_b']
    xcl = x.transpose(0, 2, 3, 1)
    res = ((xcl + o[..., :C]) / math.sqrt(2.0)).transpose(0, 3, 1, 2)
    skip = o[..., C:].transpose(0, 3, 1, 2)
    return res, skip


# ---------------------------------- main --------------------------------------

if __name__ == "__main__":
    B, C, K, L = 2, 64, 4, 8
    side_dim = 16
    diffusion_embedding_dim = 32
    nheads = 8

    key = jax.random.PRNGKey(0)
    kx, kc, kd, kp = jax.random.split(key, 4)
    x = jax.random.normal(kx, (B, C, K, L), jnp.float32)
    cond_info = jax.random.normal(kc, (B, side_dim, K, L), jnp.float32)
    diffusion_emb = jax.random.normal(kd, (B, diffusion_embedding_dim), jnp.float32)

    params = init_params(kp, side_dim, C, diffusion_embedding_dim)

    fwd = jax.jit(functools.partial(residual_block_forward, nheads=nheads))
    res, skip = fwd(x, cond_info, diffusion_emb, params)
    jax.block_until_ready((res, skip))

    assert res.shape == (B, C, K, L) and skip.shape == (B, C, K, L)
    assert res.dtype == jnp.float32 and skip.dtype == jnp.float32
    assert bool(jnp.isfinite(res).all()) and bool(jnp.isfinite(skip).all())

    # Numerical check vs a pure-JAX replica of the PyTorch forward (loose tolerance:
    # approx-reciprocal softmax + erf approximation are intentionally not bit-exact).
    res_ref, skip_ref = residual_block_reference(x, cond_info, diffusion_emb, params, nheads)
    np.testing.assert_allclose(np.asarray(res), np.asarray(res_ref), rtol=3e-2, atol=3e-2)
    np.testing.assert_allclose(np.asarray(skip), np.asarray(skip_ref), rtol=3e-2, atol=3e-2)

    print("KERNEL_OK")
</pallas_src>

<mosaic_0001>
module attributes {stable_mosaic.version = 11 : i64} {
  func.func @_residual_block_kernel(%arg0: i32, %arg1: memref<1x32x64xf32, #tpu.memory_space<vmem>>, %arg2: memref<1x32x16xf32, #tpu.memory_space<vmem>>, %arg3: memref<1x1x64xf32, #tpu.memory_space<vmem>>, %arg4: memref<256x1xi32, #tpu.memory_space<vmem>>, %arg5: memref<1x32xi32, #tpu.memory_space<vmem>>, %arg6: memref<256x1xi32, #tpu.memory_space<vmem>>, %arg7: memref<1x32xi32, #tpu.memory_space<vmem>>, %arg8: memref<64x128xf32, #tpu.memory_space<vmem>>, %arg9: memref<1x128xf32, #tpu.memory_space<vmem>>, %arg10: memref<16x128xf32, #tpu.memory_space<vmem>>, %arg11: memref<1x128xf32, #tpu.memory_space<vmem>>, %arg12: memref<64x128xf32, #tpu.memory_space<vmem>>, %arg13: memref<1x128xf32, #tpu.memory_space<vmem>>, %arg14: memref<64x192xf32, #tpu.memory_space<vmem>>, %arg15: memref<1x192xf32, #tpu.memory_space<vmem>>, %arg16: memref<64x64xf32, #tpu.memory_space<vmem>>, %arg17: memref<1x64xf32, #tpu.memory_space<vmem>>, %arg18: memref<64x64xf32, #tpu.memory_space<vmem>>, %arg19: memref<1x64xf32, #tpu.memory_space<vmem>>, %arg20: memref<64x64xf32, #tpu.memory_space<vmem>>, %arg21: memref<1x64xf32, #tpu.memory_space<vmem>>, %arg22: memref<1x64xf32, #tpu.memory_space<vmem>>, %arg23: memref<1x64xf32, #tpu.memory_space<vmem>>, %arg24: memref<1x64xf32, #tpu.memory_space<vmem>>, %arg25: memref<1x64xf32, #tpu.memory_space<vmem>>, %arg26: memref<64x192xf32, #tpu.memory_space<vmem>>, %arg27: memref<1x192xf32, #tpu.memory_space<vmem>>, %arg28: memref<64x64xf32, #tpu.memory_space<vmem>>, %arg29: memref<1x64xf32, #tpu.memory_space<vmem>>, %arg30: memref<64x64xf32, #tpu.memory_space<vmem>>, %arg31: memref<1x64xf32, #tpu.memory_space<vmem>>, %arg32: memref<64x64xf32, #tpu.memory_space<vmem>>, %arg33: memref<1x64xf32, #tpu.memory_space<vmem>>, %arg34: memref<1x64xf32, #tpu.memory_space<vmem>>, %arg35: memref<1x64xf32, #tpu.memory_space<vmem>>, %arg36: memref<1x64xf32, #tpu.memory_space<vmem>>, %arg37: memref<1x64xf32, #tpu.memory_space<vmem>>, %arg38: memref<1x32x128xf32, #tpu.memory_space<vmem>>) attributes {dimension_semantics = [#tpu.dimension_semantics<parallel>], iteration_bounds = array<i64: 2>, scalar_prefetch = 0 : i64, scratch_operands = 0 : i64, tpu.core_type = #tpu.core_type<tc>, window_params = [{transform_indices = @transform_0, window_bounds = array<i64: 1, 32, 64>}, {transform_indices = @transform_1, window_bounds = array<i64: 1, 32, 16>}, {transform_indices = @transform_2, window_bounds = array<i64: 1, 1, 64>}, {pipeline_mode = #tpu.pipeline_mode<synchronous>, transform_indices = @transform_3, window_bounds = array<i64: 256, 1>}, {pipeline_mode = #tpu.pipeline_mode<synchronous>, transform_indices = @transform_4, window_bounds = array<i64: 1, 32>}, {pipeline_mode = #tpu.pipeline_mode<synchronous>, transform_indices = @transform_5, window_bounds = array<i64: 256, 1>}, {pipeline_mode = #tpu.pipeline_mode<synchronous>, transform_indices = @transform_6, window_bounds = array<i64: 1, 32>}, {pipeline_mode = #tpu.pipeline_mode<synchronous>, transform_indices = @transform_7, window_bounds = array<i64: 64, 128>}, {pipeline_mode = #tpu.pipeline_mode<synchronous>, transform_indices = @transform_8, window_bounds = array<i64: 1, 128>}, {pipeline_mode = #tpu.pipeline_mode<synchronous>, transform_indices = @transform_9, window_bounds = array<i64: 16, 128>}, {pipeline_mode = #tpu.pipeline_mode<synchronous>, transform_indices = @transform_10, window_bounds = array<i64: 1, 128>}, {pipeline_mode = #tpu.pipeline_mode<synchronous>, transform_indices = @transform_11, window_bounds = array<i64: 64, 128>}, {pipeline_mode = #tpu.pipeline_mode<synchronous>, transform_indices = @transform_12, window_bounds = array<i64: 1, 128>}, {pipeline_mode = #tpu.pipeline_mode<synchronous>, transform_indices = @transform_13, window_bounds = array<i64: 64, 192>}, {pipeline_mode = #tpu.pipeline_mode<synchronous>, transform_indices = @transform_14, window_bounds = array<i64: 1, 192>}, {pipeline_mode = #tpu.pipeline_mode<synchronous>, transform_indices = @transform_15, window_bounds = array<i64: 64, 64>}, {pipeline_mode = #tpu.pipeline_mode<synchronous>, transform_indices = @transform_16, window_bounds = array<i64: 1, 64>}, {pipeline_mode = #tpu.pipeline_mode<synchronous>, transform_indices = @transform_17, window_bounds = array<i64: 64, 64>}, {pipeline_mode = #tpu.pipeline_mode<synchronous>, transform_indices = @transform_18, window_bounds = array<i64: 1, 64>}, {pipeline_mode = #tpu.pipeline_mode<synchronous>, transform_indices = @transform_19, window_bounds = array<i64: 64, 64>}, {pipeline_mode = #tpu.pipeline_mode<synchronous>, transform_indices = @transform_20, window_bounds = array<i64: 1, 64>}, {pipeline_mode = #tpu.pipeline_mode<synchronous>, transform_indices = @transform_21, window_bounds = array<i64: 1, 64>}, {pipeline_mode = #tpu.pipeline_mode<synchronous>, transform_indices = @transform_22, window_bounds = array<i64: 1, 64>}, {pipeline_mode = #tpu.pipeline_mode<synchronous>, transform_indices = @transform_23, window_bounds = array<i64: 1, 64>}, {pipeline_mode = #tpu.pipeline_mode<synchronous>, transform_indices = @transform_24, window_bounds = array<i64: 1, 64>}, {pipeline_mode = #tpu.pipeline_mode<synchronous>, transform_indices = @transform_25, window_bounds = array<i64: 64, 192>}, {pipeline_mode = #tpu.pipeline_mode<synchronous>, transform_indices = @transform_26, window_bounds = array<i64: 1, 192>}, {pipeline_mode = #tpu.pipeline_mode<synchronous>, transform_indices = @transform_27, window_bounds = array<i64: 64, 64>}, {pipeline_mode = #tpu.pipeline_mode<synchronous>, transform_indices = @transform_28, window_bounds = array<i64: 1, 64>}, {pipeline_mode = #tpu.pipeline_mode<synchronous>, transform_indices = @transform_29, window_bounds = array<i64: 64, 64>}, {pipeline_mode = #tpu.pipeline_mode<synchronous>, transform_indices = @transform_30, window_bounds = array<i64: 1, 64>}, {pipeline_mode = #tpu.pipeline_mode<synchronous>, transform_indices = @transform_31, window_bounds = array<i64: 64, 64>}, {pipeline_mode = #tpu.pipeline_mode<synchronous>, transform_indices = @transform_32, window_bounds = array<i64: 1, 64>}, {pipeline_mode = #tpu.pipeline_mode<synchronous>, transform_indices = @transform_33, window_bounds = array<i64: 1, 64>}, {pipeline_mode = #tpu.pipeline_mode<synchronous>, transform_indices = @transform_34, window_bounds = array<i64: 1, 64>}, {pipeline_mode = #tpu.pipeline_mode<synchronous>, transform_indices = @transform_35, window_bounds = array<i64: 1, 64>}, {pipeline_mode = #tpu.pipeline_mode<synchronous>, transform_indices = @transform_36, window_bounds = array<i64: 1, 64>}, {transform_indices = @transform_37, window_bounds = array<i64: 1, 32, 128>}]} {
    %c0 = arith.constant 0 : index
    %c0_0 = arith.constant 0 : index
    %c0_1 = arith.constant 0 : index
    %0 = vector.load %arg1[%c0, %c0_0, %c0_1] : memref<1x32x64xf32, #tpu.memory_space<vmem>>, vector<1x32x64xf32>
    %1 = vector.shape_cast %0 : vector<1x32x64xf32> to vector<32x64xf32>
    %c0_2 = arith.constant 0 : index
    %c0_3 = arith.constant 0 : index
    %c0_4 = arith.constant 0 : index
    %2 = vector.load %arg2[%c0_2, %c0_3, %c0_4] : memref<1x32x16xf32, #tpu.memory_space<vmem>>, vector<1x32x16xf32>
    %3 = vector.shape_cast %2 : vector<1x32x16xf32> to vector<32x16xf32>
    %c0_5 = arith.constant 0 : index
    %c0_6 = arith.constant 0 : index
    %c0_7 = arith.constant 0 : index
    %4 = vector.load %arg3[%c0_5, %c0_6, %c0_7] : memref<1x1x64xf32, #tpu.memory_space<vmem>>, vector<1x1x64xf32>
    %5 = vector.broadcast %4 : vector<1x1x64xf32> to vector<1x32x64xf32>
    %6 = arith.addf %0, %5 : vector<1x32x64xf32>
    %7 = vector.shape_cast %6 : vector<1x32x64xf32> to vector<32x64xf32>
    %8 = tpu.iota {dimensions = array<i32: 2>} : vector<8x1x64xi32>
    %9 = tpu.iota {dimensions = array<i32: 0>} : vector<8x1x64xi32>
    %c8_i32 = arith.constant 8 : i32
    %10 = vector.broadcast %c8_i32 : i32 to vector<8x1x64xi32>
    %11 = arith.muli %9, %10 : vector<8x1x64xi32>
    %12 = arith.cmpi sge, %8, %11 : vector<8x1x64xi32>
    %c1_i32 = arith.constant 1 : i32
    %13 = vector.broadcast %c1_i32 : i32 to vector<8x1x64xi32>
    %14 = arith.addi %9, %13 : vector<8x1x64xi32>
    %c8_i32_8 = arith.constant 8 : i32
    %15 = vector.broadcast %c8_i32_8 : i32 to vector<8x1x64xi32>
    %16 = arith.muli %14, %15 : vector<8x1x64xi32>
    %17 = arith.cmpi slt, %8, %16 : vector<8x1x64xi32>
    %18 = arith.andi %12, %17 : vector<8x1x64xi1>
    %19 = arith.extui %18 : vector<8x1x64xi1> to vector<8x1x64xi32>
    %20 = arith.sitofp %19 : vector<8x1x64xi32> to vector<8x1x64xf32>
    %c0_9 = arith.constant 0 : index
    %c0_10 = arith.constant 0 : index
    %21 = vector.load %arg4[%c0_9, %c0_10] : memref<256x1xi32, #tpu.memory_space<vmem>>, vector<256x1xi32>
    %c0_11 = arith.constant 0 : index
    %c0_12 = arith.constant 0 : index
    %22 = vector.load %arg5[%c0_11, %c0_12] : memref<1x32xi32, #tpu.memory_space<vmem>>, vector<1x32xi32>
    %23 = vector.broadcast %21 : vector<256x1xi32> to vector<256x32xi32>
    %24 = vector.broadcast %22 : vector<1x32xi32> to vector<256x32xi32>
    %25 = arith.cmpi eq, %23, %24 : vector<256x32xi32>
    %c0_13 = arith.constant 0 : index
    %c0_14 = arith.constant 0 : index
    %26 = vector.load %arg14[%c0_13, %c0_14] : memref<64x192xf32, #tpu.memory_space<vmem>>, vector<64x192xf32>
    %cst = arith.constant dense<0.000000e+00> : vector<32x192xf32>
    %27 = tpu.matmul %7, %26, %cst {dimension_numbers = #tpu.dot_dimension_numbers<[1], [0], [0], [1], [0, 0, 1, 1], [], []>} : vector<32x64xf32>, vector<64x192xf32>, vector<32x192xf32> -> vector<32x192xf32>
    %c0_15 = arith.constant 0 : index
    %c0_16 = arith.constant 0 : index
    %28 = vector.load %arg15[%c0_15, %c0_16] : memref<1x192xf32, #tpu.memory_space<vmem>>, vector<1x192xf32>
    %29 = vector.broadcast %28 : vector<1x192xf32> to vector<32x192xf32>
    %30 = arith.addf %27, %29 : vector<32x192xf32>
    %31 = vector.extract_strided_slice %30 {offsets = [0, 0], sizes = [32, 64], strides = [1, 1]} : vector<32x192xf32> to vector<32x64xf32>
    %cst_17 = arith.constant 0.353553385 : f32
    %32 = vector.broadcast %cst_17 : f32 to vector<32x64xf32>
    %33 = arith.mulf %31, %32 : vector<32x64xf32>
    %34 = vector.extract_strided_slice %30 {offsets = [0, 64], sizes = [32, 64], strides = [1, 1]} : vector<32x192xf32> to vector<32x64xf32>
    %35 = vector.extract_strided_slice %30 {offsets = [0, 128], sizes = [32, 64], strides = [1, 1]} : vector<32x192xf32> to vector<32x64xf32>
    %36 = vector.shape_cast %33 : vector<32x64xf32> to vector<1x32x64xf32>
    %37 = vector.broadcast %36 : vector<1x32x64xf32> to vector<8x32x64xf32>
    %38 = vector.broadcast %20 : vector<8x1x64xf32> to vector<8x32x64xf32>
    %39 = arith.mulf %37, %38 : vector<8x32x64xf32>
    %40 = vector.shape_cast %39 : vector<8x32x64xf32> to vector<256x64xf32>
    %cst_18 = arith.constant dense<0.000000e+00> : vector<256x32xf32>
    %41 = tpu.matmul %40, %34, %cst_18 {dimension_numbers = #tpu.dot_dimension_numbers<[1], [1], [0], [0], [0, 0, 1, 0], [], []>} : vector<256x64xf32>, vector<32x64xf32>, vector<256x32xf32> -> vector<256x32xf32>
    %cst_19 = arith.constant 0xFF800000 : f32
    %42 = vector.broadcast %cst_19 : f32 to vector<256x32xf32>
    %43 = arith.select %25, %41, %42 : vector<256x32xi1>, vector<256x32xf32>
    %cst_20 = arith.constant dense<0xFF800000> : vector<256xf32>
    %44 = vector.multi_reduction <maximumf>, %43, %cst_20 [1] : vector<256x32xf32> to vector<256xf32>
    %45 = vector.shape_cast %44 : vector<256xf32> to vector<256x1xf32>
    %46 = vector.broadcast %45 : vector<256x1xf32> to vector<256x32xf32>
    %47 = arith.subf %43, %46 : vector<256x32xf32>
    %48 = math.exp %47 : vector<256x32xf32>
    %cst_21 = arith.constant dense<0.000000e+00> : vector<256xf32>
    %49 = vector.multi_reduction <add>, %48, %cst_21 [1] : vector<256x32xf32> to vector<256xf32>
    %50 = vector.shape_cast %49 : vector<256xf32> to vector<256x1xf32>
    %51 = tpu.reciprocal %50 {approx = true} : vector<256x1xf32> -> vector<256x1xf32>
    %52 = vector.broadcast %51 : vector<256x1xf32> to vector<256x32xf32>
    %53 = arith.mulf %48, %52 : vector<256x32xf32>
    %cst_22 = arith.constant dense<0.000000e+00> : vector<256x64xf32>
    %54 = tpu.matmul %53, %35, %cst_22 {dimension_numbers = #tpu.dot_dimension_numbers<[1], [0], [0], [1], [0, 0, 1, 1], [], []>} : vector<256x32xf32>, vector<32x64xf32>, vector<256x64xf32> -> vector<256x64xf32>
    %55 = vector.shape_cast %54 : vector<256x64xf32> to vector<8x32x64xf32>
    %56 = vector.broadcast %20 : vector<8x1x64xf32> to vector<8x32x64xf32>
    %57 = arith.mulf %55, %56 : vector<8x32x64xf32>
    %cst_23 = arith.constant dense<0.000000e+00> : vector<32x64xf32>
    %58 = vector.multi_reduction <add>, %57, %cst_23 [0] : vector<8x32x64xf32> to vector<32x64xf32>
    %c0_24 = arith.constant 0 : index
    %c0_25 = arith.constant 0 : index
    %59 = vector.load %arg16[%c0_24, %c0_25] : memref<64x64xf32, #tpu.memory_space<vmem>>, vector<64x64xf32>
    %cst_26 = arith.constant dense<0.000000e+00> : vector<32x64xf32>
    %60 = tpu.matmul %58, %59, %cst_26 {dimension_numbers = #tpu.dot_dimension_numbers<[1], [0], [0], [1], [0, 0, 1, 1], [], []>} : vector<32x64xf32>, vector<64x64xf32>, vector<32x64xf32> -> vector<32x64xf32>
    %c0_27 = arith.constant 0 : index
    %c0_28 = arith.constant 0 : index
    %61 = vector.load %arg17[%c0_27, %c0_28] : memref<1x64xf32, #tpu.memory_space<vmem>>, vector<1x64xf32>
    %62 = vector.broadcast %61 : vector<1x64xf32> to vector<32x64xf32>
    %63 = arith.addf %60, %62 : vector<32x64xf32>
    %64 = arith.addf %7, %63 : vector<32x64xf32>
    %c0_29 = arith.constant 0 : index
    %c0_30 = arith.constant 0 : index
    %65 = vector.load %arg22[%c0_29, %c0_30] : memref<1x64xf32, #tpu.memory_space<vmem>>, vector<1x64xf32>
    %c0_31 = arith.constant 0 : index
    %c0_32 = arith.constant 0 : index
    %66 = vector.load %arg23[%c0_31, %c0_32] : memref<1x64xf32, #tpu.memory_space<vmem>>, vector<1x64xf32>
    %cst_33 = arith.constant dense<0.000000e+00> : vector<32xf32>
    %67 = vector.multi_reduction <add>, %64, %cst_33 [1] : vector<32x64xf32> to vector<32xf32>
    %68 = vector.shape_cast %67 : vector<32xf32> to vector<32x1xf32>
    %cst_34 = arith.constant 6.400000e+01 : f32
    %69 = vector.broadcast %cst_34 : f32 to vector<32x1xf32>
    %70 = arith.divf %68, %69 : vector<32x1xf32>
    %71 = vector.broadcast %70 : vector<32x1xf32> to vector<32x64xf32>
    %72 = arith.subf %64, %71 : vector<32x64xf32>
    %73 = arith.mulf %72, %72 : vector<32x64xf32>
    %cst_35 = arith.constant dense<0.000000e+00> : vector<32xf32>
    %74 = vector.multi_reduction <add>, %73, %cst_35 [1] : vector<32x64xf32> to vector<32xf32>
    %75 = vector.shape_cast %74 : vector<32xf32> to vector<32x1xf32>
    %cst_36 = arith.constant 6.400000e+01 : f32
    %76 = vector.broadcast %cst_36 : f32 to vector<32x1xf32>
    %77 = arith.divf %75, %76 : vector<32x1xf32>
    %cst_37 = arith.constant 9.99999974E-6 : f32
    %78 = vector.broadcast %cst_37 : f32 to vector<32x1xf32>
    %79 = arith.addf %77, %78 : vector<32x1xf32>
    %80 = math.rsqrt %79 : vector<32x1xf32>
    %81 = vector.broadcast %80 : vector<32x1xf32> to vector<32x64xf32>
    %82 = arith.mulf %72, %81 : vector<32x64xf32>
    %83 = vector.broadcast %65 : vector<1x64xf32> to vector<32x64xf32>
    %84 = arith.mulf %82, %83 : vector<32x64xf32>
    %85 = vector.broadcast %66 : vector<1x64xf32> to vector<32x64xf32>
    %86 = arith.addf %84, %85 : vector<32x64xf32>
    %c0_38 = arith.constant 0 : index
    %c0_39 = arith.constant 0 : index
    %87 = vector.load %arg18[%c0_38, %c0_39] : memref<64x64xf32, #tpu.memory_space<vmem>>, vector<64x64xf32>
    %cst_40 = arith.constant dense<0.000000e+00> : vector<32x64xf32>
    %88 = tpu.matmul %86, %87, %cst_40 {dimension_numbers = #tpu.dot_dimension_numbers<[1], [0], [0], [1], [0, 0, 1, 1], [], []>} : vector<32x64xf32>, vector<64x64xf32>, vector<32x64xf32> -> vector<32x64xf32>
    %c0_41 = arith.constant 0 : index
    %c0_42 = arith.constant 0 : index
    %89 = vector.load %arg19[%c0_41, %c0_42] : memref<1x64xf32, #tpu.memory_space<vmem>>, vector<1x64xf32>
    %90 = vector.broadcast %89 : vector<1x64xf32> to vector<32x64xf32>
    %91 = arith.addf %88, %90 : vector<32x64xf32>
    %cst_43 = arith.constant 5.000000e-01 : f32
    %92 = vector.broadcast %cst_43 : f32 to vector<32x64xf32>
    %93 = arith.mulf %92, %91 : vector<32x64xf32>
    %cst_44 = arith.constant 0.707106769 : f32
    %94 = vector.broadcast %cst_44 : f32 to vector<32x64xf32>
    %95 = arith.mulf %91, %94 : vector<32x64xf32>
    %96 = math.absf %95 : vector<32x64xf32>
    %cst_45 = arith.constant 0.327591091 : f32
    %97 = vector.broadcast %cst_45 : f32 to vector<32x64xf32>
    %98 = arith.mulf %97, %96 : vector<32x64xf32>
    %cst_46 = arith.constant 1.000000e+00 : f32
    %99 = vector.broadcast %cst_46 : f32 to vector<32x64xf32>
    %100 = arith.addf %99, %98 : vector<32x64xf32>
    %cst_47 = arith.constant 1.000000e+00 : f32
    %101 = vector.broadcast %cst_47 : f32 to vector<32x64xf32>
    %102 = arith.divf %101, %100 : vector<32x64xf32>
    %cst_48 = arith.constant 1.06140542 : f32
    %103 = vector.broadcast %cst_48 : f32 to vector<32x64xf32>
    %104 = arith.mulf %103, %102 : vector<32x64xf32>
    %cst_49 = arith.constant -1.45315206 : f32
    %105 = vector.broadcast %cst_49 : f32 to vector<32x64xf32>
    %106 = arith.addf %104, %105 : vector<32x64xf32>
    %107 = arith.mulf %106, %102 : vector<32x64xf32>
    %cst_50 = arith.constant 1.42141378 : f32
    %108 = vector.broadcast %cst_50 : f32 to vector<32x64xf32>
    %109 = arith.addf %107, %108 : vector<32x64xf32>
    %110 = arith.mulf %109, %102 : vector<32x64xf32>
    %cst_51 = arith.constant -0.284496725 : f32
    %111 = vector.broadcast %cst_51 : f32 to vector<32x64xf32>
    %112 = arith.addf %110, %111 : vector<32x64xf32>
    %113 = arith.mulf %112, %102 : vector<32x64xf32>
    %cst_52 = arith.constant 0.254829586 : f32
    %114 = vector.broadcast %cst_52 : f32 to vector<32x64xf32>
    %115 = arith.addf %113, %114 : vector<32x64xf32>
    %116 = arith.mulf %115, %102 : vector<32x64xf32>
    %117 = arith.mulf %96, %96 : vector<32x64xf32>
    %cst_53 = arith.constant 0.000000e+00 : f32
    %118 = vector.broadcast %cst_53 : f32 to vector<32x64xf32>
    %119 = arith.subf %118, %117 : vector<32x64xf32>
    %120 = math.exp %119 : vector<32x64xf32>
    %121 = arith.mulf %116, %120 : vector<32x64xf32>
    %cst_54 = arith.constant 1.000000e+00 : f32
    %122 = vector.broadcast %cst_54 : f32 to vector<32x64xf32>
    %123 = arith.subf %122, %121 : vector<32x64xf32>
    %cst_55 = arith.constant 0.000000e+00 : f32
    %124 = vector.broadcast %cst_55 : f32 to vector<32x64xf32>
    %125 = arith.cmpf oge, %95, %124 : vector<32x64xf32>
    %cst_56 = arith.constant 0.000000e+00 : f32
    %126 = vector.broadcast %cst_56 : f32 to vector<32x64xf32>
    %127 = arith.subf %126, %123 : vector<32x64xf32>
    %128 = arith.select %125, %123, %127 : vector<32x64xi1>, vector<32x64xf32>
    %cst_57 = arith.constant 1.000000e+00 : f32
    %129 = vector.broadcast %cst_57 : f32 to vector<32x64xf32>
    %130 = arith.addf %129, %128 : vector<32x64xf32>
    %131 = arith.mulf %93, %130 : vector<32x64xf32>
    %c0_58 = arith.constant 0 : index
    %c0_59 = arith.constant 0 : index
    %132 = vector.load %arg20[%c0_58, %c0_59] : memref<64x64xf32, #tpu.memory_space<vmem>>, vector<64x64xf32>
    %cst_60 = arith.constant dense<0.000000e+00> : vector<32x64xf32>
    %133 = tpu.matmul %131, %132, %cst_60 {dimension_numbers = #tpu.dot_dimension_numbers<[1], [0], [0], [1], [0, 0, 1, 1], [], []>} : vector<32x64xf32>, vector<64x64xf32>, vector<32x64xf32> -> vector<32x64xf32>
    %c0_61 = arith.constant 0 : index
    %c0_62 = arith.constant 0 : index
    %134 = vector.load %arg21[%c0_61, %c0_62] : memref<1x64xf32, #tpu.memory_space<vmem>>, vector<1x64xf32>
    %135 = vector.broadcast %134 : vector<1x64xf32> to vector<32x64xf32>
    %136 = arith.addf %133, %135 : vector<32x64xf32>
    %137 = arith.addf %86, %136 : vector<32x64xf32>
    %c0_63 = arith.constant 0 : index
    %c0_64 = arith.constant 0 : index
    %138 = vector.load %arg24[%c0_63, %c0_64] : memref<1x64xf32, #tpu.memory_space<vmem>>, vector<1x64xf32>
    %c0_65 = arith.constant 0 : index
    %c0_66 = arith.constant 0 : index
    %139 = vector.load %arg25[%c0_65, %c0_66] : memref<1x64xf32, #tpu.memory_space<vmem>>, vector<1x64xf32>
    %cst_67 = arith.constant dense<0.000000e+00> : vector<32xf32>
    %140 = vector.multi_reduction <add>, %137, %cst_67 [1] : vector<32x64xf32> to vector<32xf32>
    %141 = vector.shape_cast %140 : vector<32xf32> to vector<32x1xf32>
    %cst_68 = arith.constant 6.400000e+01 : f32
    %142 = vector.broadcast %cst_68 : f32 to vector<32x1xf32>
    %143 = arith.divf %141, %142 : vector<32x1xf32>
    %144 = vector.broadcast %143 : vector<32x1xf32> to vector<32x64xf32>
    %145 = arith.subf %137, %144 : vector<32x64xf32>
    %146 = arith.mulf %145, %145 : vector<32x64xf32>
    %cst_69 = arith.constant dense<0.000000e+00> : vector<32xf32>
    %147 = vector.multi_reduction <add>, %146, %cst_69 [1] : vector<32x64xf32> to vector<32xf32>
    %148 = vector.shape_cast %147 : vector<32xf32> to vector<32x1xf32>
    %cst_70 = arith.constant 6.400000e+01 : f32
    %149 = vector.broadcast %cst_70 : f32 to vector<32x1xf32>
    %150 = arith.divf %148, %149 : vector<32x1xf32>
    %cst_71 = arith.constant 9.99999974E-6 : f32
    %151 = vector.broadcast %cst_71 : f32 to vector<32x1xf32>
    %152 = arith.addf %150, %151 : vector<32x1xf32>
    %153 = math.rsqrt %152 : vector<32x1xf32>
    %154 = vector.broadcast %153 : vector<32x1xf32> to vector<32x64xf32>
    %155 = arith.mulf %145, %154 : vector<32x64xf32>
    %156 = vector.broadcast %138 : vector<1x64xf32> to vector<32x64xf32>
    %157 = arith.mulf %155, %156 : vector<32x64xf32>
    %158 = vector.broadcast %139 : vector<1x64xf32> to vector<32x64xf32>
    %159 = arith.addf %157, %158 : vector<32x64xf32>
    %c0_72 = arith.constant 0 : index
    %c0_73 = arith.constant 0 : index
    %160 = vector.load %arg6[%c0_72, %c0_73] : memref<256x1xi32, #tpu.memory_space<vmem>>, vector<256x1xi32>
    %c0_74 = arith.constant 0 : index
    %c0_75 = arith.constant 0 : index
    %161 = vector.load %arg7[%c0_74, %c0_75] : memref<1x32xi32, #tpu.memory_space<vmem>>, vector<1x32xi32>
    %162 = vector.broadcast %160 : vector<256x1xi32> to vector<256x32xi32>
    %163 = vector.broadcast %161 : vector<1x32xi32> to vector<256x32xi32>
    %164 = arith.cmpi eq, %162, %163 : vector<256x32xi32>
    %c0_76 = arith.constant 0 : index
    %c0_77 = arith.constant 0 : index
    %165 = vector.load %arg26[%c0_76, %c0_77] : memref<64x192xf32, #tpu.memory_space<vmem>>, vector<64x192xf32>
    %cst_78 = arith.constant dense<0.000000e+00> : vector<32x192xf32>
    %166 = tpu.matmul %159, %165, %cst_78 {dimension_numbers = #tpu.dot_dimension_numbers<[1], [0], [0], [1], [0, 0, 1, 1], [], []>} : vector<32x64xf32>, vector<64x192xf32>, vector<32x192xf32> -> vector<32x192xf32>
    %c0_79 = arith.constant 0 : index
    %c0_80 = arith.constant 0 : index
    %167 = vector.load %arg27[%c0_79, %c0_80] : memref<1x192xf32, #tpu.memory_space<vmem>>, vector<1x192xf32>
    %168 = vector.broadcast %167 : vector<1x192xf32> to vector<32x192xf32>
    %169 = arith.addf %166, %168 : vector<32x192xf32>
    %170 = vector.extract_strided_slice %169 {offsets = [0, 0], sizes = [32, 64], strides = [1, 1]} : vector<32x192xf32> to vector<32x64xf32>
    %cst_81 = arith.constant 0.353553385 : f32
    %171 = vector.broadcast %cst_81 : f32 to vector<32x64xf32>
    %172 = arith.mulf %170, %171 : vector<32x64xf32>
    %173 = vector.extract_strided_slice %169 {offsets = [0, 64], sizes = [32, 64], strides = [1, 1]} : vector<32x192xf32> to vector<32x64xf32>
    %174 = vector.extract_strided_slice %169 {offsets = [0, 128], sizes = [32, 64], strides = [1, 1]} : vector<32x192xf32> to vector<32x64xf32>
    %175 = vector.shape_cast %172 : vector<32x64xf32> to vector<1x32x64xf32>
    %176 = vector.broadcast %175 : vector<1x32x64xf32> to vector<8x32x64xf32>
    %177 = vector.broadcast %20 : vector<8x1x64xf32> to vector<8x32x64xf32>
    %178 = arith.mulf %176, %177 : vector<8x32x64xf32>
    %179 = vector.shape_cast %178 : vector<8x32x64xf32> to vector<256x64xf32>
    %cst_82 = arith.constant dense<0.000000e+00> : vector<256x32xf32>
    %180 = tpu.matmul %179, %173, %cst_82 {dimension_numbers = #tpu.dot_dimension_numbers<[1], [1], [0], [0], [0, 0, 1, 0], [], []>} : vector<256x64xf32>, vector<32x64xf32>, vector<256x32xf32> -> vector<256x32xf32>
    %cst_83 = arith.constant 0xFF800000 : f32
    %181 = vector.broadcast %cst_83 : f32 to vector<256x32xf32>
    %182 = arith.select %164, %180, %181 : vector<256x32xi1>, vector<256x32xf32>
    %cst_84 = arith.constant dense<0xFF800000> : vector<256xf32>
    %183 = vector.multi_reduction <maximumf>, %182, %cst_84 [1] : vector<256x32xf32> to vector<256xf32>
    %184 = vector.shape_cast %183 : vector<256xf32> to vector<256x1xf32>
    %185 = vector.broadcast %184 : vector<256x1xf32> to vector<256x32xf32>
    %186 = arith.subf %182, %185 : vector<256x32xf32>
    %187 = math.exp %186 : vector<256x32xf32>
    %cst_85 = arith.constant dense<0.000000e+00> : vector<256xf32>
    %188 = vector.multi_reduction <add>, %187, %cst_85 [1] : vector<256x32xf32> to vector<256xf32>
    %189 = vector.shape_cast %188 : vector<256xf32> to vector<256x1xf32>
    %190 = tpu.reciprocal %189 {approx = true} : vector<256x1xf32> -> vector<256x1xf32>
    %191 = vector.broadcast %190 : vector<256x1xf32> to vector<256x32xf32>
    %192 = arith.mulf %187, %191 : vector<256x32xf32>
    %cst_86 = arith.constant dense<0.000000e+00> : vector<256x64xf32>
    %193 = tpu.matmul %192, %174, %cst_86 {dimension_numbers = #tpu.dot_dimension_numbers<[1], [0], [0], [1], [0, 0, 1, 1], [], []>} : vector<256x32xf32>, vector<32x64xf32>, vector<256x64xf32> -> vector<256x64xf32>
    %194 = vector.shape_cast %193 : vector<256x64xf32> to vector<8x32x64xf32>
    %195 = vector.broadcast %20 : vector<8x1x64xf32> to vector<8x32x64xf32>
    %196 = arith.mulf %194, %195 : vector<8x32x64xf32>
    %cst_87 = arith.constant dense<0.000000e+00> : vector<32x64xf32>
    %197 = vector.multi_reduction <add>, %196, %cst_87 [0] : vector<8x32x64xf32> to vector<32x64xf32>
    %c0_88 = arith.constant 0 : index
    %c0_89 = arith.constant 0 : index
    %198 = vector.load %arg28[%c0_88, %c0_89] : memref<64x64xf32, #tpu.memory_space<vmem>>, vector<64x64xf32>
    %cst_90 = arith.constant dense<0.000000e+00> : vector<32x64xf32>
    %199 = tpu.matmul %197, %198, %cst_90 {dimension_numbers = #tpu.dot_dimension_numbers<[1], [0], [0], [1], [0, 0, 1, 1], [], []>} : vector<32x64xf32>, vector<64x64xf32>, vector<32x64xf32> -> vector<32x64xf32>
    %c0_91 = arith.constant 0 : index
    %c0_92 = arith.constant 0 : index
    %200 = vector.load %arg29[%c0_91, %c0_92] : memref<1x64xf32, #tpu.memory_space<vmem>>, vector<1x64xf32>
    %201 = vector.broadcast %200 : vector<1x64xf32> to vector<32x64xf32>
    %202 = arith.addf %199, %201 : vector<32x64xf32>
    %203 = arith.addf %159, %202 : vector<32x64xf32>
    %c0_93 = arith.constant 0 : index
    %c0_94 = arith.constant 0 : index
    %204 = vector.load %arg34[%c0_93, %c0_94] : memref<1x64xf32, #tpu.memory_space<vmem>>, vector<1x64xf32>
    %c0_95 = arith.constant 0 : index
    %c0_96 = arith.constant 0 : index
    %205 = vector.load %arg35[%c0_95, %c0_96] : memref<1x64xf32, #tpu.memory_space<vmem>>, vector<1x64xf32>
    %cst_97 = arith.constant dense<0.000000e+00> : vector<32xf32>
    %206 = vector.multi_reduction <add>, %203, %cst_97 [1] : vector<32x64xf32> to vector<32xf32>
    %207 = vector.shape_cast %206 : vector<32xf32> to vector<32x1xf32>
    %cst_98 = arith.constant 6.400000e+01 : f32
    %208 = vector.broadcast %cst_98 : f32 to vector<32x1xf32>
    %209 = arith.divf %207, %208 : vector<32x1xf32>
    %210 = vector.broadcast %209 : vector<32x1xf32> to vector<32x64xf32>
    %211 = arith.subf %203, %210 : vector<32x64xf32>
    %212 = arith.mulf %211, %211 : vector<32x64xf32>
    %cst_99 = arith.constant dense<0.000000e+00> : vector<32xf32>
    %213 = vector.multi_reduction <add>, %212, %cst_99 [1] : vector<32x64xf32> to vector<32xf32>
    %214 = vector.shape_cast %213 : vector<32xf32> to vector<32x1xf32>
    %cst_100 = arith.constant 6.400000e+01 : f32
    %215 = vector.broadcast %cst_100 : f32 to vector<32x1xf32>
    %216 = arith.divf %214, %215 : vector<32x1xf32>
    %cst_101 = arith.constant 9.99999974E-6 : f32
    %217 = vector.broadcast %cst_101 : f32 to vector<32x1xf32>
    %218 = arith.addf %216, %217 : vector<32x1xf32>
    %219 = math.rsqrt %218 : vector<32x1xf32>
    %220 = vector.broadcast %219 : vector<32x1xf32> to vector<32x64xf32>
    %221 = arith.mulf %211, %220 : vector<32x64xf32>
    %222 = vector.broadcast %204 : vector<1x64xf32> to vector<32x64xf32>
    %223 = arith.mulf %221, %222 : vector<32x64xf32>
    %224 = vector.broadcast %205 : vector<1x64xf32> to vector<32x64xf32>
    %225 = arith.addf %223, %224 : vector<32x64xf32>
    %c0_102 = arith.constant 0 : index
    %c0_103 = arith.constant 0 : index
    %226 = vector.load %arg30[%c0_102, %c0_103] : memref<64x64xf32, #tpu.memory_space<vmem>>, vector<64x64xf32>
    %cst_104 = arith.constant dense<0.000000e+00> : vector<32x64xf32>
    %227 = tpu.matmul %225, %226, %cst_104 {dimension_numbers = #tpu.dot_dimension_numbers<[1], [0], [0], [1], [0, 0, 1, 1], [], []>} : vector<32x64xf32>, vector<64x64xf32>, vector<32x64xf32> -> vector<32x64xf32>
    %c0_105 = arith.constant 0 : index
    %c0_106 = arith.constant 0 : index
    %228 = vector.load %arg31[%c0_105, %c0_106] : memref<1x64xf32, #tpu.memory_space<vmem>>, vector<1x64xf32>
    %229 = vector.broadcast %228 : vector<1x64xf32> to vector<32x64xf32>
    %230 = arith.addf %227, %229 : vector<32x64xf32>
    %cst_107 = arith.constant 5.000000e-01 : f32
    %231 = vector.broadcast %cst_107 : f32 to vector<32x64xf32>
    %232 = arith.mulf %231, %230 : vector<32x64xf32>
    %cst_108 = arith.constant 0.707106769 : f32
    %233 = vector.broadcast %cst_108 : f32 to vector<32x64xf32>
    %234 = arith.mulf %230, %233 : vector<32x64xf32>
    %235 = math.absf %234 : vector<32x64xf32>
    %cst_109 = arith.constant 0.327591091 : f32
    %236 = vector.broadcast %cst_109 : f32 to vector<32x64xf32>
    %237 = arith.mulf %236, %235 : vector<32x64xf32>
    %cst_110 = arith.constant 1.000000e+00 : f32
    %238 = vector.broadcast %cst_110 : f32 to vector<32x64xf32>
    %239 = arith.addf %238, %237 : vector<32x64xf32>
    %cst_111 = arith.constant 1.000000e+00 : f32
    %240 = vector.broadcast %cst_111 : f32 to vector<32x64xf32>
    %241 = arith.divf %240, %239 : vector<32x64xf32>
    %cst_112 = arith.constant 1.06140542 : f32
    %242 = vector.broadcast %cst_112 : f32 to vector<32x64xf32>
    %243 = arith.mulf %242, %241 : vector<32x64xf32>
    %cst_113 = arith.constant -1.45315206 : f32
    %244 = vector.broadcast %cst_113 : f32 to vector<32x64xf32>
    %245 = arith.addf %243, %244 : vector<32x64xf32>
    %246 = arith.mulf %245, %241 : vector<32x64xf32>
    %cst_114 = arith.constant 1.42141378 : f32
    %247 = vector.broadcast %cst_114 : f32 to vector<32x64xf32>
    %248 = arith.addf %246, %247 : vector<32x64xf32>
    %249 = arith.mulf %248, %241 : vector<32x64xf32>
    %cst_115 = arith.constant -0.284496725 : f32
    %250 = vector.broadcast %cst_115 : f32 to vector<32x64xf32>
    %251 = arith.addf %249, %250 : vector<32x64xf32>
    %252 = arith.mulf %251, %241 : vector<32x64xf32>
    %cst_116 = arith.constant 0.254829586 : f32
    %253 = vector.broadcast %cst_116 : f32 to vector<32x64xf32>
    %254 = arith.addf %252, %253 : vector<32x64xf32>
    %255 = arith.mulf %254, %241 : vector<32x64xf32>
    %256 = arith.mulf %235, %235 : vector<32x64xf32>
    %cst_117 = arith.constant 0.000000e+00 : f32
    %257 = vector.broadcast %cst_117 : f32 to vector<32x64xf32>
    %258 = arith.subf %257, %256 : vector<32x64xf32>
    %259 = math.exp %258 : vector<32x64xf32>
    %260 = arith.mulf %255, %259 : vector<32x64xf32>
    %cst_118 = arith.constant 1.000000e+00 : f32
    %261 = vector.broadcast %cst_118 : f32 to vector<32x64xf32>
    %262 = arith.subf %261, %260 : vector<32x64xf32>
    %cst_119 = arith.constant 0.000000e+00 : f32
    %263 = vector.broadcast %cst_119 : f32 to vector<32x64xf32>
    %264 = arith.cmpf oge, %234, %263 : vector<32x64xf32>
    %cst_120 = arith.constant 0.000000e+00 : f32
    %265 = vector.broadcast %cst_120 : f32 to vector<32x64xf32>
    %266 = arith.subf %265, %262 : vector<32x64xf32>
    %267 = arith.select %264, %262, %266 : vector<32x64xi1>, vector<32x64xf32>
    %cst_121 = arith.constant 1.000000e+00 : f32
    %268 = vector.broadcast %cst_121 : f32 to vector<32x64xf32>
    %269 = arith.addf %268, %267 : vector<32x64xf32>
    %270 = arith.mulf %232, %269 : vector<32x64xf32>
    %c0_122 = arith.constant 0 : index
    %c0_123 = arith.constant 0 : index
    %271 = vector.load %arg32[%c0_122, %c0_123] : memref<64x64xf32, #tpu.memory_space<vmem>>, vector<64x64xf32>
    %cst_124 = arith.constant dense<0.000000e+00> : vector<32x64xf32>
    %272 = tpu.matmul %270, %271, %cst_124 {dimension_numbers = #tpu.dot_dimension_numbers<[1], [0], [0], [1], [0, 0, 1, 1], [], []>} : vector<32x64xf32>, vector<64x64xf32>, vector<32x64xf32> -> vector<32x64xf32>
    %c0_125 = arith.constant 0 : index
    %c0_126 = arith.constant 0 : index
    %273 = vector.load %arg33[%c0_125, %c0_126] : memref<1x64xf32, #tpu.memory_space<vmem>>, vector<1x64xf32>
    %274 = vector.broadcast %273 : vector<1x64xf32> to vector<32x64xf32>
    %275 = arith.addf %272, %274 : vector<32x64xf32>
    %276 = arith.addf %225, %275 : vector<32x64xf32>
    %c0_127 = arith.constant 0 : index
    %c0_128 = arith.constant 0 : index
    %277 = vector.load %arg36[%c0_127, %c0_128] : memref<1x64xf32, #tpu.memory_space<vmem>>, vector<1x64xf32>
    %c0_129 = arith.constant 0 : index
    %c0_130 = arith.constant 0 : index
    %278 = vector.load %arg37[%c0_129, %c0_130] : memref<1x64xf32, #tpu.memory_space<vmem>>, vector<1x64xf32>
    %cst_131 = arith.constant dense<0.000000e+00> : vector<32xf32>
    %279 = vector.multi_reduction <add>, %276, %cst_131 [1] : vector<32x64xf32> to vector<32xf32>
    %280 = vector.shape_cast %279 : vector<32xf32> to vector<32x1xf32>
    %cst_132 = arith.constant 6.400000e+01 : f32
    %281 = vector.broadcast %cst_132 : f32 to vector<32x1xf32>
    %282 = arith.divf %280, %281 : vector<32x1xf32>
    %283 = vector.broadcast %282 : vector<32x1xf32> to vector<32x64xf32>
    %284 = arith.subf %276, %283 : vector<32x64xf32>
    %285 = arith.mulf %284, %284 : vector<32x64xf32>
    %cst_133 = arith.constant dense<0.000000e+00> : vector<32xf32>
    %286 = vector.multi_reduction <add>, %285, %cst_133 [1] : vector<32x64xf32> to vector<32xf32>
    %287 = vector.shape_cast %286 : vector<32xf32> to vector<32x1xf32>
    %cst_134 = arith.constant 6.400000e+01 : f32
    %288 = vector.broadcast %cst_134 : f32 to vector<32x1xf32>
    %289 = arith.divf %287, %288 : vector<32x1xf32>
    %cst_135 = arith.constant 9.99999974E-6 : f32
    %290 = vector.broadcast %cst_135 : f32 to vector<32x1xf32>
    %291 = arith.addf %289, %290 : vector<32x1xf32>
    %292 = math.rsqrt %291 : vector<32x1xf32>
    %293 = vector.broadcast %292 : vector<32x1xf32> to vector<32x64xf32>
    %294 = arith.mulf %284, %293 : vector<32x64xf32>
    %295 = vector.broadcast %277 : vector<1x64xf32> to vector<32x64xf32>
    %296 = arith.mulf %294, %295 : vector<32x64xf32>
    %297 = vector.broadcast %278 : vector<1x64xf32> to vector<32x64xf32>
    %298 = arith.addf %296, %297 : vector<32x64xf32>
    %c0_136 = arith.constant 0 : index
    %c0_137 = arith.constant 0 : index
    %299 = vector.load %arg8[%c0_136, %c0_137] : memref<64x128xf32, #tpu.memory_space<vmem>>, vector<64x128xf32>
    %cst_138 = arith.constant dense<0.000000e+00> : vector<32x128xf32>
    %300 = tpu.matmul %298, %299, %cst_138 {dimension_numbers = #tpu.dot_dimension_numbers<[1], [0], [0], [1], [0, 0, 1, 1], [], []>} : vector<32x64xf32>, vector<64x128xf32>, vector<32x128xf32> -> vector<32x128xf32>
    %c0_139 = arith.constant 0 : index
    %c0_140 = arith.constant 0 : index
    %301 = vector.load %arg9[%c0_139, %c0_140] : memref<1x128xf32, #tpu.memory_space<vmem>>, vector<1x128xf32>
    %302 = vector.broadcast %301 : vector<1x128xf32> to vector<32x128xf32>
    %303 = arith.addf %300, %302 : vector<32x128xf32>
    %c0_141 = arith.constant 0 : index
    %c0_142 = arith.constant 0 : index
    %304 = vector.load %arg10[%c0_141, %c0_142] : memref<16x128xf32, #tpu.memory_space<vmem>>, vector<16x128xf32>
    %cst_143 = arith.constant dense<0.000000e+00> : vector<32x128xf32>
    %305 = tpu.matmul %3, %304, %cst_143 {dimension_numbers = #tpu.dot_dimension_numbers<[1], [0], [0], [1], [0, 0, 1, 1], [], []>} : vector<32x16xf32>, vector<16x128xf32>, vector<32x128xf32> -> vector<32x128xf32>
    %306 = arith.addf %303, %305 : vector<32x128xf32>
    %c0_144 = arith.constant 0 : index
    %c0_145 = arith.constant 0 : index
    %307 = vector.load %arg11[%c0_144, %c0_145] : memref<1x128xf32, #tpu.memory_space<vmem>>, vector<1x128xf32>
    %308 = vector.broadcast %307 : vector<1x128xf32> to vector<32x128xf32>
    %309 = arith.addf %306, %308 : vector<32x128xf32>
    %310 = vector.extract_strided_slice %309 {offsets = [0, 0], sizes = [32, 64], strides = [1, 1]} : vector<32x128xf32> to vector<32x64xf32>
    %311 = arith.negf %310 : vector<32x64xf32>
    %312 = math.exp %311 : vector<32x64xf32>
    %cst_146 = arith.constant 1.000000e+00 : f32
    %313 = vector.broadcast %cst_146 : f32 to vector<32x64xf32>
    %314 = arith.addf %313, %312 : vector<32x64xf32>
    %315 = arith.divf %313, %314 : vector<32x64xf32>
    %316 = vector.extract_strided_slice %309 {offsets = [0, 64], sizes = [32, 64], strides = [1, 1]} : vector<32x128xf32> to vector<32x64xf32>
    %317 = math.tanh %316 : vector<32x64xf32>
    %318 = arith.mulf %315, %317 : vector<32x64xf32>
    %c0_147 = arith.constant 0 : index
    %c0_148 = arith.constant 0 : index
    %319 = vector.load %arg12[%c0_147, %c0_148] : memref<64x128xf32, #tpu.memory_space<vmem>>, vector<64x128xf32>
    %cst_149 = arith.constant dense<0.000000e+00> : vector<32x128xf32>
    %320 = tpu.matmul %318, %319, %cst_149 {dimension_numbers = #tpu.dot_dimension_numbers<[1], [0], [0], [1], [0, 0, 1, 1], [], []>} : vector<32x64xf32>, vector<64x128xf32>, vector<32x128xf32> -> vector<32x128xf32>
    %c0_150 = arith.constant 0 : index
    %c0_151 = arith.constant 0 : index
    %321 = vector.load %arg13[%c0_150, %c0_151] : memref<1x128xf32, #tpu.memory_space<vmem>>, vector<1x128xf32>
    %322 = vector.broadcast %321 : vector<1x128xf32> to vector<32x128xf32>
    %323 = arith.addf %320, %322 : vector<32x128xf32>
    %324 = vector.extract_strided_slice %323 {offsets = [0, 0], sizes = [32, 64], strides = [1, 1]} : vector<32x128xf32> to vector<32x64xf32>
    %325 = arith.addf %1, %324 : vector<32x64xf32>
    %cst_152 = arith.constant 0.707106769 : f32
    %326 = vector.broadcast %cst_152 : f32 to vector<32x64xf32>
    %327 = arith.mulf %325, %326 : vector<32x64xf32>
    %328 = vector.extract_strided_slice %323 {offsets = [0, 64], sizes = [32, 64], strides = [1, 1]} : vector<32x128xf32> to vector<32x64xf32>
    %329 = tpu.concatenate %327, %328 in 1 : vector<32x64xf32>, vector<32x64xf32> -> vector<32x128xf32>
    %330 = vector.shape_cast %329 : vector<32x128xf32> to vector<1x32x128xf32>
    %c0_153 = arith.constant 0 : index
    %c0_154 = arith.constant 0 : index
    %c0_155 = arith.constant 0 : index
    %331 = vector.load %arg38[%c0_153, %c0_154, %c0_155] : memref<1x32x128xf32, #tpu.memory_space<vmem>>, vector<1x32x128xf32>
    tpu.vector_store %arg38[%c0_153, %c0_154, %c0_155], %330 {strides = array<i32>} : memref<1x32x128xf32, #tpu.memory_space<vmem>>, vector<1x32x128xf32>,
    return
  }
  func.func @transform_0(%arg0: i32) -> (i32, i32, i32) {
    %c0_i32 = arith.constant 0 : i32
    %c0_i32_0 = arith.constant 0 : i32
    %c0_i32_1 = arith.constant 0 : i32
    return %arg0, %c0_i32, %c0_i32_0 : i32, i32, i32
  }
  func.func @transform_1(%arg0: i32) -> (i32, i32, i32) {
    %c0_i32 = arith.constant 0 : i32
    %c0_i32_0 = arith.constant 0 : i32
    %c0_i32_1 = arith.constant 0 : i32
    return %arg0, %c0_i32, %c0_i32_0 : i32, i32, i32
  }
  func.func @transform_2(%arg0: i32) -> (i32, i32, i32) {
    %c0_i32 = arith.constant 0 : i32
    %c0_i32_0 = arith.constant 0 : i32
    %c0_i32_1 = arith.constant 0 : i32
    return %arg0, %c0_i32, %c0_i32_0 : i32, i32, i32
  }
  func.func @transform_3(%arg0: i32) -> (i32, i32) {
    %c0_i32 = arith.constant 0 : i32
    %c0_i32_0 = arith.constant 0 : i32
    %c0_i32_1 = arith.constant 0 : i32
    return %c0_i32, %c0_i32_0 : i32, i32
  }
  func.func @transform_4(%arg0: i32) -> (i32, i32) {
    %c0_i32 = arith.constant 0 : i32
    %c0_i32_0 = arith.constant 0 : i32
    %c0_i32_1 = arith.constant 0 : i32
    return %c0_i32, %c0_i32_0 : i32, i32
  }
  func.func @transform_5(%arg0: i32) -> (i32, i32) {
    %c0_i32 = arith.constant 0 : i32
    %c0_i32_0 = arith.constant 0 : i32
    %c0_i32_1 = arith.constant 0 : i32
    return %c0_i32, %c0_i32_0 : i32, i32
  }
  func.func @transform_6(%arg0: i32) -> (i32, i32) {
    %c0_i32 = arith.constant 0 : i32
    %c0_i32_0 = arith.constant 0 : i32
    %c0_i32_1 = arith.constant 0 : i32
    return %c0_i32, %c0_i32_0 : i32, i32
  }
  func.func @transform_7(%arg0: i32) -> (i32, i32) {
    %c0_i32 = arith.constant 0 : i32
    %c0_i32_0 = arith.constant 0 : i32
    %c0_i32_1 = arith.constant 0 : i32
    return %c0_i32, %c0_i32_0 : i32, i32
  }
  func.func @transform_8(%arg0: i32) -> (i32, i32) {
    %c0_i32 = arith.constant 0 : i32
    %c0_i32_0 = arith.constant 0 : i32
    %c0_i32_1 = arith.constant 0 : i32
    return %c0_i32, %c0_i32_0 : i32, i32
  }
  func.func @transform_9(%arg0: i32) -> (i32, i32) {
    %c0_i32 = arith.constant 0 : i32
    %c0_i32_0 = arith.constant 0 : i32
    %c0_i32_1 = arith.constant 0 : i32
    return %c0_i32, %c0_i32_0 : i32, i32
  }
  func.func @transform_10(%arg0: i32) -> (i32, i32) {
    %c0_i32 = arith.constant 0 : i32
    %c0_i32_0 = arith.constant 0 : i32
    %c0_i32_1 = arith.constant 0 : i32
    return %c0_i32, %c0_i32_0 : i32, i32
  }
  func.func @transform_11(%arg0: i32) -> (i32, i32) {
    %c0_i32 = arith.constant 0 : i32
    %c0_i32_0 = arith.constant 0 : i32
    %c0_i32_1 = arith.constant 0 : i32
    return %c0_i32, %c0_i32_0 : i32, i32
  }
  func.func @transform_12(%arg0: i32) -> (i32, i32) {
    %c0_i32 = arith.constant 0 : i32
    %c0_i32_0 = arith.constant 0 : i32
    %c0_i32_1 = arith.constant 0 : i32
    return %c0_i32, %c0_i32_0 : i32, i32
  }
  func.func @transform_13(%arg0: i32) -> (i32, i32) {
    %c0_i32 = arith.constant 0 : i32
    %c0_i32_0 = arith.constant 0 : i32
    %c0_i32_1 = arith.constant 0 : i32
    return %c0_i32, %c0_i32_0 : i32, i32
  }
  func.func @transform_14(%arg0: i32) -> (i32, i32) {
    %c0_i32 = arith.constant 0 : i32
    %c0_i32_0 = arith.constant 0 : i32
    %c0_i32_1 = arith.constant 0 : i32
    return %c0_i32, %c0_i32_0 : i32, i32
  }
  func.func @transform_15(%arg0: i32) -> (i32, i32) {
    %c0_i32 = arith.constant 0 : i32
    %c0_i32_0 = arith.constant 0 : i32
    %c0_i32_1 = arith.constant 0 : i32
    return %c0_i32, %c0_i32_0 : i32, i32
  }
  func.func @transform_16(%arg0: i32) -> (i32, i32) {
    %c0_i32 = arith.constant 0 : i32
    %c0_i32_0 = arith.constant 0 : i32
    %c0_i32_1 = arith.constant 0 : i32
    return %c0_i32, %c0_i32_0 : i32, i32
  }
  func.func @transform_17(%arg0: i32) -> (i32, i32) {
    %c0_i32 = arith.constant 0 : i32
    %c0_i32_0 = arith.constant 0 : i32
    %c0_i32_1 = arith.constant 0 : i32
    return %c0_i32, %c0_i32_0 : i32, i32
  }
  func.func @transform_18(%arg0: i32) -> (i32, i32) {
    %c0_i32 = arith.constant 0 : i32
    %c0_i32_0 = arith.constant 0 : i32
    %c0_i32_1 = arith.constant 0 : i32
    return %c0_i32, %c0_i32_0 : i32, i32
  }
  func.func @transform_19(%arg0: i32) -> (i32, i32) {
    %c0_i32 = arith.constant 0 : i32
    %c0_i32_0 = arith.constant 0 : i32
    %c0_i32_1 = arith.constant 0 : i32
    return %c0_i32, %c0_i32_0 : i32, i32
  }
  func.func @transform_20(%arg0: i32) -> (i32, i32) {
    %c0_i32 = arith.constant 0 : i32
    %c0_i32_0 = arith.constant 0 : i32
    %c0_i32_1 = arith.constant 0 : i32
    return %c0_i32, %c0_i32_0 : i32, i32
  }
  func.func @transform_21(%arg0: i32) -> (i32, i32) {
    %c0_i32 = arith.constant 0 : i32
    %c0_i32_0 = arith.constant 0 : i32
    %c0_i32_1 = arith.constant 0 : i32
    return %c0_i32, %c0_i32_0 : i32, i32
  }
  func.func @transform_22(%arg0: i32) -> (i32, i32) {
    %c0_i32 = arith.constant 0 : i32
    %c0_i32_0 = arith.constant 0 : i32
    %c0_i32_1 = arith.constant 0 : i32
    return %c0_i32, %c0_i32_0 : i32, i32
  }
  func.func @transform_23(%arg0: i32) -> (i32, i32) {
    %c0_i32 = arith.constant 0 : i32
    %c0_i32_0 = arith.constant 0 : i32
    %c0_i32_1 = arith.constant 0 : i32
    return %c0_i32, %c0_i32_0 : i32, i32
  }
  func.func @transform_24(%arg0: i32) -> (i32, i32) {
    %c0_i32 = arith.constant 0 : i32
    %c0_i32_0 = arith.constant 0 : i32
    %c0_i32_1 = arith.constant 0 : i32
    return %c0_i32, %c0_i32_0 : i32, i32
  }
  func.func @transform_25(%arg0: i32) -> (i32, i32) {
    %c0_i32 = arith.constant 0 : i32
    %c0_i32_0 = arith.constant 0 : i32
    %c0_i32_1 = arith.constant 0 : i32
    return %c0_i32, %c0_i32_0 : i32, i32
  }
  func.func @transform_26(%arg0: i32) -> (i32, i32) {
    %c0_i32 = arith.constant 0 : i32
    %c0_i32_0 = arith.constant 0 : i32
    %c0_i32_1 = arith.constant 0 : i32
    return %c0_i32, %c0_i32_0 : i32, i32
  }
  func.func @transform_27(%arg0: i32) -> (i32, i32) {
    %c0_i32 = arith.constant 0 : i32
    %c0_i32_0 = arith.constant 0 : i32
    %c0_i32_1 = arith.constant 0 : i32
    return %c0_i32, %c0_i32_0 : i32, i32
  }
  func.func @transform_28(%arg0: i32) -> (i32, i32) {
    %c0_i32 = arith.constant 0 : i32
    %c0_i32_0 = arith.constant 0 : i32
    %c0_i32_1 = arith.constant 0 : i32
    return %c0_i32, %c0_i32_0 : i32, i32
  }
  func.func @transform_29(%arg0: i32) -> (i32, i32) {
    %c0_i32 = arith.constant 0 : i32
    %c0_i32_0 = arith.constant 0 : i32
    %c0_i32_1 = arith.constant 0 : i32
    return %c0_i32, %c0_i32_0 : i32, i32
  }
  func.func @transform_30(%arg0: i32) -> (i32, i32) {
    %c0_i32 = arith.constant 0 : i32
    %c0_i32_0 = arith.constant 0 : i32
    %c0_i32_1 = arith.constant 0 : i32
    return %c0_i32, %c0_i32_0 : i32, i32
  }
  func.func @transform_31(%arg0: i32) -> (i32, i32) {
    %c0_i32 = arith.constant 0 : i32
    %c0_i32_0 = arith.constant 0 : i32
    %c0_i32_1 = arith.constant 0 : i32
    return %c0_i32, %c0_i32_0 : i32, i32
  }
  func.func @transform_32(%arg0: i32) -> (i32, i32) {
    %c0_i32 = arith.constant 0 : i32
    %c0_i32_0 = arith.constant 0 : i32
    %c0_i32_1 = arith.constant 0 : i32
    return %c0_i32, %c0_i32_0 : i32, i32
  }
  func.func @transform_33(%arg0: i32) -> (i32, i32) {
    %c0_i32 = arith.constant 0 : i32
    %c0_i32_0 = arith.constant 0 : i32
    %c0_i32_1 = arith.constant 0 : i32
    return %c0_i32, %c0_i32_0 : i32, i32
  }
  func.func @transform_34(%arg0: i32) -> (i32, i32) {
    %c0_i32 = arith.constant 0 : i32
    %c0_i32_0 = arith.constant 0 : i32
    %c0_i32_1 = arith.constant 0 : i32
    return %c0_i32, %c0_i32_0 : i32, i32
  }
  func.func @transform_35(%arg0: i32) -> (i32, i32) {
    %c0_i32 = arith.constant 0 : i32
    %c0_i32_0 = arith.constant 0 : i32
    %c0_i32_1 = arith.constant 0 : i32
    return %c0_i32, %c0_i32_0 : i32, i32
  }
  func.func @transform_36(%arg0: i32) -> (i32, i32) {
    %c0_i32 = arith.constant 0 : i32
    %c0_i32_0 = arith.constant 0 : i32
    %c0_i32_1 = arith.constant 0 : i32
    return %c0_i32, %c0_i32_0 : i32, i32
  }
  func.func @transform_37(%arg0: i32) -> (i32, i32, i32) {
    %c0_i32 = arith.constant 0 : i32
    %c0_i32_0 = arith.constant 0 : i32
    %c0_i32_1 = arith.constant 0 : i32
    return %arg0, %c0_i32, %c0_i32_0 : i32, i32, i32
  }
}

</mosaic_0001>

<llo_original>
// kernel: residual_block_forward.1
$region0: #{residual_block_forward.1}
  #allocation0 [shape = 'u32[]', space=smem, size = 0x4, offset = 0x4, fixed_abs, tag = 'smem constant byte address 0x4 - core index']
  #allocation1 [shape = 'u32[144,128]{1,0:T(1,128)}', space=vmem, size = 0x12000, scoped, tag = 'internal scratch']
  %s0 = inlined_call_operand.smem [shape: u32[38], index: -1, kind: input, shape index: {}]
  %s1 = sld [smem:[%s0]]
  %s2 = scalar_lea.smem %s0, 1
  %s3 = sld [smem:[%s2]]
  %s4 = scalar_lea.smem %s0, 2
  %s5 = sld [smem:[%s4]]
  %s6 = scalar_lea.smem %s0, 3
  %s7 = sld [smem:[%s6]]
  %s8 = scalar_lea.smem %s0, 4
  %s9 = sld [smem:[%s8]]
  %s10 = scalar_lea.smem %s0, 5
  %s11 = sld [smem:[%s10]]
  %s12 = scalar_lea.smem %s0, 6
  %s13 = sld [smem:[%s12]]
  %s14 = scalar_lea.smem %s0, 7
  %s15 = sld [smem:[%s14]]
  %s16 = scalar_lea.smem %s0, 8
  %s17 = sld [smem:[%s16]]
  %s18 = scalar_lea.smem %s0, 9
  %s19 = sld [smem:[%s18]]
  %s20 = scalar_lea.smem %s0, 10
  %s21 = sld [smem:[%s20]]
  %s22 = scalar_lea.smem %s0, 11
  %s23 = sld [smem:[%s22]]
  %s24 = scalar_lea.smem %s0, 12
  %s25 = sld [smem:[%s24]]
  %s26 = scalar_lea.smem %s0, 13
  %s27 = sld [smem:[%s26]]
  %s28 = scalar_lea.smem %s0, 14
  %s29 = sld [smem:[%s28]]
  %s30 = scalar_lea.smem %s0, 15
  %s31 = sld [smem:[%s30]]
  %s32 = scalar_lea.smem %s0, 16
  %s33 = sld [smem:[%s32]]
  %s34 = scalar_lea.smem %s0, 17
  %s35 = sld [smem:[%s34]]
  %s36 = scalar_lea.smem %s0, 18
  %s37 = sld [smem:[%s36]]
  %s38 = scalar_lea.smem %s0, 19
  %s39 = sld [smem:[%s38]]
  %s40 = scalar_lea.smem %s0, 20
  %s41 = sld [smem:[%s40]]
  %s42 = scalar_lea.smem %s0, 21
  %s43 = sld [smem:[%s42]]
  %s44 = scalar_lea.smem %s0, 22
  %s45 = sld [smem:[%s44]]
  %s46 = scalar_lea.smem %s0, 23
  %s47 = sld [smem:[%s46]]
  %s48 = scalar_lea.smem %s0, 24
  %s49 = sld [smem:[%s48]]
  %s50 = scalar_lea.smem %s0, 25
  %s51 = sld [smem:[%s50]]
  %s52 = scalar_lea.smem %s0, 26
  %s53 = sld [smem:[%s52]]
  %s54 = scalar_lea.smem %s0, 27
  %s55 = sld [smem:[%s54]]
  %s56 = scalar_lea.smem %s0, 28
  %s57 = sld [smem:[%s56]]
  %s58 = scalar_lea.smem %s0, 29
  %s59 = sld [smem:[%s58]]
  %s60 = scalar_lea.smem %s0, 30
  %s61 = sld [smem:[%s60]]
  %s62 = scalar_lea.smem %s0, 31
  %s63 = sld [smem:[%s62]]
  %s64 = scalar_lea.smem %s0, 32
  %s65 = sld [smem:[%s64]]
  %s66 = scalar_lea.smem %s0, 33
  %s67 = sld [smem:[%s66]]
  %s68 = scalar_lea.smem %s0, 34
  %s69 = sld [smem:[%s68]]
  %s70 = scalar_lea.smem %s0, 35
  %s71 = sld [smem:[%s70]]
  %s72 = scalar_lea.smem %s0, 36
  %s73 = sld [smem:[%s72]]
  %s74 = scalar_lea.smem %s0, 37
  %s75 = sld [smem:[%s74]]
  %s76 = sld [smem:[#allocation0]]
  $region261: #{residual_block_forward.1} parent=0
    _
  %s78 = ssub.s32 1, %s76
  %s79 = scalar_select 0, %s78, %s76
  $region1: #{residual_block_forward.1} parent=0
    #allocation2 [shape = 'u8[32768]{0}', space=vmem, size = 0x8000, scoped, tag = 'input window, operand 0']
    #allocation3 [shape = 's32[2]{0}', space=sflag, size = 0x8, scoped, tag = 'scoped memory for residual_block_forward.1']
    #allocation4 [shape = 'u8[32768]{0}', space=vmem, size = 0x8000, scoped, tag = 'input window, operand 1']
    #allocation5 [shape = 's32[2]{0}', space=sflag, size = 0x8, scoped, tag = 'scoped memory for residual_block_forward.1']
    #allocation6 [shape = 'u8[131072]{0}', space=vmem, size = 0x20000, scoped, tag = 'input window, operand 3, single buffered']
    #allocation7 [shape = 'u8[131072]{0}', space=vmem, size = 0x20000, scoped, tag = 'input window, operand 5, single buffered']
    #allocation8 [shape = 's32[1]{0}', space=sflag, size = 0x4, scoped, tag = 'scoped memory for residual_block_forward.1']
    #allocation9 [shape = 'u8[32768]{0}', space=vmem, size = 0x8000, scoped, tag = 'input window, operand 7, single buffered']
    #allocation10 [shape = 'u8[32768]{0}', space=vmem, size = 0x8000, scoped, tag = 'input window, operand 11, single buffered']
    #allocation11 [shape = 's32[1]{0}', space=sflag, size = 0x4, scoped, tag = 'scoped memory for residual_block_forward.1']
    #allocation12 [shape = 'u8[32768]{0}', space=vmem, size = 0x8000, scoped, tag = 'input window, operand 15, single buffered']
    #allocation13 [shape = 'u8[32768]{0}', space=vmem, size = 0x8000, scoped, tag = 'input window, operand 17, single buffered']
    #allocation14 [shape = 's32[1]{0}', space=sflag, size = 0x4, scoped, tag = 'scoped memory for residual_block_forward.1']
    #allocation15 [shape = 'u8[32768]{0}', space=vmem, size = 0x8000, scoped, tag = 'input window, operand 19, single buffered']
    #allocation16 [shape = 'u8[65536]{0}', space=vmem, size = 0x10000, scoped, tag = 'input window, operand 25, single buffered']
    #allocation17 [shape = 's32[1]{0}', space=sflag, size = 0x4, scoped, tag = 'scoped memory for residual_block_forward.1']
    #allocation18 [shape = 'u8[32768]{0}', space=vmem, size = 0x8000, scoped, tag = 'input window, operand 27, single buffered']
    #allocation19 [shape = 'u8[512]{0}', space=vmem, size = 0x400, scoped, tag = 'input window, operand 28, single buffered']
    #allocation20 [shape = 's32[1]{0}', space=sflag, size = 0x4, scoped, tag = 'scoped memory for residual_block_forward.1']
    #allocation21 [shape = 'u8[32768]{0}', space=vmem, size = 0x8000, scoped, tag = 'input window, operand 29, single buffered']
    #allocation22 [shape = 'u8[512]{0}', space=vmem, size = 0x400, scoped, tag = 'input window, operand 30, single buffered']
    #allocation23 [shape = 's32[1]{0}', space=sflag, size = 0x4, scoped, tag = 'scoped memory for residual_block_forward.1']
    #allocation24 [shape = 'u8[32768]{0}', space=vmem, size = 0x8000, scoped, tag = 'input window, operand 31, single buffered']
    #allocation25 [shape = 'u8[512]{0}', space=vmem, size = 0x400, scoped, tag = 'input window, operand 32, single buffered']
    #allocation26 [shape = 's32[1]{0}', space=sflag, size = 0x4, scoped, tag = 'scoped memory for residual_block_forward.1']
    #allocation27 [shape = 'u8[512]{0}', space=vmem, size = 0x400, scoped, tag = 'input window, operand 33, single buffered']
    #allocation28 [shape = 'u8[512]{0}', space=vmem, size = 0x400, scoped, tag = 'input window, operand 34, single buffered']
    #allocation29 [shape = 's32[1]{0}', space=sflag, size = 0x4, scoped, tag = 'scoped memory for residual_block_forward.1']
    #allocation30 [shape = 'u8[512]{0}', space=vmem, size = 0x400, scoped, tag = 'input window, operand 35, single buffered']
    #allocation31 [shape = 'u8[512]{0}', space=vmem, size = 0x400, scoped, tag = 'input window, operand 36, single buffered']
    #allocation32 [shape = 's32[1]{0}', space=sflag, size = 0x4, scoped, tag = 'scoped memory for residual_block_forward.1']
    %80 = vsyncpa [#allocation3], 0
    %s81 = scalar_lea.sflag [#allocation3], 1
    %82 = vsyncpa %s81, 0
    %83 = vsyncpa [#allocation5], 0
    %s84 = scalar_lea.sflag [#allocation5], 1
    %85 = vsyncpa %s84, 0
    %86 = vsyncpa [#allocation8], 0
    %87 = vsyncpa [#allocation11], 0
    %88 = vsyncpa [#allocation14], 0
    %89 = vsyncpa [#allocation17], 0
    %90 = vsyncpa [#allocation20], 0
    %91 = vsyncpa [#allocation23], 0
    %92 = vsyncpa [#allocation26], 0
    %93 = vsyncpa [#allocation29], 0
    %94 = vsyncpa [#allocation32], 0
    loop: start=0, step=1, limit=4
    $region2: #{residual_block_forward.1} parent=1 // loop_pre_header
      _
    $region3: #{residual_block_forward.1} parent=1 // loop_header
      %s96 = sphi 0, %s100
      %p97 = scmp.ge.s32.totalorder %s96, 4
      %s106 = sphi 0, %s108
      %s109 = sphi 0, %s106
      %s110 = sphi 0, %s109
      %s126 = sphi 0, %s110
      %s132 = sphi 0, %s134
      %s135 = sphi 0, %s132
      %s136 = sphi 0, %s135
      %s152 = sphi 0, %s136
      %s158 = sphi 0, %s160
      %s161 = sphi 0, %s158
      %s162 = sphi 0, %s161
      %s178 = sphi 0, %s162
      %s182 = sphi 0, %s182
      %s184 = sphi 0, %s182
      %s185 = sphi 0, %s184
      %s199 = sphi 0, %s185
      %s203 = sphi 0, %s203
      %s205 = sphi 0, %s203
      %s206 = sphi 0, %s205
      %s220 = sphi 0, %s206
      %s224 = sphi 0, %s224
      %s226 = sphi 0, %s224
      %s227 = sphi 0, %s226
      %s241 = sphi 0, %s227
      %s245 = sphi 0, %s245
      %s247 = sphi 0, %s245
      %s248 = sphi 0, %s247
      %s262 = sphi 0, %s248
      %s266 = sphi 0, %s266
      %s268 = sphi 0, %s266
      %s269 = sphi 0, %s268
      %s283 = sphi 0, %s269
      %s287 = sphi 0, %s287
      %s289 = sphi 0, %s287
      %s290 = sphi 0, %s289
      %s304 = sphi 0, %s290
      %s308 = sphi 0, %s308
      %s310 = sphi 0, %s308
      %s311 = sphi 0, %s310
      %s325 = sphi 0, %s311
      %s329 = sphi 0, %s329
      %s331 = sphi 0, %s329
      %s332 = sphi 0, %s331
      %s346 = sphi 0, %s332
      %s350 = sphi 0, %s350
      %s352 = sphi 0, %s350
      %s353 = sphi 0, %s352
      %s367 = sphi 0, %s353
      %s371 = sphi 0, %s371
      %s373 = sphi 0, %s371
      %s374 = sphi 0, %s373
      %s388 = sphi 0, %s374
      %s392 = sphi 0, %s392
      %s394 = sphi 0, %s392
      %s395 = sphi 0, %s394
      %s409 = sphi 0, %s395
      %s413 = sphi 0, %s413
      %s415 = sphi 0, %s413
      %s416 = sphi 0, %s415
      %s430 = sphi 0, %s416
      %s434 = sphi 0, %s434
      %s436 = sphi 0, %s434
      %s437 = sphi 0, %s436
      %s451 = sphi 0, %s437
      %s455 = sphi 0, %s455
      %s457 = sphi 0, %s455
      %s458 = sphi 0, %s457
      %s472 = sphi 0, %s458
      %s476 = sphi 0, %s476
      %s478 = sphi 0, %s476
      %s479 = sphi 0, %s478
      %s493 = sphi 0, %s479
      %s497 = sphi 0, %s497
      %s499 = sphi 0, %s497
      %s500 = sphi 0, %s499
      %s514 = sphi 0, %s500
      %s518 = sphi 0, %s518
      %s520 = sphi 0, %s518
      %s521 = sphi 0, %s520
      %s535 = sphi 0, %s521
      %s539 = sphi 0, %s539
      %s541 = sphi 0, %s539
      %s542 = sphi 0, %s541
      %s556 = sphi 0, %s542
      %s560 = sphi 0, %s560
      %s562 = sphi 0, %s560
      %s563 = sphi 0, %s562
      %s577 = sphi 0, %s563
      %s581 = sphi 0, %s581
      %s583 = sphi 0, %s581
      %s584 = sphi 0, %s583
      %s598 = sphi 0, %s584
      %s602 = sphi 0, %s602
      %s604 = sphi 0, %s602
      %s605 = sphi 0, %s604
      %s619 = sphi 0, %s605
      %s623 = sphi 0, %s623
      %s625 = sphi 0, %s623
      %s626 = sphi 0, %s625
      %s640 = sphi 0, %s626
      %s644 = sphi 0, %s644
      %s646 = sphi 0, %s644
      %s647 = sphi 0, %s646
      %s661 = sphi 0, %s647
      %s665 = sphi 0, %s665
      %s667 = sphi 0, %s665
      %s668 = sphi 0, %s667
      %s682 = sphi 0, %s668
      %s686 = sphi 0, %s686
      %s688 = sphi 0, %s686
      %s689 = sphi 0, %s688
      %s703 = sphi 0, %s689
      %s707 = sphi 0, %s707
      %s709 = sphi 0, %s707
      %s710 = sphi 0, %s709
      %s724 = sphi 0, %s710
      %s728 = sphi 0, %s728
      %s730 = sphi 0, %s728
      %s731 = sphi 0, %s730
      %s745 = sphi 0, %s731
      %s749 = sphi 0, %s749
      %s751 = sphi 0, %s749
      %s752 = sphi 0, %s751
      %s766 = sphi 0, %s752
      %s770 = sphi 0, %s770
      %s772 = sphi 0, %s770
      %s773 = sphi 0, %s772
      %s787 = sphi 0, %s773
      %s791 = sphi 0, %s791
      %s793 = sphi 0, %s791
      %s794 = sphi 0, %s793
      %s808 = sphi 0, %s794
      %s812 = sphi 0, %s812
      %s814 = sphi 0, %s812
      %s815 = sphi 0, %s814
      %s829 = sphi 0, %s815
      %s833 = sphi 0, %s833
      %s835 = sphi 0, %s833
      %s836 = sphi 0, %s835
      %s850 = sphi 0, %s836
      %s854 = sphi 0, %s854
      %s856 = sphi 0, %s854
      %s857 = sphi 0, %s856
      %s871 = sphi 0, %s857
      %s875 = sphi 0, %s875
      %s877 = sphi 0, %s875
      %s878 = sphi 0, %s877
      %s892 = sphi 0, %s878
      %s898 = sphi 0, %s900
      %s901 = sphi 0, %s898
      %s902 = sphi 0, %s901
      %s918 = sphi 0, %s902
    $region4: #{residual_block_forward.1} parent=1 // loop_header_branch
      %99 = sbr.rel (%p97) target = $region8
    $region5: #{residual_block_forward.1} parent=1 // loop_body
      %s101 = ssub.s32 %s96, 1
      %s102 = ssub.s32 %s96, 2
      %s103 = sadd.s32 %s96, 1
      %s104 = ssub.s32 %s96, %s103
      %p105 = scmp.eq.s32.totalorder %s104, 0
      %s107 = sadd.s32 %s106, 1
      %s108 = scalar_select %p105, %s106, %s107
      %p111 = pneg %p105
      %p112 = scmp.eq.s32.totalorder %s96, 1
      %p113 = por %p111, %p112
      %p114 = scmp.ne.s32.totalorder %s106, %s109
      %p115 = scmp.eq.s32.totalorder %s96, 0
      %p116 = por %p114, %p115
      %p117 = scmp.ne.s32.totalorder %s106, %s109
      %p118 = scmp.eq.s32.totalorder %s101, 1
      %p119 = por %p117, %p118
      %p120 = scmp.ne.s32.totalorder %s109, %s110
      %p121 = scmp.eq.s32.totalorder %s101, 0
      %p122 = por %p120, %p121
      %p123 = scmp.ne.s32.totalorder %s109, %s110
      %p124 = scmp.eq.s32.totalorder %s102, 1
      %p125 = por %p123, %p124
      %p127 = scmp.ne.s32.totalorder %s110, %s126
      %p128 = scmp.eq.s32.totalorder %s102, 0
      %p129 = por %p127, %p128
      %s130 = ssub.s32 %s96, %s103
      %p131 = scmp.eq.s32.totalorder %s130, 0
      %s133 = sadd.s32 %s132, 1
      %s134 = scalar_select %p131, %s132, %s133
      %p137 = pneg %p131
      %p138 = scmp.eq.s32.totalorder %s96, 1
      %p139 = por %p137, %p138
      %p140 = scmp.ne.s32.totalorder %s132, %s135
      %p141 = scmp.eq.s32.totalorder %s96, 0
      %p142 = por %p140, %p141
      %p143 = scmp.ne.s32.totalorder %s132, %s135
      %p144 = scmp.eq.s32.totalorder %s101, 1
      %p145 = por %p143, %p144
      %p146 = scmp.ne.s32.totalorder %s135, %s136
      %p147 = scmp.eq.s32.totalorder %s101, 0
      %p148 = por %p146, %p147
      %p149 = scmp.ne.s32.totalorder %s135, %s136
      %p150 = scmp.eq.s32.totalorder %s102, 1
      %p151 = por %p149, %p150
      %p153 = scmp.ne.s32.totalorder %s136, %s152
      %p154 = scmp.eq.s32.totalorder %s102, 0
      %p155 = por %p153, %p154
      %s156 = ssub.s32 %s96, %s103
      %p157 = scmp.eq.s32.totalorder %s156, 0
      %s159 = sadd.s32 %s158, 1
      %s160 = scalar_select %p157, %s158, %s159
      %p163 = pneg %p157
      %p164 = scmp.eq.s32.totalorder %s96, 1
      %p165 = por %p163, %p164
      %p166 = scmp.ne.s32.totalorder %s158, %s161
      %p167 = scmp.eq.s32.totalorder %s96, 0
      %p168 = por %p166, %p167
      %p169 = scmp.ne.s32.totalorder %s158, %s161
      %p170 = scmp.eq.s32.totalorder %s101, 1
      %p171 = por %p169, %p170
      %p172 = scmp.ne.s32.totalorder %s161, %s162
      %p173 = scmp.eq.s32.totalorder %s101, 0
      %p174 = por %p172, %p173
      %p175 = scmp.ne.s32.totalorder %s161, %s162
      %p176 = scmp.eq.s32.totalorder %s102, 1
      %p177 = por %p175, %p176
      %p179 = scmp.ne.s32.totalorder %s162, %s178
      %p180 = scmp.eq.s32.totalorder %s102, 0
      %p181 = por %p179, %p180
      %s183 = sadd.s32 %s182, 1
      %p186 = scmp.eq.s32.totalorder %s96, 1
      %p187 = scmp.ne.s32.totalorder %s182, %s184
      %p188 = scmp.eq.s32.totalorder %s96, 0
      %p189 = por %p187, %p188
      %p190 = scmp.ne.s32.totalorder %s182, %s184
      %p191 = scmp.eq.s32.totalorder %s101, 1
      %p192 = por %p190, %p191
      %p193 = scmp.ne.s32.totalorder %s184, %s185
      %p194 = scmp.eq.s32.totalorder %s101, 0
      %p195 = por %p193, %p194
      %p196 = scmp.ne.s32.totalorder %s184, %s185
      %p197 = scmp.eq.s32.totalorder %s102, 1
      %p198 = por %p196, %p197
      %p200 = scmp.ne.s32.totalorder %s185, %s199
      %p201 = scmp.eq.s32.totalorder %s102, 0
      %p202 = por %p200, %p201
      %s204 = sadd.s32 %s203, 1
      %p207 = scmp.eq.s32.totalorder %s96, 1
      %p208 = scmp.ne.s32.totalorder %s203, %s205
      %p209 = scmp.eq.s32.totalorder %s96, 0
      %p210 = por %p208, %p209
      %p211 = scmp.ne.s32.totalorder %s203, %s205
      %p212 = scmp.eq.s32.totalorder %s101, 1
      %p213 = por %p211, %p212
      %p214 = scmp.ne.s32.totalorder %s205, %s206
      %p215 = scmp.eq.s32.totalorder %s101, 0
      %p216 = por %p214, %p215
      %p217 = scmp.ne.s32.totalorder %s205, %s206
      %p218 = scmp.eq.s32.totalorder %s102, 1
      %p219 = por %p217, %p218
      %p221 = scmp.ne.s32.totalorder %s206, %s220
      %p222 = scmp.eq.s32.totalorder %s102, 0
      %p223 = por %p221, %p222
      %s225 = sadd.s32 %s224, 1
      %p228 = scmp.eq.s32.totalorder %s96, 1
      %p229 = scmp.ne.s32.totalorder %s224, %s226
      %p230 = scmp.eq.s32.totalorder %s96, 0
      %p231 = por %p229, %p230
      %p232 = scmp.ne.s32.totalorder %s224, %s226
      %p233 = scmp.eq.s32.totalorder %s101, 1
      %p234 = por %p232, %p233
      %p235 = scmp.ne.s32.totalorder %s226, %s227
      %p236 = scmp.eq.s32.totalorder %s101, 0
      %p237 = por %p235, %p236
      %p238 = scmp.ne.s32.totalorder %s226, %s227
      %p239 = scmp.eq.s32.totalorder %s102, 1
      %p240 = por %p238, %p239
      %p242 = scmp.ne.s32.totalorder %s227, %s241
      %p243 = scmp.eq.s32.totalorder %s102, 0
      %p244 = por %p242, %p243
      %s246 = sadd.s32 %s245, 1
      %p249 = scmp.eq.s32.totalorder %s96, 1
      %p250 = scmp.ne.s32.totalorder %s245, %s247
      %p251 = scmp.eq.s32.totalorder %s96, 0
      %p252 = por %p250, %p251
      %p253 = scmp.ne.s32.totalorder %s245, %s247
      %p254 = scmp.eq.s32.totalorder %s101, 1
      %p255 = por %p253, %p254
      %p256 = scmp.ne.s32.totalorder %s247, %s248
      %p257 = scmp.eq.s32.totalorder %s101, 0
      %p258 = por %p256, %p257
      %p259 = scmp.ne.s32.totalorder %s247, %s248
      %p260 = scmp.eq.s32.totalorder %s102, 1
      %p261 = por %p259, %p260
      %p263 = scmp.ne.s32.totalorder %s248, %s262
      %p264 = scmp.eq.s32.totalorder %s102, 0
      %p265 = por %p263, %p264
      %s267 = sadd.s32 %s266, 1
      %p270 = scmp.eq.s32.totalorder %s96, 1
      %p271 = scmp.ne.s32.totalorder %s266, %s268
      %p272 = scmp.eq.s32.totalorder %s96, 0
      %p273 = por %p271, %p272
      %p274 = scmp.ne.s32.totalorder %s266, %s268
      %p275 = scmp.eq.s32.totalorder %s101, 1
      %p276 = por %p274, %p275
      %p277 = scmp.ne.s32.totalorder %s268, %s269
      %p278 = scmp.eq.s32.totalorder %s101, 0
      %p279 = por %p277, %p278
      %p280 = scmp.ne.s32.totalorder %s268, %s269
      %p281 = scmp.eq.s32.totalorder %s102, 1
      %p282 = por %p280, %p281
      %p284 = scmp.ne.s32.totalorder %s269, %s283
      %p285 = scmp.eq.s32.totalorder %s102, 0
      %p286 = por %p284, %p285
      %s288 = sadd.s32 %s287, 1
      %p291 = scmp.eq.s32.totalorder %s96, 1
      %p292 = scmp.ne.s32.totalorder %s287, %s289
      %p293 = scmp.eq.s32.totalorder %s96, 0
      %p294 = por %p292, %p293
      %p295 = scmp.ne.s32.totalorder %s287, %s289
      %p296 = scmp.eq.s32.totalorder %s101, 1
      %p297 = por %p295, %p296
      %p298 = scmp.ne.s32.totalorder %s289, %s290
      %p299 = scmp.eq.s32.totalorder %s101, 0
      %p300 = por %p298, %p299
      %p301 = scmp.ne.s32.totalorder %s289, %s290
      %p302 = scmp.eq.s32.totalorder %s102, 1
      %p303 = por %p301, %p302
      %p305 = scmp.ne.s32.totalorder %s290, %s304
      %p306 = scmp.eq.s32.totalorder %s102, 0
      %p307 = por %p305, %p306
      %s309 = sadd.s32 %s308, 1
      %p312 = scmp.eq.s32.totalorder %s96, 1
      %p313 = scmp.ne.s32.totalorder %s308, %s310
      %p314 = scmp.eq.s32.totalorder %s96, 0
      %p315 = por %p313, %p314
      %p316 = scmp.ne.s32.totalorder %s308, %s310
      %p317 = scmp.eq.s32.totalorder %s101, 1
      %p318 = por %p316, %p317
      %p319 = scmp.ne.s32.totalorder %s310, %s311
      %p320 = scmp.eq.s32.totalorder %s101, 0
      %p321 = por %p319, %p320
      %p322 = scmp.ne.s32.totalorder %s310, %s311
      %p323 = scmp.eq.s32.totalorder %s102, 1
      %p324 = por %p322, %p323
      %p326 = scmp.ne.s32.totalorder %s311, %s325
      %p327 = scmp.eq.s32.totalorder %s102, 0
      %p328 = por %p326, %p327
      %s330 = sadd.s32 %s329, 1
      %p333 = scmp.eq.s32.totalorder %s96, 1
      %p334 = scmp.ne.s32.totalorder %s329, %s331
      %p335 = scmp.eq.s32.totalorder %s96, 0
      %p336 = por %p334, %p335
      %p337 = scmp.ne.s32.totalorder %s329, %s331
      %p338 = scmp.eq.s32.totalorder %s101, 1
      %p339 = por %p337, %p338
      %p340 = scmp.ne.s32.totalorder %s331, %s332
      %p341 = scmp.eq.s32.totalorder %s101, 0
      %p342 = por %p340, %p341
      %p343 = scmp.ne.s32.totalorder %s331, %s332
      %p344 = scmp.eq.s32.totalorder %s102, 1
      %p345 = por %p343, %p344
      %p347 = scmp.ne.s32.totalorder %s332, %s346
      %p348 = scmp.eq.s32.totalorder %s102, 0
      %p349 = por %p347, %p348
      %s351 = sadd.s32 %s350, 1
      %p354 = scmp.eq.s32.totalorder %s96, 1
      %p355 = scmp.ne.s32.totalorder %s350, %s352
      %p356 = scmp.eq.s32.totalorder %s96, 0
      %p357 = por %p355, %p356
      %p358 = scmp.ne.s32.totalorder %s350, %s352
      %p359 = scmp.eq.s32.totalorder %s101, 1
      %p360 = por %p358, %p359
      %p361 = scmp.ne.s32.totalorder %s352, %s353
      %p362 = scmp.eq.s32.totalorder %s101, 0
      %p363 = por %p361, %p362
      %p364 = scmp.ne.s32.totalorder %s352, %s353
      %p365 = scmp.eq.s32.totalorder %s102, 1
      %p366 = por %p364, %p365
      %p368 = scmp.ne.s32.totalorder %s353, %s367
      %p369 = scmp.eq.s32.totalorder %s102, 0
      %p370 = por %p368, %p369
      %s372 = sadd.s32 %s371, 1
      %p375 = scmp.eq.s32.totalorder %s96, 1
      %p376 = scmp.ne.s32.totalorder %s371, %s373
      %p377 = scmp.eq.s32.totalorder %s96, 0
      %p378 = por %p376, %p377
      %p379 = scmp.ne.s32.totalorder %s371, %s373
      %p380 = scmp.eq.s32.totalorder %s101, 1
      %p381 = por %p379, %p380
      %p382 = scmp.ne.s32.totalorder %s373, %s374
      %p383 = scmp.eq.s32.totalorder %s101, 0
      %p384 = por %p382, %p383
      %p385 = scmp.ne.s32.totalorder %s373, %s374
      %p386 = scmp.eq.s32.totalorder %s102, 1
      %p387 = por %p385, %p386
      %p389 = scmp.ne.s32.totalorder %s374, %s388
      %p390 = scmp.eq.s32.totalorder %s102, 0
      %p391 = por %p389, %p390
      %s393 = sadd.s32 %s392, 1
      %p396 = scmp.eq.s32.totalorder %s96, 1
      %p397 = scmp.ne.s32.totalorder %s392, %s394
      %p398 = scmp.eq.s32.totalorder %s96, 0
      %p399 = por %p397, %p398
      %p400 = scmp.ne.s32.totalorder %s392, %s394
      %p401 = scmp.eq.s32.totalorder %s101, 1
      %p402 = por %p400, %p401
      %p403 = scmp.ne.s32.totalorder %s394, %s395
      %p404 = scmp.eq.s32.totalorder %s101, 0
      %p405 = por %p403, %p404
      %p406 = scmp.ne.s32.totalorder %s394, %s395
      %p407 = scmp.eq.s32.totalorder %s102, 1
      %p408 = por %p406, %p407
      %p410 = scmp.ne.s32.totalorder %s395, %s409
      %p411 = scmp.eq.s32.totalorder %s102, 0
      %p412 = por %p410, %p411
      %s414 = sadd.s32 %s413, 1
      %p417 = scmp.eq.s32.totalorder %s96, 1
      %p418 = scmp.ne.s32.totalorder %s413, %s415
      %p419 = scmp.eq.s32.totalorder %s96, 0
      %p420 = por %p418, %p419
      %p421 = scmp.ne.s32.totalorder %s413, %s415
      %p422 = scmp.eq.s32.totalorder %s101, 1
      %p423 = por %p421, %p422
      %p424 = scmp.ne.s32.totalorder %s415, %s416
      %p425 = scmp.eq.s32.totalorder %s101, 0
      %p426 = por %p424, %p425
      %p427 = scmp.ne.s32.totalorder %s415, %s416
      %p428 = scmp.eq.s32.totalorder %s102, 1
      %p429 = por %p427, %p428
      %p431 = scmp.ne.s32.totalorder %s416, %s430
      %p432 = scmp.eq.s32.totalorder %s102, 0
      %p433 = por %p431, %p432
      %s435 = sadd.s32 %s434, 1
      %p438 = scmp.eq.s32.totalorder %s96, 1
      %p439 = scmp.ne.s32.totalorder %s434, %s436
      %p440 = scmp.eq.s32.totalorder %s96, 0
      %p441 = por %p439, %p440
      %p442 = scmp.ne.s32.totalorder %s434, %s436
      %p443 = scmp.eq.s32.totalorder %s101, 1
      %p444 = por %p442, %p443
      %p445 = scmp.ne.s32.totalorder %s436, %s437
      %p446 = scmp.eq.s32.totalorder %s101, 0
      %p447 = por %p445, %p446
      %p448 = scmp.ne.s32.totalorder %s436, %s437
      %p449 = scmp.eq.s32.totalorder %s102, 1
      %p450 = por %p448, %p449
      %p452 = scmp.ne.s32.totalorder %s437, %s451
      %p453 = scmp.eq.s32.totalorder %s102, 0
      %p454 = por %p452, %p453
      %s456 = sadd.s32 %s455, 1
      %p459 = scmp.eq.s32.totalorder %s96, 1
      %p460 = scmp.ne.s32.totalorder %s455, %s457
      %p461 = scmp.eq.s32.totalorder %s96, 0
      %p462 = por %p460, %p461
      %p463 = scmp.ne.s32.totalorder %s455, %s457
      %p464 = scmp.eq.s32.totalorder %s101, 1
      %p465 = por %p463, %p464
      %p466 = scmp.ne.s32.totalorder %s457, %s458
      %p467 = scmp.eq.s32.totalorder %s101, 0
      %p468 = por %p466, %p467
      %p469 = scmp.ne.s32.totalorder %s457, %s458
      %p470 = scmp.eq.s32.totalorder %s102, 1
      %p471 = por %p469, %p470
      %p473 = scmp.ne.s32.totalorder %s458, %s472
      %p474 = scmp.eq.s32.totalorder %s102, 0
      %p475 = por %p473, %p474
      %s477 = sadd.s32 %s476, 1
      %p480 = scmp.eq.s32.totalorder %s96, 1
      %p481 = scmp.ne.s32.totalorder %s476, %s478
      %p482 = scmp.eq.s32.totalorder %s96, 0
      %p483 = por %p481, %p482
      %p484 = scmp.ne.s32.totalorder %s476, %s478
      %p485 = scmp.eq.s32.totalorder %s101, 1
      %p486 = por %p484, %p485
      %p487 = scmp.ne.s32.totalorder %s478, %s479
      %p488 = scmp.eq.s32.totalorder %s101, 0
      %p489 = por %p487, %p488
      %p490 = scmp.ne.s32.totalorder %s478, %s479
      %p491 = scmp.eq.s32.totalorder %s102, 1
      %p492 = por %p490, %p491
      %p494 = scmp.ne.s32.totalorder %s479, %s493
      %p495 = scmp.eq.s32.totalorder %s102, 0
      %p496 = por %p494, %p495
      %s498 = sadd.s32 %s497, 1
      %p501 = scmp.eq.s32.totalorder %s96, 1
      %p502 = scmp.ne.s32.totalorder %s497, %s499
      %p503 = scmp.eq.s32.totalorder %s96, 0
      %p504 = por %p502, %p503
      %p505 = scmp.ne.s32.totalorder %s497, %s499
      %p506 = scmp.eq.s32.totalorder %s101, 1
      %p507 = por %p505, %p506
      %p508 = scmp.ne.s32.totalorder %s499, %s500
      %p509 = scmp.eq.s32.totalorder %s101, 0
      %p510 = por %p508, %p509
      %p511 = scmp.ne.s32.totalorder %s499, %s500
      %p512 = scmp.eq.s32.totalorder %s102, 1
      %p513 = por %p511, %p512
      %p515 = scmp.ne.s32.totalorder %s500, %s514
      %p516 = scmp.eq.s32.totalorder %s102, 0
      %p517 = por %p515, %p516
      %s519 = sadd.s32 %s518, 1
      %p522 = scmp.eq.s32.totalorder %s96, 1
      %p523 = scmp.ne.s32.totalorder %s518, %s520
      %p524 = scmp.eq.s32.totalorder %s96, 0
      %p525 = por %p523, %p524
      %p526 = scmp.ne.s32.totalorder %s518, %s520
      %p527 = scmp.eq.s32.totalorder %s101, 1
      %p528 = por %p526, %p527
      %p529 = scmp.ne.s32.totalorder %s520, %s521
      %p530 = scmp.eq.s32.totalorder %s101, 0
      %p531 = por %p529, %p530
      %p532 = scmp.ne.s32.totalorder %s520, %s521
      %p533 = scmp.eq.s32.totalorder %s102, 1
      %p534 = por %p532, %p533
      %p536 = scmp.ne.s32.totalorder %s521, %s535
      %p537 = scmp.eq.s32.totalorder %s102, 0
      %p538 = por %p536, %p537
      %s540 = sadd.s32 %s539, 1
      %p543 = scmp.eq.s32.totalorder %s96, 1
      %p544 = scmp.ne.s32.totalorder %s539, %s541
      %p545 = scmp.eq.s32.totalorder %s96, 0
      %p546 = por %p544, %p545
      %p547 = scmp.ne.s32.totalorder %s539, %s541
      %p548 = scmp.eq.s32.totalorder %s101, 1
      %p549 = por %p547, %p548
      %p550 = scmp.ne.s32.totalorder %s541, %s542
      %p551 = scmp.eq.s32.totalorder %s101, 0
      %p552 = por %p550, %p551
      %p553 = scmp.ne.s32.totalorder %s541, %s542
      %p554 = scmp.eq.s32.totalorder %s102, 1
      %p555 = por %p553, %p554
      %p557 = scmp.ne.s32.totalorder %s542, %s556
      %p558 = scmp.eq.s32.totalorder %s102, 0
      %p559 = por %p557, %p558
      %s561 = sadd.s32 %s560, 1
      %p564 = scmp.eq.s32.totalorder %s96, 1
      %p565 = scmp.ne.s32.totalorder %s560, %s562
      %p566 = scmp.eq.s32.totalorder %s96, 0
      %p567 = por %p565, %p566
      %p568 = scmp.ne.s32.totalorder %s560, %s562
      %p569 = scmp.eq.s32.totalorder %s101, 1
      %p570 = por %p568, %p569
      %p571 = scmp.ne.s32.totalorder %s562, %s563
      %p572 = scmp.eq.s32.totalorder %s101, 0
      %p573 = por %p571, %p572
      %p574 = scmp.ne.s32.totalorder %s562, %s563
      %p575 = scmp.eq.s32.totalorder %s102, 1
      %p576 = por %p574, %p575
      %p578 = scmp.ne.s32.totalorder %s563, %s577
      %p579 = scmp.eq.s32.totalorder %s102, 0
      %p580 = por %p578, %p579
      %s582 = sadd.s32 %s581, 1
      %p585 = scmp.eq.s32.totalorder %s96, 1
      %p586 = scmp.ne.s32.totalorder %s581, %s583
      %p587 = scmp.eq.s32.totalorder %s96, 0
      %p588 = por %p586, %p587
      %p589 = scmp.ne.s32.totalorder %s581, %s583
      %p590 = scmp.eq.s32.totalorder %s101, 1
      %p591 = por %p589, %p590
      %p592 = scmp.ne.s32.totalorder %s583, %s584
      %p593 = scmp.eq.s32.totalorder %s101, 0
      %p594 = por %p592, %p593
      %p595 = scmp.ne.s32.totalorder %s583, %s584
      %p596 = scmp.eq.s32.totalorder %s102, 1
      %p597 = por %p595, %p596
      %p599 = scmp.ne.s32.totalorder %s584, %s598
      %p600 = scmp.eq.s32.totalorder %s102, 0
      %p601 = por %p599, %p600
      %s603 = sadd.s32 %s602, 1
      %p606 = scmp.eq.s32.totalorder %s96, 1
      %p607 = scmp.ne.s32.totalorder %s602, %s604
      %p608 = scmp.eq.s32.totalorder %s96, 0
      %p609 = por %p607, %p608
      %p610 = scmp.ne.s32.totalorder %s602, %s604
      %p611 = scmp.eq.s32.totalorder %s101, 1
      %p612 = por %p610, %p611
      %p613 = scmp.ne.s32.totalorder %s604, %s605
      %p614 = scmp.eq.s32.totalorder %s101, 0
      %p615 = por %p613, %p614
      %p616 = scmp.ne.s32.totalorder %s604, %s605
      %p617 = scmp.eq.s32.totalorder %s102, 1
      %p618 = por %p616, %p617
      %p620 = scmp.ne.s32.totalorder %s605, %s619
      %p621 = scmp.eq.s32.totalorder %s102, 0
      %p622 = por %p620, %p621
      %s624 = sadd.s32 %s623, 1
      %p627 = scmp.eq.s32.totalorder %s96, 1
      %p628 = scmp.ne.s32.totalorder %s623, %s625
      %p629 = scmp.eq.s32.totalorder %s96, 0
      %p630 = por %p628, %p629
      %p631 = scmp.ne.s32.totalorder %s623, %s625
      %p632 = scmp.eq.s32.totalorder %s101, 1
      %p633 = por %p631, %p632
      %p634 = scmp.ne.s32.totalorder %s625, %s626
      %p635 = scmp.eq.s32.totalorder %s101, 0
      %p636 = por %p634, %p635
      %p637 = scmp.ne.s32.totalorder %s625, %s626
      %p638 = scmp.eq.s32.totalorder %s102, 1
      %p639 = por %p637, %p638
      %p641 = scmp.ne.s32.totalorder %s626, %s640
      %p642 = scmp.eq.s32.totalorder %s102, 0
      %p643 = por %p641, %p642
      %s645 = sadd.s32 %s644, 1
      %p648 = scmp.eq.s32.totalorder %s96, 1
      %p649 = scmp.ne.s32.totalorder %s644, %s646
      %p650 = scmp.eq.s32.totalorder %s96, 0
      %p651 = por %p649, %p650
      %p652 = scmp.ne.s32.totalorder %s644, %s646
      %p653 = scmp.eq.s32.totalorder %s101, 1
      %p654 = por %p652, %p653
      %p655 = scmp.ne.s32.totalorder %s646, %s647
      %p656 = scmp.eq.s32.totalorder %s101, 0
      %p657 = por %p655, %p656
      %p658 = scmp.ne.s32.totalorder %s646, %s647
      %p659 = scmp.eq.s32.totalorder %s102, 1
      %p660 = por %p658, %p659
      %p662 = scmp.ne.s32.totalorder %s647, %s661
      %p663 = scmp.eq.s32.totalorder %s102, 0
      %p664 = por %p662, %p663
      %s666 = sadd.s32 %s665, 1
      %p669 = scmp.eq.s32.totalorder %s96, 1
      %p670 = scmp.ne.s32.totalorder %s665, %s667
      %p671 = scmp.eq.s32.totalorder %s96, 0
      %p672 = por %p670, %p671
      %p673 = scmp.ne.s32.totalorder %s665, %s667
      %p674 = scmp.eq.s32.totalorder %s101, 1
      %p675 = por %p673, %p674
      %p676 = scmp.ne.s32.totalorder %s667, %s668
      %p677 = scmp.eq.s32.totalorder %s101, 0
      %p678 = por %p676, %p677
      %p679 = scmp.ne.s32.totalorder %s667, %s668
      %p680 = scmp.eq.s32.totalorder %s102, 1
      %p681 = por %p679, %p680
      %p683 = scmp.ne.s32.totalorder %s668, %s682
      %p684 = scmp.eq.s32.totalorder %s102, 0
      %p685 = por %p683, %p684
      %s687 = sadd.s32 %s686, 1
      %p690 = scmp.eq.s32.totalorder %s96, 1
      %p691 = scmp.ne.s32.totalorder %s686, %s688
      %p692 = scmp.eq.s32.totalorder %s96, 0
      %p693 = por %p691, %p692
      %p694 = scmp.ne.s32.totalorder %s686, %s688
      %p695 = scmp.eq.s32.totalorder %s101, 1
      %p696 = por %p694, %p695
      %p697 = scmp.ne.s32.totalorder %s688, %s689
      %p698 = scmp.eq.s32.totalorder %s101, 0
      %p699 = por %p697, %p698
      %p700 = scmp.ne.s32.totalorder %s688, %s689
      %p701 = scmp.eq.s32.totalorder %s102, 1
      %p702 = por %p700, %p701
      %p704 = scmp.ne.s32.totalorder %s689, %s703
      %p705 = scmp.eq.s32.totalorder %s102, 0
      %p706 = por %p704, %p705
      %s708 = sadd.s32 %s707, 1
      %p711 = scmp.eq.s32.totalorder %s96, 1
      %p712 = scmp.ne.s32.totalorder %s707, %s709
      %p713 = scmp.eq.s32.totalorder %s96, 0
      %p714 = por %p712, %p713
      %p715 = scmp.ne.s32.totalorder %s707, %s709
      %p716 = scmp.eq.s32.totalorder %s101, 1
      %p717 = por %p715, %p716
      %p718 = scmp.ne.s32.totalorder %s709, %s710
      %p719 = scmp.eq.s32.totalorder %s101, 0
      %p720 = por %p718, %p719
      %p721 = scmp.ne.s32.totalorder %s709, %s710
      %p722 = scmp.eq.s32.totalorder %s102, 1
      %p723 = por %p721, %p722
      %p725 = scmp.ne.s32.totalorder %s710, %s724
      %p726 = scmp.eq.s32.totalorder %s102, 0
      %p727 = por %p725, %p726
      %s729 = sadd.s32 %s728, 1
      %p732 = scmp.eq.s32.totalorder %s96, 1
      %p733 = scmp.ne.s32.totalorder %s728, %s730
      %p734 = scmp.eq.s32.totalorder %s96, 0
      %p735 = por %p733, %p734
      %p736 = scmp.ne.s32.totalorder %s728, %s730
      %p737 = scmp.eq.s32.totalorder %s101, 1
      %p738 = por %p736, %p737
      %p739 = scmp.ne.s32.totalorder %s730, %s731
      %p740 = scmp.eq.s32.totalorder %s101, 0
      %p741 = por %p739, %p740
      %p742 = scmp.ne.s32.totalorder %s730, %s731
      %p743 = scmp.eq.s32.totalorder %s102, 1
      %p744 = por %p742, %p743
      %p746 = scmp.ne.s32.totalorder %s731, %s745
      %p747 = scmp.eq.s32.totalorder %s102, 0
      %p748 = por %p746, %p747
      %s750 = sadd.s32 %s749, 1
      %p753 = scmp.eq.s32.totalorder %s96, 1
      %p754 = scmp.ne.s32.totalorder %s749, %s751
      %p755 = scmp.eq.s32.totalorder %s96, 0
      %p756 = por %p754, %p755
      %p757 = scmp.ne.s32.totalorder %s749, %s751
      %p758 = scmp.eq.s32.totalorder %s101, 1
      %p759 = por %p757, %p758
      %p760 = scmp.ne.s32.totalorder %s751, %s752
      %p761 = scmp.eq.s32.totalorder %s101, 0
      %p762 = por %p760, %p761
      %p763 = scmp.ne.s32.totalorder %s751, %s752
      %p764 = scmp.eq.s32.totalorder %s102, 1
      %p765 = por %p763, %p764
      %p767 = scmp.ne.s32.totalorder %s752, %s766
      %p768 = scmp.eq.s32.totalorder %s102, 0
      %p769 = por %p767, %p768
      %s771 = sadd.s32 %s770, 1
      %p774 = scmp.eq.s32.totalorder %s96, 1
      %p775 = scmp.ne.s32.totalorder %s770, %s772
      %p776 = scmp.eq.s32.totalorder %s96, 0
      %p777 = por %p775, %p776
      %p778 = scmp.ne.s32.totalorder %s770, %s772
      %p779 = scmp.eq.s32.totalorder %s101, 1
      %p780 = por %p778, %p779
      %p781 = scmp.ne.s32.totalorder %s772, %s773
      %p782 = scmp.eq.s32.totalorder %s101, 0
      %p783 = por %p781, %p782
      %p784 = scmp.ne.s32.totalorder %s772, %s773
      %p785 = scmp.eq.s32.totalorder %s102, 1
      %p786 = por %p784, %p785
      %p788 = scmp.ne.s32.totalorder %s773, %s787
      %p789 = scmp.eq.s32.totalorder %s102, 0
      %p790 = por %p788, %p789
      %s792 = sadd.s32 %s791, 1
      %p795 = scmp.eq.s32.totalorder %s96, 1
      %p796 = scmp.ne.s32.totalorder %s791, %s793
      %p797 = scmp.eq.s32.totalorder %s96, 0
      %p798 = por %p796, %p797
      %p799 = scmp.ne.s32.totalorder %s791, %s793
      %p800 = scmp.eq.s32.totalorder %s101, 1
      %p801 = por %p799, %p800
      %p802 = scmp.ne.s32.totalorder %s793, %s794
      %p803 = scmp.eq.s32.totalorder %s101, 0
      %p804 = por %p802, %p803
      %p805 = scmp.ne.s32.totalorder %s793, %s794
      %p806 = scmp.eq.s32.totalorder %s102, 1
      %p807 = por %p805, %p806
      %p809 = scmp.ne.s32.totalorder %s794, %s808
      %p810 = scmp.eq.s32.totalorder %s102, 0
      %p811 = por %p809, %p810
      %s813 = sadd.s32 %s812, 1
      %p816 = scmp.eq.s32.totalorder %s96, 1
      %p817 = scmp.ne.s32.totalorder %s812, %s814
      %p818 = scmp.eq.s32.totalorder %s96, 0
      %p819 = por %p817, %p818
      %p820 = scmp.ne.s32.totalorder %s812, %s814
      %p821 = scmp.eq.s32.totalorder %s101, 1
      %p822 = por %p820, %p821
      %p823 = scmp.ne.s32.totalorder %s814, %s815
      %p824 = scmp.eq.s32.totalorder %s101, 0
      %p825 = por %p823, %p824
      %p826 = scmp.ne.s32.totalorder %s814, %s815
      %p827 = scmp.eq.s32.totalorder %s102, 1
      %p828 = por %p826, %p827
      %p830 = scmp.ne.s32.totalorder %s815, %s829
      %p831 = scmp.eq.s32.totalorder %s102, 0
      %p832 = por %p830, %p831
      %s834 = sadd.s32 %s833, 1
      %p837 = scmp.eq.s32.totalorder %s96, 1
      %p838 = scmp.ne.s32.totalorder %s833, %s835
      %p839 = scmp.eq.s32.totalorder %s96, 0
      %p840 = por %p838, %p839
      %p841 = scmp.ne.s32.totalorder %s833, %s835
      %p842 = scmp.eq.s32.totalorder %s101, 1
      %p843 = por %p841, %p842
      %p844 = scmp.ne.s32.totalorder %s835, %s836
      %p845 = scmp.eq.s32.totalorder %s101, 0
      %p846 = por %p844, %p845
      %p847 = scmp.ne.s32.totalorder %s835, %s836
      %p848 = scmp.eq.s32.totalorder %s102, 1
      %p849 = por %p847, %p848
      %p851 = scmp.ne.s32.totalorder %s836, %s850
      %p852 = scmp.eq.s32.totalorder %s102, 0
      %p853 = por %p851, %p852
      %s855 = sadd.s32 %s854, 1
      %p858 = scmp.eq.s32.totalorder %s96, 1
      %p859 = scmp.ne.s32.totalorder %s854, %s856
      %p860 = scmp.eq.s32.totalorder %s96, 0
      %p861 = por %p859, %p860
      %p862 = scmp.ne.s32.totalorder %s854, %s856
      %p863 = scmp.eq.s32.totalorder %s101, 1
      %p864 = por %p862, %p863
      %p865 = scmp.ne.s32.totalorder %s856, %s857
      %p866 = scmp.eq.s32.totalorder %s101, 0
      %p867 = por %p865, %p866
      %p868 = scmp.ne.s32.totalorder %s856, %s857
      %p869 = scmp.eq.s32.totalorder %s102, 1
      %p870 = por %p868, %p869
      %p872 = scmp.ne.s32.totalorder %s857, %s871
      %p873 = scmp.eq.s32.totalorder %s102, 0
      %p874 = por %p872, %p873
      %s876 = sadd.s32 %s875, 1
      %p879 = scmp.eq.s32.totalorder %s96, 1
      %p880 = scmp.ne.s32.totalorder %s875, %s877
      %p881 = scmp.eq.s32.totalorder %s96, 0
      %p882 = por %p880, %p881
      %p883 = scmp.ne.s32.totalorder %s875, %s877
      %p884 = scmp.eq.s32.totalorder %s101, 1
      %p885 = por %p883, %p884
      %p886 = scmp.ne.s32.totalorder %s877, %s878
      %p887 = scmp.eq.s32.totalorder %s101, 0
      %p888 = por %p886, %p887
      %p889 = scmp.ne.s32.totalorder %s877, %s878
      %p890 = scmp.eq.s32.totalorder %s102, 1
      %p891 = por %p889, %p890
      %p893 = scmp.ne.s32.totalorder %s878, %s892
      %p894 = scmp.eq.s32.totalorder %s102, 0
      %p895 = por %p893, %p894
      %s896 = ssub.s32 %s96, %s103
      %p897 = scmp.eq.s32.totalorder %s896, 0
      %s899 = sadd.s32 %s898, 1
      %s900 = scalar_select %p897, %s898, %s899
      %p903 = pneg %p897
      %p904 = scmp.eq.s32.totalorder %s96, 1
      %p905 = por %p903, %p904
      %p906 = scmp.ne.s32.totalorder %s898, %s901
      %p907 = scmp.eq.s32.totalorder %s96, 0
      %p908 = por %p906, %p907
      %p909 = scmp.ne.s32.totalorder %s898, %s901
      %p910 = scmp.eq.s32.totalorder %s101, 1
      %p911 = por %p909, %p910
      %p912 = scmp.ne.s32.totalorder %s901, %s902
      %p913 = scmp.eq.s32.totalorder %s101, 0
      %p914 = por %p912, %p913
      %p915 = scmp.ne.s32.totalorder %s901, %s902
      %p916 = scmp.eq.s32.totalorder %s102, 1
      %p917 = por %p915, %p916
      %p919 = scmp.ne.s32.totalorder %s902, %s918
      %p920 = scmp.eq.s32.totalorder %s102, 0
      %p921 = por %p919, %p920
      %p922 = scmp.le.s32.totalorder 1, %s96
      %p923 = scmp.lt.s32.totalorder %s96, 3
      %p924 = pnand %p922, %p923
      %p925 = pneg %p924
      // Predicated region
      $region9: #{residual_block_forward.1} parent=5 // pred_check
        _
      $region10: #{residual_block_forward.1} parent=5 // pred_check_branch
        %927 = sbr.rel (%p924) target = $region12
      $region11: #{residual_block_forward.1} parent=5 // pred_region
        %s928 = ssub.s32 %s96, 1
        // Predicated region
        $region13: #{residual_block_forward.1} parent=11 // pred_check
          %p929 = pneg %p195
        $region14: #{residual_block_forward.1} parent=11 // pred_check_branch
          %931 = sbr.rel (%p929) target = $region16
        $region15: #{residual_block_forward.1} parent=11 // pred_region
          %s933 = ssub.s32 4096, 4096
          %934 = vsyncadd [#allocation5], %s933
          %s935 = sshll.u32 [#allocation6], 4
          %s936 = int_to_ptr.vmem [resolvable:$true] %s935
          %941 = dma.hbm_to_vmem [thread:$0]  %s7, 4096, %s936, [#allocation5], 128, 128, 8
        $region16: #{residual_block_forward.1} parent=11 // pred_fallthru
          _
        // Predicated region
        $region17: #{residual_block_forward.1} parent=11 // pred_check
          %p942 = pneg %p216
        $region18: #{residual_block_forward.1} parent=11 // pred_check_branch
          %944 = sbr.rel (%p942) target = $region20
        $region19: #{residual_block_forward.1} parent=11 // pred_region
          _
        $region20: #{residual_block_forward.1} parent=11 // pred_fallthru
          _
        // Predicated region
        $region21: #{residual_block_forward.1} parent=11 // pred_check
          %p945 = pneg %p237
        $region22: #{residual_block_forward.1} parent=11 // pred_check_branch
          %947 = sbr.rel (%p945) target = $region24
        $region23: #{residual_block_forward.1} parent=11 // pred_region
          %s949 = ssub.s32 4096, 4096
          %950 = vsyncadd [#allocation8], %s949
          %s951 = sshll.u32 [#allocation7], 4
          %s952 = int_to_ptr.vmem [resolvable:$true] %s951
          %957 = dma.hbm_to_vmem [thread:$0]  %s11, 4096, %s952, [#allocation8], 128, 128, 8
        $region24: #{residual_block_forward.1} parent=11 // pred_fallthru
          _
        // Predicated region
        $region25: #{residual_block_forward.1} parent=11 // pred_check
          %p958 = pneg %p258
        $region26: #{residual_block_forward.1} parent=11 // pred_check_branch
          %960 = sbr.rel (%p958) target = $region28
        $region27: #{residual_block_forward.1} parent=11 // pred_region
          _
        $region28: #{residual_block_forward.1} parent=11 // pred_fallthru
          _
        // Predicated region
        $region29: #{residual_block_forward.1} parent=11 // pred_check
          %p961 = pneg %p279
        $region30: #{residual_block_forward.1} parent=11 // pred_check_branch
          %963 = sbr.rel (%p961) target = $region32
        $region31: #{residual_block_forward.1} parent=11 // pred_region
          %s965 = ssub.s32 1024, 1024
          %966 = vsyncadd [#allocation8], %s965
          %s967 = sshll.u32 [#allocation9], 4
          %s968 = int_to_ptr.vmem [resolvable:$true] %s967
          %973 = dma.hbm_to_vmem [thread:$0]  %s15, 1024, %s968, [#allocation8], 128, 128, 8
        $region32: #{residual_block_forward.1} parent=11 // pred_fallthru
          _
        // Predicated region
        $region33: #{residual_block_forward.1} parent=11 // pred_check
          %p974 = pneg %p300
        $region34: #{residual_block_forward.1} parent=11 // pred_check_branch
          %976 = sbr.rel (%p974) target = $region36
        $region35: #{residual_block_forward.1} parent=11 // pred_region
          _
        $region36: #{residual_block_forward.1} parent=11 // pred_fallthru
          _
        // Predicated region
        $region37: #{residual_block_forward.1} parent=11 // pred_check
          %p977 = pneg %p321
        $region38: #{residual_block_forward.1} parent=11 // pred_check_branch
          %979 = sbr.rel (%p977) target = $region40
        $region39: #{residual_block_forward.1} parent=11 // pred_region
          _
        $region40: #{residual_block_forward.1} parent=11 // pred_fallthru
          _
        // Predicated region
        $region41: #{residual_block_forward.1} parent=11 // pred_check
          %p980 = pneg %p342
        $region42: #{residual_block_forward.1} parent=11 // pred_check_branch
          %982 = sbr.rel (%p980) target = $region44
        $region43: #{residual_block_forward.1} parent=11 // pred_region
          _
        $region44: #{residual_block_forward.1} parent=11 // pred_fallthru
          _
        // Predicated region
        $region45: #{residual_block_forward.1} parent=11 // pred_check
          %p983 = pneg %p363
        $region46: #{residual_block_forward.1} parent=11 // pred_check_branch
          %985 = sbr.rel (%p983) target = $region48
        $region47: #{residual_block_forward.1} parent=11 // pred_region
          %s987 = ssub.s32 1024, 1024
          %988 = vsyncadd [#allocation11], %s987
          %s989 = sshll.u32 [#allocation10], 4
          %s990 = int_to_ptr.vmem [resolvable:$true] %s989
          %995 = dma.hbm_to_vmem [thread:$0]  %s23, 1024, %s990, [#allocation11], 128, 128, 8
        $region48: #{residual_block_forward.1} parent=11 // pred_fallthru
          _
        // Predicated region
        $region49: #{residual_block_forward.1} parent=11 // pred_check
          %p996 = pneg %p384
        $region50: #{residual_block_forward.1} parent=11 // pred_check_branch
          %998 = sbr.rel (%p996) target = $region52
        $region51: #{residual_block_forward.1} parent=11 // pred_region
          _
        $region52: #{residual_block_forward.1} parent=11 // pred_fallthru
          _
        // Predicated region
        $region53: #{residual_block_forward.1} parent=11 // pred_check
          %p999 = pneg %p405
        $region54: #{residual_block_forward.1} parent=11 // pred_check_branch
          %1001 = sbr.rel (%p999) target = $region56
        $region55: #{residual_block_forward.1} parent=11 // pred_region
          _
        $region56: #{residual_block_forward.1} parent=11 // pred_fallthru
          _
        // Predicated region
        $region57: #{residual_block_forward.1} parent=11 // pred_check
          %p1002 = pneg %p426
        $region58: #{residual_block_forward.1} parent=11 // pred_check_branch
          %1004 = sbr.rel (%p1002) target = $region60
        $region59: #{residual_block_forward.1} parent=11 // pred_region
          _
        $region60: #{residual_block_forward.1} parent=11 // pred_fallthru
          _
        // Predicated region
        $region61: #{residual_block_forward.1} parent=11 // pred_check
          %p1005 = pneg %p447
        $region62: #{residual_block_forward.1} parent=11 // pred_check_branch
          %1007 = sbr.rel (%p1005) target = $region64
        $region63: #{residual_block_forward.1} parent=11 // pred_region
          %s1009 = ssub.s32 1024, 1024
          %1010 = vsyncadd [#allocation11], %s1009
          %s1011 = sshll.u32 [#allocation12], 4
          %s1012 = int_to_ptr.vmem [resolvable:$true] %s1011
          %1017 = dma.hbm_to_vmem [thread:$0]  %s31, 1024, %s1012, [#allocation11], 128, 128, 8
        $region64: #{residual_block_forward.1} parent=11 // pred_fallthru
          _
        // Predicated region
        $region65: #{residual_block_forward.1} parent=11 // pred_check
          %p1018 = pneg %p468
        $region66: #{residual_block_forward.1} parent=11 // pred_check_branch
          %1020 = sbr.rel (%p1018) target = $region68
        $region67: #{residual_block_forward.1} parent=11 // pred_region
          _
        $region68: #{residual_block_forward.1} parent=11 // pred_fallthru
          _
        // Predicated region
        $region69: #{residual_block_forward.1} parent=11 // pred_check
          %p1021 = pneg %p489
        $region70: #{residual_block_forward.1} parent=11 // pred_check_branch
          %1023 = sbr.rel (%p1021) target = $region72
        $region71: #{residual_block_forward.1} parent=11 // pred_region
          %s1025 = ssub.s32 1024, 1024
          %1026 = vsyncadd [#allocation14], %s1025
          %s1027 = sshll.u32 [#allocation13], 4
          %s1028 = int_to_ptr.vmem [resolvable:$true] %s1027
          %1033 = dma.hbm_to_vmem [thread:$0]  %s35, 1024, %s1028, [#allocation14], 128, 128, 8
        $region72: #{residual_block_forward.1} parent=11 // pred_fallthru
          _
        // Predicated region
        $region73: #{residual_block_forward.1} parent=11 // pred_check
          %p1034 = pneg %p510
        $region74: #{residual_block_forward.1} parent=11 // pred_check_branch
          %1036 = sbr.rel (%p1034) target = $region76
        $region75: #{residual_block_forward.1} parent=11 // pred_region
          _
        $region76: #{residual_block_forward.1} parent=11 // pred_fallthru
          _
        // Predicated region
        $region77: #{residual_block_forward.1} parent=11 // pred_check
          %p1037 = pneg %p531
        $region78: #{residual_block_forward.1} parent=11 // pred_check_branch
          %1039 = sbr.rel (%p1037) target = $region80
        $region79: #{residual_block_forward.1} parent=11 // pred_region
          %s1041 = ssub.s32 1024, 1024
          %1042 = vsyncadd [#allocation14], %s1041
          %s1043 = sshll.u32 [#allocation15], 4
          %s1044 = int_to_ptr.vmem [resolvable:$true] %s1043
          %1049 = dma.hbm_to_vmem [thread:$0]  %s39, 1024, %s1044, [#allocation14], 128, 128, 8
        $region80: #{residual_block_forward.1} parent=11 // pred_fallthru
          _
        // Predicated region
        $region81: #{residual_block_forward.1} parent=11 // pred_check
          %p1050 = pneg %p552
        $region82: #{residual_block_forward.1} parent=11 // pred_check_branch
          %1052 = sbr.rel (%p1050) target = $region84
        $region83: #{residual_block_forward.1} parent=11 // pred_region
          _
        $region84: #{residual_block_forward.1} parent=11 // pred_fallthru
          _
        // Predicated region
        $region85: #{residual_block_forward.1} parent=11 // pred_check
          %p1053 = pneg %p573
        $region86: #{residual_block_forward.1} parent=11 // pred_check_branch
          %1055 = sbr.rel (%p1053) target = $region88
        $region87: #{residual_block_forward.1} parent=11 // pred_region
          _
        $region88: #{residual_block_forward.1} parent=11 // pred_fallthru
          _
        // Predicated region
        $region89: #{residual_block_forward.1} parent=11 // pred_check
          %p1056 = pneg %p594
        $region90: #{residual_block_forward.1} parent=11 // pred_check_branch
          %1058 = sbr.rel (%p1056) target = $region92
        $region91: #{residual_block_forward.1} parent=11 // pred_region
          _
        $region92: #{residual_block_forward.1} parent=11 // pred_fallthru
          _
        // Predicated region
        $region93: #{residual_block_forward.1} parent=11 // pred_check
          %p1059 = pneg %p615
        $region94: #{residual_block_forward.1} parent=11 // pred_check_branch
          %1061 = sbr.rel (%p1059) target = $region96
        $region95: #{residual_block_forward.1} parent=11 // pred_region
          _
        $region96: #{residual_block_forward.1} parent=11 // pred_fallthru
          _
        // Predicated region
        $region97: #{residual_block_forward.1} parent=11 // pred_check
          %p1062 = pneg %p636
        $region98: #{residual_block_forward.1} parent=11 // pred_check_branch
          %1064 = sbr.rel (%p1062) target = $region100
        $region99: #{residual_block_forward.1} parent=11 // pred_region
          _
        $region100: #{residual_block_forward.1} parent=11 // pred_fallthru
          _
        // Predicated region
        $region101: #{residual_block_forward.1} parent=11 // pred_check
          %p1065 = pneg %p657
        $region102: #{residual_block_forward.1} parent=11 // pred_check_branch
          %1067 = sbr.rel (%p1065) target = $region104
        $region103: #{residual_block_forward.1} parent=11 // pred_region
          %s1069 = ssub.s32 2048, 2048
          %1070 = vsyncadd [#allocation17], %s1069
          %s1071 = sshll.u32 [#allocation16], 4
          %s1072 = int_to_ptr.vmem [resolvable:$true] %s1071
          %1077 = dma.hbm_to_vmem [thread:$0]  %s51, 2048, %s1072, [#allocation17], 256, 256, 16
        $region104: #{residual_block_forward.1} parent=11 // pred_fallthru
          _
        // Predicated region
        $region105: #{residual_block_forward.1} parent=11 // pred_check
          %p1078 = pneg %p678
        $region106: #{residual_block_forward.1} parent=11 // pred_check_branch
          %1080 = sbr.rel (%p1078) target = $region108
        $region107: #{residual_block_forward.1} parent=11 // pred_region
          _
        $region108: #{residual_block_forward.1} parent=11 // pred_fallthru
          _
        // Predicated region
        $region109: #{residual_block_forward.1} parent=11 // pred_check
          %p1081 = pneg %p699
        $region110: #{residual_block_forward.1} parent=11 // pred_check_branch
          %1083 = sbr.rel (%p1081) target = $region112
        $region111: #{residual_block_forward.1} parent=11 // pred_region
          %s1085 = ssub.s32 1024, 1024
          %1086 = vsyncadd [#allocation17], %s1085
          %s1087 = sshll.u32 [#allocation18], 4
          %s1088 = int_to_ptr.vmem [resolvable:$true] %s1087
          %1093 = dma.hbm_to_vmem [thread:$0]  %s55, 1024, %s1088, [#allocation17], 128, 128, 8
        $region112: #{residual_block_forward.1} parent=11 // pred_fallthru
          _
        // Predicated region
        $region113: #{residual_block_forward.1} parent=11 // pred_check
          %p1094 = pneg %p720
        $region114: #{residual_block_forward.1} parent=11 // pred_check_branch
          %1096 = sbr.rel (%p1094) target = $region116
        $region115: #{residual_block_forward.1} parent=11 // pred_region
          %s1098 = ssub.s32 16, 16
          %1099 = vsyncadd [#allocation20], %s1098
          %s1101 = sshll.u32 [#allocation19], 4
          %s1102 = int_to_ptr.vmem [resolvable:$true] %s1101
          %1104 = dma.hbm_to_vmem [thread:$0]  %s57, 16, %s1102, [#allocation20]
        $region116: #{residual_block_forward.1} parent=11 // pred_fallthru
          _
        // Predicated region
        $region117: #{residual_block_forward.1} parent=11 // pred_check
          %p1105 = pneg %p741
        $region118: #{residual_block_forward.1} parent=11 // pred_check_branch
          %1107 = sbr.rel (%p1105) target = $region120
        $region119: #{residual_block_forward.1} parent=11 // pred_region
          %s1109 = ssub.s32 1024, 1024
          %1110 = vsyncadd [#allocation20], %s1109
          %s1111 = sshll.u32 [#allocation21], 4
          %s1112 = int_to_ptr.vmem [resolvable:$true] %s1111
          %1117 = dma.hbm_to_vmem [thread:$0]  %s59, 1024, %s1112, [#allocation20], 128, 128, 8
        $region120: #{residual_block_forward.1} parent=11 // pred_fallthru
          _
        // Predicated region
        $region121: #{residual_block_forward.1} parent=11 // pred_check
          %p1118 = pneg %p762
        $region122: #{residual_block_forward.1} parent=11 // pred_check_branch
          %1120 = sbr.rel (%p1118) target = $region124
        $region123: #{residual_block_forward.1} parent=11 // pred_region
          %s1122 = ssub.s32 16, 16
          %1123 = vsyncadd [#allocation23], %s1122
          %s1125 = sshll.u32 [#allocation22], 4
          %s1126 = int_to_ptr.vmem [resolvable:$true] %s1125
          %1128 = dma.hbm_to_vmem [thread:$0]  %s61, 16, %s1126, [#allocation23]
        $region124: #{residual_block_forward.1} parent=11 // pred_fallthru
          _
        // Predicated region
        $region125: #{residual_block_forward.1} parent=11 // pred_check
          %p1129 = pneg %p783
        $region126: #{residual_block_forward.1} parent=11 // pred_check_branch
          %1131 = sbr.rel (%p1129) target = $region128
        $region127: #{residual_block_forward.1} parent=11 // pred_region
          %s1133 = ssub.s32 1024, 1024
          %1134 = vsyncadd [#allocation23], %s1133
          %s1135 = sshll.u32 [#allocation24], 4
          %s1136 = int_to_ptr.vmem [resolvable:$true] %s1135
          %1141 = dma.hbm_to_vmem [thread:$0]  %s63, 1024, %s1136, [#allocation23], 128, 128, 8
        $region128: #{residual_block_forward.1} parent=11 // pred_fallthru
          _
        // Predicated region
        $region129: #{residual_block_forward.1} parent=11 // pred_check
          %p1142 = pneg %p804
        $region130: #{residual_block_forward.1} parent=11 // pred_check_branch
          %1144 = sbr.rel (%p1142) target = $region132
        $region131: #{residual_block_forward.1} parent=11 // pred_region
          %s1146 = ssub.s32 16, 16
          %1147 = vsyncadd [#allocation26], %s1146
          %s1149 = sshll.u32 [#allocation25], 4
          %s1150 = int_to_ptr.vmem [resolvable:$true] %s1149
          %1152 = dma.hbm_to_vmem [thread:$0]  %s65, 16, %s1150, [#allocation26]
        $region132: #{residual_block_forward.1} parent=11 // pred_fallthru
          _
        // Predicated region
        $region133: #{residual_block_forward.1} parent=11 // pred_check
          %p1153 = pneg %p825
        $region134: #{residual_block_forward.1} parent=11 // pred_check_branch
          %1155 = sbr.rel (%p1153) target = $region136
        $region135: #{residual_block_forward.1} parent=11 // pred_region
          %s1157 = ssub.s32 16, 16
          %1158 = vsyncadd [#allocation26], %s1157
          %s1160 = sshll.u32 [#allocation27], 4
          %s1161 = int_to_ptr.vmem [resolvable:$true] %s1160
          %1163 = dma.hbm_to_vmem [thread:$0]  %s67, 16, %s1161, [#allocation26]
        $region136: #{residual_block_forward.1} parent=11 // pred_fallthru
          _
        // Predicated region
        $region137: #{residual_block_forward.1} parent=11 // pred_check
          %p1164 = pneg %p846
        $region138: #{residual_block_forward.1} parent=11 // pred_check_branch
          %1166 = sbr.rel (%p1164) target = $region140
        $region139: #{residual_block_forward.1} parent=11 // pred_region
          %s1168 = ssub.s32 16, 16
          %1169 = vsyncadd [#allocation29], %s1168
          %s1171 = sshll.u32 [#allocation28], 4
          %s1172 = int_to_ptr.vmem [resolvable:$true] %s1171
          %1174 = dma.hbm_to_vmem [thread:$0]  %s69, 16, %s1172, [#allocation29]
        $region140: #{residual_block_forward.1} parent=11 // pred_fallthru
          _
        // Predicated region
        $region141: #{residual_block_forward.1} parent=11 // pred_check
          %p1175 = pneg %p867
        $region142: #{residual_block_forward.1} parent=11 // pred_check_branch
          %1177 = sbr.rel (%p1175) target = $region144
        $region143: #{residual_block_forward.1} parent=11 // pred_region
          %s1179 = ssub.s32 16, 16
          %1180 = vsyncadd [#allocation29], %s1179
          %s1182 = sshll.u32 [#allocation30], 4
          %s1183 = int_to_ptr.vmem [resolvable:$true] %s1182
          %1185 = dma.hbm_to_vmem [thread:$0]  %s71, 16, %s1183, [#allocation29]
        $region144: #{residual_block_forward.1} parent=11 // pred_fallthru
          _
        // Predicated region
        $region145: #{residual_block_forward.1} parent=11 // pred_check
          %p1186 = pneg %p888
        $region146: #{residual_block_forward.1} parent=11 // pred_check_branch
          %1188 = sbr.rel (%p1186) target = $region148
        $region147: #{residual_block_forward.1} parent=11 // pred_region
          %s1190 = ssub.s32 16, 16
          %1191 = vsyncadd [#allocation32], %s1190
          %s1193 = sshll.u32 [#allocation31], 4
          %s1194 = int_to_ptr.vmem [resolvable:$true] %s1193
          %1196 = dma.hbm_to_vmem [thread:$0]  %s73, 16, %s1194, [#allocation32]
        $region148: #{residual_block_forward.1} parent=11 // pred_fallthru
          _
      $region12: #{residual_block_forward.1} parent=5 // pred_fallthru
        _
      %p1197 = scmp.lt.s32.totalorder %s96, 2
      // Predicated region
      $region149: #{residual_block_forward.1} parent=5 // pred_check
        %p1198 = pneg %p1197
      $region150: #{residual_block_forward.1} parent=5 // pred_check_branch
        %1200 = sbr.rel (%p1198) target = $region152
      $region151: #{residual_block_forward.1} parent=5 // pred_region
        // Predicated region
        $region153: #{residual_block_forward.1} parent=151 // pred_check
          %p1201 = pneg %p116
        $region154: #{residual_block_forward.1} parent=151 // pred_check_branch
          %1203 = sbr.rel (%p1201) target = $region156
        $region155: #{residual_block_forward.1} parent=151 // pred_region
          %s1204 = sand.u32 %s106, 1
          %s1205 = scalar_lea.sflag [#allocation3], %s1204
          %s1206 = sand.u32 %s106, 1
          %s1207 = smul.addr %s1206, 32
          %s1208 = scalar_lea.vmem [#allocation2], %s1207
          %s1210 = ssub.s32 512, 512
          %1211 = vsyncadd %s1205, %s1210
          %s1212 = smul.addr %s96, 4
          %s1213 = smul.addr %s1212, 128
          %s1214 = scalar_lea.hbm %s1, %s1213
          %s1215 = sshll.u32 %s1208, 4
          %s1216 = int_to_ptr.vmem [resolvable:$true] %s1215
          %1221 = dma.hbm_to_vmem [thread:$0]  %s1214, 512, %s1216, %s1205, 128, 128, 8
        $region156: #{residual_block_forward.1} parent=151 // pred_fallthru
          _
        // Predicated region
        $region157: #{residual_block_forward.1} parent=151 // pred_check
          %p1222 = pneg %p142
        $region158: #{residual_block_forward.1} parent=151 // pred_check_branch
          %1224 = sbr.rel (%p1222) target = $region160
        $region159: #{residual_block_forward.1} parent=151 // pred_region
          %s1225 = sand.u32 %s96, 1
          %s1226 = scalar_lea.sflag [#allocation5], %s1225
          %s1227 = sand.u32 %s132, 1
          %s1228 = smul.addr %s1227, 32
          %s1229 = scalar_lea.vmem [#allocation4], %s1228
          %s1231 = ssub.s32 512, 512
          %1232 = vsyncadd %s1226, %s1231
          %s1233 = smul.addr %s96, 4
          %s1234 = smul.addr %s1233, 128
          %s1235 = scalar_lea.hbm %s3, %s1234
          %s1236 = sshll.u32 %s1229, 4
          %s1237 = int_to_ptr.vmem [resolvable:$true] %s1236
          %1242 = dma.hbm_to_vmem [thread:$0]  %s1235, 512, %s1237, %s1226, 128, 128, 8
        $region160: #{residual_block_forward.1} parent=151 // pred_fallthru
          _
        // Predicated region
        $region161: #{residual_block_forward.1} parent=151 // pred_check
          %p1243 = pneg %p168
        $region162: #{residual_block_forward.1} parent=151 // pred_check_branch
          %1245 = sbr.rel (%p1243) target = $region164
        $region163: #{residual_block_forward.1} parent=151 // pred_region
          %p1246 = scmp.lt.s32.totalorder %s96, 1
          %s1247 = scalar_select %p1246, %s96, 1
          %s1248 = scalar_lea.vmem %s5, %s1247
        $region164: #{residual_block_forward.1} parent=151 // pred_fallthru
          _
      $region152: #{residual_block_forward.1} parent=5 // pred_fallthru
        _
      %p1249 = scmp.le.s32.totalorder 1, %s96
      %p1250 = scmp.lt.s32.totalorder %s96, 3
      %p1251 = pnand %p1249, %p1250
      %p1252 = pneg %p1251
      // Predicated region
      $region165: #{residual_block_forward.1} parent=5 // pred_check
        _
      $region166: #{residual_block_forward.1} parent=5 // pred_check_branch
        %1254 = sbr.rel (%p1251) target = $region168
      $region167: #{residual_block_forward.1} parent=5 // pred_region
        %s1255 = ssub.s32 %s96, 1
        %s1256 = sand.u32 %s109, 1
        %s1257 = scalar_lea.sflag [#allocation3], %s1256
        %s1258 = sand.u32 %s109, 1
        %s1259 = smul.addr %s1258, 32
        %s1260 = scalar_lea.vmem [#allocation2], %s1259
        // Predicated region
        $region169: #{residual_block_forward.1} parent=167 // pred_check
          %p1261 = pneg %p122
        $region170: #{residual_block_forward.1} parent=167 // pred_check_branch
          %1263 = sbr.rel (%p1261) target = $region172
        $region171: #{residual_block_forward.1} parent=167 // pred_region
          %1264 = dma.done %s1257, 512
        $region172: #{residual_block_forward.1} parent=167 // pred_fallthru
          _
        %s1265 = sand.u32 %s101, 1
        %s1266 = scalar_lea.sflag [#allocation5], %s1265
        %s1267 = sand.u32 %s135, 1
        %s1268 = smul.addr %s1267, 32
        %s1269 = scalar_lea.vmem [#allocation4], %s1268
        // Predicated region
        $region173: #{residual_block_forward.1} parent=167 // pred_check
          %p1270 = pneg %p148
        $region174: #{residual_block_forward.1} parent=167 // pred_check_branch
          %1272 = sbr.rel (%p1270) target = $region176
        $region175: #{residual_block_forward.1} parent=167 // pred_region
          %1273 = dma.done %s1266, 512
        $region176: #{residual_block_forward.1} parent=167 // pred_fallthru
          _
        // Predicated region
        $region177: #{residual_block_forward.1} parent=167 // pred_check
          %p1274 = pneg %p195
        $region178: #{residual_block_forward.1} parent=167 // pred_check_branch
          %1276 = sbr.rel (%p1274) target = $region180
        $region179: #{residual_block_forward.1} parent=167 // pred_region
          %1277 = dma.done [#allocation5], 4096
        $region180: #{residual_block_forward.1} parent=167 // pred_fallthru
          _
        // Predicated region
        $region181: #{residual_block_forward.1} parent=167 // pred_check
          %p1278 = pneg %p237
        $region182: #{residual_block_forward.1} parent=167 // pred_check_branch
          %1280 = sbr.rel (%p1278) target = $region184
        $region183: #{residual_block_forward.1} parent=167 // pred_region
          %1281 = dma.done [#allocation8], 4096
        $region184: #{residual_block_forward.1} parent=167 // pred_fallthru
          _
        // Predicated region
        $region185: #{residual_block_forward.1} parent=167 // pred_check
          %p1282 = pneg %p279
        $region186: #{residual_block_forward.1} parent=167 // pred_check_branch
          %1284 = sbr.rel (%p1282) target = $region188
        $region187: #{residual_block_forward.1} parent=167 // pred_region
          %1285 = dma.done [#allocation8], 1024
        $region188: #{residual_block_forward.1} parent=167 // pred_fallthru
          _
        // Predicated region
        $region189: #{residual_block_forward.1} parent=167 // pred_check
          %p1286 = pneg %p363
        $region190: #{residual_block_forward.1} parent=167 // pred_check_branch
          %1288 = sbr.rel (%p1286) target = $region192
        $region191: #{residual_block_forward.1} parent=167 // pred_region
          %1289 = dma.done [#allocation11], 1024
        $region192: #{residual_block_forward.1} parent=167 // pred_fallthru
          _
        // Predicated region
        $region193: #{residual_block_forward.1} parent=167 // pred_check
          %p1290 = pneg %p447
        $region194: #{residual_block_forward.1} parent=167 // pred_check_branch
          %1292 = sbr.rel (%p1290) target = $region196
        $region195: #{residual_block_forward.1} parent=167 // pred_region
          %1293 = dma.done [#allocation11], 1024
        $region196: #{residual_block_forward.1} parent=167 // pred_fallthru
          _
        // Predicated region
        $region197: #{residual_block_forward.1} parent=167 // pred_check
          %p1294 = pneg %p489
        $region198: #{residual_block_forward.1} parent=167 // pred_check_branch
          %1296 = sbr.rel (%p1294) target = $region200
        $region199: #{residual_block_forward.1} parent=167 // pred_region
          %1297 = dma.done [#allocation14], 1024
        $region200: #{residual_block_forward.1} parent=167 // pred_fallthru
          _
        // Predicated region
        $region201: #{residual_block_forward.1} parent=167 // pred_check
          %p1298 = pneg %p531
        $region202: #{residual_block_forward.1} parent=167 // pred_check_branch
          %1300 = sbr.rel (%p1298) target = $region204
        $region203: #{residual_block_forward.1} parent=167 // pred_region
          %1301 = dma.done [#allocation14], 1024
        $region204: #{residual_block_forward.1} parent=167 // pred_fallthru
          _
        // Predicated region
        $region205: #{residual_block_forward.1} parent=167 // pred_check
          %p1302 = pneg %p657
        $region206: #{residual_block_forward.1} parent=167 // pred_check_branch
          %1304 = sbr.rel (%p1302) target = $region208
        $region207: #{residual_block_forward.1} parent=167 // pred_region
          %1305 = dma.done [#allocation17], 2048
        $region208: #{residual_block_forward.1} parent=167 // pred_fallthru
          _
        // Predicated region
        $region209: #{residual_block_forward.1} parent=167 // pred_check
          %p1306 = pneg %p699
        $region210: #{residual_block_forward.1} parent=167 // pred_check_branch
          %1308 = sbr.rel (%p1306) target = $region212
        $region211: #{residual_block_forward.1} parent=167 // pred_region
          %1309 = dma.done [#allocation17], 1024
        $region212: #{residual_block_forward.1} parent=167 // pred_fallthru
          _
        // Predicated region
        $region213: #{residual_block_forward.1} parent=167 // pred_check
          %p1310 = pneg %p720
        $region214: #{residual_block_forward.1} parent=167 // pred_check_branch
          %1312 = sbr.rel (%p1310) target = $region216
        $region215: #{residual_block_forward.1} parent=167 // pred_region
          %1313 = dma.done [#allocation20], 16
        $region216: #{residual_block_forward.1} parent=167 // pred_fallthru
          _
        // Predicated region
        $region217: #{residual_block_forward.1} parent=167 // pred_check
          %p1314 = pneg %p741
        $region218: #{residual_block_forward.1} parent=167 // pred_check_branch
          %1316 = sbr.rel (%p1314) target = $region220
        $region219: #{residual_block_forward.1} parent=167 // pred_region
          %1317 = dma.done [#allocation20], 1024
        $region220: #{residual_block_forward.1} parent=167 // pred_fallthru
          _
        // Predicated region
        $region221: #{residual_block_forward.1} parent=167 // pred_check
          %p1318 = pneg %p762
        $region222: #{residual_block_forward.1} parent=167 // pred_check_branch
          %1320 = sbr.rel (%p1318) target = $region224
        $region223: #{residual_block_forward.1} parent=167 // pred_region
          %1321 = dma.done [#allocation23], 16
        $region224: #{residual_block_forward.1} parent=167 // pred_fallthru
          _
        // Predicated region
        $region225: #{residual_block_forward.1} parent=167 // pred_check
          %p1322 = pneg %p783
        $region226: #{residual_block_forward.1} parent=167 // pred_check_branch
          %1324 = sbr.rel (%p1322) target = $region228
        $region227: #{residual_block_forward.1} parent=167 // pred_region
          %1325 = dma.done [#allocation23], 1024
        $region228: #{residual_block_forward.1} parent=167 // pred_fallthru
          _
        // Predicated region
        $region229: #{residual_block_forward.1} parent=167 // pred_check
          %p1326 = pneg %p804
        $region230: #{residual_block_forward.1} parent=167 // pred_check_branch
          %1328 = sbr.rel (%p1326) target = $region232
        $region231: #{residual_block_forward.1} parent=167 // pred_region
          %1329 = dma.done [#allocation26], 16
        $region232: #{residual_block_forward.1} parent=167 // pred_fallthru
          _
        // Predicated region
        $region233: #{residual_block_forward.1} parent=167 // pred_check
          %p1330 = pneg %p825
        $region234: #{residual_block_forward.1} parent=167 // pred_check_branch
          %1332 = sbr.rel (%p1330) target = $region236
        $region235: #{residual_block_forward.1} parent=167 // pred_region
          %1333 = dma.done [#allocation26], 16
        $region236: #{residual_block_forward.1} parent=167 // pred_fallthru
          _
        // Predicated region
        $region237: #{residual_block_forward.1} parent=167 // pred_check
          %p1334 = pneg %p846
        $region238: #{residual_block_forward.1} parent=167 // pred_check_branch
          %1336 = sbr.rel (%p1334) target = $region240
        $region239: #{residual_block_forward.1} parent=167 // pred_region
          %1337 = dma.done [#allocation29], 16
        $region240: #{residual_block_forward.1} parent=167 // pred_fallthru
          _
        // Predicated region
        $region241: #{residual_block_forward.1} parent=167 // pred_check
          %p1338 = pneg %p867
        $region242: #{residual_block_forward.1} parent=167 // pred_check_branch
          %1340 = sbr.rel (%p1338) target = $region244
        $region243: #{residual_block_forward.1} parent=167 // pred_region
          %1341 = dma.done [#allocation29], 16
        $region244: #{residual_block_forward.1} parent=167 // pred_fallthru
          _
        // Predicated region
        $region245: #{residual_block_forward.1} parent=167 // pred_check
          %p1342 = pneg %p888
        $region246: #{residual_block_forward.1} parent=167 // pred_check_branch
          %1344 = sbr.rel (%p1342) target = $region248
        $region247: #{residual_block_forward.1} parent=167 // pred_region
          %1345 = dma.done [#allocation32], 16
        $region248: #{residual_block_forward.1} parent=167 // pred_fallthru
          _
        %s1346 = sand.u32 %s109, 1
        %s1347 = scalar_lea.sflag [#allocation3], %s1346
        %s1348 = sand.u32 %s109, 1
        %s1349 = smul.addr %s1348, 32
        %s1350 = scalar_lea.vmem [#allocation2], %s1349
        %p1351 = pneg %p122
        %p1352 = pneg %p119
        %s1353 = sand.u32 %s101, 1
        %s1354 = scalar_lea.sflag [#allocation5], %s1353
        %s1355 = sand.u32 %s135, 1
        %s1356 = smul.addr %s1355, 32
        %s1357 = scalar_lea.vmem [#allocation4], %s1356
        %p1358 = pneg %p148
        %p1359 = pneg %p145
        %p1360 = scmp.lt.s32.totalorder %s101, 1
        %s1361 = scalar_select %p1360, %s101, 1
        %s1362 = scalar_lea.vmem %s5, %s1361
        %p1363 = pneg %p174
        %p1364 = pneg %p171
        %p1365 = pneg %p195
        %p1366 = pneg %p192
        %p1367 = pneg %p216
        %p1368 = pneg %p213
        %p1369 = pneg %p237
        %p1370 = pneg %p234
        %p1371 = pneg %p258
        %p1372 = pneg %p255
        %p1373 = pneg %p279
        %p1374 = pneg %p276
        %p1375 = pneg %p300
        %p1376 = pneg %p297
        %p1377 = pneg %p321
        %p1378 = pneg %p318
        %p1379 = pneg %p342
        %p1380 = pneg %p339
        %p1381 = pneg %p363
        %p1382 = pneg %p360
        %p1383 = pneg %p384
        %p1384 = pneg %p381
        %p1385 = pneg %p405
        %p1386 = pneg %p402
        %p1387 = pneg %p426
        %p1388 = pneg %p423
        %p1389 = pneg %p447
        %p1390 = pneg %p444
        %p1391 = pneg %p468
        %p1392 = pneg %p465
        %p1393 = pneg %p489
        %p1394 = pneg %p486
        %p1395 = pneg %p510
        %p1396 = pneg %p507
        %p1397 = pneg %p531
        %p1398 = pneg %p528
        %p1399 = pneg %p552
        %p1400 = pneg %p549
        %p1401 = pneg %p573
        %p1402 = pneg %p570
        %p1403 = pneg %p594
        %p1404 = pneg %p591
        %p1405 = pneg %p615
        %p1406 = pneg %p612
        %p1407 = pneg %p636
        %p1408 = pneg %p633
        %p1409 = pneg %p657
        %p1410 = pneg %p654
        %p1411 = pneg %p678
        %p1412 = pneg %p675
        %p1413 = pneg %p699
        %p1414 = pneg %p696
        %p1415 = pneg %p720
        %p1416 = pneg %p717
        %p1417 = pneg %p741
        %p1418 = pneg %p738
        %p1419 = pneg %p762
        %p1420 = pneg %p759
        %p1421 = pneg %p783
        %p1422 = pneg %p780
        %p1423 = pneg %p804
        %p1424 = pneg %p801
        %p1425 = pneg %p825
        %p1426 = pneg %p822
        %p1427 = pneg %p846
        %p1428 = pneg %p843
        %p1429 = pneg %p867
        %p1430 = pneg %p864
        %p1431 = pneg %p888
        %p1432 = pneg %p885
        %p1433 = pneg %p914
        %p1434 = pneg %p911
        %p1435 = scmp.lt.s32.totalorder %s101, 1
        %s1436 = scalar_select %p1435, %s101, 1
        %s1437 = smul.addr %s1436, 4
        %s1438 = smul.addr %s1437, 8
        %s1439 = scalar_lea.vmem %s75, %s1438
        %p1440 = scmp.lt.s32.totalorder %s101, 1
        %s1441 = scalar_select %p1440, %s101, 1
        %s1442 = scalar_lea.vmem %s5, %s1441
        %p1443 = scmp.lt.s32.totalorder %s101, 1
        %s1444 = scalar_select %p1443, %s101, 1
        %s1445 = smul.addr %s1444, 4
        %s1446 = smul.addr %s1445, 8
        %s1447 = scalar_lea.vmem %s75, %s1446
        %v1448 = vld [vmem:[%s1260] sm:$0xff]
        %v1449 = vld [vmem:[%s1260 + $0x8] sm:$0xff]
        %v1450 = vld [vmem:[%s1260 + $0x10] sm:$0xff]
        %v1451 = vld [vmem:[%s1260 + $0x18] sm:$0xff]
        %v1452 = vld [vmem:[%s1269] sm:$0xff]
        %v1453 = vld [vmem:[%s1269 + $0x8] sm:$0xff]
        %v1454 = vld [vmem:[%s1269 + $0x10] sm:$0xff]
        %v1455 = vld [vmem:[%s1269 + $0x18] sm:$0xff]
        %v1456 = vld [vmem:[%s1442] sm:$0x1]
        %v1458 = vlaneseq
        %v1459 = vshrl.u32 %v1458, 7
        %v1460 = vsub.s32 0, %v1459
        %v1461 = vrot.slane %v1456, %v1460
        %v1463 = vadd.f32 %v1448, %v1461
        %v1464 = vadd.f32 %v1449, %v1461
        %v1465 = vadd.f32 %v1450, %v1461
        %v1466 = vadd.f32 %v1451, %v1461
        %v1467 = vlaneseq
        %v1468 = vand.u32 %v1467, 127
        %vm1469 = vcmp.ge.s32.totalorder %v1468, 0
        %vm1470 = vcmp.ge.s32.totalorder %v1468, 8
        %vm1471 = vcmp.ge.s32.totalorder %v1468, 16
        %vm1472 = vcmp.ge.s32.totalorder %v1468, 24
        %vm1473 = vcmp.ge.s32.totalorder %v1468, 32
        %vm1474 = vcmp.ge.s32.totalorder %v1468, 40
        %vm1475 = vcmp.ge.s32.totalorder %v1468, 48
        %vm1476 = vcmp.ge.s32.totalorder %v1468, 56
        %vm1477 = vcmp.lt.s32.totalorder %v1468, 8
        %vm1478 = vcmp.lt.s32.totalorder %v1468, 16
        %vm1479 = vcmp.lt.s32.totalorder %v1468, 24
        %vm1480 = vcmp.lt.s32.totalorder %v1468, 32
        %vm1481 = vcmp.lt.s32.totalorder %v1468, 40
        %vm1482 = vcmp.lt.s32.totalorder %v1468, 48
        %vm1483 = vcmp.lt.s32.totalorder %v1468, 56
        %vm1484 = vcmp.lt.s32.totalorder %v1468, 64
        %vm1485 = vmand %vm1469, %vm1477
        %vm1486 = vmand %vm1470, %vm1478
        %vm1487 = vmand %vm1471, %vm1479
        %vm1488 = vmand %vm1472, %vm1480
        %vm1489 = vmand %vm1473, %vm1481
        %vm1490 = vmand %vm1474, %vm1482
        %vm1491 = vmand %vm1475, %vm1483
        %vm1492 = vmand %vm1476, %vm1484
        %v1493 = vsel %vm1485, 1, 0
        %v1494 = vsel %vm1486, 1, 0
        %v1495 = vsel %vm1487, 1, 0
        %v1496 = vsel %vm1488, 1, 0
        %v1497 = vsel %vm1489, 1, 0
        %v1498 = vsel %vm1490, 1, 0
        %v1499 = vsel %vm1491, 1, 0
        %v1500 = vsel %vm1492, 1, 0
        %v1501 = vcvt.s32.f32 %v1493
        %v1502 = vcvt.s32.f32 %v1494
        %v1503 = vcvt.s32.f32 %v1495
        %v1504 = vcvt.s32.f32 %v1496
        %v1505 = vcvt.s32.f32 %v1497
        %v1506 = vcvt.s32.f32 %v1498
        %v1507 = vcvt.s32.f32 %v1499
        %v1508 = vcvt.s32.f32 %v1500
        %v1509 = vld [vmem:[#allocation6] sm:$0xff]
        %v1510 = vld [vmem:[#allocation6 + $0x8] sm:$0xff]
        %v1511 = vld [vmem:[#allocation6 + $0x10] sm:$0xff]
        %v1512 = vld [vmem:[#allocation6 + $0x18] sm:$0xff]
        %v1513 = vld [vmem:[#allocation6 + $0x20] sm:$0xff]
        %v1514 = vld [vmem:[#allocation6 + $0x28] sm:$0xff]
        %v1515 = vld [vmem:[#allocation6 + $0x30] sm:$0xff]
        %v1516 = vld [vmem:[#allocation6 + $0x38] sm:$0xff]
        %v1517 = vld [vmem:[#allocation6 + $0x40] sm:$0xff]
        %v1518 = vld [vmem:[#allocation6 + $0x48] sm:$0xff]
        %v1519 = vld [vmem:[#allocation6 + $0x50] sm:$0xff]
        %v1520 = vld [vmem:[#allocation6 + $0x58] sm:$0xff]
        %v1521 = vld [vmem:[#allocation6 + $0x60] sm:$0xff]
        %v1522 = vld [vmem:[#allocation6 + $0x68] sm:$0xff]
        %v1523 = vld [vmem:[#allocation6 + $0x70] sm:$0xff]
        %v1524 = vld [vmem:[#allocation6 + $0x78] sm:$0xff]
        %v1525 = vld [vmem:[#allocation6 + $0x80] sm:$0xff]
        %v1526 = vld [vmem:[#allocation6 + $0x88] sm:$0xff]
        %v1527 = vld [vmem:[#allocation6 + $0x90] sm:$0xff]
        %v1528 = vld [vmem:[#allocation6 + $0x98] sm:$0xff]
        %v1529 = vld [vmem:[#allocation6 + $0xa0] sm:$0xff]
        %v1530 = vld [vmem:[#allocation6 + $0xa8] sm:$0xff]
        %v1531 = vld [vmem:[#allocation6 + $0xb0] sm:$0xff]
        %v1532 = vld [vmem:[#allocation6 + $0xb8] sm:$0xff]
        %v1533 = vld [vmem:[#allocation6 + $0xc0] sm:$0xff]
        %v1534 = vld [vmem:[#allocation6 + $0xc8] sm:$0xff]
        %v1535 = vld [vmem:[#allocation6 + $0xd0] sm:$0xff]
        %v1536 = vld [vmem:[#allocation6 + $0xd8] sm:$0xff]
        %v1537 = vld [vmem:[#allocation6 + $0xe0] sm:$0xff]
        %v1538 = vld [vmem:[#allocation6 + $0xe8] sm:$0xff]
        %v1539 = vld [vmem:[#allocation6 + $0xf0] sm:$0xff]
        %v1540 = vld [vmem:[#allocation6 + $0xf8] sm:$0xff]
        %v1541 = vld [vmem:[%s9] sm:$0x1]
        %1542 = vset.pattern.permute.xlu0 0
        %1543 = vperm.xlu0 %1542, %v1509
        %v1544 = vpop.permute.xlu0 %1543
        %1545 = vset.pattern.permute.xlu0 0
        %1546 = vperm.xlu0 %1545, %v1510
        %v1547 = vpop.permute.xlu0 %1546
        %1548 = vset.pattern.permute.xlu0 0
        %1549 = vperm.xlu0 %1548, %v1511
        %v1550 = vpop.permute.xlu0 %1549
        %1551 = vset.pattern.permute.xlu0 0
        %1552 = vperm.xlu0 %1551, %v1512
        %v1553 = vpop.permute.xlu0 %1552
        %1554 = vset.pattern.permute.xlu0 0
        %1555 = vperm.xlu0 %1554, %v1513
        %v1556 = vpop.permute.xlu0 %1555
        %1557 = vset.pattern.permute.xlu0 0
        %1558 = vperm.xlu0 %1557, %v1514
        %v1559 = vpop.permute.xlu0 %1558
        %1560 = vset.pattern.permute.xlu0 0
        %1561 = vperm.xlu0 %1560, %v1515
        %v1562 = vpop.permute.xlu0 %1561
        %1563 = vset.pattern.permute.xlu0 0
        %1564 = vperm.xlu0 %1563, %v1516
        %v1565 = vpop.permute.xlu0 %1564
        %1566 = vset.pattern.permute.xlu0 0
        %1567 = vperm.xlu0 %1566, %v1517
        %v1568 = vpop.permute.xlu0 %1567
        %1569 = vset.pattern.permute.xlu0 0
        %1570 = vperm.xlu0 %1569, %v1518
        %v1571 = vpop.permute.xlu0 %1570
        %1572 = vset.pattern.permute.xlu0 0
        %1573 = vperm.xlu0 %1572, %v1519
        %v1574 = vpop.permute.xlu0 %1573
        %1575 = vset.pattern.permute.xlu0 0
        %1576 = vperm.xlu0 %1575, %v1520
        %v1577 = vpop.permute.xlu0 %1576
        %1578 = vset.pattern.permute.xlu0 0
        %1579 = vperm.xlu0 %1578, %v1521
        %v1580 = vpop.permute.xlu0 %1579
        %1581 = vset.pattern.permute.xlu0 0
        %1582 = vperm.xlu0 %1581, %v1522
        %v1583 = vpop.permute.xlu0 %1582
        %1584 = vset.pattern.permute.xlu0 0
        %1585 = vperm.xlu0 %1584, %v1523
        %v1586 = vpop.permute.xlu0 %1585
        %1587 = vset.pattern.permute.xlu0 0
        %1588 = vperm.xlu0 %1587, %v1524
        %v1589 = vpop.permute.xlu0 %1588
        %1590 = vset.pattern.permute.xlu0 0
        %1591 = vperm.xlu0 %1590, %v1525
        %v1592 = vpop.permute.xlu0 %1591
        %1593 = vset.pattern.permute.xlu0 0
        %1594 = vperm.xlu0 %1593, %v1526
        %v1595 = vpop.permute.xlu0 %1594
        %1596 = vset.pattern.permute.xlu0 0
        %1597 = vperm.xlu0 %1596, %v1527
        %v1598 = vpop.permute.xlu0 %1597
        %1599 = vset.pattern.permute.xlu0 0
        %1600 = vperm.xlu0 %1599, %v1528
        %v1601 = vpop.permute.xlu0 %1600
        %1602 = vset.pattern.permute.xlu0 0
        %1603 = vperm.xlu0 %1602, %v1529
        %v1604 = vpop.permute.xlu0 %1603
        %1605 = vset.pattern.permute.xlu0 0
        %1606 = vperm.xlu0 %1605, %v1530
        %v1607 = vpop.permute.xlu0 %1606
        %1608 = vset.pattern.permute.xlu0 0
        %1609 = vperm.xlu0 %1608, %v1531
        %v1610 = vpop.permute.xlu0 %1609
        %1611 = vset.pattern.permute.xlu0 0
        %1612 = vperm.xlu0 %1611, %v1532
        %v1613 = vpop.permute.xlu0 %1612
        %1614 = vset.pattern.permute.xlu0 0
        %1615 = vperm.xlu0 %1614, %v1533
        %v1616 = vpop.permute.xlu0 %1615
        %1617 = vset.pattern.permute.xlu0 0
        %1618 = vperm.xlu0 %1617, %v1534
        %v1619 = vpop.permute.xlu0 %1618
        %1620 = vset.pattern.permute.xlu0 0
        %1621 = vperm.xlu0 %1620, %v1535
        %v1622 = vpop.permute.xlu0 %1621
        %1623 = vset.pattern.permute.xlu0 0
        %1624 = vperm.xlu0 %1623, %v1536
        %v1625 = vpop.permute.xlu0 %1624
        %1626 = vset.pattern.permute.xlu0 0
        %1627 = vperm.xlu0 %1626, %v1537
        %v1628 = vpop.permute.xlu0 %1627
        %1629 = vset.pattern.permute.xlu0 0
        %1630 = vperm.xlu0 %1629, %v1538
        %v1631 = vpop.permute.xlu0 %1630
        %1632 = vset.pattern.permute.xlu0 0
        %1633 = vperm.xlu0 %1632, %v1539
        %v1634 = vpop.permute.xlu0 %1633
        %1635 = vset.pattern.permute.xlu0 0
        %1636 = vperm.xlu0 %1635, %v1540
        %v1637 = vpop.permute.xlu0 %1636
        %v1638 = vlaneseq
        %v1639 = vshrl.u32 %v1638, 7
        %v1640 = vsub.s32 0, %v1639
        %v1641 = vrot.slane %v1541, %v1640
        %vm1642 = vcmp.eq.s32.totalorder %v1544, %v1641
        %vm1643 = vcmp.eq.s32.totalorder %v1547, %v1641
        %vm1644 = vcmp.eq.s32.totalorder %v1550, %v1641
        %vm1645 = vcmp.eq.s32.totalorder %v1553, %v1641
        %vm1646 = vcmp.eq.s32.totalorder %v1556, %v1641
        %vm1647 = vcmp.eq.s32.totalorder %v1559, %v1641
        %vm1648 = vcmp.eq.s32.totalorder %v1562, %v1641
        %vm1649 = vcmp.eq.s32.totalorder %v1565, %v1641
        %vm1650 = vcmp.eq.s32.totalorder %v1568, %v1641
        %vm1651 = vcmp.eq.s32.totalorder %v1571, %v1641
        %vm1652 = vcmp.eq.s32.totalorder %v1574, %v1641
        %vm1653 = vcmp.eq.s32.totalorder %v1577, %v1641
        %vm1654 = vcmp.eq.s32.totalorder %v1580, %v1641
        %vm1655 = vcmp.eq.s32.totalorder %v1583, %v1641
        %vm1656 = vcmp.eq.s32.totalorder %v1586, %v1641
        %vm1657 = vcmp.eq.s32.totalorder %v1589, %v1641
        %vm1658 = vcmp.eq.s32.totalorder %v1592, %v1641
        %vm1659 = vcmp.eq.s32.totalorder %v1595, %v1641
        %vm1660 = vcmp.eq.s32.totalorder %v1598, %v1641
        %vm1661 = vcmp.eq.s32.totalorder %v1601, %v1641
        %vm1662 = vcmp.eq.s32.totalorder %v1604, %v1641
        %vm1663 = vcmp.eq.s32.totalorder %v1607, %v1641
        %vm1664 = vcmp.eq.s32.totalorder %v1610, %v1641
        %vm1665 = vcmp.eq.s32.totalorder %v1613, %v1641
        %vm1666 = vcmp.eq.s32.totalorder %v1616, %v1641
        %vm1667 = vcmp.eq.s32.totalorder %v1619, %v1641
        %vm1668 = vcmp.eq.s32.totalorder %v1622, %v1641
        %vm1669 = vcmp.eq.s32.totalorder %v1625, %v1641
        %vm1670 = vcmp.eq.s32.totalorder %v1628, %v1641
        %vm1671 = vcmp.eq.s32.totalorder %v1631, %v1641
        %vm1672 = vcmp.eq.s32.totalorder %v1634, %v1641
        %vm1673 = vcmp.eq.s32.totalorder %v1637, %v1641
        %v1674 = vld [vmem:[%s27] sm:$0xff]
        %v1675 = vld [vmem:[%s27 + $0x8] sm:$0xff]
        %v1676 = vld [vmem:[%s27 + $0x10] sm:$0xff]
        %v1677 = vld [vmem:[%s27 + $0x18] sm:$0xff]
        %v1678 = vld [vmem:[%s27 + $0x20] sm:$0xff]
        %v1679 = vld [vmem:[%s27 + $0x28] sm:$0xff]
        %v1680 = vld [vmem:[%s27 + $0x30] sm:$0xff]
        %v1681 = vld [vmem:[%s27 + $0x38] sm:$0xff]
        %v1682 = vld [vmem:[%s27 + $0x40] sm:$0xff]
        %v1683 = vld [vmem:[%s27 + $0x48] sm:$0xff]
        %v1684 = vld [vmem:[%s27 + $0x50] sm:$0xff]
        %v1685 = vld [vmem:[%s27 + $0x58] sm:$0xff]
        %v1686 = vld [vmem:[%s27 + $0x60] sm:$0xff]
        %v1687 = vld [vmem:[%s27 + $0x68] sm:$0xff]
        %v1688 = vld [vmem:[%s27 + $0x70] sm:$0xff]
        %v1689 = vld [vmem:[%s27 + $0x78] sm:$0xff]
        %v1690 = vld [vmem:[%s29] sm:$0x3]
        %v1692 = vlaneseq
        %v1693 = vshrl.u32 %v1692, 7
        %v1694 = vsub.s32 0, %v1693
        %v1695 = vrot.slane %v1690, %v1694
        %v1696 = vlaneseq
        %v1697 = vshrl.u32 %v1696, 7
        %v1698 = vsub.s32 1, %v1697
        %v1699 = vrot.slane %v1690, %v1698
        %vm1702 = vcmask 523264
        %v1704 = vsel %vm1702, %v1463, 0
        %v1707 = vsel %vm1702, %v1464, 0
        %v1710 = vsel %vm1702, %v1465, 0
        %v1713 = vsel %vm1702, %v1466, 0
        %1715 = vmatprep.subr.mxu0 %v1675
        %1716 = vmatpush1.msra.mxu0 %v1674
        %1717 = vmatprep.subr.mxu0 %v1677
        %1718 = vmatpush1.msra.mxu0 %v1676
        %1719 = vmatprep.subr.mxu0 %v1679
        %1720 = vmatpush1.msra.mxu0 %v1678
        %1721 = vmatprep.subr.mxu0 %v1681
        %1722 = vmatpush1.msra.mxu0 %v1680
        %1723 = vmatprep.subr.mxu0 %v1683
        %1724 = vmatpush1.msra.mxu0 %v1682
        %1725 = vmatprep.subr.mxu0 %v1685
        %1726 = vmatpush1.msra.mxu0 %v1684
        %1727 = vmatprep.subr.mxu0 %v1687
        %1728 = vmatpush1.msra.mxu0 %v1686
        %1729 = vmatprep.subr.mxu0 %v1689
        %1730 = vmatpush1.msra.mxu0 %v1688
        %1731 = vmatprep.subr.mxu0 0.0
        %1732 = vmatpush1.msra.mxu0 0.0
        %1733 = vmatprep.subr.mxu0 0.0
        %1734 = vmatpush1.msra.mxu0 0.0
        %1735 = vmatprep.subr.mxu0 0.0
        %1736 = vmatpush1.msra.mxu0 0.0
        %1737 = vmatprep.subr.mxu0 0.0
        %1738 = vmatpush1.msra.mxu0 0.0
        %1739 = vmatprep.subr.mxu0 0.0
        %1740 = vmatpush1.msra.mxu0 0.0
        %1741 = vmatprep.subr.mxu0 0.0
        %1742 = vmatpush1.msra.mxu0 0.0
        %1743 = vmatprep.subr.mxu0 0.0
        %1744 = vmatpush1.msra.mxu0 0.0
        %1745 = vmatprep.subr.mxu0 0.0
        %1746 = vmatpush1.msra.mxu0 0.0
        %1747 = vmatprep.subr.mxu0 0.0
        %1748 = vmatpush1.msra.mxu0 0.0
        %1749 = vmatprep.subr.mxu0 0.0
        %1750 = vmatpush1.msra.mxu0 0.0
        %1751 = vmatprep.subr.mxu0 0.0
        %1752 = vmatpush1.msra.mxu0 0.0
        %1753 = vmatprep.subr.mxu0 0.0
        %1754 = vmatpush1.msra.mxu0 0.0
        %1755 = vmatprep.subr.mxu0 0.0
        %1756 = vmatpush1.msra.mxu0 0.0
        %1757 = vmatprep.subr.mxu0 0.0
        %1758 = vmatpush1.msra.mxu0 0.0
        %1759 = vmatprep.subr.mxu0 0.0
        %1760 = vmatpush1.msra.mxu0 0.0
        %1761 = vmatprep.subr.mxu0 0.0
        %1762 = vmatpush1.msra.mxu0 0.0
        %1763 = vmatprep.subr.mxu0 0.0
        %1764 = vmatpush1.msra.mxu0 0.0
        %1765 = vmatprep.subr.mxu0 0.0
        %1766 = vmatpush1.msra.mxu0 0.0
        %1767 = vmatprep.subr.mxu0 0.0
        %1768 = vmatpush1.msra.mxu0 0.0
        %1769 = vmatprep.subr.mxu0 0.0
        %1770 = vmatpush1.msra.mxu0 0.0
        %1771 = vmatprep.subr.mxu0 0.0
        %1772 = vmatpush1.msra.mxu0 0.0
        %1773 = vmatprep.subr.mxu0 0.0
        %1774 = vmatpush1.msra.mxu0 0.0
        %1775 = vmatprep.subr.mxu0 0.0
        %1776 = vmatpush1.msra.mxu0 0.0
        %1777 = vmatprep.subr.mxu0 0.0
        %1778 = vmatpush1.msra.mxu0 0.0
        %1779 = vmatprep.mubr.f32.mxu0 0.0
        %1780 = vmatmul.mubr.f32.gmra.mrb[0].mxu0 %v1704
        %v1781 = vpop.f32.mrb[0].mxu0
        %v1782 = vadd.f32 %v1695, %v1781
        %v1783 = vpop.f32.mrb[0].mxu0
        %v1784 = vadd.f32 %v1699, %v1783
        %1785 = vmatprep.mubr.f32.mxu0 0.0
        %1786 = vmatmul.mubr.f32.gmra.mrb[0].mxu0 %v1707
        %v1787 = vpop.f32.mrb[0].mxu0
        %v1788 = vadd.f32 %v1695, %v1787
        %v1789 = vpop.f32.mrb[0].mxu0
        %v1790 = vadd.f32 %v1699, %v1789
        %1791 = vmatprep.mubr.f32.mxu0 0.0
        %1792 = vmatmul.mubr.f32.gmra.mrb[0].mxu0 %v1710
        %v1793 = vpop.f32.mrb[0].mxu0
        %v1794 = vadd.f32 %v1695, %v1793
        %v1795 = vpop.f32.mrb[0].mxu0
        %v1796 = vadd.f32 %v1699, %v1795
        %1797 = vmatprep.mubr.f32.mxu0 0.0
        %1798 = vmatmul.mubr.f32.gmra.mrb[0].mxu0 %v1713
        %v1799 = vpop.f32.mrb[0].mxu0
        %v1800 = vadd.f32 %v1695, %v1799
        %v1801 = vpop.f32.mrb[0].mxu0
        %v1802 = vadd.f32 %v1699, %v1801
        %1803 = vdwg.mxu0
        %v1804 = vmul.f32 %v1782, 0.35355338
        %v1805 = vmul.f32 %v1788, 0.35355338
        %v1806 = vmul.f32 %v1794, 0.35355338
        %v1807 = vmul.f32 %v1800, 0.35355338
        %v1808 = vmul.f32 %v1804, %v1501
        %v1809 = vmul.f32 %v1805, %v1501
        %v1810 = vmul.f32 %v1806, %v1501
        %v1811 = vmul.f32 %v1807, %v1501
        %v1812 = vmul.f32 %v1804, %v1502
        %v1813 = vmul.f32 %v1805, %v1502
        %v1814 = vmul.f32 %v1806, %v1502
        %v1815 = vmul.f32 %v1807, %v1502
        %v1816 = vmul.f32 %v1804, %v1503
        %v1817 = vmul.f32 %v1805, %v1503
        %v1818 = vmul.f32 %v1806, %v1503
        %v1819 = vmul.f32 %v1807, %v1503
        %v1820 = vmul.f32 %v1804, %v1504
        %v1821 = vmul.f32 %v1805, %v1504
        %v1822 = vmul.f32 %v1806, %v1504
        %v1823 = vmul.f32 %v1807, %v1504
        %v1824 = vmul.f32 %v1804, %v1505
        %v1825 = vmul.f32 %v1805, %v1505
        %v1826 = vmul.f32 %v1806, %v1505
        %v1827 = vmul.f32 %v1807, %v1505
        %v1828 = vmul.f32 %v1804, %v1506
        %v1829 = vmul.f32 %v1805, %v1506
        %v1830 = vmul.f32 %v1806, %v1506
        %v1831 = vmul.f32 %v1807, %v1506
        %v1832 = vmul.f32 %v1804, %v1507
        %v1833 = vmul.f32 %v1805, %v1507
        %v1834 = vmul.f32 %v1806, %v1507
        %v1835 = vmul.f32 %v1807, %v1507
        %v1836 = vmul.f32 %v1804, %v1508
        %v1837 = vmul.f32 %v1805, %v1508
        %v1838 = vmul.f32 %v1806, %v1508
        %v1839 = vmul.f32 %v1807, %v1508
        %1844 = vrot.lane.b32.xlu0 %v1782, 64
        %v1845 = vpop.permute.xlu0 %1844
        %1846 = vrot.lane.b32.xlu0 %v1788, 64
        %v1847 = vpop.permute.xlu0 %1846
        %1848 = vrot.lane.b32.xlu0 %v1794, 64
        %v1849 = vpop.permute.xlu0 %1848
        %1850 = vrot.lane.b32.xlu0 %v1800, 64
        %v1851 = vpop.permute.xlu0 %1850
        %v1853 = vsel %vm1702, %v1808, 0
        %v1856 = vsel %vm1702, %v1809, 0
        %v1859 = vsel %vm1702, %v1810, 0
        %v1862 = vsel %vm1702, %v1811, 0
        %v1865 = vsel %vm1702, %v1812, 0
        %v1868 = vsel %vm1702, %v1813, 0
        %v1871 = vsel %vm1702, %v1814, 0
        %v1874 = vsel %vm1702, %v1815, 0
        %v1877 = vsel %vm1702, %v1816, 0
        %v1880 = vsel %vm1702, %v1817, 0
        %v1883 = vsel %vm1702, %v1818, 0
        %v1886 = vsel %vm1702, %v1819, 0
        %v1889 = vsel %vm1702, %v1820, 0
        %v1892 = vsel %vm1702, %v1821, 0
        %v1895 = vsel %vm1702, %v1822, 0
        %v1898 = vsel %vm1702, %v1823, 0
        %v1901 = vsel %vm1702, %v1824, 0
        %v1904 = vsel %vm1702, %v1825, 0
        %v1907 = vsel %vm1702, %v1826, 0
        %v1910 = vsel %vm1702, %v1827, 0
        %v1913 = vsel %vm1702, %v1828, 0
        %v1916 = vsel %vm1702, %v1829, 0
        %v1919 = vsel %vm1702, %v1830, 0
        %v1922 = vsel %vm1702, %v1831, 0
        %v1925 = vsel %vm1702, %v1832, 0
        %v1928 = vsel %vm1702, %v1833, 0
        %v1931 = vsel %vm1702, %v1834, 0
        %v1934 = vsel %vm1702, %v1835, 0
        %v1937 = vsel %vm1702, %v1836, 0
        %v1940 = vsel %vm1702, %v1837, 0
        %v1943 = vsel %vm1702, %v1838, 0
        %v1946 = vsel %vm1702, %v1839, 0
        %v1948 = vsel %vm1702, %v1845, 0
        %v1950 = vsel %vm1702, %v1847, 0
        %v1952 = vsel %vm1702, %v1849, 0
        %v1954 = vsel %vm1702, %v1851, 0
        %1956 = vmatprep.subr.mxu0 0.0
        %1957 = vmatpush1.xpose.msra.mxu0 %v1948
        %1958 = vmatprep.subr.mxu0 0.0
        %1959 = vmatpush1.xpose.msra.mxu0 %v1950
        %1960 = vmatprep.subr.mxu0 0.0
        %1961 = vmatpush1.xpose.msra.mxu0 %v1952
        %1962 = vmatprep.subr.mxu0 0.0
        %1963 = vmatpush1.xpose.msra.mxu0 %v1954
        %1964 = vmatprep.subr.mxu0 0.0
        %1965 = vmatpush1.xpose.msra.mxu0 0.0
        %1966 = vmatprep.subr.mxu0 0.0
        %1967 = vmatpush1.xpose.msra.mxu0 0.0
        %1968 = vmatprep.subr.mxu0 0.0
        %1969 = vmatpush1.xpose.msra.mxu0 0.0
        %1970 = vmatprep.subr.mxu0 0.0
        %1971 = vmatpush1.xpose.msra.mxu0 0.0
        %1972 = vmatprep.subr.mxu0 0.0
        %1973 = vmatpush1.xpose.msra.mxu0 0.0
        %1974 = vmatprep.subr.mxu0 0.0
        %1975 = vmatpush1.xpose.msra.mxu0 0.0
        %1976 = vmatprep.subr.mxu0 0.0
        %1977 = vmatpush1.xpose.msra.mxu0 0.0
        %1978 = vmatprep.subr.mxu0 0.0
        %1979 = vmatpush1.xpose.msra.mxu0 0.0
        %1980 = vmatprep.subr.mxu0 0.0
        %1981 = vmatpush1.xpose.msra.mxu0 0.0
        %1982 = vmatprep.subr.mxu0 0.0
        %1983 = vmatpush1.xpose.msra.mxu0 0.0
        %1984 = vmatprep.subr.mxu0 0.0
        %1985 = vmatpush1.xpose.msra.mxu0 0.0
        %1986 = vmatprep.subr.mxu0 0.0
        %1987 = vmatpush1.xpose.msra.mxu0 0.0
        %1988 = vmatprep.subr.mxu0 0.0
        %1989 = vmatpush1.xpose.msra.mxu0 0.0
        %1990 = vmatprep.subr.mxu0 0.0
        %1991 = vmatpush1.xpose.msra.mxu0 0.0
        %1992 = vmatprep.subr.mxu0 0.0
        %1993 = vmatpush1.xpose.msra.mxu0 0.0
        %1994 = vmatprep.subr.mxu0 0.0
        %1995 = vmatpush1.xpose.msra.mxu0 0.0
        %1996 = vmatprep.subr.mxu0 0.0
        %1997 = vmatpush1.xpose.msra.mxu0 0.0
        %1998 = vmatprep.subr.mxu0 0.0
        %1999 = vmatpush1.xpose.msra.mxu0 0.0
        %2000 = vmatprep.subr.mxu0 0.0
        %2001 = vmatpush1.xpose.msra.mxu0 0.0
        %2002 = vmatprep.subr.mxu0 0.0
        %2003 = vmatpush1.xpose.msra.mxu0 0.0
        %2004 = vmatprep.subr.mxu0 0.0
        %2005 = vmatpush1.xpose.msra.mxu0 0.0
        %2006 = vmatprep.subr.mxu0 0.0
        %2007 = vmatpush1.xpose.msra.mxu0 0.0
        %2008 = vmatprep.subr.mxu0 0.0
        %2009 = vmatpush1.xpose.msra.mxu0 0.0
        %2010 = vmatprep.subr.mxu0 0.0
        %2011 = vmatpush1.xpose.msra.mxu0 0.0
        %2012 = vmatprep.subr.mxu0 0.0
        %2013 = vmatpush1.xpose.msra.mxu0 0.0
        %2014 = vmatprep.subr.mxu0 0.0
        %2015 = vmatpush1.xpose.msra.mxu0 0.0
        %2016 = vmatprep.subr.mxu0 0.0
        %2017 = vmatpush1.xpose.msra.mxu0 0.0
        %2018 = vmatprep.subr.mxu0 0.0
        %2019 = vmatpush1.xpose.msra.mxu0 0.0
        %2020 = vmatprep.mubr.f32.mxu0 0.0
        %2021 = vmatmul.mubr.f32.gmra.mrb[0].mxu0 %v1853
        %v2022 = vpop.f32.mrb[0].mxu0
        %v2023 = vadd.f32 0.0, %v2022
        %v2024 = vpop.f32.mrb[0].mxu0
        %2025 = vmatprep.mubr.f32.mxu0 0.0
        %2026 = vmatmul.mubr.f32.gmra.mrb[0].mxu0 %v1856
        %v2027 = vpop.f32.mrb[0].mxu0
        %v2028 = vadd.f32 0.0, %v2027
        %v2029 = vpop.f32.mrb[0].mxu0
        %2030 = vmatprep.mubr.f32.mxu0 0.0
        %2031 = vmatmul.mubr.f32.gmra.mrb[0].mxu0 %v1859
        %v2032 = vpop.f32.mrb[0].mxu0
        %v2033 = vadd.f32 0.0, %v2032
        %v2034 = vpop.f32.mrb[0].mxu0
        %2035 = vmatprep.mubr.f32.mxu0 0.0
        %2036 = vmatmul.mubr.f32.gmra.mrb[0].mxu0 %v1862
        %v2037 = vpop.f32.mrb[0].mxu0
        %v2038 = vadd.f32 0.0, %v2037
        %v2039 = vpop.f32.mrb[0].mxu0
        %2040 = vmatprep.mubr.f32.mxu0 0.0
        %2041 = vmatmul.mubr.f32.gmra.mrb[0].mxu0 %v1865
        %v2042 = vpop.f32.mrb[0].mxu0
        %v2043 = vadd.f32 0.0, %v2042
        %v2044 = vpop.f32.mrb[0].mxu0
        %2045 = vmatprep.mubr.f32.mxu0 0.0
        %2046 = vmatmul.mubr.f32.gmra.mrb[0].mxu0 %v1868
        %v2047 = vpop.f32.mrb[0].mxu0
        %v2048 = vadd.f32 0.0, %v2047
        %v2049 = vpop.f32.mrb[0].mxu0
        %2050 = vmatprep.mubr.f32.mxu0 0.0
        %2051 = vmatmul.mubr.f32.gmra.mrb[0].mxu0 %v1871
        %v2052 = vpop.f32.mrb[0].mxu0
        %v2053 = vadd.f32 0.0, %v2052
        %v2054 = vpop.f32.mrb[0].mxu0
        %2055 = vmatprep.mubr.f32.mxu0 0.0
        %2056 = vmatmul.mubr.f32.gmra.mrb[0].mxu0 %v1874
        %v2057 = vpop.f32.mrb[0].mxu0
        %v2058 = vadd.f32 0.0, %v2057
        %v2059 = vpop.f32.mrb[0].mxu0
        %2060 = vmatprep.mubr.f32.mxu0 0.0
        %2061 = vmatmul.mubr.f32.gmra.mrb[0].mxu0 %v1877
        %v2062 = vpop.f32.mrb[0].mxu0
        %v2063 = vadd.f32 0.0, %v2062
        %v2064 = vpop.f32.mrb[0].mxu0
        %2065 = vmatprep.mubr.f32.mxu0 0.0
        %2066 = vmatmul.mubr.f32.gmra.mrb[0].mxu0 %v1880
        %v2067 = vpop.f32.mrb[0].mxu0
        %v2068 = vadd.f32 0.0, %v2067
        %v2069 = vpop.f32.mrb[0].mxu0
        %2070 = vmatprep.mubr.f32.mxu0 0.0
        %2071 = vmatmul.mubr.f32.gmra.mrb[0].mxu0 %v1883
        %v2072 = vpop.f32.mrb[0].mxu0
        %v2073 = vadd.f32 0.0, %v2072
        %v2074 = vpop.f32.mrb[0].mxu0
        %2075 = vmatprep.mubr.f32.mxu0 0.0
        %2076 = vmatmul.mubr.f32.gmra.mrb[0].mxu0 %v1886
        %v2077 = vpop.f32.mrb[0].mxu0
        %v2078 = vadd.f32 0.0, %v2077
        %v2079 = vpop.f32.mrb[0].mxu0
        %2080 = vmatprep.mubr.f32.mxu0 0.0
        %2081 = vmatmul.mubr.f32.gmra.mrb[0].mxu0 %v1889
        %v2082 = vpop.f32.mrb[0].mxu0
        %v2083 = vadd.f32 0.0, %v2082
        %v2084 = vpop.f32.mrb[0].mxu0
        %2085 = vmatprep.mubr.f32.mxu0 0.0
        %2086 = vmatmul.mubr.f32.gmra.mrb[0].mxu0 %v1892
        %v2087 = vpop.f32.mrb[0].mxu0
        %v2088 = vadd.f32 0.0, %v2087
        %v2089 = vpop.f32.mrb[0].mxu0
        %2090 = vmatprep.mubr.f32.mxu0 0.0
        %2091 = vmatmul.mubr.f32.gmra.mrb[0].mxu0 %v1895
        %v2092 = vpop.f32.mrb[0].mxu0
        %v2093 = vadd.f32 0.0, %v2092
        %v2094 = vpop.f32.mrb[0].mxu0
        %2095 = vmatprep.mubr.f32.mxu0 0.0
        %2096 = vmatmul.mubr.f32.gmra.mrb[0].mxu0 %v1898
        %v2097 = vpop.f32.mrb[0].mxu0
        %v2098 = vadd.f32 0.0, %v2097
        %v2099 = vpop.f32.mrb[0].mxu0
        %2100 = vmatprep.mubr.f32.mxu0 0.0
        %2101 = vmatmul.mubr.f32.gmra.mrb[0].mxu0 %v1901
        %v2102 = vpop.f32.mrb[0].mxu0
        %v2103 = vadd.f32 0.0, %v2102
        %v2104 = vpop.f32.mrb[0].mxu0
        %2105 = vmatprep.mubr.f32.mxu0 0.0
        %2106 = vmatmul.mubr.f32.gmra.mrb[0].mxu0 %v1904
        %v2107 = vpop.f32.mrb[0].mxu0
        %v2108 = vadd.f32 0.0, %v2107
        %v2109 = vpop.f32.mrb[0].mxu0
        %2110 = vmatprep.mubr.f32.mxu0 0.0
        %2111 = vmatmul.mubr.f32.gmra.mrb[0].mxu0 %v1907
        %v2112 = vpop.f32.mrb[0].mxu0
        %v2113 = vadd.f32 0.0, %v2112
        %v2114 = vpop.f32.mrb[0].mxu0
        %2115 = vmatprep.mubr.f32.mxu0 0.0
        %2116 = vmatmul.mubr.f32.gmra.mrb[0].mxu0 %v1910
        %v2117 = vpop.f32.mrb[0].mxu0
        %v2118 = vadd.f32 0.0, %v2117
        %v2119 = vpop.f32.mrb[0].mxu0
        %2120 = vmatprep.mubr.f32.mxu0 0.0
        %2121 = vmatmul.mubr.f32.gmra.mrb[0].mxu0 %v1913
        %v2122 = vpop.f32.mrb[0].mxu0
        %v2123 = vadd.f32 0.0, %v2122
        %v2124 = vpop.f32.mrb[0].mxu0
        %2125 = vmatprep.mubr.f32.mxu0 0.0
        %2126 = vmatmul.mubr.f32.gmra.mrb[0].mxu0 %v1916
        %v2127 = vpop.f32.mrb[0].mxu0
        %v2128 = vadd.f32 0.0, %v2127
        %v2129 = vpop.f32.mrb[0].mxu0
        %2130 = vmatprep.mubr.f32.mxu0 0.0
        %2131 = vmatmul.mubr.f32.gmra.mrb[0].mxu0 %v1919
        %v2132 = vpop.f32.mrb[0].mxu0
        %v2133 = vadd.f32 0.0, %v2132
        %v2134 = vpop.f32.mrb[0].mxu0
        %2135 = vmatprep.mubr.f32.mxu0 0.0
        %2136 = vmatmul.mubr.f32.gmra.mrb[0].mxu0 %v1922
        %v2137 = vpop.f32.mrb[0].mxu0
        %v2138 = vadd.f32 0.0, %v2137
        %v2139 = vpop.f32.mrb[0].mxu0
        %2140 = vmatprep.mubr.f32.mxu0 0.0
        %2141 = vmatmul.mubr.f32.gmra.mrb[0].mxu0 %v1925
        %v2142 = vpop.f32.mrb[0].mxu0
        %v2143 = vadd.f32 0.0, %v2142
        %v2144 = vpop.f32.mrb[0].mxu0
        %2145 = vmatprep.mubr.f32.mxu0 0.0
        %2146 = vmatmul.mubr.f32.gmra.mrb[0].mxu0 %v1928
        %v2147 = vpop.f32.mrb[0].mxu0
        %v2148 = vadd.f32 0.0, %v2147
        %v2149 = vpop.f32.mrb[0].mxu0
        %2150 = vmatprep.mubr.f32.mxu0 0.0
        %2151 = vmatmul.mubr.f32.gmra.mrb[0].mxu0 %v1931
        %v2152 = vpop.f32.mrb[0].mxu0
        %v2153 = vadd.f32 0.0, %v2152
        %v2154 = vpop.f32.mrb[0].mxu0
        %2155 = vmatprep.mubr.f32.mxu0 0.0
        %2156 = vmatmul.mubr.f32.gmra.mrb[0].mxu0 %v1934
        %v2157 = vpop.f32.mrb[0].mxu0
        %v2158 = vadd.f32 0.0, %v2157
        %v2159 = vpop.f32.mrb[0].mxu0
        %2160 = vmatprep.mubr.f32.mxu0 0.0
        %2161 = vmatmul.mubr.f32.gmra.mrb[0].mxu0 %v1937
        %v2162 = vpop.f32.mrb[0].mxu0
        %v2163 = vadd.f32 0.0, %v2162
        %v2164 = vpop.f32.mrb[0].mxu0
        %2165 = vmatprep.mubr.f32.mxu0 0.0
        %2166 = vmatmul.mubr.f32.gmra.mrb[0].mxu0 %v1940
        %v2167 = vpop.f32.mrb[0].mxu0
        %v2168 = vadd.f32 0.0, %v2167
        %v2169 = vpop.f32.mrb[0].mxu0
        %2170 = vmatprep.mubr.f32.mxu0 0.0
        %2171 = vmatmul.mubr.f32.gmra.mrb[0].mxu0 %v1943
        %v2172 = vpop.f32.mrb[0].mxu0
        %v2173 = vadd.f32 0.0, %v2172
        %v2174 = vpop.f32.mrb[0].mxu0
        %2175 = vmatprep.mubr.f32.mxu0 0.0
        %2176 = vmatmul.mubr.f32.gmra.mrb[0].mxu0 %v1946
        %v2177 = vpop.f32.mrb[0].mxu0
        %v2178 = vadd.f32 0.0, %v2177
        %v2179 = vpop.f32.mrb[0].mxu0
        %2180 = vdwg.mxu0
        %v2181 = vsel %vm1642, %v2023, -inf
        %v2182 = vsel %vm1643, %v2028, -inf
        %v2183 = vsel %vm1644, %v2033, -inf
        %v2184 = vsel %vm1645, %v2038, -inf
        %v2185 = vsel %vm1646, %v2043, -inf
        %v2186 = vsel %vm1647, %v2048, -inf
        %v2187 = vsel %vm1648, %v2053, -inf
        %v2188 = vsel %vm1649, %v2058, -inf
        %v2189 = vsel %vm1650, %v2063, -inf
        %v2190 = vsel %vm1651, %v2068, -inf
        %v2191 = vsel %vm1652, %v2073, -inf
        %v2192 = vsel %vm1653, %v2078, -inf
        %v2193 = vsel %vm1654, %v2083, -inf
        %v2194 = vsel %vm1655, %v2088, -inf
        %v2195 = vsel %vm1656, %v2093, -inf
        %v2196 = vsel %vm1657, %v2098, -inf
        %v2197 = vsel %vm1658, %v2103, -inf
        %v2198 = vsel %vm1659, %v2108, -inf
        %v2199 = vsel %vm1660, %v2113, -inf
        %v2200 = vsel %vm1661, %v2118, -inf
        %v2201 = vsel %vm1662, %v2123, -inf
        %v2202 = vsel %vm1663, %v2128, -inf
        %v2203 = vsel %vm1664, %v2133, -inf
        %v2204 = vsel %vm1665, %v2138, -inf
        %v2205 = vsel %vm1666, %v2143, -inf
        %v2206 = vsel %vm1667, %v2148, -inf
        %v2207 = vsel %vm1668, %v2153, -inf
        %v2208 = vsel %vm1669, %v2158, -inf
        %v2209 = vsel %vm1670, %v2163, -inf
        %v2210 = vsel %vm1671, %v2168, -inf
        %v2211 = vsel %vm1672, %v2173, -inf
        %v2212 = vsel %vm1673, %v2178, -inf
        %vm2213 = vcmask 261120
        %v2214 = vsel %vm2213, %v2181, -inf
        %2215 = vmax.xlane.f32.xlu0 %v2214
        %v2216 = vpop.xlane.xlu0 %2215
        %v2217 = vsel %vm2213, %v2182, -inf
        %2218 = vmax.xlane.f32.xlu0 %v2217
        %v2219 = vpop.xlane.xlu0 %2218
        %v2220 = vsel %vm2213, %v2183, -inf
        %2221 = vmax.xlane.f32.xlu0 %v2220
        %v2222 = vpop.xlane.xlu0 %2221
        %v2223 = vsel %vm2213, %v2184, -inf
        %2224 = vmax.xlane.f32.xlu0 %v2223
        %v2225 = vpop.xlane.xlu0 %2224
        %v2226 = vsel %vm2213, %v2185, -inf
        %2227 = vmax.xlane.f32.xlu0 %v2226
        %v2228 = vpop.xlane.xlu0 %2227
        %v2229 = vsel %vm2213, %v2186, -inf
        %2230 = vmax.xlane.f32.xlu0 %v2229
        %v2231 = vpop.xlane.xlu0 %2230
        %v2232 = vsel %vm2213, %v2187, -inf
        %2233 = vmax.xlane.f32.xlu0 %v2232
        %v2234 = vpop.xlane.xlu0 %2233
        %v2235 = vsel %vm2213, %v2188, -inf
        %2236 = vmax.xlane.f32.xlu0 %v2235
        %v2237 = vpop.xlane.xlu0 %2236
        %v2238 = vsel %vm2213, %v2189, -inf
        %2239 = vmax.xlane.f32.xlu0 %v2238
        %v2240 = vpop.xlane.xlu0 %2239
        %v2241 = vsel %vm2213, %v2190, -inf
        %2242 = vmax.xlane.f32.xlu0 %v2241
        %v2243 = vpop.xlane.xlu0 %2242
        %v2244 = vsel %vm2213, %v2191, -inf
        %2245 = vmax.xlane.f32.xlu0 %v2244
        %v2246 = vpop.xlane.xlu0 %2245
        %v2247 = vsel %vm2213, %v2192, -inf
        %2248 = vmax.xlane.f32.xlu0 %v2247
        %v2249 = vpop.xlane.xlu0 %2248
        %v2250 = vsel %vm2213, %v2193, -inf
        %2251 = vmax.xlane.f32.xlu0 %v2250
        %v2252 = vpop.xlane.xlu0 %2251
        %v2253 = vsel %vm2213, %v2194, -inf
        %2254 = vmax.xlane.f32.xlu0 %v2253
        %v2255 = vpop.xlane.xlu0 %2254
        %v2256 = vsel %vm2213, %v2195, -inf
        %2257 = vmax.xlane.f32.xlu0 %v2256
        %v2258 = vpop.xlane.xlu0 %2257
        %v2259 = vsel %vm2213, %v2196, -inf
        %2260 = vmax.xlane.f32.xlu0 %v2259
        %v2261 = vpop.xlane.xlu0 %2260
        %v2262 = vsel %vm2213, %v2197, -inf
        %2263 = vmax.xlane.f32.xlu0 %v2262
        %v2264 = vpop.xlane.xlu0 %2263
        %v2265 = vsel %vm2213, %v2198, -inf
        %2266 = vmax.xlane.f32.xlu0 %v2265
        %v2267 = vpop.xlane.xlu0 %2266
        %v2268 = vsel %vm2213, %v2199, -inf
        %2269 = vmax.xlane.f32.xlu0 %v2268
        %v2270 = vpop.xlane.xlu0 %2269
        %v2271 = vsel %vm2213, %v2200, -inf
        %2272 = vmax.xlane.f32.xlu0 %v2271
        %v2273 = vpop.xlane.xlu0 %2272
        %v2274 = vsel %vm2213, %v2201, -inf
        %2275 = vmax.xlane.f32.xlu0 %v2274
        %v2276 = vpop.xlane.xlu0 %2275
        %v2277 = vsel %vm2213, %v2202, -inf
        %2278 = vmax.xlane.f32.xlu0 %v2277
        %v2279 = vpop.xlane.xlu0 %2278
        %v2280 = vsel %vm2213, %v2203, -inf
        %2281 = vmax.xlane.f32.xlu0 %v2280
        %v2282 = vpop.xlane.xlu0 %2281
        %v2283 = vsel %vm2213, %v2204, -inf
        %2284 = vmax.xlane.f32.xlu0 %v2283
        %v2285 = vpop.xlane.xlu0 %2284
        %v2286 = vsel %vm2213, %v2205, -inf
        %2287 = vmax.xlane.f32.xlu0 %v2286
        %v2288 = vpop.xlane.xlu0 %2287
        %v2289 = vsel %vm2213, %v2206, -inf
        %2290 = vmax.xlane.f32.xlu0 %v2289
        %v2291 = vpop.xlane.xlu0 %2290
        %v2292 = vsel %vm2213, %v2207, -inf
        %2293 = vmax.xlane.f32.xlu0 %v2292
        %v2294 = vpop.xlane.xlu0 %2293
        %v2295 = vsel %vm2213, %v2208, -inf
        %2296 = vmax.xlane.f32.xlu0 %v2295
        %v2297 = vpop.xlane.xlu0 %2296
        %v2298 = vsel %vm2213, %v2209, -inf
        %2299 = vmax.xlane.f32.xlu0 %v2298
        %v2300 = vpop.xlane.xlu0 %2299
        %v2301 = vsel %vm2213, %v2210, -inf
        %2302 = vmax.xlane.f32.xlu0 %v2301
        %v2303 = vpop.xlane.xlu0 %2302
        %v2304 = vsel %vm2213, %v2211, -inf
        %2305 = vmax.xlane.f32.xlu0 %v2304
        %v2306 = vpop.xlane.xlu0 %2305
        %v2307 = vsel %vm2213, %v2212, -inf
        %2308 = vmax.xlane.f32.xlu0 %v2307
        %v2309 = vpop.xlane.xlu0 %2308
        %v2310 = vsub.f32 %v2181, %v2216
        %v2311 = vsub.f32 %v2182, %v2219
        %v2312 = vsub.f32 %v2183, %v2222
        %v2313 = vsub.f32 %v2184, %v2225
        %v2314 = vsub.f32 %v2185, %v2228
        %v2315 = vsub.f32 %v2186, %v2231
        %v2316 = vsub.f32 %v2187, %v2234
        %v2317 = vsub.f32 %v2188, %v2237
        %v2318 = vsub.f32 %v2189, %v2240
        %v2319 = vsub.f32 %v2190, %v2243
        %v2320 = vsub.f32 %v2191, %v2246
        %v2321 = vsub.f32 %v2192, %v2249
        %v2322 = vsub.f32 %v2193, %v2252
        %v2323 = vsub.f32 %v2194, %v2255
        %v2324 = vsub.f32 %v2195, %v2258
        %v2325 = vsub.f32 %v2196, %v2261
        %v2326 = vsub.f32 %v2197, %v2264
        %v2327 = vsub.f32 %v2198, %v2267
        %v2328 = vsub.f32 %v2199, %v2270
        %v2329 = vsub.f32 %v2200, %v2273
        %v2330 = vsub.f32 %v2201, %v2276
        %v2331 = vsub.f32 %v2202, %v2279
        %v2332 = vsub.f32 %v2203, %v2282
        %v2333 = vsub.f32 %v2204, %v2285
        %v2334 = vsub.f32 %v2205, %v2288
        %v2335 = vsub.f32 %v2206, %v2291
        %v2336 = vsub.f32 %v2207, %v2294
        %v2337 = vsub.f32 %v2208, %v2297
        %v2338 = vsub.f32 %v2209, %v2300
        %v2339 = vsub.f32 %v2210, %v2303
        %v2340 = vsub.f32 %v2211, %v2306
        %v2341 = vsub.f32 %v2212, %v2309
        %v2342 = vmul.f32 %v2310, 1.442695
        %v2343 = vpow.pop %v2342
        %v2344 = vmul.f32 %v2311, 1.442695
        %v2345 = vpow.pop %v2344
        %v2346 = vmul.f32 %v2312, 1.442695
        %v2347 = vpow.pop %v2346
        %v2348 = vmul.f32 %v2313, 1.442695
        %v2349 = vpow.pop %v2348
        %v2350 = vmul.f32 %v2314, 1.442695
        %v2351 = vpow.pop %v2350
        %v2352 = vmul.f32 %v2315, 1.442695
        %v2353 = vpow.pop %v2352
        %v2354 = vmul.f32 %v2316, 1.442695
        %v2355 = vpow.pop %v2354
        %v2356 = vmul.f32 %v2317, 1.442695
        %v2357 = vpow.pop %v2356
        %v2358 = vmul.f32 %v2318, 1.442695
        %v2359 = vpow.pop %v2358
        %v2360 = vmul.f32 %v2319, 1.442695
        %v2361 = vpow.pop %v2360
        %v2362 = vmul.f32 %v2320, 1.442695
        %v2363 = vpow.pop %v2362
        %v2364 = vmul.f32 %v2321, 1.442695
        %v2365 = vpow.pop %v2364
        %v2366 = vmul.f32 %v2322, 1.442695
        %v2367 = vpow.pop %v2366
        %v2368 = vmul.f32 %v2323, 1.442695
        %v2369 = vpow.pop %v2368
        %v2370 = vmul.f32 %v2324, 1.442695
        %v2371 = vpow.pop %v2370
        %v2372 = vmul.f32 %v2325, 1.442695
        %v2373 = vpow.pop %v2372
        %v2374 = vmul.f32 %v2326, 1.442695
        %v2375 = vpow.pop %v2374
        %v2376 = vmul.f32 %v2327, 1.442695
        %v2377 = vpow.pop %v2376
        %v2378 = vmul.f32 %v2328, 1.442695
        %v2379 = vpow.pop %v2378
        %v2380 = vmul.f32 %v2329, 1.442695
        %v2381 = vpow.pop %v2380
        %v2382 = vmul.f32 %v2330, 1.442695
        %v2383 = vpow.pop %v2382
        %v2384 = vmul.f32 %v2331, 1.442695
        %v2385 = vpow.pop %v2384
        %v2386 = vmul.f32 %v2332, 1.442695
        %v2387 = vpow.pop %v2386
        %v2388 = vmul.f32 %v2333, 1.442695
        %v2389 = vpow.pop %v2388
        %v2390 = vmul.f32 %v2334, 1.442695
        %v2391 = vpow.pop %v2390
        %v2392 = vmul.f32 %v2335, 1.442695
        %v2393 = vpow.pop %v2392
        %v2394 = vmul.f32 %v2336, 1.442695
        %v2395 = vpow.pop %v2394
        %v2396 = vmul.f32 %v2337, 1.442695
        %v2397 = vpow.pop %v2396
        %v2398 = vmul.f32 %v2338, 1.442695
        %v2399 = vpow.pop %v2398
        %v2400 = vmul.f32 %v2339, 1.442695
        %v2401 = vpow.pop %v2400
        %v2402 = vmul.f32 %v2340, 1.442695
        %v2403 = vpow.pop %v2402
        %v2404 = vmul.f32 %v2341, 1.442695
        %v2405 = vpow.pop %v2404
        %v2406 = vsel %vm2213, %v2343, 0.0
        %2407 = vadd.xlane.f32.xlu0 %v2406
        %v2408 = vpop.xlane.xlu0 %2407
        %v2409 = vsel %vm2213, %v2345, 0.0
        %2410 = vadd.xlane.f32.xlu0 %v2409
        %v2411 = vpop.xlane.xlu0 %2410
        %v2412 = vsel %vm2213, %v2347, 0.0
        %2413 = vadd.xlane.f32.xlu0 %v2412
        %v2414 = vpop.xlane.xlu0 %2413
        %v2415 = vsel %vm2213, %v2349, 0.0
        %2416 = vadd.xlane.f32.xlu0 %v2415
        %v2417 = vpop.xlane.xlu0 %2416
        %v2418 = vsel %vm2213, %v2351, 0.0
        %2419 = vadd.xlane.f32.xlu0 %v2418
        %v2420 = vpop.xlane.xlu0 %2419
        %v2421 = vsel %vm2213, %v2353, 0.0
        %2422 = vadd.xlane.f32.xlu0 %v2421
        %v2423 = vpop.xlane.xlu0 %2422
        %v2424 = vsel %vm2213, %v2355, 0.0
        %2425 = vadd.xlane.f32.xlu0 %v2424
        %v2426 = vpop.xlane.xlu0 %2425
        %v2427 = vsel %vm2213, %v2357, 0.0
        %2428 = vadd.xlane.f32.xlu0 %v2427
        %v2429 = vpop.xlane.xlu0 %2428
        %v2430 = vsel %vm2213, %v2359, 0.0
        %2431 = vadd.xlane.f32.xlu0 %v2430
        %v2432 = vpop.xlane.xlu0 %2431
        %v2433 = vsel %vm2213, %v2361, 0.0
        %2434 = vadd.xlane.f32.xlu0 %v2433
        %v2435 = vpop.xlane.xlu0 %2434
        %v2436 = vsel %vm2213, %v2363, 0.0
        %2437 = vadd.xlane.f32.xlu0 %v2436
        %v2438 = vpop.xlane.xlu0 %2437
        %v2439 = vsel %vm2213, %v2365, 0.0
        %2440 = vadd.xlane.f32.xlu0 %v2439
        %v2441 = vpop.xlane.xlu0 %2440
        %v2442 = vsel %vm2213, %v2367, 0.0
        %2443 = vadd.xlane.f32.xlu0 %v2442
        %v2444 = vpop.xlane.xlu0 %2443
        %v2445 = vsel %vm2213, %v2369, 0.0
        %2446 = vadd.xlane.f32.xlu0 %v2445
        %v2447 = vpop.xlane.xlu0 %2446
        %v2448 = vsel %vm2213, %v2371, 0.0
        %2449 = vadd.xlane.f32.xlu0 %v2448
        %v2450 = vpop.xlane.xlu0 %2449
        %v2451 = vsel %vm2213, %v2373, 0.0
        %2452 = vadd.xlane.f32.xlu0 %v2451
        %v2453 = vpop.xlane.xlu0 %2452
        %v2454 = vsel %vm2213, %v2375, 0.0
        %2455 = vadd.xlane.f32.xlu0 %v2454
        %v2456 = vpop.xlane.xlu0 %2455
        %v2457 = vsel %vm2213, %v2377, 0.0
        %2458 = vadd.xlane.f32.xlu0 %v2457
        %v2459 = vpop.xlane.xlu0 %2458
        %v2460 = vsel %vm2213, %v2379, 0.0
        %2461 = vadd.xlane.f32.xlu0 %v2460
        %v2462 = vpop.xlane.xlu0 %2461
        %v2463 = vsel %vm2213, %v2381, 0.0
        %2464 = vadd.xlane.f32.xlu0 %v2463
        %v2465 = vpop.xlane.xlu0 %2464
        %v2466 = vsel %vm2213, %v2383, 0.0
        %2467 = vadd.xlane.f32.xlu0 %v2466
        %v2468 = vpop.xlane.xlu0 %2467
        %v2469 = vsel %vm2213, %v2385, 0.0
        %2470 = vadd.xlane.f32.xlu0 %v2469
        %v2471 = vpop.xlane.xlu0 %2470
        %v2472 = vsel %vm2213, %v2387, 0.0
        %2473 = vadd.xlane.f32.xlu0 %v2472
        %v2474 = vpop.xlane.xlu0 %2473
        %v2475 = vsel %vm2213, %v2389, 0.0
        %2476 = vadd.xlane.f32.xlu0 %v2475
        %v2477 = vpop.xlane.xlu0 %2476
        %v2478 = vsel %vm2213, %v2391, 0.0
        %2479 = vadd.xlane.f32.xlu0 %v2478
        %v2480 = vpop.xlane.xlu0 %2479
        %v2481 = vsel %vm2213, %v2393, 0.0
        %2482 = vadd.xlane.f32.xlu0 %v2481
        %v2483 = vpop.xlane.xlu0 %2482
        %v2484 = vsel %vm2213, %v2395, 0.0
        %2485 = vadd.xlane.f32.xlu0 %v2484
        %v2486 = vpop.xlane.xlu0 %2485
        %v2487 = vsel %vm2213, %v2397, 0.0
        %2488 = vadd.xlane.f32.xlu0 %v2487
        %v2489 = vpop.xlane.xlu0 %2488
        %v2490 = vsel %vm2213, %v2399, 0.0
        %2491 = vadd.xlane.f32.xlu0 %v2490
        %v2492 = vpop.xlane.xlu0 %2491
        %v2493 = vsel %vm2213, %v2401, 0.0
        %2494 = vadd.xlane.f32.xlu0 %v2493
        %v2495 = vpop.xlane.xlu0 %2494
        %v2496 = vsel %vm2213, %v2403, 0.0
        %2497 = vadd.xlane.f32.xlu0 %v2496
        %v2498 = vpop.xlane.xlu0 %2497
        %v2499 = vsel %vm2213, %v2405, 0.0
        %2500 = vadd.xlane.f32.xlu0 %v2499
        %v2501 = vpop.xlane.xlu0 %2500
        %v2502 = vrcp.pop %v2408
        %v2503 = vrcp.pop %v2411
        %v2504 = vrcp.pop %v2414
        %v2505 = vrcp.pop %v2417
        %v2506 = vrcp.pop %v2420
        %v2507 = vrcp.pop %v2423
        %v2508 = vrcp.pop %v2426
        %v2509 = vrcp.pop %v2429
        %v2510 = vrcp.pop %v2432
        %v2511 = vrcp.pop %v2435
        %v2512 = vrcp.pop %v2438
        %v2513 = vrcp.pop %v2441
        %v2514 = vrcp.pop %v2444
        %v2515 = vrcp.pop %v2447
        %v2516 = vrcp.pop %v2450
        %v2517 = vrcp.pop %v2453
        %v2518 = vrcp.pop %v2456
        %v2519 = vrcp.pop %v2459
        %v2520 = vrcp.pop %v2462
        %v2521 = vrcp.pop %v2465
        %v2522 = vrcp.pop %v2468
        %v2523 = vrcp.pop %v2471
        %v2524 = vrcp.pop %v2474
        %v2525 = vrcp.pop %v2477
        %v2526 = vrcp.pop %v2480
        %v2527 = vrcp.pop %v2483
        %v2528 = vrcp.pop %v2486
        %v2529 = vrcp.pop %v2489
        %v2530 = vrcp.pop %v2492
        %v2531 = vrcp.pop %v2495
        %v2532 = vrcp.pop %v2498
        %v2533 = vrcp.pop %v2501
        %v2534 = vmul.f32 %v2343, %v2502
        %v2535 = vmul.f32 %v2345, %v2503
        %v2536 = vmul.f32 %v2347, %v2504
        %v2537 = vmul.f32 %v2349, %v2505
        %v2538 = vmul.f32 %v2351, %v2506
        %v2539 = vmul.f32 %v2353, %v2507
        %v2540 = vmul.f32 %v2355, %v2508
        %v2541 = vmul.f32 %v2357, %v2509
        %v2542 = vmul.f32 %v2359, %v2510
        %v2543 = vmul.f32 %v2361, %v2511
        %v2544 = vmul.f32 %v2363, %v2512
        %v2545 = vmul.f32 %v2365, %v2513
        %v2546 = vmul.f32 %v2367, %v2514
        %v2547 = vmul.f32 %v2369, %v2515
        %v2548 = vmul.f32 %v2371, %v2516
        %v2549 = vmul.f32 %v2373, %v2517
        %v2550 = vmul.f32 %v2375, %v2518
        %v2551 = vmul.f32 %v2377, %v2519
        %v2552 = vmul.f32 %v2379, %v2520
        %v2553 = vmul.f32 %v2381, %v2521
        %v2554 = vmul.f32 %v2383, %v2522
        %v2555 = vmul.f32 %v2385, %v2523
        %v2556 = vmul.f32 %v2387, %v2524
        %v2557 = vmul.f32 %v2389, %v2525
        %v2558 = vmul.f32 %v2391, %v2526
        %v2559 = vmul.f32 %v2393, %v2527
        %v2560 = vmul.f32 %v2395, %v2528
        %v2561 = vmul.f32 %v2397, %v2529
        %v2562 = vmul.f32 %v2399, %v2530
        %v2563 = vmul.f32 %v2401, %v2531
        %v2564 = vmul.f32 %v2403, %v2532
        %v2565 = vmul.f32 %v2405, %v2533
        %v2567 = vsel %vm2213, %v2534, 0
        %v2570 = vsel %vm2213, %v2535, 0
        %v2573 = vsel %vm2213, %v2536, 0
        %v2576 = vsel %vm2213, %v2537, 0
        %v2579 = vsel %vm2213, %v2538, 0
        %v2582 = vsel %vm2213, %v2539, 0
        %v2585 = vsel %vm2213, %v2540, 0
        %v2588 = vsel %vm2213, %v2541, 0
        %v2591 = vsel %vm2213, %v2542, 0
        %v2594 = vsel %vm2213, %v2543, 0
        %v2597 = vsel %vm2213, %v2544, 0
        %v2600 = vsel %vm2213, %v2545, 0
        %v2603 = vsel %vm2213, %v2546, 0
        %v2606 = vsel %vm2213, %v2547, 0
        %v2609 = vsel %vm2213, %v2548, 0
        %v2612 = vsel %vm2213, %v2549, 0
        %v2615 = vsel %vm2213, %v2550, 0
        %v2618 = vsel %vm2213, %v2551, 0
        %v2621 = vsel %vm2213, %v2552, 0
        %v2624 = vsel %vm2213, %v2553, 0
        %v2627 = vsel %vm2213, %v2554, 0
        %v2630 = vsel %vm2213, %v2555, 0
        %v2633 = vsel %vm2213, %v2556, 0
        %v2636 = vsel %vm2213, %v2557, 0
        %v2639 = vsel %vm2213, %v2558, 0
        %v2642 = vsel %vm2213, %v2559, 0
        %v2645 = vsel %vm2213, %v2560, 0
        %v2648 = vsel %vm2213, %v2561, 0
        %v2651 = vsel %vm2213, %v2562, 0
        %v2654 = vsel %vm2213, %v2563, 0
        %v2657 = vsel %vm2213, %v2564, 0
        %v2660 = vsel %vm2213, %v2565, 0
        %2662 = vmatprep.subr.mxu0 0.0
        %2663 = vmatpush1.msra.mxu0 %v1784
        %2664 = vmatprep.subr.mxu0 0.0
        %2665 = vmatpush1.msra.mxu0 %v1790
        %2666 = vmatprep.subr.mxu0 0.0
        %2667 = vmatpush1.msra.mxu0 %v1796
        %2668 = vmatprep.subr.mxu0 0.0
        %2669 = vmatpush1.msra.mxu0 %v1802
        %2670 = vmatprep.subr.mxu0 0.0
        %2671 = vmatpush1.msra.mxu0 0.0
        %2672 = vmatprep.subr.mxu0 0.0
        %2673 = vmatpush1.msra.mxu0 0.0
        %2674 = vmatprep.subr.mxu0 0.0
        %2675 = vmatpush1.msra.mxu0 0.0
        %2676 = vmatprep.subr.mxu0 0.0
        %2677 = vmatpush1.msra.mxu0 0.0
        %2678 = vmatprep.subr.mxu0 0.0
        %2679 = vmatpush1.msra.mxu0 0.0
        %2680 = vmatprep.subr.mxu0 0.0
        %2681 = vmatpush1.msra.mxu0 0.0
        %2682 = vmatprep.subr.mxu0 0.0
        %2683 = vmatpush1.msra.mxu0 0.0
        %2684 = vmatprep.subr.mxu0 0.0
        %2685 = vmatpush1.msra.mxu0 0.0
        %2686 = vmatprep.subr.mxu0 0.0
        %2687 = vmatpush1.msra.mxu0 0.0
        %2688 = vmatprep.subr.mxu0 0.0
        %2689 = vmatpush1.msra.mxu0 0.0
        %2690 = vmatprep.subr.mxu0 0.0
        %2691 = vmatpush1.msra.mxu0 0.0
        %2692 = vmatprep.subr.mxu0 0.0
        %2693 = vmatpush1.msra.mxu0 0.0
        %2694 = vmatprep.subr.mxu0 0.0
        %2695 = vmatpush1.msra.mxu0 0.0
        %2696 = vmatprep.subr.mxu0 0.0
        %2697 = vmatpush1.msra.mxu0 0.0
        %2698 = vmatprep.subr.mxu0 0.0
        %2699 = vmatpush1.msra.mxu0 0.0
        %2700 = vmatprep.subr.mxu0 0.0
        %2701 = vmatpush1.msra.mxu0 0.0
        %2702 = vmatprep.subr.mxu0 0.0
        %2703 = vmatpush1.msra.mxu0 0.0
        %2704 = vmatprep.subr.mxu0 0.0
        %2705 = vmatpush1.msra.mxu0 0.0
        %2706 = vmatprep.subr.mxu0 0.0
        %2707 = vmatpush1.msra.mxu0 0.0
        %2708 = vmatprep.subr.mxu0 0.0
        %2709 = vmatpush1.msra.mxu0 0.0
        %2710 = vmatprep.subr.mxu0 0.0
        %2711 = vmatpush1.msra.mxu0 0.0
        %2712 = vmatprep.subr.mxu0 0.0
        %2713 = vmatpush1.msra.mxu0 0.0
        %2714 = vmatprep.subr.mxu0 0.0
        %2715 = vmatpush1.msra.mxu0 0.0
        %2716 = vmatprep.subr.mxu0 0.0
        %2717 = vmatpush1.msra.mxu0 0.0
        %2718 = vmatprep.subr.mxu0 0.0
        %2719 = vmatpush1.msra.mxu0 0.0
        %2720 = vmatprep.subr.mxu0 0.0
        %2721 = vmatpush1.msra.mxu0 0.0
        %2722 = vmatprep.subr.mxu0 0.0
        %2723 = vmatpush1.msra.mxu0 0.0
        %2724 = vmatprep.subr.mxu0 0.0
        %2725 = vmatpush1.msra.mxu0 0.0
        %2726 = vmatprep.mubr.f32.mxu0 0.0
        %2727 = vmatmul.mubr.f32.gmra.mrb[0].mxu0 %v2567
        %v2728 = vpop.f32.mrb[0].mxu0
        %v2729 = vadd.f32 0.0, %v2728
        %v2730 = vpop.f32.mrb[0].mxu0
        %2731 = vmatprep.mubr.f32.mxu0 0.0
        %2732 = vmatmul.mubr.f32.gmra.mrb[0].mxu0 %v2570
        %v2733 = vpop.f32.mrb[0].mxu0
        %v2734 = vadd.f32 0.0, %v2733
        %v2735 = vpop.f32.mrb[0].mxu0
        %2736 = vmatprep.mubr.f32.mxu0 0.0
        %2737 = vmatmul.mubr.f32.gmra.mrb[0].mxu0 %v2573
        %v2738 = vpop.f32.mrb[0].mxu0
        %v2739 = vadd.f32 0.0, %v2738
        %v2740 = vpop.f32.mrb[0].mxu0
        %2741 = vmatprep.mubr.f32.mxu0 0.0
        %2742 = vmatmul.mubr.f32.gmra.mrb[0].mxu0 %v2576
        %v2743 = vpop.f32.mrb[0].mxu0
        %v2744 = vadd.f32 0.0, %v2743
        %v2745 = vpop.f32.mrb[0].mxu0
        %2746 = vmatprep.mubr.f32.mxu0 0.0
        %2747 = vmatmul.mubr.f32.gmra.mrb[0].mxu0 %v2579
        %v2748 = vpop.f32.mrb[0].mxu0
        %v2749 = vadd.f32 0.0, %v2748
        %v2750 = vpop.f32.mrb[0].mxu0
        %2751 = vmatprep.mubr.f32.mxu0 0.0
        %2752 = vmatmul.mubr.f32.gmra.mrb[0].mxu0 %v2582
        %v2753 = vpop.f32.mrb[0].mxu0
        %v2754 = vadd.f32 0.0, %v2753
        %v2755 = vpop.f32.mrb[0].mxu0
        %2756 = vmatprep.mubr.f32.mxu0 0.0
        %2757 = vmatmul.mubr.f32.gmra.mrb[0].mxu0 %v2585
        %v2758 = vpop.f32.mrb[0].mxu0
        %v2759 = vadd.f32 0.0, %v2758
        %v2760 = vpop.f32.mrb[0].mxu0
        %2761 = vmatprep.mubr.f32.mxu0 0.0
        %2762 = vmatmul.mubr.f32.gmra.mrb[0].mxu0 %v2588
        %v2763 = vpop.f32.mrb[0].mxu0
        %v2764 = vadd.f32 0.0, %v2763
        %v2765 = vpop.f32.mrb[0].mxu0
        %2766 = vmatprep.mubr.f32.mxu0 0.0
        %2767 = vmatmul.mubr.f32.gmra.mrb[0].mxu0 %v2591
        %v2768 = vpop.f32.mrb[0].mxu0
        %v2769 = vadd.f32 0.0, %v2768
        %v2770 = vpop.f32.mrb[0].mxu0
        %2771 = vmatprep.mubr.f32.mxu0 0.0
        %2772 = vmatmul.mubr.f32.gmra.mrb[0].mxu0 %v2594
        %v2773 = vpop.f32.mrb[0].mxu0
        %v2774 = vadd.f32 0.0, %v2773
        %v2775 = vpop.f32.mrb[0].mxu0
        %2776 = vmatprep.mubr.f32.mxu0 0.0
        %2777 = vmatmul.mubr.f32.gmra.mrb[0].mxu0 %v2597
        %v2778 = vpop.f32.mrb[0].mxu0
        %v2779 = vadd.f32 0.0, %v2778
        %v2780 = vpop.f32.mrb[0].mxu0
        %2781 = vmatprep.mubr.f32.mxu0 0.0
        %2782 = vmatmul.mubr.f32.gmra.mrb[0].mxu0 %v2600
        %v2783 = vpop.f32.mrb[0].mxu0
        %v2784 = vadd.f32 0.0, %v2783
        %v2785 = vpop.f32.mrb[0].mxu0
        %2786 = vmatprep.mubr.f32.mxu0 0.0
        %2787 = vmatmul.mubr.f32.gmra.mrb[0].mxu0 %v2603
        %v2788 = vpop.f32.mrb[0].mxu0
        %v2789 = vadd.f32 0.0, %v2788
        %v2790 = vpop.f32.mrb[0].mxu0
        %2791 = vmatprep.mubr.f32.mxu0 0.0
        %2792 = vmatmul.mubr.f32.gmra.mrb[0].mxu0 %v2606
        %v2793 = vpop.f32.mrb[0].mxu0
        %v2794 = vadd.f32 0.0, %v2793
        %v2795 = vpop.f32.mrb[0].mxu0
        %2796 = vmatprep.mubr.f32.mxu0 0.0
        %2797 = vmatmul.mubr.f32.gmra.mrb[0].mxu0 %v2609
        %v2798 = vpop.f32.mrb[0].mxu0
        %v2799 = vadd.f32 0.0, %v2798
        %v2800 = vpop.f32.mrb[0].mxu0
        %2801 = vmatprep.mubr.f32.mxu0 0.0
        %2802 = vmatmul.mubr.f32.gmra.mrb[0].mxu0 %v2612
        %v2803 = vpop.f32.mrb[0].mxu0
        %v2804 = vadd.f32 0.0, %v2803
        %v2805 = vpop.f32.mrb[0].mxu0
        %2806 = vmatprep.mubr.f32.mxu0 0.0
        %2807 = vmatmul.mubr.f32.gmra.mrb[0].mxu0 %v2615
        %v2808 = vpop.f32.mrb[0].mxu0
        %v2809 = vadd.f32 0.0, %v2808
        %v2810 = vpop.f32.mrb[0].mxu0
        %2811 = vmatprep.mubr.f32.mxu0 0.0
        %2812 = vmatmul.mubr.f32.gmra.mrb[0].mxu0 %v2618
        %v2813 = vpop.f32.mrb[0].mxu0
        %v2814 = vadd.f32 0.0, %v2813
        %v2815 = vpop.f32.mrb[0].mxu0
        %2816 = vmatprep.mubr.f32.mxu0 0.0
        %2817 = vmatmul.mubr.f32.gmra.mrb[0].mxu0 %v2621
        %v2818 = vpop.f32.mrb[0].mxu0
        %v2819 = vadd.f32 0.0, %v2818
        %v2820 = vpop.f32.mrb[0].mxu0
        %2821 = vmatprep.mubr.f32.mxu0 0.0
        %2822 = vmatmul.mubr.f32.gmra.mrb[0].mxu0 %v2624
        %v2823 = vpop.f32.mrb[0].mxu0
        %v2824 = vadd.f32 0.0, %v2823
        %v2825 = vpop.f32.mrb[0].mxu0
        %2826 = vmatprep.mubr.f32.mxu0 0.0
        %2827 = vmatmul.mubr.f32.gmra.mrb[0].mxu0 %v2627
        %v2828 = vpop.f32.mrb[0].mxu0
        %v2829 = vadd.f32 0.0, %v2828
        %v2830 = vpop.f32.mrb[0].mxu0
        %2831 = vmatprep.mubr.f32.mxu0 0.0
        %2832 = vmatmul.mubr.f32.gmra.mrb[0].mxu0 %v2630
        %v2833 = vpop.f32.mrb[0].mxu0
        %v2834 = vadd.f32 0.0, %v2833
        %v2835 = vpop.f32.mrb[0].mxu0
        %2836 = vmatprep.mubr.f32.mxu0 0.0
        %2837 = vmatmul.mubr.f32.gmra.mrb[0].mxu0 %v2633
        %v2838 = vpop.f32.mrb[0].mxu0
        %v2839 = vadd.f32 0.0, %v2838
        %v2840 = vpop.f32.mrb[0].mxu0
        %2841 = vmatprep.mubr.f32.mxu0 0.0
        %2842 = vmatmul.mubr.f32.gmra.mrb[0].mxu0 %v2636
        %v2843 = vpop.f32.mrb[0].mxu0
        %v2844 = vadd.f32 0.0, %v2843
        %v2845 = vpop.f32.mrb[0].mxu0
        %2846 = vmatprep.mubr.f32.mxu0 0.0
        %2847 = vmatmul.mubr.f32.gmra.mrb[0].mxu0 %v2639
        %v2848 = vpop.f32.mrb[0].mxu0
        %v2849 = vadd.f32 0.0, %v2848
        %v2850 = vpop.f32.mrb[0].mxu0
        %2851 = vmatprep.mubr.f32.mxu0 0.0
        %2852 = vmatmul.mubr.f32.gmra.mrb[0].mxu0 %v2642
        %v2853 = vpop.f32.mrb[0].mxu0
        %v2854 = vadd.f32 0.0, %v2853
        %v2855 = vpop.f32.mrb[0].mxu0
        %2856 = vmatprep.mubr.f32.mxu0 0.0
        %2857 = vmatmul.mubr.f32.gmra.mrb[0].mxu0 %v2645
        %v2858 = vpop.f32.mrb[0].mxu0
        %v2859 = vadd.f32 0.0, %v2858
        %v2860 = vpop.f32.mrb[0].mxu0
        %2861 = vmatprep.mubr.f32.mxu0 0.0
        %2862 = vmatmul.mubr.f32.gmra.mrb[0].mxu0 %v2648
        %v2863 = vpop.f32.mrb[0].mxu0
        %v2864 = vadd.f32 0.0, %v2863
        %v2865 = vpop.f32.mrb[0].mxu0
        %2866 = vmatprep.mubr.f32.mxu0 0.0
        %2867 = vmatmul.mubr.f32.gmra.mrb[0].mxu0 %v2651
        %v2868 = vpop.f32.mrb[0].mxu0
        %v2869 = vadd.f32 0.0, %v2868
        %v2870 = vpop.f32.mrb[0].mxu0
        %2871 = vmatprep.mubr.f32.mxu0 0.0
        %2872 = vmatmul.mubr.f32.gmra.mrb[0].mxu0 %v2654
        %v2873 = vpop.f32.mrb[0].mxu0
        %v2874 = vadd.f32 0.0, %v2873
        %v2875 = vpop.f32.mrb[0].mxu0
        %2876 = vmatprep.mubr.f32.mxu0 0.0
        %2877 = vmatmul.mubr.f32.gmra.mrb[0].mxu0 %v2657
        %v2878 = vpop.f32.mrb[0].mxu0
        %v2879 = vadd.f32 0.0, %v2878
        %v2880 = vpop.f32.mrb[0].mxu0
        %2881 = vmatprep.mubr.f32.mxu0 0.0
        %2882 = vmatmul.mubr.f32.gmra.mrb[0].mxu0 %v2660
        %v2883 = vpop.f32.mrb[0].mxu0
        %v2884 = vadd.f32 0.0, %v2883
        %v2885 = vpop.f32.mrb[0].mxu0
        %2886 = vdwg.mxu0
        %v2887 = vmul.f32 %v2729, %v1501
        %v2888 = vmul.f32 %v2734, %v1501
        %v2889 = vmul.f32 %v2739, %v1501
        %v2890 = vmul.f32 %v2744, %v1501
        %v2891 = vmul.f32 %v2749, %v1502
        %v2892 = vmul.f32 %v2754, %v1502
        %v2893 = vmul.f32 %v2759, %v1502
        %v2894 = vmul.f32 %v2764, %v1502
        %v2895 = vmul.f32 %v2769, %v1503
        %v2896 = vmul.f32 %v2774, %v1503
        %v2897 = vmul.f32 %v2779, %v1503
        %v2898 = vmul.f32 %v2784, %v1503
        %v2899 = vmul.f32 %v2789, %v1504
        %v2900 = vmul.f32 %v2794, %v1504
        %v2901 = vmul.f32 %v2799, %v1504
        %v2902 = vmul.f32 %v2804, %v1504
        %v2903 = vmul.f32 %v2809, %v1505
        %v2904 = vmul.f32 %v2814, %v1505
        %v2905 = vmul.f32 %v2819, %v1505
        %v2906 = vmul.f32 %v2824, %v1505
        %v2907 = vmul.f32 %v2829, %v1506
        %v2908 = vmul.f32 %v2834, %v1506
        %v2909 = vmul.f32 %v2839, %v1506
        %v2910 = vmul.f32 %v2844, %v1506
        %v2911 = vmul.f32 %v2849, %v1507
        %v2912 = vmul.f32 %v2854, %v1507
        %v2913 = vmul.f32 %v2859, %v1507
        %v2914 = vmul.f32 %v2864, %v1507
        %v2915 = vmul.f32 %v2869, %v1508
        %v2916 = vmul.f32 %v2874, %v1508
        %v2917 = vmul.f32 %v2879, %v1508
        %v2918 = vmul.f32 %v2884, %v1508
        %v2919 = vsel %vm1702, %v2887, 0.0
        %v2920 = vsel %vm1702, %v2891, 0.0
        %v2921 = vadd.f32 %v2919, %v2920
        %v2922 = vsel %vm1702, %v2895, 0.0
        %v2923 = vadd.f32 %v2921, %v2922
        %v2924 = vsel %vm1702, %v2899, 0.0
        %v2925 = vadd.f32 %v2923, %v2924
        %v2926 = vsel %vm1702, %v2903, 0.0
        %v2927 = vadd.f32 %v2925, %v2926
        %v2928 = vsel %vm1702, %v2907, 0.0
        %v2929 = vadd.f32 %v2927, %v2928
        %v2930 = vsel %vm1702, %v2911, 0.0
        %v2931 = vadd.f32 %v2929, %v2930
        %v2932 = vsel %vm1702, %v2915, 0.0
        %v2933 = vadd.f32 %v2931, %v2932
        %v2934 = vsel %vm1702, %v2888, 0.0
        %v2935 = vsel %vm1702, %v2892, 0.0
        %v2936 = vadd.f32 %v2934, %v2935
        %v2937 = vsel %vm1702, %v2896, 0.0
        %v2938 = vadd.f32 %v2936, %v2937
        %v2939 = vsel %vm1702, %v2900, 0.0
        %v2940 = vadd.f32 %v2938, %v2939
        %v2941 = vsel %vm1702, %v2904, 0.0
        %v2942 = vadd.f32 %v2940, %v2941
        %v2943 = vsel %vm1702, %v2908, 0.0
        %v2944 = vadd.f32 %v2942, %v2943
        %v2945 = vsel %vm1702, %v2912, 0.0
        %v2946 = vadd.f32 %v2944, %v2945
        %v2947 = vsel %vm1702, %v2916, 0.0
        %v2948 = vadd.f32 %v2946, %v2947
        %v2949 = vsel %vm1702, %v2889, 0.0
        %v2950 = vsel %vm1702, %v2893, 0.0
        %v2951 = vadd.f32 %v2949, %v2950
        %v2952 = vsel %vm1702, %v2897, 0.0
        %v2953 = vadd.f32 %v2951, %v2952
        %v2954 = vsel %vm1702, %v2901, 0.0
        %v2955 = vadd.f32 %v2953, %v2954
        %v2956 = vsel %vm1702, %v2905, 0.0
        %v2957 = vadd.f32 %v2955, %v2956
        %v2958 = vsel %vm1702, %v2909, 0.0
        %v2959 = vadd.f32 %v2957, %v2958
        %v2960 = vsel %vm1702, %v2913, 0.0
        %v2961 = vadd.f32 %v2959, %v2960
        %v2962 = vsel %vm1702, %v2917, 0.0
        %v2963 = vadd.f32 %v2961, %v2962
        %v2964 = vsel %vm1702, %v2890, 0.0
        %v2965 = vsel %vm1702, %v2894, 0.0
        %v2966 = vadd.f32 %v2964, %v2965
        %v2967 = vsel %vm1702, %v2898, 0.0
        %v2968 = vadd.f32 %v2966, %v2967
        %v2969 = vsel %vm1702, %v2902, 0.0
        %v2970 = vadd.f32 %v2968, %v2969
        %v2971 = vsel %vm1702, %v2906, 0.0
        %v2972 = vadd.f32 %v2970, %v2971
        %v2973 = vsel %vm1702, %v2910, 0.0
        %v2974 = vadd.f32 %v2972, %v2973
        %v2975 = vsel %vm1702, %v2914, 0.0
        %v2976 = vadd.f32 %v2974, %v2975
        %v2977 = vsel %vm1702, %v2918, 0.0
        %v2978 = vadd.f32 %v2976, %v2977
        %v2979 = vld [vmem:[#allocation12] sm:$0xff]
        %v2980 = vld [vmem:[#allocation12 + $0x8] sm:$0xff]
        %v2981 = vld [vmem:[#allocation12 + $0x10] sm:$0xff]
        %v2982 = vld [vmem:[#allocation12 + $0x18] sm:$0xff]
        %v2983 = vld [vmem:[#allocation12 + $0x20] sm:$0xff]
        %v2984 = vld [vmem:[#allocation12 + $0x28] sm:$0xff]
        %v2985 = vld [vmem:[#allocation12 + $0x30] sm:$0xff]
        %v2986 = vld [vmem:[#allocation12 + $0x38] sm:$0xff]
        %v2987 = vld [vmem:[%s33] sm:$0x1]
        %v2989 = vlaneseq
        %v2990 = vshrl.u32 %v2989, 7
        %v2991 = vsub.s32 0, %v2990
        %v2992 = vrot.slane %v2987, %v2991
        %v2995 = vsel %vm1702, %v2933, 0
        %v2998 = vsel %vm1702, %v2948, 0
        %v3001 = vsel %vm1702, %v2963, 0
        %v3004 = vsel %vm1702, %v2978, 0
        %3006 = vmatprep.subr.mxu0 0.0
        %3007 = vmatpush1.msra.mxu0 %v2979
        %3008 = vmatprep.subr.mxu0 0.0
        %3009 = vmatpush1.msra.mxu0 %v2980
        %3010 = vmatprep.subr.mxu0 0.0
        %3011 = vmatpush1.msra.mxu0 %v2981
        %3012 = vmatprep.subr.mxu0 0.0
        %3013 = vmatpush1.msra.mxu0 %v2982
        %3014 = vmatprep.subr.mxu0 0.0
        %3015 = vmatpush1.msra.mxu0 %v2983
        %3016 = vmatprep.subr.mxu0 0.0
        %3017 = vmatpush1.msra.mxu0 %v2984
        %3018 = vmatprep.subr.mxu0 0.0
        %3019 = vmatpush1.msra.mxu0 %v2985
        %3020 = vmatprep.subr.mxu0 0.0
        %3021 = vmatpush1.msra.mxu0 %v2986
        %3022 = vmatprep.subr.mxu0 0.0
        %3023 = vmatpush1.msra.mxu0 0.0
        %3024 = vmatprep.subr.mxu0 0.0
        %3025 = vmatpush1.msra.mxu0 0.0
        %3026 = vmatprep.subr.mxu0 0.0
        %3027 = vmatpush1.msra.mxu0 0.0
        %3028 = vmatprep.subr.mxu0 0.0
        %3029 = vmatpush1.msra.mxu0 0.0
        %3030 = vmatprep.subr.mxu0 0.0
        %3031 = vmatpush1.msra.mxu0 0.0
        %3032 = vmatprep.subr.mxu0 0.0
        %3033 = vmatpush1.msra.mxu0 0.0
        %3034 = vmatprep.subr.mxu0 0.0
        %3035 = vmatpush1.msra.mxu0 0.0
        %3036 = vmatprep.subr.mxu0 0.0
        %3037 = vmatpush1.msra.mxu0 0.0
        %3038 = vmatprep.subr.mxu0 0.0
        %3039 = vmatpush1.msra.mxu0 0.0
        %3040 = vmatprep.subr.mxu0 0.0
        %3041 = vmatpush1.msra.mxu0 0.0
        %3042 = vmatprep.subr.mxu0 0.0
        %3043 = vmatpush1.msra.mxu0 0.0
        %3044 = vmatprep.subr.mxu0 0.0
        %3045 = vmatpush1.msra.mxu0 0.0
        %3046 = vmatprep.subr.mxu0 0.0
        %3047 = vmatpush1.msra.mxu0 0.0
        %3048 = vmatprep.subr.mxu0 0.0
        %3049 = vmatpush1.msra.mxu0 0.0
        %3050 = vmatprep.subr.mxu0 0.0
        %3051 = vmatpush1.msra.mxu0 0.0
        %3052 = vmatprep.subr.mxu0 0.0
        %3053 = vmatpush1.msra.mxu0 0.0
        %3054 = vmatprep.subr.mxu0 0.0
        %3055 = vmatpush1.msra.mxu0 0.0
        %3056 = vmatprep.subr.mxu0 0.0
        %3057 = vmatpush1.msra.mxu0 0.0
        %3058 = vmatprep.subr.mxu0 0.0
        %3059 = vmatpush1.msra.mxu0 0.0
        %3060 = vmatprep.subr.mxu0 0.0
        %3061 = vmatpush1.msra.mxu0 0.0
        %3062 = vmatprep.subr.mxu0 0.0
        %3063 = vmatpush1.msra.mxu0 0.0
        %3064 = vmatprep.subr.mxu0 0.0
        %3065 = vmatpush1.msra.mxu0 0.0
        %3066 = vmatprep.subr.mxu0 0.0
        %3067 = vmatpush1.msra.mxu0 0.0
        %3068 = vmatprep.subr.mxu0 0.0
        %3069 = vmatpush1.msra.mxu0 0.0
        %3070 = vmatprep.mubr.f32.mxu0 0.0
        %3071 = vmatmul.mubr.f32.gmra.mrb[0].mxu0 %v2995
        %v3072 = vpop.f32.mrb[0].mxu0
        %v3073 = vadd.f32 %v2992, %v3072
        %v3074 = vpop.f32.mrb[0].mxu0
        %3075 = vmatprep.mubr.f32.mxu0 0.0
        %3076 = vmatmul.mubr.f32.gmra.mrb[0].mxu0 %v2998
        %v3077 = vpop.f32.mrb[0].mxu0
        %v3078 = vadd.f32 %v2992, %v3077
        %v3079 = vpop.f32.mrb[0].mxu0
        %3080 = vmatprep.mubr.f32.mxu0 0.0
        %3081 = vmatmul.mubr.f32.gmra.mrb[0].mxu0 %v3001
        %v3082 = vpop.f32.mrb[0].mxu0
        %v3083 = vadd.f32 %v2992, %v3082
        %v3084 = vpop.f32.mrb[0].mxu0
        %3085 = vmatprep.mubr.f32.mxu0 0.0
        %3086 = vmatmul.mubr.f32.gmra.mrb[0].mxu0 %v3004
        %v3087 = vpop.f32.mrb[0].mxu0
        %v3088 = vadd.f32 %v2992, %v3087
        %v3089 = vpop.f32.mrb[0].mxu0
        %3090 = vdwg.mxu0
        %v3091 = vadd.f32 %v1463, %v3073
        %v3092 = vadd.f32 %v1464, %v3078
        %v3093 = vadd.f32 %v1465, %v3083
        %v3094 = vadd.f32 %v1466, %v3088
        %v3095 = vld [vmem:[%s43] sm:$0x1]
        %v3096 = vld [vmem:[%s45] sm:$0x1]
        %v3097 = vsel %vm1702, %v3091, 0.0
        %3098 = vadd.xlane.f32.xlu0 %v3097
        %v3099 = vpop.xlane.xlu0 %3098
        %v3100 = vsel %vm1702, %v3092, 0.0
        %3101 = vadd.xlane.f32.xlu0 %v3100
        %v3102 = vpop.xlane.xlu0 %3101
        %v3103 = vsel %vm1702, %v3093, 0.0
        %3104 = vadd.xlane.f32.xlu0 %v3103
        %v3105 = vpop.xlane.xlu0 %3104
        %v3106 = vsel %vm1702, %v3094, 0.0
        %3107 = vadd.xlane.f32.xlu0 %v3106
        %v3108 = vpop.xlane.xlu0 %3107
        %v3109 = vrcp.pop 64.0
        %v3110 = vmul.f32 %v3099, %v3109
        %v3111 = vmul.f32 %v3102, %v3109
        %v3112 = vmul.f32 %v3105, %v3109
        %v3113 = vmul.f32 %v3108, %v3109
        %v3114 = vsub.f32 %v3091, %v3110
        %v3115 = vsub.f32 %v3092, %v3111
        %v3116 = vsub.f32 %v3093, %v3112
        %v3117 = vsub.f32 %v3094, %v3113
        %v3118 = vmul.f32 %v3114, %v3114
        %v3119 = vmul.f32 %v3115, %v3115
        %v3120 = vmul.f32 %v3116, %v3116
        %v3121 = vmul.f32 %v3117, %v3117
        %v3122 = vsel %vm1702, %v3118, 0.0
        %3123 = vadd.xlane.f32.xlu0 %v3122
        %v3124 = vpop.xlane.xlu0 %3123
        %v3125 = vsel %vm1702, %v3119, 0.0
        %3126 = vadd.xlane.f32.xlu0 %v3125
        %v3127 = vpop.xlane.xlu0 %3126
        %v3128 = vsel %vm1702, %v3120, 0.0
        %3129 = vadd.xlane.f32.xlu0 %v3128
        %v3130 = vpop.xlane.xlu0 %3129
        %v3131 = vsel %vm1702, %v3121, 0.0
        %3132 = vadd.xlane.f32.xlu0 %v3131
        %v3133 = vpop.xlane.xlu0 %3132
        %v3134 = vmul.f32 %v3124, %v3109
        %v3135 = vmul.f32 %v3127, %v3109
        %v3136 = vmul.f32 %v3130, %v3109
        %v3137 = vmul.f32 %v3133, %v3109
        %v3138 = vadd.f32 %v3134, 1e-05
        %v3139 = vadd.f32 %v3135, 1e-05
        %v3140 = vadd.f32 %v3136, 1e-05
        %v3141 = vadd.f32 %v3137, 1e-05
        %v3142 = vrsqrt.pop %v3138
        %v3143 = vrsqrt.pop %v3139
        %v3144 = vrsqrt.pop %v3140
        %v3145 = vrsqrt.pop %v3141
        %v3146 = vmul.f32 %v3114, %v3142
        %v3147 = vmul.f32 %v3115, %v3143
        %v3148 = vmul.f32 %v3116, %v3144
        %v3149 = vmul.f32 %v3117, %v3145
        %v3151 = vlaneseq
        %v3152 = vshrl.u32 %v3151, 7
        %v3153 = vsub.s32 0, %v3152
        %v3154 = vrot.slane %v3095, %v3153
        %v3156 = vmul.f32 %v3146, %v3154
        %v3157 = vmul.f32 %v3147, %v3154
        %v3158 = vmul.f32 %v3148, %v3154
        %v3159 = vmul.f32 %v3149, %v3154
        %v3161 = vlaneseq
        %v3162 = vshrl.u32 %v3161, 7
        %v3163 = vsub.s32 0, %v3162
        %v3164 = vrot.slane %v3096, %v3163
        %v3166 = vadd.f32 %v3156, %v3164
        %v3167 = vadd.f32 %v3157, %v3164
        %v3168 = vadd.f32 %v3158, %v3164
        %v3169 = vadd.f32 %v3159, %v3164
        %v3170 = vld [vmem:[#allocation13] sm:$0xff]
        %v3171 = vld [vmem:[#allocation13 + $0x8] sm:$0xff]
        %v3172 = vld [vmem:[#allocation13 + $0x10] sm:$0xff]
        %v3173 = vld [vmem:[#allocation13 + $0x18] sm:$0xff]
        %v3174 = vld [vmem:[#allocation13 + $0x20] sm:$0xff]
        %v3175 = vld [vmem:[#allocation13 + $0x28] sm:$0xff]
        %v3176 = vld [vmem:[#allocation13 + $0x30] sm:$0xff]
        %v3177 = vld [vmem:[#allocation13 + $0x38] sm:$0xff]
        %v3178 = vld [vmem:[%s37] sm:$0x1]
        %v3180 = vlaneseq
        %v3181 = vshrl.u32 %v3180, 7
        %v3182 = vsub.s32 0, %v3181
        %v3183 = vrot.slane %v3178, %v3182
        %v3186 = vsel %vm1702, %v3166, 0
        %v3189 = vsel %vm1702, %v3167, 0
        %v3192 = vsel %vm1702, %v3168, 0
        %v3195 = vsel %vm1702, %v3169, 0
        %3197 = vmatprep.subr.mxu0 0.0
        %3198 = vmatpush1.msra.mxu0 %v3170
        %3199 = vmatprep.subr.mxu0 0.0
        %3200 = vmatpush1.msra.mxu0 %v3171
        %3201 = vmatprep.subr.mxu0 0.0
        %3202 = vmatpush1.msra.mxu0 %v3172
        %3203 = vmatprep.subr.mxu0 0.0
        %3204 = vmatpush1.msra.mxu0 %v3173
        %3205 = vmatprep.subr.mxu0 0.0
        %3206 = vmatpush1.msra.mxu0 %v3174
        %3207 = vmatprep.subr.mxu0 0.0
        %3208 = vmatpush1.msra.mxu0 %v3175
        %3209 = vmatprep.subr.mxu0 0.0
        %3210 = vmatpush1.msra.mxu0 %v3176
        %3211 = vmatprep.subr.mxu0 0.0
        %3212 = vmatpush1.msra.mxu0 %v3177
        %3213 = vmatprep.subr.mxu0 0.0
        %3214 = vmatpush1.msra.mxu0 0.0
        %3215 = vmatprep.subr.mxu0 0.0
        %3216 = vmatpush1.msra.mxu0 0.0
        %3217 = vmatprep.subr.mxu0 0.0
        %3218 = vmatpush1.msra.mxu0 0.0
        %3219 = vmatprep.subr.mxu0 0.0
        %3220 = vmatpush1.msra.mxu0 0.0
        %3221 = vmatprep.subr.mxu0 0.0
        %3222 = vmatpush1.msra.mxu0 0.0
        %3223 = vmatprep.subr.mxu0 0.0
        %3224 = vmatpush1.msra.mxu0 0.0
        %3225 = vmatprep.subr.mxu0 0.0
        %3226 = vmatpush1.msra.mxu0 0.0
        %3227 = vmatprep.subr.mxu0 0.0
        %3228 = vmatpush1.msra.mxu0 0.0
        %3229 = vmatprep.subr.mxu0 0.0
        %3230 = vmatpush1.msra.mxu0 0.0
        %3231 = vmatprep.subr.mxu0 0.0
        %3232 = vmatpush1.msra.mxu0 0.0
        %3233 = vmatprep.subr.mxu0 0.0
        %3234 = vmatpush1.msra.mxu0 0.0
        %3235 = vmatprep.subr.mxu0 0.0
        %3236 = vmatpush1.msra.mxu0 0.0
        %3237 = vmatprep.subr.mxu0 0.0
        %3238 = vmatpush1.msra.mxu0 0.0
        %3239 = vmatprep.subr.mxu0 0.0
        %3240 = vmatpush1.msra.mxu0 0.0
        %3241 = vmatprep.subr.mxu0 0.0
        %3242 = vmatpush1.msra.mxu0 0.0
        %3243 = vmatprep.subr.mxu0 0.0
        %3244 = vmatpush1.msra.mxu0 0.0
        %3245 = vmatprep.subr.mxu0 0.0
        %3246 = vmatpush1.msra.mxu0 0.0
        %3247 = vmatprep.subr.mxu0 0.0
        %3248 = vmatpush1.msra.mxu0 0.0
        %3249 = vmatprep.subr.mxu0 0.0
        %3250 = vmatpush1.msra.mxu0 0.0
        %3251 = vmatprep.subr.mxu0 0.0
        %3252 = vmatpush1.msra.mxu0 0.0
        %3253 = vmatprep.subr.mxu0 0.0
        %3254 = vmatpush1.msra.mxu0 0.0
        %3255 = vmatprep.subr.mxu0 0.0
        %3256 = vmatpush1.msra.mxu0 0.0
        %3257 = vmatprep.subr.mxu0 0.0
        %3258 = vmatpush1.msra.mxu0 0.0
        %3259 = vmatprep.subr.mxu0 0.0
        %3260 = vmatpush1.msra.mxu0 0.0
        %3261 = vmatprep.mubr.f32.mxu0 0.0
        %3262 = vmatmul.mubr.f32.gmra.mrb[0].mxu0 %v3186
        %v3263 = vpop.f32.mrb[0].mxu0
        %v3264 = vadd.f32 %v3183, %v3263
        %v3265 = vpop.f32.mrb[0].mxu0
        %3266 = vmatprep.mubr.f32.mxu0 0.0
        %3267 = vmatmul.mubr.f32.gmra.mrb[0].mxu0 %v3189
        %v3268 = vpop.f32.mrb[0].mxu0
        %v3269 = vadd.f32 %v3183, %v3268
        %v3270 = vpop.f32.mrb[0].mxu0
        %3271 = vmatprep.mubr.f32.mxu0 0.0
        %3272 = vmatmul.mubr.f32.gmra.mrb[0].mxu0 %v3192
        %v3273 = vpop.f32.mrb[0].mxu0
        %v3274 = vadd.f32 %v3183, %v3273
        %v3275 = vpop.f32.mrb[0].mxu0
        %3276 = vmatprep.mubr.f32.mxu0 0.0
        %3277 = vmatmul.mubr.f32.gmra.mrb[0].mxu0 %v3195
        %v3278 = vpop.f32.mrb[0].mxu0
        %v3279 = vadd.f32 %v3183, %v3278
        %v3280 = vpop.f32.mrb[0].mxu0
        %3281 = vdwg.mxu0
        %v3282 = vmul.f32 %v3264, 0.5
        %v3283 = vmul.f32 %v3269, 0.5
        %v3284 = vmul.f32 %v3274, 0.5
        %v3285 = vmul.f32 %v3279, 0.5
        %v3286 = vmul.f32 %v3264, 0.70710677
        %v3287 = vmul.f32 %v3269, 0.70710677
        %v3288 = vmul.f32 %v3274, 0.70710677
        %v3289 = vmul.f32 %v3279, 0.70710677
        %v3290 = vand.u32 2147483647, %v3286
        %v3291 = vand.u32 2147483647, %v3287
        %v3292 = vand.u32 2147483647, %v3288
        %v3293 = vand.u32 2147483647, %v3289
        %v3294 = vmul.f32 %v3290, 0.3275911
        %v3295 = vmul.f32 %v3291, 0.3275911
        %v3296 = vmul.f32 %v3292, 0.3275911
        %v3297 = vmul.f32 %v3293, 0.3275911
        %v3298 = vadd.f32 %v3294, 1.0
        %v3299 = vadd.f32 %v3295, 1.0
        %v3300 = vadd.f32 %v3296, 1.0
        %v3301 = vadd.f32 %v3297, 1.0
        %v3302 = vrcp.pop %v3298
        %v3303 = vmul.f32 1.0, %v3302
        %v3304 = vrcp.pop %v3299
        %v3305 = vmul.f32 1.0, %v3304
        %v3306 = vrcp.pop %v3300
        %v3307 = vmul.f32 1.0, %v3306
        %v3308 = vrcp.pop %v3301
        %v3309 = vmul.f32 1.0, %v3308
        %v3310 = vmul.f32 %v3303, 1.0614054
        %v3311 = vmul.f32 %v3305, 1.0614054
        %v3312 = vmul.f32 %v3307, 1.0614054
        %v3313 = vmul.f32 %v3309, 1.0614054
        %v3314 = vadd.f32 %v3310, -1.4531521
        %v3315 = vadd.f32 %v3311, -1.4531521
        %v3316 = vadd.f32 %v3312, -1.4531521
        %v3317 = vadd.f32 %v3313, -1.4531521
        %v3318 = vmul.f32 %v3314, %v3303
        %v3319 = vmul.f32 %v3315, %v3305
        %v3320 = vmul.f32 %v3316, %v3307
        %v3321 = vmul.f32 %v3317, %v3309
        %v3322 = vadd.f32 %v3318, 1.4214138
        %v3323 = vadd.f32 %v3319, 1.4214138
        %v3324 = vadd.f32 %v3320, 1.4214138
        %v3325 = vadd.f32 %v3321, 1.4214138
        %v3326 = vmul.f32 %v3322, %v3303
        %v3327 = vmul.f32 %v3323, %v3305
        %v3328 = vmul.f32 %v3324, %v3307
        %v3329 = vmul.f32 %v3325, %v3309
        %v3330 = vadd.f32 %v3326, -0.28449672
        %v3331 = vadd.f32 %v3327, -0.28449672
        %v3332 = vadd.f32 %v3328, -0.28449672
        %v3333 = vadd.f32 %v3329, -0.28449672
        %v3334 = vmul.f32 %v3330, %v3303
        %v3335 = vmul.f32 %v3331, %v3305
        %v3336 = vmul.f32 %v3332, %v3307
        %v3337 = vmul.f32 %v3333, %v3309
        %v3338 = vadd.f32 %v3334, 0.2548296
        %v3339 = vadd.f32 %v3335, 0.2548296
        %v3340 = vadd.f32 %v3336, 0.2548296
        %v3341 = vadd.f32 %v3337, 0.2548296
        %v3342 = vmul.f32 %v3338, %v3303
        %v3343 = vmul.f32 %v3339, %v3305
        %v3344 = vmul.f32 %v3340, %v3307
        %v3345 = vmul.f32 %v3341, %v3309
        %v3346 = vmul.f32 %v3290, %v3290
        %v3347 = vmul.f32 %v3291, %v3291
        %v3348 = vmul.f32 %v3292, %v3292
        %v3349 = vmul.f32 %v3293, %v3293
        %v3350 = vsub.f32 0.0, %v3346
        %v3351 = vsub.f32 0.0, %v3347
        %v3352 = vsub.f32 0.0, %v3348
        %v3353 = vsub.f32 0.0, %v3349
        %v3354 = vmul.f32 %v3350, 1.442695
        %v3355 = vpow.pop %v3354
        %v3356 = vmul.f32 %v3351, 1.442695
        %v3357 = vpow.pop %v3356
        %v3358 = vmul.f32 %v3352, 1.442695
        %v3359 = vpow.pop %v3358
        %v3360 = vmul.f32 %v3353, 1.442695
        %v3361 = vpow.pop %v3360
        %v3362 = vmul.f32 %v3342, %v3355
        %v3363 = vmul.f32 %v3343, %v3357
        %v3364 = vmul.f32 %v3344, %v3359
        %v3365 = vmul.f32 %v3345, %v3361
        %v3366 = vsub.f32 1.0, %v3362
        %v3367 = vsub.f32 1.0, %v3363
        %v3368 = vsub.f32 1.0, %v3364
        %v3369 = vsub.f32 1.0, %v3365
        %vm3370 = vcmp.ge.f32.partialorder %v3286, 0.0
        %vm3371 = vcmp.ge.f32.partialorder %v3287, 0.0
        %vm3372 = vcmp.ge.f32.partialorder %v3288, 0.0
        %vm3373 = vcmp.ge.f32.partialorder %v3289, 0.0
        %v3374 = vsub.f32 0.0, %v3366
        %v3375 = vsub.f32 0.0, %v3367
        %v3376 = vsub.f32 0.0, %v3368
        %v3377 = vsub.f32 0.0, %v3369
        %v3378 = vsel %vm3370, %v3366, %v3374
        %v3379 = vsel %vm3371, %v3367, %v3375
        %v3380 = vsel %vm3372, %v3368, %v3376
        %v3381 = vsel %vm3373, %v3369, %v3377
        %v3382 = vadd.f32 %v3378, 1.0
        %v3383 = vadd.f32 %v3379, 1.0
        %v3384 = vadd.f32 %v3380, 1.0
        %v3385 = vadd.f32 %v3381, 1.0
        %v3386 = vmul.f32 %v3282, %v3382
        %v3387 = vmul.f32 %v3283, %v3383
        %v3388 = vmul.f32 %v3284, %v3384
        %v3389 = vmul.f32 %v3285, %v3385
        %v3390 = vld [vmem:[#allocation15] sm:$0xff]
        %v3391 = vld [vmem:[#allocation15 + $0x8] sm:$0xff]
        %v3392 = vld [vmem:[#allocation15 + $0x10] sm:$0xff]
        %v3393 = vld [vmem:[#allocation15 + $0x18] sm:$0xff]
        %v3394 = vld [vmem:[#allocation15 + $0x20] sm:$0xff]
        %v3395 = vld [vmem:[#allocation15 + $0x28] sm:$0xff]
        %v3396 = vld [vmem:[#allocation15 + $0x30] sm:$0xff]
        %v3397 = vld [vmem:[#allocation15 + $0x38] sm:$0xff]
        %v3398 = vld [vmem:[%s41] sm:$0x1]
        %v3400 = vlaneseq
        %v3401 = vshrl.u32 %v3400, 7
        %v3402 = vsub.s32 0, %v3401
        %v3403 = vrot.slane %v3398, %v3402
        %v3406 = vsel %vm1702, %v3386, 0
        %v3409 = vsel %vm1702, %v3387, 0
        %v3412 = vsel %vm1702, %v3388, 0
        %v3415 = vsel %vm1702, %v3389, 0
        %3417 = vmatprep.subr.mxu0 0.0
        %3418 = vmatpush1.msra.mxu0 %v3390
        %3419 = vmatprep.subr.mxu0 0.0
        %3420 = vmatpush1.msra.mxu0 %v3391
        %3421 = vmatprep.subr.mxu0 0.0
        %3422 = vmatpush1.msra.mxu0 %v3392
        %3423 = vmatprep.subr.mxu0 0.0
        %3424 = vmatpush1.msra.mxu0 %v3393
        %3425 = vmatprep.subr.mxu0 0.0
        %3426 = vmatpush1.msra.mxu0 %v3394
        %3427 = vmatprep.subr.mxu0 0.0
        %3428 = vmatpush1.msra.mxu0 %v3395
        %3429 = vmatprep.subr.mxu0 0.0
        %3430 = vmatpush1.msra.mxu0 %v3396
        %3431 = vmatprep.subr.mxu0 0.0
        %3432 = vmatpush1.msra.mxu0 %v3397
        %3433 = vmatprep.subr.mxu0 0.0
        %3434 = vmatpush1.msra.mxu0 0.0
        %3435 = vmatprep.subr.mxu0 0.0
        %3436 = vmatpush1.msra.mxu0 0.0
        %3437 = vmatprep.subr.mxu0 0.0
        %3438 = vmatpush1.msra.mxu0 0.0
        %3439 = vmatprep.subr.mxu0 0.0
        %3440 = vmatpush1.msra.mxu0 0.0
        %3441 = vmatprep.subr.mxu0 0.0
        %3442 = vmatpush1.msra.mxu0 0.0
        %3443 = vmatprep.subr.mxu0 0.0
        %3444 = vmatpush1.msra.mxu0 0.0
        %3445 = vmatprep.subr.mxu0 0.0
        %3446 = vmatpush1.msra.mxu0 0.0
        %3447 = vmatprep.subr.mxu0 0.0
        %3448 = vmatpush1.msra.mxu0 0.0
        %3449 = vmatprep.subr.mxu0 0.0
        %3450 = vmatpush1.msra.mxu0 0.0
        %3451 = vmatprep.subr.mxu0 0.0
        %3452 = vmatpush1.msra.mxu0 0.0
        %3453 = vmatprep.subr.mxu0 0.0
        %3454 = vmatpush1.msra.mxu0 0.0
        %3455 = vmatprep.subr.mxu0 0.0
        %3456 = vmatpush1.msra.mxu0 0.0
        %3457 = vmatprep.subr.mxu0 0.0
        %3458 = vmatpush1.msra.mxu0 0.0
        %3459 = vmatprep.subr.mxu0 0.0
        %3460 = vmatpush1.msra.mxu0 0.0
        %3461 = vmatprep.subr.mxu0 0.0
        %3462 = vmatpush1.msra.mxu0 0.0
        %3463 = vmatprep.subr.mxu0 0.0
        %3464 = vmatpush1.msra.mxu0 0.0
        %3465 = vmatprep.subr.mxu0 0.0
        %3466 = vmatpush1.msra.mxu0 0.0
        %3467 = vmatprep.subr.mxu0 0.0
        %3468 = vmatpush1.msra.mxu0 0.0
        %3469 = vmatprep.subr.mxu0 0.0
        %3470 = vmatpush1.msra.mxu0 0.0
        %3471 = vmatprep.subr.mxu0 0.0
        %3472 = vmatpush1.msra.mxu0 0.0
        %3473 = vmatprep.subr.mxu0 0.0
        %3474 = vmatpush1.msra.mxu0 0.0
        %3475 = vmatprep.subr.mxu0 0.0
        %3476 = vmatpush1.msra.mxu0 0.0
        %3477 = vmatprep.subr.mxu0 0.0
        %3478 = vmatpush1.msra.mxu0 0.0
        %3479 = vmatprep.subr.mxu0 0.0
        %3480 = vmatpush1.msra.mxu0 0.0
        %3481 = vmatprep.mubr.f32.mxu0 0.0
        %3482 = vmatmul.mubr.f32.gmra.mrb[0].mxu0 %v3406
        %v3483 = vpop.f32.mrb[0].mxu0
        %v3484 = vadd.f32 %v3403, %v3483
        %v3485 = vpop.f32.mrb[0].mxu0
        %3486 = vmatprep.mubr.f32.mxu0 0.0
        %3487 = vmatmul.mubr.f32.gmra.mrb[0].mxu0 %v3409
        %v3488 = vpop.f32.mrb[0].mxu0
        %v3489 = vadd.f32 %v3403, %v3488
        %v3490 = vpop.f32.mrb[0].mxu0
        %3491 = vmatprep.mubr.f32.mxu0 0.0
        %3492 = vmatmul.mubr.f32.gmra.mrb[0].mxu0 %v3412
        %v3493 = vpop.f32.mrb[0].mxu0
        %v3494 = vadd.f32 %v3403, %v3493
        %v3495 = vpop.f32.mrb[0].mxu0
        %3496 = vmatprep.mubr.f32.mxu0 0.0
        %3497 = vmatmul.mubr.f32.gmra.mrb[0].mxu0 %v3415
        %v3498 = vpop.f32.mrb[0].mxu0
        %v3499 = vadd.f32 %v3403, %v3498
        %v3500 = vpop.f32.mrb[0].mxu0
        %3501 = vdwg.mxu0
        %v3502 = vadd.f32 %v3166, %v3484
        %v3503 = vadd.f32 %v3167, %v3489
        %v3504 = vadd.f32 %v3168, %v3494
        %v3505 = vadd.f32 %v3169, %v3499
        %v3506 = vld [vmem:[%s47] sm:$0x1]
        %v3507 = vld [vmem:[%s49] sm:$0x1]
        %v3508 = vsel %vm1702, %v3502, 0.0
        %3509 = vadd.xlane.f32.xlu0 %v3508
        %v3510 = vpop.xlane.xlu0 %3509
        %v3511 = vsel %vm1702, %v3503, 0.0
        %3512 = vadd.xlane.f32.xlu0 %v3511
        %v3513 = vpop.xlane.xlu0 %3512
        %v3514 = vsel %vm1702, %v3504, 0.0
        %3515 = vadd.xlane.f32.xlu0 %v3514
        %v3516 = vpop.xlane.xlu0 %3515
        %v3517 = vsel %vm1702, %v3505, 0.0
        %3518 = vadd.xlane.f32.xlu0 %v3517
        %v3519 = vpop.xlane.xlu0 %3518
        %v3520 = vmul.f32 %v3510, %v3109
        %v3521 = vmul.f32 %v3513, %v3109
        %v3522 = vmul.f32 %v3516, %v3109
        %v3523 = vmul.f32 %v3519, %v3109
        %v3524 = vsub.f32 %v3502, %v3520
        %v3525 = vsub.f32 %v3503, %v3521
        %v3526 = vsub.f32 %v3504, %v3522
        %v3527 = vsub.f32 %v3505, %v3523
        %v3528 = vmul.f32 %v3524, %v3524
        %v3529 = vmul.f32 %v3525, %v3525
        %v3530 = vmul.f32 %v3526, %v3526
        %v3531 = vmul.f32 %v3527, %v3527
        %v3532 = vsel %vm1702, %v3528, 0.0
        %3533 = vadd.xlane.f32.xlu0 %v3532
        %v3534 = vpop.xlane.xlu0 %3533
        %v3535 = vsel %vm1702, %v3529, 0.0
        %3536 = vadd.xlane.f32.xlu0 %v3535
        %v3537 = vpop.xlane.xlu0 %3536
        %v3538 = vsel %vm1702, %v3530, 0.0
        %3539 = vadd.xlane.f32.xlu0 %v3538
        %v3540 = vpop.xlane.xlu0 %3539
        %v3541 = vsel %vm1702, %v3531, 0.0
        %3542 = vadd.xlane.f32.xlu0 %v3541
        %v3543 = vpop.xlane.xlu0 %3542
        %v3544 = vmul.f32 %v3534, %v3109
        %v3545 = vmul.f32 %v3537, %v3109
        %v3546 = vmul.f32 %v3540, %v3109
        %v3547 = vmul.f32 %v3543, %v3109
        %v3548 = vadd.f32 %v3544, 1e-05
        %v3549 = vadd.f32 %v3545, 1e-05
        %v3550 = vadd.f32 %v3546, 1e-05
        %v3551 = vadd.f32 %v3547, 1e-05
        %v3552 = vrsqrt.pop %v3548
        %v3553 = vrsqrt.pop %v3549
        %v3554 = vrsqrt.pop %v3550
        %v3555 = vrsqrt.pop %v3551
        %v3556 = vmul.f32 %v3524, %v3552
        %v3557 = vmul.f32 %v3525, %v3553
        %v3558 = vmul.f32 %v3526, %v3554
        %v3559 = vmul.f32 %v3527, %v3555
        %v3561 = vlaneseq
        %v3562 = vshrl.u32 %v3561, 7
        %v3563 = vsub.s32 0, %v3562
        %v3564 = vrot.slane %v3506, %v3563
        %v3566 = vmul.f32 %v3556, %v3564
        %v3567 = vmul.f32 %v3557, %v3564
        %v3568 = vmul.f32 %v3558, %v3564
        %v3569 = vmul.f32 %v3559, %v3564
        %v3571 = vlaneseq
        %v3572 = vshrl.u32 %v3571, 7
        %v3573 = vsub.s32 0, %v3572
        %v3574 = vrot.slane %v3507, %v3573
        %v3576 = vadd.f32 %v3566, %v3574
        %v3577 = vadd.f32 %v3567, %v3574
        %v3578 = vadd.f32 %v3568, %v3574
        %v3579 = vadd.f32 %v3569, %v3574
        %v3580 = vld [vmem:[#allocation7] sm:$0xff]
        %v3581 = vld [vmem:[#allocation7 + $0x8] sm:$0xff]
        %v3582 = vld [vmem:[#allocation7 + $0x10] sm:$0xff]
        %v3583 = vld [vmem:[#allocation7 + $0x18] sm:$0xff]
        %v3584 = vld [vmem:[#allocation7 + $0x20] sm:$0xff]
        %v3585 = vld [vmem:[#allocation7 + $0x28] sm:$0xff]
        %v3586 = vld [vmem:[#allocation7 + $0x30] sm:$0xff]
        %v3587 = vld [vmem:[#allocation7 + $0x38] sm:$0xff]
        %v3588 = vld [vmem:[#allocation7 + $0x40] sm:$0xff]
        %v3589 = vld [vmem:[#allocation7 + $0x48] sm:$0xff]
        %v3590 = vld [vmem:[#allocation7 + $0x50] sm:$0xff]
        %v3591 = vld [vmem:[#allocation7 + $0x58] sm:$0xff]
        %v3592 = vld [vmem:[#allocation7 + $0x60] sm:$0xff]
        %v3593 = vld [vmem:[#allocation7 + $0x68] sm:$0xff]
        %v3594 = vld [vmem:[#allocation7 + $0x70] sm:$0xff]
        %v3595 = vld [vmem:[#allocation7 + $0x78] sm:$0xff]
        %v3596 = vld [vmem:[#allocation7 + $0x80] sm:$0xff]
        %v3597 = vld [vmem:[#allocation7 + $0x88] sm:$0xff]
        %v3598 = vld [vmem:[#allocation7 + $0x90] sm:$0xff]
        %v3599 = vld [vmem:[#allocation7 + $0x98] sm:$0xff]
        %v3600 = vld [vmem:[#allocation7 + $0xa0] sm:$0xff]
        %v3601 = vld [vmem:[#allocation7 + $0xa8] sm:$0xff]
        %v3602 = vld [vmem:[#allocation7 + $0xb0] sm:$0xff]
        %v3603 = vld [vmem:[#allocation7 + $0xb8] sm:$0xff]
        %v3604 = vld [vmem:[#allocation7 + $0xc0] sm:$0xff]
        %v3605 = vld [vmem:[#allocation7 + $0xc8] sm:$0xff]
        %v3606 = vld [vmem:[#allocation7 + $0xd0] sm:$0xff]
        %v3607 = vld [vmem:[#allocation7 + $0xd8] sm:$0xff]
        %v3608 = vld [vmem:[#allocation7 + $0xe0] sm:$0xff]
        %v3609 = vld [vmem:[#allocation7 + $0xe8] sm:$0xff]
        %v3610 = vld [vmem:[#allocation7 + $0xf0] sm:$0xff]
        %v3611 = vld [vmem:[#allocation7 + $0xf8] sm:$0xff]
        %v3612 = vld [vmem:[%s13] sm:$0x1]
        %3613 = vset.pattern.permute.xlu0 0
        %3614 = vperm.xlu0 %3613, %v3580
        %v3615 = vpop.permute.xlu0 %3614
        %3616 = vset.pattern.permute.xlu0 0
        %3617 = vperm.xlu0 %3616, %v3581
        %v3618 = vpop.permute.xlu0 %3617
        %3619 = vset.pattern.permute.xlu0 0
        %3620 = vperm.xlu0 %3619, %v3582
        %v3621 = vpop.permute.xlu0 %3620
        %3622 = vset.pattern.permute.xlu0 0
        %3623 = vperm.xlu0 %3622, %v3583
        %v3624 = vpop.permute.xlu0 %3623
        %3625 = vset.pattern.permute.xlu0 0
        %3626 = vperm.xlu0 %3625, %v3584
        %v3627 = vpop.permute.xlu0 %3626
        %3628 = vset.pattern.permute.xlu0 0
        %3629 = vperm.xlu0 %3628, %v3585
        %v3630 = vpop.permute.xlu0 %3629
        %3631 = vset.pattern.permute.xlu0 0
        %3632 = vperm.xlu0 %3631, %v3586
        %v3633 = vpop.permute.xlu0 %3632
        %3634 = vset.pattern.permute.xlu0 0
        %3635 = vperm.xlu0 %3634, %v3587
        %v3636 = vpop.permute.xlu0 %3635
        %3637 = vset.pattern.permute.xlu0 0
        %3638 = vperm.xlu0 %3637, %v3588
        %v3639 = vpop.permute.xlu0 %3638
        %3640 = vset.pattern.permute.xlu0 0
        %3641 = vperm.xlu0 %3640, %v3589
        %v3642 = vpop.permute.xlu0 %3641
        %3643 = vset.pattern.permute.xlu0 0
        %3644 = vperm.xlu0 %3643, %v3590
        %v3645 = vpop.permute.xlu0 %3644
        %3646 = vset.pattern.permute.xlu0 0
        %3647 = vperm.xlu0 %3646, %v3591
        %v3648 = vpop.permute.xlu0 %3647
        %3649 = vset.pattern.permute.xlu0 0
        %3650 = vperm.xlu0 %3649, %v3592
        %v3651 = vpop.permute.xlu0 %3650
        %3652 = vset.pattern.permute.xlu0 0
        %3653 = vperm.xlu0 %3652, %v3593
        %v3654 = vpop.permute.xlu0 %3653
        %3655 = vset.pattern.permute.xlu0 0
        %3656 = vperm.xlu0 %3655, %v3594
        %v3657 = vpop.permute.xlu0 %3656
        %3658 = vset.pattern.permute.xlu0 0
        %3659 = vperm.xlu0 %3658, %v3595
        %v3660 = vpop.permute.xlu0 %3659
        %3661 = vset.pattern.permute.xlu0 0
        %3662 = vperm.xlu0 %3661, %v3596
        %v3663 = vpop.permute.xlu0 %3662
        %3664 = vset.pattern.permute.xlu0 0
        %3665 = vperm.xlu0 %3664, %v3597
        %v3666 = vpop.permute.xlu0 %3665
        %3667 = vset.pattern.permute.xlu0 0
        %3668 = vperm.xlu0 %3667, %v3598
        %v3669 = vpop.permute.xlu0 %3668
        %3670 = vset.pattern.permute.xlu0 0
        %3671 = vperm.xlu0 %3670, %v3599
        %v3672 = vpop.permute.xlu0 %3671
        %3673 = vset.pattern.permute.xlu0 0
        %3674 = vperm.xlu0 %3673, %v3600
        %v3675 = vpop.permute.xlu0 %3674
        %3676 = vset.pattern.permute.xlu0 0
        %3677 = vperm.xlu0 %3676, %v3601
        %v3678 = vpop.permute.xlu0 %3677
        %3679 = vset.pattern.permute.xlu0 0
        %3680 = vperm.xlu0 %3679, %v3602
        %v3681 = vpop.permute.xlu0 %3680
        %3682 = vset.pattern.permute.xlu0 0
        %3683 = vperm.xlu0 %3682, %v3603
        %v3684 = vpop.permute.xlu0 %3683
        %3685 = vset.pattern.permute.xlu0 0
        %3686 = vperm.xlu0 %3685, %v3604
        %v3687 = vpop.permute.xlu0 %3686
        %3688 = vset.pattern.permute.xlu0 0
        %3689 = vperm.xlu0 %3688, %v3605
        %v3690 = vpop.permute.xlu0 %3689
        %3691 = vset.pattern.permute.xlu0 0
        %3692 = vperm.xlu0 %3691, %v3606
        %v3693 = vpop.permute.xlu0 %3692
        %3694 = vset.pattern.permute.xlu0 0
        %3695 = vperm.xlu0 %3694, %v3607
        %v3696 = vpop.permute.xlu0 %3695
        %3697 = vset.pattern.permute.xlu0 0
        %3698 = vperm.xlu0 %3697, %v3608
        %v3699 = vpop.permute.xlu0 %3698
        %3700 = vset.pattern.permute.xlu0 0
        %3701 = vperm.xlu0 %3700, %v3609
        %v3702 = vpop.permute.xlu0 %3701
        %3703 = vset.pattern.permute.xlu0 0
        %3704 = vperm.xlu0 %3703, %v3610
        %v3705 = vpop.permute.xlu0 %3704
        %3706 = vset.pattern.permute.xlu0 0
        %3707 = vperm.xlu0 %3706, %v3611
        %v3708 = vpop.permute.xlu0 %3707
        %v3709 = vlaneseq
        %v3710 = vshrl.u32 %v3709, 7
        %v3711 = vsub.s32 0, %v3710
        %v3712 = vrot.slane %v3612, %v3711
        %vm3713 = vcmp.eq.s32.totalorder %v3615, %v3712
        %vm3714 = vcmp.eq.s32.totalorder %v3618, %v3712
        %vm3715 = vcmp.eq.s32.totalorder %v3621, %v3712
        %vm3716 = vcmp.eq.s32.totalorder %v3624, %v3712
        %vm3717 = vcmp.eq.s32.totalorder %v3627, %v3712
        %vm3718 = vcmp.eq.s32.totalorder %v3630, %v3712
        %vm3719 = vcmp.eq.s32.totalorder %v3633, %v3712
        %vm3720 = vcmp.eq.s32.totalorder %v3636, %v3712
        %vm3721 = vcmp.eq.s32.totalorder %v3639, %v3712
        %vm3722 = vcmp.eq.s32.totalorder %v3642, %v3712
        %vm3723 = vcmp.eq.s32.totalorder %v3645, %v3712
        %vm3724 = vcmp.eq.s32.totalorder %v3648, %v3712
        %vm3725 = vcmp.eq.s32.totalorder %v3651, %v3712
        %vm3726 = vcmp.eq.s32.totalorder %v3654, %v3712
        %vm3727 = vcmp.eq.s32.totalorder %v3657, %v3712
        %vm3728 = vcmp.eq.s32.totalorder %v3660, %v3712
        %vm3729 = vcmp.eq.s32.totalorder %v3663, %v3712
        %vm3730 = vcmp.eq.s32.totalorder %v3666, %v3712
        %vm3731 = vcmp.eq.s32.totalorder %v3669, %v3712
        %vm3732 = vcmp.eq.s32.totalorder %v3672, %v3712
        %vm3733 = vcmp.eq.s32.totalorder %v3675, %v3712
        %vm3734 = vcmp.eq.s32.totalorder %v3678, %v3712
        %vm3735 = vcmp.eq.s32.totalorder %v3681, %v3712
        %vm3736 = vcmp.eq.s32.totalorder %v3684, %v3712
        %vm3737 = vcmp.eq.s32.totalorder %v3687, %v3712
        %vm3738 = vcmp.eq.s32.totalorder %v3690, %v3712
        %vm3739 = vcmp.eq.s32.totalorder %v3693, %v3712
        %vm3740 = vcmp.eq.s32.totalorder %v3696, %v3712
        %vm3741 = vcmp.eq.s32.totalorder %v3699, %v3712
        %vm3742 = vcmp.eq.s32.totalorder %v3702, %v3712
        %vm3743 = vcmp.eq.s32.totalorder %v3705, %v3712
        %vm3744 = vcmp.eq.s32.totalorder %v3708, %v3712
        %v3745 = vld [vmem:[#allocation16] sm:$0xff]
        %v3746 = vld [vmem:[#allocation16 + $0x8] sm:$0xff]
        %v3747 = vld [vmem:[#allocation16 + $0x10] sm:$0xff]
        %v3748 = vld [vmem:[#allocation16 + $0x18] sm:$0xff]
        %v3749 = vld [vmem:[#allocation16 + $0x20] sm:$0xff]
        %v3750 = vld [vmem:[#allocation16 + $0x28] sm:$0xff]
        %v3751 = vld [vmem:[#allocation16 + $0x30] sm:$0xff]
        %v3752 = vld [vmem:[#allocation16 + $0x38] sm:$0xff]
        %v3753 = vld [vmem:[#allocation16 + $0x40] sm:$0xff]
        %v3754 = vld [vmem:[#allocation16 + $0x48] sm:$0xff]
        %v3755 = vld [vmem:[#allocation16 + $0x50] sm:$0xff]
        %v3756 = vld [vmem:[#allocation16 + $0x58] sm:$0xff]
        %v3757 = vld [vmem:[#allocation16 + $0x60] sm:$0xff]
        %v3758 = vld [vmem:[#allocation16 + $0x68] sm:$0xff]
        %v3759 = vld [vmem:[#allocation16 + $0x70] sm:$0xff]
        %v3760 = vld [vmem:[#allocation16 + $0x78] sm:$0xff]
        %v3761 = vld [vmem:[%s53] sm:$0x3]
        %v3763 = vlaneseq
        %v3764 = vshrl.u32 %v3763, 7
        %v3765 = vsub.s32 0, %v3764
        %v3766 = vrot.slane %v3761, %v3765
        %v3767 = vlaneseq
        %v3768 = vshrl.u32 %v3767, 7
        %v3769 = vsub.s32 1, %v3768
        %v3770 = vrot.slane %v3761, %v3769
        %v3774 = vsel %vm1702, %v3576, 0
        %v3777 = vsel %vm1702, %v3577, 0
        %v3780 = vsel %vm1702, %v3578, 0
        %v3783 = vsel %vm1702, %v3579, 0
        %3785 = vmatprep.subr.mxu0 %v3746
        %3786 = vmatpush1.msra.mxu0 %v3745
        %3787 = vmatprep.subr.mxu0 %v3748
        %3788 = vmatpush1.msra.mxu0 %v3747
        %3789 = vmatprep.subr.mxu0 %v3750
        %3790 = vmatpush1.msra.mxu0 %v3749
        %3791 = vmatprep.subr.mxu0 %v3752
        %3792 = vmatpush1.msra.mxu0 %v3751
        %3793 = vmatprep.subr.mxu0 %v3754
        %3794 = vmatpush1.msra.mxu0 %v3753
        %3795 = vmatprep.subr.mxu0 %v3756
        %3796 = vmatpush1.msra.mxu0 %v3755
        %3797 = vmatprep.subr.mxu0 %v3758
        %3798 = vmatpush1.msra.mxu0 %v3757
        %3799 = vmatprep.subr.mxu0 %v3760
        %3800 = vmatpush1.msra.mxu0 %v3759
        %3801 = vmatprep.subr.mxu0 0.0
        %3802 = vmatpush1.msra.mxu0 0.0
        %3803 = vmatprep.subr.mxu0 0.0
        %3804 = vmatpush1.msra.mxu0 0.0
        %3805 = vmatprep.subr.mxu0 0.0
        %3806 = vmatpush1.msra.mxu0 0.0
        %3807 = vmatprep.subr.mxu0 0.0
        %3808 = vmatpush1.msra.mxu0 0.0
        %3809 = vmatprep.subr.mxu0 0.0
        %3810 = vmatpush1.msra.mxu0 0.0
        %3811 = vmatprep.subr.mxu0 0.0
        %3812 = vmatpush1.msra.mxu0 0.0
        %3813 = vmatprep.subr.mxu0 0.0
        %3814 = vmatpush1.msra.mxu0 0.0
        %3815 = vmatprep.subr.mxu0 0.0
        %3816 = vmatpush1.msra.mxu0 0.0
        %3817 = vmatprep.subr.mxu0 0.0
        %3818 = vmatpush1.msra.mxu0 0.0
        %3819 = vmatprep.subr.mxu0 0.0
        %3820 = vmatpush1.msra.mxu0 0.0
        %3821 = vmatprep.subr.mxu0 0.0
        %3822 = vmatpush1.msra.mxu0 0.0
        %3823 = vmatprep.subr.mxu0 0.0
        %3824 = vmatpush1.msra.mxu0 0.0
        %3825 = vmatprep.subr.mxu0 0.0
        %3826 = vmatpush1.msra.mxu0 0.0
        %3827 = vmatprep.subr.mxu0 0.0
        %3828 = vmatpush1.msra.mxu0 0.0
        %3829 = vmatprep.subr.mxu0 0.0
        %3830 = vmatpush1.msra.mxu0 0.0
        %3831 = vmatprep.subr.mxu0 0.0
        %3832 = vmatpush1.msra.mxu0 0.0
        %3833 = vmatprep.subr.mxu0 0.0
        %3834 = vmatpush1.msra.mxu0 0.0
        %3835 = vmatprep.subr.mxu0 0.0
        %3836 = vmatpush1.msra.mxu0 0.0
        %3837 = vmatprep.subr.mxu0 0.0
        %3838 = vmatpush1.msra.mxu0 0.0
        %3839 = vmatprep.subr.mxu0 0.0
        %3840 = vmatpush1.msra.mxu0 0.0
        %3841 = vmatprep.subr.mxu0 0.0
        %3842 = vmatpush1.msra.mxu0 0.0
        %3843 = vmatprep.subr.mxu0 0.0
        %3844 = vmatpush1.msra.mxu0 0.0
        %3845 = vmatprep.subr.mxu0 0.0
        %3846 = vmatpush1.msra.mxu0 0.0
        %3847 = vmatprep.subr.mxu0 0.0
        %3848 = vmatpush1.msra.mxu0 0.0
        %3849 = vmatprep.mubr.f32.mxu0 0.0
        %3850 = vmatmul.mubr.f32.gmra.mrb[0].mxu0 %v3774
        %v3851 = vpop.f32.mrb[0].mxu0
        %v3852 = vadd.f32 %v3766, %v3851
        %v3853 = vpop.f32.mrb[0].mxu0
        %v3854 = vadd.f32 %v3770, %v3853
        %3855 = vmatprep.mubr.f32.mxu0 0.0
        %3856 = vmatmul.mubr.f32.gmra.mrb[0].mxu0 %v3777
        %v3857 = vpop.f32.mrb[0].mxu0
        %v3858 = vadd.f32 %v3766, %v3857
        %v3859 = vpop.f32.mrb[0].mxu0
        %v3860 = vadd.f32 %v3770, %v3859
        %3861 = vmatprep.mubr.f32.mxu0 0.0
        %3862 = vmatmul.mubr.f32.gmra.mrb[0].mxu0 %v3780
        %v3863 = vpop.f32.mrb[0].mxu0
        %v3864 = vadd.f32 %v3766, %v3863
        %v3865 = vpop.f32.mrb[0].mxu0
        %v3866 = vadd.f32 %v3770, %v3865
        %3867 = vmatprep.mubr.f32.mxu0 0.0
        %3868 = vmatmul.mubr.f32.gmra.mrb[0].mxu0 %v3783
        %v3869 = vpop.f32.mrb[0].mxu0
        %v3870 = vadd.f32 %v3766, %v3869
        %v3871 = vpop.f32.mrb[0].mxu0
        %v3872 = vadd.f32 %v3770, %v3871
        %3873 = vdwg.mxu0
        %v3874 = vmul.f32 %v3852, 0.35355338
        %v3875 = vmul.f32 %v3858, 0.35355338
        %v3876 = vmul.f32 %v3864, 0.35355338
        %v3877 = vmul.f32 %v3870, 0.35355338
        %v3878 = vmul.f32 %v3874, %v1501
        %v3879 = vmul.f32 %v3875, %v1501
        %v3880 = vmul.f32 %v3876, %v1501
        %v3881 = vmul.f32 %v3877, %v1501
        %v3882 = vmul.f32 %v3874, %v1502
        %v3883 = vmul.f32 %v3875, %v1502
        %v3884 = vmul.f32 %v3876, %v1502
        %v3885 = vmul.f32 %v3877, %v1502
        %v3886 = vmul.f32 %v3874, %v1503
        %v3887 = vmul.f32 %v3875, %v1503
        %v3888 = vmul.f32 %v3876, %v1503
        %v3889 = vmul.f32 %v3877, %v1503
        %v3890 = vmul.f32 %v3874, %v1504
        %v3891 = vmul.f32 %v3875, %v1504
        %v3892 = vmul.f32 %v3876, %v1504
        %v3893 = vmul.f32 %v3877, %v1504
        %v3894 = vmul.f32 %v3874, %v1505
        %v3895 = vmul.f32 %v3875, %v1505
        %v3896 = vmul.f32 %v3876, %v1505
        %v3897 = vmul.f32 %v3877, %v1505
        %v3898 = vmul.f32 %v3874, %v1506
        %v3899 = vmul.f32 %v3875, %v1506
        %v3900 = vmul.f32 %v3876, %v1506
        %v3901 = vmul.f32 %v3877, %v1506
        %v3902 = vmul.f32 %v3874, %v1507
        %v3903 = vmul.f32 %v3875, %v1507
        %v3904 = vmul.f32 %v3876, %v1507
        %v3905 = vmul.f32 %v3877, %v1507
        %v3906 = vmul.f32 %v3874, %v1508
        %v3907 = vmul.f32 %v3875, %v1508
        %v3908 = vmul.f32 %v3876, %v1508
        %v3909 = vmul.f32 %v3877, %v1508
        %3914 = vrot.lane.b32.xlu0 %v3852, 64
        %v3915 = vpop.permute.xlu0 %3914
        %3916 = vrot.lane.b32.xlu0 %v3858, 64
        %v3917 = vpop.permute.xlu0 %3916
        %3918 = vrot.lane.b32.xlu0 %v3864, 64
        %v3919 = vpop.permute.xlu0 %3918
        %3920 = vrot.lane.b32.xlu0 %v3870, 64
        %v3921 = vpop.permute.xlu0 %3920
        %v3923 = vsel %vm1702, %v3878, 0
        %v3926 = vsel %vm1702, %v3879, 0
        %v3929 = vsel %vm1702, %v3880, 0
        %v3932 = vsel %vm1702, %v3881, 0
        %v3935 = vsel %vm1702, %v3882, 0
        %v3938 = vsel %vm1702, %v3883, 0
        %v3941 = vsel %vm1702, %v3884, 0
        %v3944 = vsel %vm1702, %v3885, 0
        %v3947 = vsel %vm1702, %v3886, 0
        %v3950 = vsel %vm1702, %v3887, 0
        %v3953 = vsel %vm1702, %v3888, 0
        %v3956 = vsel %vm1702, %v3889, 0
        %v3959 = vsel %vm1702, %v3890, 0
        %v3962 = vsel %vm1702, %v3891, 0
        %v3965 = vsel %vm1702, %v3892, 0
        %v3968 = vsel %vm1702, %v3893, 0
        %v3971 = vsel %vm1702, %v3894, 0
        %v3974 = vsel %vm1702, %v3895, 0
        %v3977 = vsel %vm1702, %v3896, 0
        %v3980 = vsel %vm1702, %v3897, 0
        %v3983 = vsel %vm1702, %v3898, 0
        %v3986 = vsel %vm1702, %v3899, 0
        %v3989 = vsel %vm1702, %v3900, 0
        %v3992 = vsel %vm1702, %v3901, 0
        %v3995 = vsel %vm1702, %v3902, 0
        %v3998 = vsel %vm1702, %v3903, 0
        %v4001 = vsel %vm1702, %v3904, 0
        %v4004 = vsel %vm1702, %v3905, 0
        %v4007 = vsel %vm1702, %v3906, 0
        %v4010 = vsel %vm1702, %v3907, 0
        %v4013 = vsel %vm1702, %v3908, 0
        %v4016 = vsel %vm1702, %v3909, 0
        %v4018 = vsel %vm1702, %v3915, 0
        %v4020 = vsel %vm1702, %v3917, 0
        %v4022 = vsel %vm1702, %v3919, 0
        %v4024 = vsel %vm1702, %v3921, 0
        %4026 = vmatprep.subr.mxu0 0.0
        %4027 = vmatpush1.xpose.msra.mxu0 %v4018
        %4028 = vmatprep.subr.mxu0 0.0
        %4029 = vmatpush1.xpose.msra.mxu0 %v4020
        %4030 = vmatprep.subr.mxu0 0.0
        %4031 = vmatpush1.xpose.msra.mxu0 %v4022
        %4032 = vmatprep.subr.mxu0 0.0
        %4033 = vmatpush1.xpose.msra.mxu0 %v4024
        %4034 = vmatprep.subr.mxu0 0.0
        %4035 = vmatpush1.xpose.msra.mxu0 0.0
        %4036 = vmatprep.subr.mxu0 0.0
        %4037 = vmatpush1.xpose.msra.mxu0 0.0
        %4038 = vmatprep.subr.mxu0 0.0
        %4039 = vmatpush1.xpose.msra.mxu0 0.0
        %4040 = vmatprep.subr.mxu0 0.0
        %4041 = vmatpush1.xpose.msra.mxu0 0.0
        %4042 = vmatprep.subr.mxu0 0.0
        %4043 = vmatpush1.xpose.msra.mxu0 0.0
        %4044 = vmatprep.subr.mxu0 0.0
        %4045 = vmatpush1.xpose.msra.mxu0 0.0
        %4046 = vmatprep.subr.mxu0 0.0
        %4047 = vmatpush1.xpose.msra.mxu0 0.0
        %4048 = vmatprep.subr.mxu0 0.0
        %4049 = vmatpush1.xpose.msra.mxu0 0.0
        %4050 = vmatprep.subr.mxu0 0.0
        %4051 = vmatpush1.xpose.msra.mxu0 0.0
        %4052 = vmatprep.subr.mxu0 0.0
        %4053 = vmatpush1.xpose.msra.mxu0 0.0
        %4054 = vmatprep.subr.mxu0 0.0
        %4055 = vmatpush1.xpose.msra.mxu0 0.0
        %4056 = vmatprep.subr.mxu0 0.0
        %4057 = vmatpush1.xpose.msra.mxu0 0.0
        %4058 = vmatprep.subr.mxu0 0.0
        %4059 = vmatpush1.xpose.msra.mxu0 0.0
        %4060 = vmatprep.subr.mxu0 0.0
        %4061 = vmatpush1.xpose.msra.mxu0 0.0
        %4062 = vmatprep.subr.mxu0 0.0
        %4063 = vmatpush1.xpose.msra.mxu0 0.0
        %4064 = vmatprep.subr.mxu0 0.0
        %4065 = vmatpush1.xpose.msra.mxu0 0.0
        %4066 = vmatprep.subr.mxu0 0.0
        %4067 = vmatpush1.xpose.msra.mxu0 0.0
        %4068 = vmatprep.subr.mxu0 0.0
        %4069 = vmatpush1.xpose.msra.mxu0 0.0
        %4070 = vmatprep.subr.mxu0 0.0
        %4071 = vmatpush1.xpose.msra.mxu0 0.0
        %4072 = vmatprep.subr.mxu0 0.0
        %4073 = vmatpush1.xpose.msra.mxu0 0.0
        %4074 = vmatprep.subr.mxu0 0.0
        %4075 = vmatpush1.xpose.msra.mxu0 0.0
        %4076 = vmatprep.subr.mxu0 0.0
        %4077 = vmatpush1.xpose.msra.mxu0 0.0
        %4078 = vmatprep.subr.mxu0 0.0
        %4079 = vmatpush1.xpose.msra.mxu0 0.0
        %4080 = vmatprep.subr.mxu0 0.0
        %4081 = vmatpush1.xpose.msra.mxu0 0.0
        %4082 = vmatprep.subr.mxu0 0.0
        %4083 = vmatpush1.xpose.msra.mxu0 0.0
        %4084 = vmatprep.subr.mxu0 0.0
        %4085 = vmatpush1.xpose.msra.mxu0 0.0
        %4086 = vmatprep.subr.mxu0 0.0
        %4087 = vmatpush1.xpose.msra.mxu0 0.0
        %4088 = vmatprep.subr.mxu0 0.0
        %4089 = vmatpush1.xpose.msra.mxu0 0.0
        %4090 = vmatprep.mubr.f32.mxu0 0.0
        %4091 = vmatmul.mubr.f32.gmra.mrb[0].mxu0 %v3923
        %v4092 = vpop.f32.mrb[0].mxu0
        %v4093 = vadd.f32 0.0, %v4092
        %v4094 = vpop.f32.mrb[0].mxu0
        %4095 = vmatprep.mubr.f32.mxu0 0.0
        %4096 = vmatmul.mubr.f32.gmra.mrb[0].mxu0 %v3926
        %v4097 = vpop.f32.mrb[0].mxu0
        %v4098 = vadd.f32 0.0, %v4097
        %v4099 = vpop.f32.mrb[0].mxu0
        %4100 = vmatprep.mubr.f32.mxu0 0.0
        %4101 = vmatmul.mubr.f32.gmra.mrb[0].mxu0 %v3929
        %v4102 = vpop.f32.mrb[0].mxu0
        %v4103 = vadd.f32 0.0, %v4102
        %v4104 = vpop.f32.mrb[0].mxu0
        %4105 = vmatprep.mubr.f32.mxu0 0.0
        %4106 = vmatmul.mubr.f32.gmra.mrb[0].mxu0 %v3932
        %v4107 = vpop.f32.mrb[0].mxu0
        %v4108 = vadd.f32 0.0, %v4107
        %v4109 = vpop.f32.mrb[0].mxu0
        %4110 = vmatprep.mubr.f32.mxu0 0.0
        %4111 = vmatmul.mubr.f32.gmra.mrb[0].mxu0 %v3935
        %v4112 = vpop.f32.mrb[0].mxu0
        %v4113 = vadd.f32 0.0, %v4112
        %v4114 = vpop.f32.mrb[0].mxu0
        %4115 = vmatprep.mubr.f32.mxu0 0.0
        %4116 = vmatmul.mubr.f32.gmra.mrb[0].mxu0 %v3938
        %v4117 = vpop.f32.mrb[0].mxu0
        %v4118 = vadd.f32 0.0, %v4117
        %v4119 = vpop.f32.mrb[0].mxu0
        %4120 = vmatprep.mubr.f32.mxu0 0.0
        %4121 = vmatmul.mubr.f32.gmra.mrb[0].mxu0 %v3941
        %v4122 = vpop.f32.mrb[0].mxu0
        %v4123 = vadd.f32 0.0, %v4122
        %v4124 = vpop.f32.mrb[0].mxu0
        %4125 = vmatprep.mubr.f32.mxu0 0.0
        %4126 = vmatmul.mubr.f32.gmra.mrb[0].mxu0 %v3944
        %v4127 = vpop.f32.mrb[0].mxu0
        %v4128 = vadd.f32 0.0, %v4127
        %v4129 = vpop.f32.mrb[0].mxu0
        %4130 = vmatprep.mubr.f32.mxu0 0.0
        %4131 = vmatmul.mubr.f32.gmra.mrb[0].mxu0 %v3947
        %v4132 = vpop.f32.mrb[0].mxu0
        %v4133 = vadd.f32 0.0, %v4132
        %v4134 = vpop.f32.mrb[0].mxu0
        %4135 = vmatprep.mubr.f32.mxu0 0.0
        %4136 = vmatmul.mubr.f32.gmra.mrb[0].mxu0 %v3950
        %v4137 = vpop.f32.mrb[0].mxu0
        %v4138 = vadd.f32 0.0, %v4137
        %v4139 = vpop.f32.mrb[0].mxu0
        %4140 = vmatprep.mubr.f32.mxu0 0.0
        %4141 = vmatmul.mubr.f32.gmra.mrb[0].mxu0 %v3953
        %v4142 = vpop.f32.mrb[0].mxu0
        %v4143 = vadd.f32 0.0, %v4142
        %v4144 = vpop.f32.mrb[0].mxu0
        %4145 = vmatprep.mubr.f32.mxu0 0.0
        %4146 = vmatmul.mubr.f32.gmra.mrb[0].mxu0 %v3956
        %v4147 = vpop.f32.mrb[0].mxu0
        %v4148 = vadd.f32 0.0, %v4147
        %v4149 = vpop.f32.mrb[0].mxu0
        %4150 = vmatprep.mubr.f32.mxu0 0.0
        %4151 = vmatmul.mubr.f32.gmra.mrb[0].mxu0 %v3959
        %v4152 = vpop.f32.mrb[0].mxu0
        %v4153 = vadd.f32 0.0, %v4152
        %v4154 = vpop.f32.mrb[0].mxu0
        %4155 = vmatprep.mubr.f32.mxu0 0.0
        %4156 = vmatmul.mubr.f32.gmra.mrb[0].mxu0 %v3962
        %v4157 = vpop.f32.mrb[0].mxu0
        %v4158 = vadd.f32 0.0, %v4157
        %v4159 = vpop.f32.mrb[0].mxu0
        %4160 = vmatprep.mubr.f32.mxu0 0.0
        %4161 = vmatmul.mubr.f32.gmra.mrb[0].mxu0 %v3965
        %v4162 = vpop.f32.mrb[0].mxu0
        %v4163 = vadd.f32 0.0, %v4162
        %v4164 = vpop.f32.mrb[0].mxu0
        %4165 = vmatprep.mubr.f32.mxu0 0.0
        %4166 = vmatmul.mubr.f32.gmra.mrb[0].mxu0 %v3968
        %v4167 = vpop.f32.mrb[0].mxu0
        %v4168 = vadd.f32 0.0, %v4167
        %v4169 = vpop.f32.mrb[0].mxu0
        %4170 = vmatprep.mubr.f32.mxu0 0.0
        %4171 = vmatmul.mubr.f32.gmra.mrb[0].mxu0 %v3971
        %v4172 = vpop.f32.mrb[0].mxu0
        %v4173 = vadd.f32 0.0, %v4172
        %v4174 = vpop.f32.mrb[0].mxu0
        %4175 = vmatprep.mubr.f32.mxu0 0.0
        %4176 = vmatmul.mubr.f32.gmra.mrb[0].mxu0 %v3974
        %v4177 = vpop.f32.mrb[0].mxu0
        %v4178 = vadd.f32 0.0, %v4177
        %v4179 = vpop.f32.mrb[0].mxu0
        %4180 = vmatprep.mubr.f32.mxu0 0.0
        %4181 = vmatmul.mubr.f32.gmra.mrb[0].mxu0 %v3977
        %v4182 = vpop.f32.mrb[0].mxu0
        %v4183 = vadd.f32 0.0, %v4182
        %v4184 = vpop.f32.mrb[0].mxu0
        %4185 = vmatprep.mubr.f32.mxu0 0.0
        %4186 = vmatmul.mubr.f32.gmra.mrb[0].mxu0 %v3980
        %v4187 = vpop.f32.mrb[0].mxu0
        %v4188 = vadd.f32 0.0, %v4187
        %v4189 = vpop.f32.mrb[0].mxu0
        %4190 = vmatprep.mubr.f32.mxu0 0.0
        %4191 = vmatmul.mubr.f32.gmra.mrb[0].mxu0 %v3983
        %v4192 = vpop.f32.mrb[0].mxu0
        %v4193 = vadd.f32 0.0, %v4192
        %v4194 = vpop.f32.mrb[0].mxu0
        %4195 = vmatprep.mubr.f32.mxu0 0.0
        %4196 = vmatmul.mubr.f32.gmra.mrb[0].mxu0 %v3986
        %v4197 = vpop.f32.mrb[0].mxu0
        %v4198 = vadd.f32 0.0, %v4197
        %v4199 = vpop.f32.mrb[0].mxu0
        %4200 = vmatprep.mubr.f32.mxu0 0.0
        %4201 = vmatmul.mubr.f32.gmra.mrb[0].mxu0 %v3989
        %v4202 = vpop.f32.mrb[0].mxu0
        %v4203 = vadd.f32 0.0, %v4202
        %v4204 = vpop.f32.mrb[0].mxu0
        %4205 = vmatprep.mubr.f32.mxu0 0.0
        %4206 = vmatmul.mubr.f32.gmra.mrb[0].mxu0 %v3992
        %v4207 = vpop.f32.mrb[0].mxu0
        %v4208 = vadd.f32 0.0, %v4207
        %v4209 = vpop.f32.mrb[0].mxu0
        %4210 = vmatprep.mubr.f32.mxu0 0.0
        %4211 = vmatmul.mubr.f32.gmra.mrb[0].mxu0 %v3995
        %v4212 = vpop.f32.mrb[0].mxu0
        %v4213 = vadd.f32 0.0, %v4212
        %v4214 = vpop.f32.mrb[0].mxu0
        %4215 = vmatprep.mubr.f32.mxu0 0.0
        %4216 = vmatmul.mubr.f32.gmra.mrb[0].mxu0 %v3998
        %v4217 = vpop.f32.mrb[0].mxu0
        %v4218 = vadd.f32 0.0, %v4217
        %v4219 = vpop.f32.mrb[0].mxu0
        %4220 = vmatprep.mubr.f32.mxu0 0.0
        %4221 = vmatmul.mubr.f32.gmra.mrb[0].mxu0 %v4001
        %v4222 = vpop.f32.mrb[0].mxu0
        %v4223 = vadd.f32 0.0, %v4222
        %v4224 = vpop.f32.mrb[0].mxu0
        %4225 = vmatprep.mubr.f32.mxu0 0.0
        %4226 = vmatmul.mubr.f32.gmra.mrb[0].mxu0 %v4004
        %v4227 = vpop.f32.mrb[0].mxu0
        %v4228 = vadd.f32 0.0, %v4227
        %v4229 = vpop.f32.mrb[0].mxu0
        %4230 = vmatprep.mubr.f32.mxu0 0.0
        %4231 = vmatmul.mubr.f32.gmra.mrb[0].mxu0 %v4007
        %v4232 = vpop.f32.mrb[0].mxu0
        %v4233 = vadd.f32 0.0, %v4232
        %v4234 = vpop.f32.mrb[0].mxu0
        %4235 = vmatprep.mubr.f32.mxu0 0.0
        %4236 = vmatmul.mubr.f32.gmra.mrb[0].mxu0 %v4010
        %v4237 = vpop.f32.mrb[0].mxu0
        %v4238 = vadd.f32 0.0, %v4237
        %v4239 = vpop.f32.mrb[0].mxu0
        %4240 = vmatprep.mubr.f32.mxu0 0.0
        %4241 = vmatmul.mubr.f32.gmra.mrb[0].mxu0 %v4013
        %v4242 = vpop.f32.mrb[0].mxu0
        %v4243 = vadd.f32 0.0, %v4242
        %v4244 = vpop.f32.mrb[0].mxu0
        %4245 = vmatprep.mubr.f32.mxu0 0.0
        %4246 = vmatmul.mubr.f32.gmra.mrb[0].mxu0 %v4016
        %v4247 = vpop.f32.mrb[0].mxu0
        %v4248 = vadd.f32 0.0, %v4247
        %v4249 = vpop.f32.mrb[0].mxu0
        %4250 = vdwg.mxu0
        %v4251 = vsel %vm3713, %v4093, -inf
        %v4252 = vsel %vm3714, %v4098, -inf
        %v4253 = vsel %vm3715, %v4103, -inf
        %v4254 = vsel %vm3716, %v4108, -inf
        %v4255 = vsel %vm3717, %v4113, -inf
        %v4256 = vsel %vm3718, %v4118, -inf
        %v4257 = vsel %vm3719, %v4123, -inf
        %v4258 = vsel %vm3720, %v4128, -inf
        %v4259 = vsel %vm3721, %v4133, -inf
        %v4260 = vsel %vm3722, %v4138, -inf
        %v4261 = vsel %vm3723, %v4143, -inf
        %v4262 = vsel %vm3724, %v4148, -inf
        %v4263 = vsel %vm3725, %v4153, -inf
        %v4264 = vsel %vm3726, %v4158, -inf
        %v4265 = vsel %vm3727, %v4163, -inf
        %v4266 = vsel %vm3728, %v4168, -inf
        %v4267 = vsel %vm3729, %v4173, -inf
        %v4268 = vsel %vm3730, %v4178, -inf
        %v4269 = vsel %vm3731, %v4183, -inf
        %v4270 = vsel %vm3732, %v4188, -inf
        %v4271 = vsel %vm3733, %v4193, -inf
        %v4272 = vsel %vm3734, %v4198, -inf
        %v4273 = vsel %vm3735, %v4203, -inf
        %v4274 = vsel %vm3736, %v4208, -inf
        %v4275 = vsel %vm3737, %v4213, -inf
        %v4276 = vsel %vm3738, %v4218, -inf
        %v4277 = vsel %vm3739, %v4223, -inf
        %v4278 = vsel %vm3740, %v4228, -inf
        %v4279 = vsel %vm3741, %v4233, -inf
        %v4280 = vsel %vm3742, %v4238, -inf
        %v4281 = vsel %vm3743, %v4243, -inf
        %v4282 = vsel %vm3744, %v4248, -inf
        %v4283 = vsel %vm2213, %v4251, -inf
        %4284 = vmax.xlane.f32.xlu0 %v4283
        %v4285 = vpop.xlane.xlu0 %4284
        %v4286 = vsel %vm2213, %v4252, -inf
        %4287 = vmax.xlane.f32.xlu0 %v4286
        %v4288 = vpop.xlane.xlu0 %4287
        %v4289 = vsel %vm2213, %v4253, -inf
        %4290 = vmax.xlane.f32.xlu0 %v4289
        %v4291 = vpop.xlane.xlu0 %4290
        %v4292 = vsel %vm2213, %v4254, -inf
        %4293 = vmax.xlane.f32.xlu0 %v4292
        %v4294 = vpop.xlane.xlu0 %4293
        %v4295 = vsel %vm2213, %v4255, -inf
        %4296 = vmax.xlane.f32.xlu0 %v4295
        %v4297 = vpop.xlane.xlu0 %4296
        %v4298 = vsel %vm2213, %v4256, -inf
        %4299 = vmax.xlane.f32.xlu0 %v4298
        %v4300 = vpop.xlane.xlu0 %4299
        %v4301 = vsel %vm2213, %v4257, -inf
        %4302 = vmax.xlane.f32.xlu0 %v4301
        %v4303 = vpop.xlane.xlu0 %4302
        %v4304 = vsel %vm2213, %v4258, -inf
        %4305 = vmax.xlane.f32.xlu0 %v4304
        %v4306 = vpop.xlane.xlu0 %4305
        %v4307 = vsel %vm2213, %v4259, -inf
        %4308 = vmax.xlane.f32.xlu0 %v4307
        %v4309 = vpop.xlane.xlu0 %4308
        %v4310 = vsel %vm2213, %v4260, -inf
        %4311 = vmax.xlane.f32.xlu0 %v4310
        %v4312 = vpop.xlane.xlu0 %4311
        %v4313 = vsel %vm2213, %v4261, -inf
        %4314 = vmax.xlane.f32.xlu0 %v4313
        %v4315 = vpop.xlane.xlu0 %4314
        %v4316 = vsel %vm2213, %v4262, -inf
        %4317 = vmax.xlane.f32.xlu0 %v4316
        %v4318 = vpop.xlane.xlu0 %4317
        %v4319 = vsel %vm2213, %v4263, -inf
        %4320 = vmax.xlane.f32.xlu0 %v4319
        %v4321 = vpop.xlane.xlu0 %4320
        %v4322 = vsel %vm2213, %v4264, -inf
        %4323 = vmax.xlane.f32.xlu0 %v4322
        %v4324 = vpop.xlane.xlu0 %4323
        %v4325 = vsel %vm2213, %v4265, -inf
        %4326 = vmax.xlane.f32.xlu0 %v4325
        %v4327 = vpop.xlane.xlu0 %4326
        %v4328 = vsel %vm2213, %v4266, -inf
        %4329 = vmax.xlane.f32.xlu0 %v4328
        %v4330 = vpop.xlane.xlu0 %4329
        %v4331 = vsel %vm2213, %v4267, -inf
        %4332 = vmax.xlane.f32.xlu0 %v4331
        %v4333 = vpop.xlane.xlu0 %4332
        %v4334 = vsel %vm2213, %v4268, -inf
        %4335 = vmax.xlane.f32.xlu0 %v4334
        %v4336 = vpop.xlane.xlu0 %4335
        %v4337 = vsel %vm2213, %v4269, -inf
        %4338 = vmax.xlane.f32.xlu0 %v4337
        %v4339 = vpop.xlane.xlu0 %4338
        %v4340 = vsel %vm2213, %v4270, -inf
        %4341 = vmax.xlane.f32.xlu0 %v4340
        %v4342 = vpop.xlane.xlu0 %4341
        %v4343 = vsel %vm2213, %v4271, -inf
        %4344 = vmax.xlane.f32.xlu0 %v4343
        %v4345 = vpop.xlane.xlu0 %4344
        %v4346 = vsel %vm2213, %v4272, -inf
        %4347 = vmax.xlane.f32.xlu0 %v4346
        %v4348 = vpop.xlane.xlu0 %4347
        %v4349 = vsel %vm2213, %v4273, -inf
        %4350 = vmax.xlane.f32.xlu0 %v4349
        %v4351 = vpop.xlane.xlu0 %4350
        %v4352 = vsel %vm2213, %v4274, -inf
        %4353 = vmax.xlane.f32.xlu0 %v4352
        %v4354 = vpop.xlane.xlu0 %4353
        %v4355 = vsel %vm2213, %v4275, -inf
        %4356 = vmax.xlane.f32.xlu0 %v4355
        %v4357 = vpop.xlane.xlu0 %4356
        %v4358 = vsel %vm2213, %v4276, -inf
        %4359 = vmax.xlane.f32.xlu0 %v4358
        %v4360 = vpop.xlane.xlu0 %4359
        %v4361 = vsel %vm2213, %v4277, -inf
        %4362 = vmax.xlane.f32.xlu0 %v4361
        %v4363 = vpop.xlane.xlu0 %4362
        %v4364 = vsel %vm2213, %v4278, -inf
        %4365 = vmax.xlane.f32.xlu0 %v4364
        %v4366 = vpop.xlane.xlu0 %4365
        %v4367 = vsel %vm2213, %v4279, -inf
        %4368 = vmax.xlane.f32.xlu0 %v4367
        %v4369 = vpop.xlane.xlu0 %4368
        %v4370 = vsel %vm2213, %v4280, -inf
        %4371 = vmax.xlane.f32.xlu0 %v4370
        %v4372 = vpop.xlane.xlu0 %4371
        %v4373 = vsel %vm2213, %v4281, -inf
        %4374 = vmax.xlane.f32.xlu0 %v4373
        %v4375 = vpop.xlane.xlu0 %4374
        %v4376 = vsel %vm2213, %v4282, -inf
        %4377 = vmax.xlane.f32.xlu0 %v4376
        %v4378 = vpop.xlane.xlu0 %4377
        %v4379 = vsub.f32 %v4251, %v4285
        %v4380 = vsub.f32 %v4252, %v4288
        %v4381 = vsub.f32 %v4253, %v4291
        %v4382 = vsub.f32 %v4254, %v4294
        %v4383 = vsub.f32 %v4255, %v4297
        %v4384 = vsub.f32 %v4256, %v4300
        %v4385 = vsub.f32 %v4257, %v4303
        %v4386 = vsub.f32 %v4258, %v4306
        %v4387 = vsub.f32 %v4259, %v4309
        %v4388 = vsub.f32 %v4260, %v4312
        %v4389 = vsub.f32 %v4261, %v4315
        %v4390 = vsub.f32 %v4262, %v4318
        %v4391 = vsub.f32 %v4263, %v4321
        %v4392 = vsub.f32 %v4264, %v4324
        %v4393 = vsub.f32 %v4265, %v4327
        %v4394 = vsub.f32 %v4266, %v4330
        %v4395 = vsub.f32 %v4267, %v4333
        %v4396 = vsub.f32 %v4268, %v4336
        %v4397 = vsub.f32 %v4269, %v4339
        %v4398 = vsub.f32 %v4270, %v4342
        %v4399 = vsub.f32 %v4271, %v4345
        %v4400 = vsub.f32 %v4272, %v4348
        %v4401 = vsub.f32 %v4273, %v4351
        %v4402 = vsub.f32 %v4274, %v4354
        %v4403 = vsub.f32 %v4275, %v4357
        %v4404 = vsub.f32 %v4276, %v4360
        %v4405 = vsub.f32 %v4277, %v4363
        %v4406 = vsub.f32 %v4278, %v4366
        %v4407 = vsub.f32 %v4279, %v4369
        %v4408 = vsub.f32 %v4280, %v4372
        %v4409 = vsub.f32 %v4281, %v4375
        %v4410 = vsub.f32 %v4282, %v4378
        %v4411 = vmul.f32 %v4379, 1.442695
        %v4412 = vpow.pop %v4411
        %v4413 = vmul.f32 %v4380, 1.442695
        %v4414 = vpow.pop %v4413
        %v4415 = vmul.f32 %v4381, 1.442695
        %v4416 = vpow.pop %v4415
        %v4417 = vmul.f32 %v4382, 1.442695
        %v4418 = vpow.pop %v4417
        %v4419 = vmul.f32 %v4383, 1.442695
        %v4420 = vpow.pop %v4419
        %v4421 = vmul.f32 %v4384, 1.442695
        %v4422 = vpow.pop %v4421
        %v4423 = vmul.f32 %v4385, 1.442695
        %v4424 = vpow.pop %v4423
        %v4425 = vmul.f32 %v4386, 1.442695
        %v4426 = vpow.pop %v4425
        %v4427 = vmul.f32 %v4387, 1.442695
        %v4428 = vpow.pop %v4427
        %v4429 = vmul.f32 %v4388, 1.442695
        %v4430 = vpow.pop %v4429
        %v4431 = vmul.f32 %v4389, 1.442695
        %v4432 = vpow.pop %v4431
        %v4433 = vmul.f32 %v4390, 1.442695
        %v4434 = vpow.pop %v4433
        %v4435 = vmul.f32 %v4391, 1.442695
        %v4436 = vpow.pop %v4435
        %v4437 = vmul.f32 %v4392, 1.442695
        %v4438 = vpow.pop %v4437
        %v4439 = vmul.f32 %v4393, 1.442695
        %v4440 = vpow.pop %v4439
        %v4441 = vmul.f32 %v4394, 1.442695
        %v4442 = vpow.pop %v4441
        %v4443 = vmul.f32 %v4395, 1.442695
        %v4444 = vpow.pop %v4443
        %v4445 = vmul.f32 %v4396, 1.442695
        %v4446 = vpow.pop %v4445
        %v4447 = vmul.f32 %v4397, 1.442695
        %v4448 = vpow.pop %v4447
        %v4449 = vmul.f32 %v4398, 1.442695
        %v4450 = vpow.pop %v4449
        %v4451 = vmul.f32 %v4399, 1.442695
        %v4452 = vpow.pop %v4451
        %v4453 = vmul.f32 %v4400, 1.442695
        %v4454 = vpow.pop %v4453
        %v4455 = vmul.f32 %v4401, 1.442695
        %v4456 = vpow.pop %v4455
        %v4457 = vmul.f32 %v4402, 1.442695
        %v4458 = vpow.pop %v4457
        %v4459 = vmul.f32 %v4403, 1.442695
        %v4460 = vpow.pop %v4459
        %v4461 = vmul.f32 %v4404, 1.442695
        %v4462 = vpow.pop %v4461
        %v4463 = vmul.f32 %v4405, 1.442695
        %v4464 = vpow.pop %v4463
        %v4465 = vmul.f32 %v4406, 1.442695
        %v4466 = vpow.pop %v4465
        %v4467 = vmul.f32 %v4407, 1.442695
        %v4468 = vpow.pop %v4467
        %v4469 = vmul.f32 %v4408, 1.442695
        %v4470 = vpow.pop %v4469
        %v4471 = vmul.f32 %v4409, 1.442695
        %v4472 = vpow.pop %v4471
        %v4473 = vmul.f32 %v4410, 1.442695
        %v4474 = vpow.pop %v4473
        %v4475 = vsel %vm2213, %v4412, 0.0
        %4476 = vadd.xlane.f32.xlu0 %v4475
        %v4477 = vpop.xlane.xlu0 %4476
        %v4478 = vsel %vm2213, %v4414, 0.0
        %4479 = vadd.xlane.f32.xlu0 %v4478
        %v4480 = vpop.xlane.xlu0 %4479
        %v4481 = vsel %vm2213, %v4416, 0.0
        %4482 = vadd.xlane.f32.xlu0 %v4481
        %v4483 = vpop.xlane.xlu0 %4482
        %v4484 = vsel %vm2213, %v4418, 0.0
        %4485 = vadd.xlane.f32.xlu0 %v4484
        %v4486 = vpop.xlane.xlu0 %4485
        %v4487 = vsel %vm2213, %v4420, 0.0
        %4488 = vadd.xlane.f32.xlu0 %v4487
        %v4489 = vpop.xlane.xlu0 %4488
        %v4490 = vsel %vm2213, %v4422, 0.0
        %4491 = vadd.xlane.f32.xlu0 %v4490
        %v4492 = vpop.xlane.xlu0 %4491
        %v4493 = vsel %vm2213, %v4424, 0.0
        %4494 = vadd.xlane.f32.xlu0 %v4493
        %v4495 = vpop.xlane.xlu0 %4494
        %v4496 = vsel %vm2213, %v4426, 0.0
        %4497 = vadd.xlane.f32.xlu0 %v4496
        %v4498 = vpop.xlane.xlu0 %4497
        %v4499 = vsel %vm2213, %v4428, 0.0
        %4500 = vadd.xlane.f32.xlu0 %v4499
        %v4501 = vpop.xlane.xlu0 %4500
        %v4502 = vsel %vm2213, %v4430, 0.0
        %4503 = vadd.xlane.f32.xlu0 %v4502
        %v4504 = vpop.xlane.xlu0 %4503
        %v4505 = vsel %vm2213, %v4432, 0.0
        %4506 = vadd.xlane.f32.xlu0 %v4505
        %v4507 = vpop.xlane.xlu0 %4506
        %v4508 = vsel %vm2213, %v4434, 0.0
        %4509 = vadd.xlane.f32.xlu0 %v4508
        %v4510 = vpop.xlane.xlu0 %4509
        %v4511 = vsel %vm2213, %v4436, 0.0
        %4512 = vadd.xlane.f32.xlu0 %v4511
        %v4513 = vpop.xlane.xlu0 %4512
        %v4514 = vsel %vm2213, %v4438, 0.0
        %4515 = vadd.xlane.f32.xlu0 %v4514
        %v4516 = vpop.xlane.xlu0 %4515
        %v4517 = vsel %vm2213, %v4440, 0.0
        %4518 = vadd.xlane.f32.xlu0 %v4517
        %v4519 = vpop.xlane.xlu0 %4518
        %v4520 = vsel %vm2213, %v4442, 0.0
        %4521 = vadd.xlane.f32.xlu0 %v4520
        %v4522 = vpop.xlane.xlu0 %4521
        %v4523 = vsel %vm2213, %v4444, 0.0
        %4524 = vadd.xlane.f32.xlu0 %v4523
        %v4525 = vpop.xlane.xlu0 %4524
        %v4526 = vsel %vm2213, %v4446, 0.0
        %4527 = vadd.xlane.f32.xlu0 %v4526
        %v4528 = vpop.xlane.xlu0 %4527
        %v4529 = vsel %vm2213, %v4448, 0.0
        %4530 = vadd.xlane.f32.xlu0 %v4529
        %v4531 = vpop.xlane.xlu0 %4530
        %v4532 = vsel %vm2213, %v4450, 0.0
        %4533 = vadd.xlane.f32.xlu0 %v4532
        %v4534 = vpop.xlane.xlu0 %4533
        %v4535 = vsel %vm2213, %v4452, 0.0
        %4536 = vadd.xlane.f32.xlu0 %v4535
        %v4537 = vpop.xlane.xlu0 %4536
        %v4538 = vsel %vm2213, %v4454, 0.0
        %4539 = vadd.xlane.f32.xlu0 %v4538
        %v4540 = vpop.xlane.xlu0 %4539
        %v4541 = vsel %vm2213, %v4456, 0.0
        %4542 = vadd.xlane.f32.xlu0 %v4541
        %v4543 = vpop.xlane.xlu0 %4542
        %v4544 = vsel %vm2213, %v4458, 0.0
        %4545 = vadd.xlane.f32.xlu0 %v4544
        %v4546 = vpop.xlane.xlu0 %4545
        %v4547 = vsel %vm2213, %v4460, 0.0
        %4548 = vadd.xlane.f32.xlu0 %v4547
        %v4549 = vpop.xlane.xlu0 %4548
        %v4550 = vsel %vm2213, %v4462, 0.0
        %4551 = vadd.xlane.f32.xlu0 %v4550
        %v4552 = vpop.xlane.xlu0 %4551
        %v4553 = vsel %vm2213, %v4464, 0.0
        %4554 = vadd.xlane.f32.xlu0 %v4553
        %v4555 = vpop.xlane.xlu0 %4554
        %v4556 = vsel %vm2213, %v4466, 0.0
        %4557 = vadd.xlane.f32.xlu0 %v4556
        %v4558 = vpop.xlane.xlu0 %4557
        %v4559 = vsel %vm2213, %v4468, 0.0
        %4560 = vadd.xlane.f32.xlu0 %v4559
        %v4561 = vpop.xlane.xlu0 %4560
        %v4562 = vsel %vm2213, %v4470, 0.0
        %4563 = vadd.xlane.f32.xlu0 %v4562
        %v4564 = vpop.xlane.xlu0 %4563
        %v4565 = vsel %vm2213, %v4472, 0.0
        %4566 = vadd.xlane.f32.xlu0 %v4565
        %v4567 = vpop.xlane.xlu0 %4566
        %v4568 = vsel %vm2213, %v4474, 0.0
        %4569 = vadd.xlane.f32.xlu0 %v4568
        %v4570 = vpop.xlane.xlu0 %4569
        %v4571 = vrcp.pop %v4477
        %v4572 = vrcp.pop %v4480
        %v4573 = vrcp.pop %v4483
        %v4574 = vrcp.pop %v4486
        %v4575 = vrcp.pop %v4489
        %v4576 = vrcp.pop %v4492
        %v4577 = vrcp.pop %v4495
        %v4578 = vrcp.pop %v4498
        %v4579 = vrcp.pop %v4501
        %v4580 = vrcp.pop %v4504
        %v4581 = vrcp.pop %v4507
        %v4582 = vrcp.pop %v4510
        %v4583 = vrcp.pop %v4513
        %v4584 = vrcp.pop %v4516
        %v4585 = vrcp.pop %v4519
        %v4586 = vrcp.pop %v4522
        %v4587 = vrcp.pop %v4525
        %v4588 = vrcp.pop %v4528
        %v4589 = vrcp.pop %v4531
        %v4590 = vrcp.pop %v4534
        %v4591 = vrcp.pop %v4537
        %v4592 = vrcp.pop %v4540
        %v4593 = vrcp.pop %v4543
        %v4594 = vrcp.pop %v4546
        %v4595 = vrcp.pop %v4549
        %v4596 = vrcp.pop %v4552
        %v4597 = vrcp.pop %v4555
        %v4598 = vrcp.pop %v4558
        %v4599 = vrcp.pop %v4561
        %v4600 = vrcp.pop %v4564
        %v4601 = vrcp.pop %v4567
        %v4602 = vrcp.pop %v4570
        %v4603 = vmul.f32 %v4412, %v4571
        %v4604 = vmul.f32 %v4414, %v4572
        %v4605 = vmul.f32 %v4416, %v4573
        %v4606 = vmul.f32 %v4418, %v4574
        %v4607 = vmul.f32 %v4420, %v4575
        %v4608 = vmul.f32 %v4422, %v4576
        %v4609 = vmul.f32 %v4424, %v4577
        %v4610 = vmul.f32 %v4426, %v4578
        %v4611 = vmul.f32 %v4428, %v4579
        %v4612 = vmul.f32 %v4430, %v4580
        %v4613 = vmul.f32 %v4432, %v4581
        %v4614 = vmul.f32 %v4434, %v4582
        %v4615 = vmul.f32 %v4436, %v4583
        %v4616 = vmul.f32 %v4438, %v4584
        %v4617 = vmul.f32 %v4440, %v4585
        %v4618 = vmul.f32 %v4442, %v4586
        %v4619 = vmul.f32 %v4444, %v4587
        %v4620 = vmul.f32 %v4446, %v4588
        %v4621 = vmul.f32 %v4448, %v4589
        %v4622 = vmul.f32 %v4450, %v4590
        %v4623 = vmul.f32 %v4452, %v4591
        %v4624 = vmul.f32 %v4454, %v4592
        %v4625 = vmul.f32 %v4456, %v4593
        %v4626 = vmul.f32 %v4458, %v4594
        %v4627 = vmul.f32 %v4460, %v4595
        %v4628 = vmul.f32 %v4462, %v4596
        %v4629 = vmul.f32 %v4464, %v4597
        %v4630 = vmul.f32 %v4466, %v4598
        %v4631 = vmul.f32 %v4468, %v4599
        %v4632 = vmul.f32 %v4470, %v4600
        %v4633 = vmul.f32 %v4472, %v4601
        %v4634 = vmul.f32 %v4474, %v4602
        %v4636 = vsel %vm2213, %v4603, 0
        %v4639 = vsel %vm2213, %v4604, 0
        %v4642 = vsel %vm2213, %v4605, 0
        %v4645 = vsel %vm2213, %v4606, 0
        %v4648 = vsel %vm2213, %v4607, 0
        %v4651 = vsel %vm2213, %v4608, 0
        %v4654 = vsel %vm2213, %v4609, 0
        %v4657 = vsel %vm2213, %v4610, 0
        %v4660 = vsel %vm2213, %v4611, 0
        %v4663 = vsel %vm2213, %v4612, 0
        %v4666 = vsel %vm2213, %v4613, 0
        %v4669 = vsel %vm2213, %v4614, 0
        %v4672 = vsel %vm2213, %v4615, 0
        %v4675 = vsel %vm2213, %v4616, 0
        %v4678 = vsel %vm2213, %v4617, 0
        %v4681 = vsel %vm2213, %v4618, 0
        %v4684 = vsel %vm2213, %v4619, 0
        %v4687 = vsel %vm2213, %v4620, 0
        %v4690 = vsel %vm2213, %v4621, 0
        %v4693 = vsel %vm2213, %v4622, 0
        %v4696 = vsel %vm2213, %v4623, 0
        %v4699 = vsel %vm2213, %v4624, 0
        %v4702 = vsel %vm2213, %v4625, 0
        %v4705 = vsel %vm2213, %v4626, 0
        %v4708 = vsel %vm2213, %v4627, 0
        %v4711 = vsel %vm2213, %v4628, 0
        %v4714 = vsel %vm2213, %v4629, 0
        %v4717 = vsel %vm2213, %v4630, 0
        %v4720 = vsel %vm2213, %v4631, 0
        %v4723 = vsel %vm2213, %v4632, 0
        %v4726 = vsel %vm2213, %v4633, 0
        %v4729 = vsel %vm2213, %v4634, 0
        %4731 = vmatprep.subr.mxu0 0.0
        %4732 = vmatpush1.msra.mxu0 %v3854
        %4733 = vmatprep.subr.mxu0 0.0
        %4734 = vmatpush1.msra.mxu0 %v3860
        %4735 = vmatprep.subr.mxu0 0.0
        %4736 = vmatpush1.msra.mxu0 %v3866
        %4737 = vmatprep.subr.mxu0 0.0
        %4738 = vmatpush1.msra.mxu0 %v3872
        %4739 = vmatprep.subr.mxu0 0.0
        %4740 = vmatpush1.msra.mxu0 0.0
        %4741 = vmatprep.subr.mxu0 0.0
        %4742 = vmatpush1.msra.mxu0 0.0
        %4743 = vmatprep.subr.mxu0 0.0
        %4744 = vmatpush1.msra.mxu0 0.0
        %4745 = vmatprep.subr.mxu0 0.0
        %4746 = vmatpush1.msra.mxu0 0.0
        %4747 = vmatprep.subr.mxu0 0.0
        %4748 = vmatpush1.msra.mxu0 0.0
        %4749 = vmatprep.subr.mxu0 0.0
        %4750 = vmatpush1.msra.mxu0 0.0
        %4751 = vmatprep.subr.mxu0 0.0
        %4752 = vmatpush1.msra.mxu0 0.0
        %4753 = vmatprep.subr.mxu0 0.0
        %4754 = vmatpush1.msra.mxu0 0.0
        %4755 = vmatprep.subr.mxu0 0.0
        %4756 = vmatpush1.msra.mxu0 0.0
        %4757 = vmatprep.subr.mxu0 0.0
        %4758 = vmatpush1.msra.mxu0 0.0
        %4759 = vmatprep.subr.mxu0 0.0
        %4760 = vmatpush1.msra.mxu0 0.0
        %4761 = vmatprep.subr.mxu0 0.0
        %4762 = vmatpush1.msra.mxu0 0.0
        %4763 = vmatprep.subr.mxu0 0.0
        %4764 = vmatpush1.msra.mxu0 0.0
        %4765 = vmatprep.subr.mxu0 0.0
        %4766 = vmatpush1.msra.mxu0 0.0
        %4767 = vmatprep.subr.mxu0 0.0
        %4768 = vmatpush1.msra.mxu0 0.0
        %4769 = vmatprep.subr.mxu0 0.0
        %4770 = vmatpush1.msra.mxu0 0.0
        %4771 = vmatprep.subr.mxu0 0.0
        %4772 = vmatpush1.msra.mxu0 0.0
        %4773 = vmatprep.subr.mxu0 0.0
        %4774 = vmatpush1.msra.mxu0 0.0
        %4775 = vmatprep.subr.mxu0 0.0
        %4776 = vmatpush1.msra.mxu0 0.0
        %4777 = vmatprep.subr.mxu0 0.0
        %4778 = vmatpush1.msra.mxu0 0.0
        %4779 = vmatprep.subr.mxu0 0.0
        %4780 = vmatpush1.msra.mxu0 0.0
        %4781 = vmatprep.subr.mxu0 0.0
        %4782 = vmatpush1.msra.mxu0 0.0
        %4783 = vmatprep.subr.mxu0 0.0
        %4784 = vmatpush1.msra.mxu0 0.0
        %4785 = vmatprep.subr.mxu0 0.0
        %4786 = vmatpush1.msra.mxu0 0.0
        %4787 = vmatprep.subr.mxu0 0.0
        %4788 = vmatpush1.msra.mxu0 0.0
        %4789 = vmatprep.subr.mxu0 0.0
        %4790 = vmatpush1.msra.mxu0 0.0
        %4791 = vmatprep.subr.mxu0 0.0
        %4792 = vmatpush1.msra.mxu0 0.0
        %4793 = vmatprep.subr.mxu0 0.0
        %4794 = vmatpush1.msra.mxu0 0.0
        %4795 = vmatprep.mubr.f32.mxu0 0.0
        %4796 = vmatmul.mubr.f32.gmra.mrb[0].mxu0 %v4636
        %v4797 = vpop.f32.mrb[0].mxu0
        %v4798 = vadd.f32 0.0, %v4797
        %v4799 = vpop.f32.mrb[0].mxu0
        %4800 = vmatprep.mubr.f32.mxu0 0.0
        %4801 = vmatmul.mubr.f32.gmra.mrb[0].mxu0 %v4639
        %v4802 = vpop.f32.mrb[0].mxu0
        %v4803 = vadd.f32 0.0, %v4802
        %v4804 = vpop.f32.mrb[0].mxu0
        %4805 = vmatprep.mubr.f32.mxu0 0.0
        %4806 = vmatmul.mubr.f32.gmra.mrb[0].mxu0 %v4642
        %v4807 = vpop.f32.mrb[0].mxu0
        %v4808 = vadd.f32 0.0, %v4807
        %v4809 = vpop.f32.mrb[0].mxu0
        %4810 = vmatprep.mubr.f32.mxu0 0.0
        %4811 = vmatmul.mubr.f32.gmra.mrb[0].mxu0 %v4645
        %v4812 = vpop.f32.mrb[0].mxu0
        %v4813 = vadd.f32 0.0, %v4812
        %v4814 = vpop.f32.mrb[0].mxu0
        %4815 = vmatprep.mubr.f32.mxu0 0.0
        %4816 = vmatmul.mubr.f32.gmra.mrb[0].mxu0 %v4648
        %v4817 = vpop.f32.mrb[0].mxu0
        %v4818 = vadd.f32 0.0, %v4817
        %v4819 = vpop.f32.mrb[0].mxu0
        %4820 = vmatprep.mubr.f32.mxu0 0.0
        %4821 = vmatmul.mubr.f32.gmra.mrb[0].mxu0 %v4651
        %v4822 = vpop.f32.mrb[0].mxu0
        %v4823 = vadd.f32 0.0, %v4822
        %v4824 = vpop.f32.mrb[0].mxu0
        %4825 = vmatprep.mubr.f32.mxu0 0.0
        %4826 = vmatmul.mubr.f32.gmra.mrb[0].mxu0 %v4654
        %v4827 = vpop.f32.mrb[0].mxu0
        %v4828 = vadd.f32 0.0, %v4827
        %v4829 = vpop.f32.mrb[0].mxu0
        %4830 = vmatprep.mubr.f32.mxu0 0.0
        %4831 = vmatmul.mubr.f32.gmra.mrb[0].mxu0 %v4657
        %v4832 = vpop.f32.mrb[0].mxu0
        %v4833 = vadd.f32 0.0, %v4832
        %v4834 = vpop.f32.mrb[0].mxu0
        %4835 = vmatprep.mubr.f32.mxu0 0.0
        %4836 = vmatmul.mubr.f32.gmra.mrb[0].mxu0 %v4660
        %v4837 = vpop.f32.mrb[0].mxu0
        %v4838 = vadd.f32 0.0, %v4837
        %v4839 = vpop.f32.mrb[0].mxu0
        %4840 = vmatprep.mubr.f32.mxu0 0.0
        %4841 = vmatmul.mubr.f32.gmra.mrb[0].mxu0 %v4663
        %v4842 = vpop.f32.mrb[0].mxu0
        %v4843 = vadd.f32 0.0, %v4842
        %v4844 = vpop.f32.mrb[0].mxu0
        %4845 = vmatprep.mubr.f32.mxu0 0.0
        %4846 = vmatmul.mubr.f32.gmra.mrb[0].mxu0 %v4666
        %v4847 = vpop.f32.mrb[0].mxu0
        %v4848 = vadd.f32 0.0, %v4847
        %v4849 = vpop.f32.mrb[0].mxu0
        %4850 = vmatprep.mubr.f32.mxu0 0.0
        %4851 = vmatmul.mubr.f32.gmra.mrb[0].mxu0 %v4669
        %v4852 = vpop.f32.mrb[0].mxu0
        %v4853 = vadd.f32 0.0, %v4852
        %v4854 = vpop.f32.mrb[0].mxu0
        %4855 = vmatprep.mubr.f32.mxu0 0.0
        %4856 = vmatmul.mubr.f32.gmra.mrb[0].mxu0 %v4672
        %v4857 = vpop.f32.mrb[0].mxu0
        %v4858 = vadd.f32 0.0, %v4857
        %v4859 = vpop.f32.mrb[0].mxu0
        %4860 = vmatprep.mubr.f32.mxu0 0.0
        %4861 = vmatmul.mubr.f32.gmra.mrb[0].mxu0 %v4675
        %v4862 = vpop.f32.mrb[0].mxu0
        %v4863 = vadd.f32 0.0, %v4862
        %v4864 = vpop.f32.mrb[0].mxu0
        %4865 = vmatprep.mubr.f32.mxu0 0.0
        %4866 = vmatmul.mubr.f32.gmra.mrb[0].mxu0 %v4678
        %v4867 = vpop.f32.mrb[0].mxu0
        %v4868 = vadd.f32 0.0, %v4867
        %v4869 = vpop.f32.mrb[0].mxu0
        %4870 = vmatprep.mubr.f32.mxu0 0.0
        %4871 = vmatmul.mubr.f32.gmra.mrb[0].mxu0 %v4681
        %v4872 = vpop.f32.mrb[0].mxu0
        %v4873 = vadd.f32 0.0, %v4872
        %v4874 = vpop.f32.mrb[0].mxu0
        %4875 = vmatprep.mubr.f32.mxu0 0.0
        %4876 = vmatmul.mubr.f32.gmra.mrb[0].mxu0 %v4684
        %v4877 = vpop.f32.mrb[0].mxu0
        %v4878 = vadd.f32 0.0, %v4877
        %v4879 = vpop.f32.mrb[0].mxu0
        %4880 = vmatprep.mubr.f32.mxu0 0.0
        %4881 = vmatmul.mubr.f32.gmra.mrb[0].mxu0 %v4687
        %v4882 = vpop.f32.mrb[0].mxu0
        %v4883 = vadd.f32 0.0, %v4882
        %v4884 = vpop.f32.mrb[0].mxu0
        %4885 = vmatprep.mubr.f32.mxu0 0.0
        %4886 = vmatmul.mubr.f32.gmra.mrb[0].mxu0 %v4690
        %v4887 = vpop.f32.mrb[0].mxu0
        %v4888 = vadd.f32 0.0, %v4887
        %v4889 = vpop.f32.mrb[0].mxu0
        %4890 = vmatprep.mubr.f32.mxu0 0.0
        %4891 = vmatmul.mubr.f32.gmra.mrb[0].mxu0 %v4693
        %v4892 = vpop.f32.mrb[0].mxu0
        %v4893 = vadd.f32 0.0, %v4892
        %v4894 = vpop.f32.mrb[0].mxu0
        %4895 = vmatprep.mubr.f32.mxu0 0.0
        %4896 = vmatmul.mubr.f32.gmra.mrb[0].mxu0 %v4696
        %v4897 = vpop.f32.mrb[0].mxu0
        %v4898 = vadd.f32 0.0, %v4897
        %v4899 = vpop.f32.mrb[0].mxu0
        %4900 = vmatprep.mubr.f32.mxu0 0.0
        %4901 = vmatmul.mubr.f32.gmra.mrb[0].mxu0 %v4699
        %v4902 = vpop.f32.mrb[0].mxu0
        %v4903 = vadd.f32 0.0, %v4902
        %v4904 = vpop.f32.mrb[0].mxu0
        %4905 = vmatprep.mubr.f32.mxu0 0.0
        %4906 = vmatmul.mubr.f32.gmra.mrb[0].mxu0 %v4702
        %v4907 = vpop.f32.mrb[0].mxu0
        %v4908 = vadd.f32 0.0, %v4907
        %v4909 = vpop.f32.mrb[0].mxu0
        %4910 = vmatprep.mubr.f32.mxu0 0.0
        %4911 = vmatmul.mubr.f32.gmra.mrb[0].mxu0 %v4705
        %v4912 = vpop.f32.mrb[0].mxu0
        %v4913 = vadd.f32 0.0, %v4912
        %v4914 = vpop.f32.mrb[0].mxu0
        %4915 = vmatprep.mubr.f32.mxu0 0.0
        %4916 = vmatmul.mubr.f32.gmra.mrb[0].mxu0 %v4708
        %v4917 = vpop.f32.mrb[0].mxu0
        %v4918 = vadd.f32 0.0, %v4917
        %v4919 = vpop.f32.mrb[0].mxu0
        %4920 = vmatprep.mubr.f32.mxu0 0.0
        %4921 = vmatmul.mubr.f32.gmra.mrb[0].mxu0 %v4711
        %v4922 = vpop.f32.mrb[0].mxu0
        %v4923 = vadd.f32 0.0, %v4922
        %v4924 = vpop.f32.mrb[0].mxu0
        %4925 = vmatprep.mubr.f32.mxu0 0.0
        %4926 = vmatmul.mubr.f32.gmra.mrb[0].mxu0 %v4714
        %v4927 = vpop.f32.mrb[0].mxu0
        %v4928 = vadd.f32 0.0, %v4927
        %v4929 = vpop.f32.mrb[0].mxu0
        %4930 = vmatprep.mubr.f32.mxu0 0.0
        %4931 = vmatmul.mubr.f32.gmra.mrb[0].mxu0 %v4717
        %v4932 = vpop.f32.mrb[0].mxu0
        %v4933 = vadd.f32 0.0, %v4932
        %v4934 = vpop.f32.mrb[0].mxu0
        %4935 = vmatprep.mubr.f32.mxu0 0.0
        %4936 = vmatmul.mubr.f32.gmra.mrb[0].mxu0 %v4720
        %v4937 = vpop.f32.mrb[0].mxu0
        %v4938 = vadd.f32 0.0, %v4937
        %v4939 = vpop.f32.mrb[0].mxu0
        %4940 = vmatprep.mubr.f32.mxu0 0.0
        %4941 = vmatmul.mubr.f32.gmra.mrb[0].mxu0 %v4723
        %v4942 = vpop.f32.mrb[0].mxu0
        %v4943 = vadd.f32 0.0, %v4942
        %v4944 = vpop.f32.mrb[0].mxu0
        %4945 = vmatprep.mubr.f32.mxu0 0.0
        %4946 = vmatmul.mubr.f32.gmra.mrb[0].mxu0 %v4726
        %v4947 = vpop.f32.mrb[0].mxu0
        %v4948 = vadd.f32 0.0, %v4947
        %v4949 = vpop.f32.mrb[0].mxu0
        %4950 = vmatprep.mubr.f32.mxu0 0.0
        %4951 = vmatmul.mubr.f32.gmra.mrb[0].mxu0 %v4729
        %v4952 = vpop.f32.mrb[0].mxu0
        %v4953 = vadd.f32 0.0, %v4952
        %v4954 = vpop.f32.mrb[0].mxu0
        %4955 = vdwg.mxu0
        %v4956 = vmul.f32 %v4798, %v1501
        %v4957 = vmul.f32 %v4803, %v1501
        %v4958 = vmul.f32 %v4808, %v1501
        %v4959 = vmul.f32 %v4813, %v1501
        %v4960 = vmul.f32 %v4818, %v1502
        %v4961 = vmul.f32 %v4823, %v1502
        %v4962 = vmul.f32 %v4828, %v1502
        %v4963 = vmul.f32 %v4833, %v1502
        %v4964 = vmul.f32 %v4838, %v1503
        %v4965 = vmul.f32 %v4843, %v1503
        %v4966 = vmul.f32 %v4848, %v1503
        %v4967 = vmul.f32 %v4853, %v1503
        %v4968 = vmul.f32 %v4858, %v1504
        %v4969 = vmul.f32 %v4863, %v1504
        %v4970 = vmul.f32 %v4868, %v1504
        %v4971 = vmul.f32 %v4873, %v1504
        %v4972 = vmul.f32 %v4878, %v1505
        %v4973 = vmul.f32 %v4883, %v1505
        %v4974 = vmul.f32 %v4888, %v1505
        %v4975 = vmul.f32 %v4893, %v1505
        %v4976 = vmul.f32 %v4898, %v1506
        %v4977 = vmul.f32 %v4903, %v1506
        %v4978 = vmul.f32 %v4908, %v1506
        %v4979 = vmul.f32 %v4913, %v1506
        %v4980 = vmul.f32 %v4918, %v1507
        %v4981 = vmul.f32 %v4923, %v1507
        %v4982 = vmul.f32 %v4928, %v1507
        %v4983 = vmul.f32 %v4933, %v1507
        %v4984 = vmul.f32 %v4938, %v1508
        %v4985 = vmul.f32 %v4943, %v1508
        %v4986 = vmul.f32 %v4948, %v1508
        %v4987 = vmul.f32 %v4953, %v1508
        %v4988 = vsel %vm1702, %v4956, 0.0
        %v4989 = vsel %vm1702, %v4960, 0.0
        %v4990 = vadd.f32 %v4988, %v4989
        %v4991 = vsel %vm1702, %v4964, 0.0
        %v4992 = vadd.f32 %v4990, %v4991
        %v4993 = vsel %vm1702, %v4968, 0.0
        %v4994 = vadd.f32 %v4992, %v4993
        %v4995 = vsel %vm1702, %v4972, 0.0
        %v4996 = vadd.f32 %v4994, %v4995
        %v4997 = vsel %vm1702, %v4976, 0.0
        %v4998 = vadd.f32 %v4996, %v4997
        %v4999 = vsel %vm1702, %v4980, 0.0
        %v5000 = vadd.f32 %v4998, %v4999
        %v5001 = vsel %vm1702, %v4984, 0.0
        %v5002 = vadd.f32 %v5000, %v5001
        %v5003 = vsel %vm1702, %v4957, 0.0
        %v5004 = vsel %vm1702, %v4961, 0.0
        %v5005 = vadd.f32 %v5003, %v5004
        %v5006 = vsel %vm1702, %v4965, 0.0
        %v5007 = vadd.f32 %v5005, %v5006
        %v5008 = vsel %vm1702, %v4969, 0.0
        %v5009 = vadd.f32 %v5007, %v5008
        %v5010 = vsel %vm1702, %v4973, 0.0
        %v5011 = vadd.f32 %v5009, %v5010
        %v5012 = vsel %vm1702, %v4977, 0.0
        %v5013 = vadd.f32 %v5011, %v5012
        %v5014 = vsel %vm1702, %v4981, 0.0
        %v5015 = vadd.f32 %v5013, %v5014
        %v5016 = vsel %vm1702, %v4985, 0.0
        %v5017 = vadd.f32 %v5015, %v5016
        %v5018 = vsel %vm1702, %v4958, 0.0
        %v5019 = vsel %vm1702, %v4962, 0.0
        %v5020 = vadd.f32 %v5018, %v5019
        %v5021 = vsel %vm1702, %v4966, 0.0
        %v5022 = vadd.f32 %v5020, %v5021
        %v5023 = vsel %vm1702, %v4970, 0.0
        %v5024 = vadd.f32 %v5022, %v5023
        %v5025 = vsel %vm1702, %v4974, 0.0
        %v5026 = vadd.f32 %v5024, %v5025
        %v5027 = vsel %vm1702, %v4978, 0.0
        %v5028 = vadd.f32 %v5026, %v5027
        %v5029 = vsel %vm1702, %v4982, 0.0
        %v5030 = vadd.f32 %v5028, %v5029
        %v5031 = vsel %vm1702, %v4986, 0.0
        %v5032 = vadd.f32 %v5030, %v5031
        %v5033 = vsel %vm1702, %v4959, 0.0
        %v5034 = vsel %vm1702, %v4963, 0.0
        %v5035 = vadd.f32 %v5033, %v5034
        %v5036 = vsel %vm1702, %v4967, 0.0
        %v5037 = vadd.f32 %v5035, %v5036
        %v5038 = vsel %vm1702, %v4971, 0.0
        %v5039 = vadd.f32 %v5037, %v5038
        %v5040 = vsel %vm1702, %v4975, 0.0
        %v5041 = vadd.f32 %v5039, %v5040
        %v5042 = vsel %vm1702, %v4979, 0.0
        %v5043 = vadd.f32 %v5041, %v5042
        %v5044 = vsel %vm1702, %v4983, 0.0
        %v5045 = vadd.f32 %v5043, %v5044
        %v5046 = vsel %vm1702, %v4987, 0.0
        %v5047 = vadd.f32 %v5045, %v5046
        %v5048 = vld [vmem:[#allocation18] sm:$0xff]
        %v5049 = vld [vmem:[#allocation18 + $0x8] sm:$0xff]
        %v5050 = vld [vmem:[#allocation18 + $0x10] sm:$0xff]
        %v5051 = vld [vmem:[#allocation18 + $0x18] sm:$0xff]
        %v5052 = vld [vmem:[#allocation18 + $0x20] sm:$0xff]
        %v5053 = vld [vmem:[#allocation18 + $0x28] sm:$0xff]
        %v5054 = vld [vmem:[#allocation18 + $0x30] sm:$0xff]
        %v5055 = vld [vmem:[#allocation18 + $0x38] sm:$0xff]
        %v5056 = vld [vmem:[#allocation19] sm:$0x1]
        %v5058 = vlaneseq
        %v5059 = vshrl.u32 %v5058, 7
        %v5060 = vsub.s32 0, %v5059
        %v5061 = vrot.slane %v5056, %v5060
        %v5064 = vsel %vm1702, %v5002, 0
        %v5067 = vsel %vm1702, %v5017, 0
        %v5070 = vsel %vm1702, %v5032, 0
        %v5073 = vsel %vm1702, %v5047, 0
        %5075 = vmatprep.subr.mxu0 0.0
        %5076 = vmatpush1.msra.mxu0 %v5048
        %5077 = vmatprep.subr.mxu0 0.0
        %5078 = vmatpush1.msra.mxu0 %v5049
        %5079 = vmatprep.subr.mxu0 0.0
        %5080 = vmatpush1.msra.mxu0 %v5050
        %5081 = vmatprep.subr.mxu0 0.0
        %5082 = vmatpush1.msra.mxu0 %v5051
        %5083 = vmatprep.subr.mxu0 0.0
        %5084 = vmatpush1.msra.mxu0 %v5052
        %5085 = vmatprep.subr.mxu0 0.0
        %5086 = vmatpush1.msra.mxu0 %v5053
        %5087 = vmatprep.subr.mxu0 0.0
        %5088 = vmatpush1.msra.mxu0 %v5054
        %5089 = vmatprep.subr.mxu0 0.0
        %5090 = vmatpush1.msra.mxu0 %v5055
        %5091 = vmatprep.subr.mxu0 0.0
        %5092 = vmatpush1.msra.mxu0 0.0
        %5093 = vmatprep.subr.mxu0 0.0
        %5094 = vmatpush1.msra.mxu0 0.0
        %5095 = vmatprep.subr.mxu0 0.0
        %5096 = vmatpush1.msra.mxu0 0.0
        %5097 = vmatprep.subr.mxu0 0.0
        %5098 = vmatpush1.msra.mxu0 0.0
        %5099 = vmatprep.subr.mxu0 0.0
        %5100 = vmatpush1.msra.mxu0 0.0
        %5101 = vmatprep.subr.mxu0 0.0
        %5102 = vmatpush1.msra.mxu0 0.0
        %5103 = vmatprep.subr.mxu0 0.0
        %5104 = vmatpush1.msra.mxu0 0.0
        %5105 = vmatprep.subr.mxu0 0.0
        %5106 = vmatpush1.msra.mxu0 0.0
        %5107 = vmatprep.subr.mxu0 0.0
        %5108 = vmatpush1.msra.mxu0 0.0
        %5109 = vmatprep.subr.mxu0 0.0
        %5110 = vmatpush1.msra.mxu0 0.0
        %5111 = vmatprep.subr.mxu0 0.0
        %5112 = vmatpush1.msra.mxu0 0.0
        %5113 = vmatprep.subr.mxu0 0.0
        %5114 = vmatpush1.msra.mxu0 0.0
        %5115 = vmatprep.subr.mxu0 0.0
        %5116 = vmatpush1.msra.mxu0 0.0
        %5117 = vmatprep.subr.mxu0 0.0
        %5118 = vmatpush1.msra.mxu0 0.0
        %5119 = vmatprep.subr.mxu0 0.0
        %5120 = vmatpush1.msra.mxu0 0.0
        %5121 = vmatprep.subr.mxu0 0.0
        %5122 = vmatpush1.msra.mxu0 0.0
        %5123 = vmatprep.subr.mxu0 0.0
        %5124 = vmatpush1.msra.mxu0 0.0
        %5125 = vmatprep.subr.mxu0 0.0
        %5126 = vmatpush1.msra.mxu0 0.0
        %5127 = vmatprep.subr.mxu0 0.0
        %5128 = vmatpush1.msra.mxu0 0.0
        %5129 = vmatprep.subr.mxu0 0.0
        %5130 = vmatpush1.msra.mxu0 0.0
        %5131 = vmatprep.subr.mxu0 0.0
        %5132 = vmatpush1.msra.mxu0 0.0
        %5133 = vmatprep.subr.mxu0 0.0
        %5134 = vmatpush1.msra.mxu0 0.0
        %5135 = vmatprep.subr.mxu0 0.0
        %5136 = vmatpush1.msra.mxu0 0.0
        %5137 = vmatprep.subr.mxu0 0.0
        %5138 = vmatpush1.msra.mxu0 0.0
        %5139 = vmatprep.mubr.f32.mxu0 0.0
        %5140 = vmatmul.mubr.f32.gmra.mrb[0].mxu0 %v5064
        %v5141 = vpop.f32.mrb[0].mxu0
        %v5142 = vadd.f32 %v5061, %v5141
        %v5143 = vpop.f32.mrb[0].mxu0
        %5144 = vmatprep.mubr.f32.mxu0 0.0
        %5145 = vmatmul.mubr.f32.gmra.mrb[0].mxu0 %v5067
        %v5146 = vpop.f32.mrb[0].mxu0
        %v5147 = vadd.f32 %v5061, %v5146
        %v5148 = vpop.f32.mrb[0].mxu0
        %5149 = vmatprep.mubr.f32.mxu0 0.0
        %5150 = vmatmul.mubr.f32.gmra.mrb[0].mxu0 %v5070
        %v5151 = vpop.f32.mrb[0].mxu0
        %v5152 = vadd.f32 %v5061, %v5151
        %v5153 = vpop.f32.mrb[0].mxu0
        %5154 = vmatprep.mubr.f32.mxu0 0.0
        %5155 = vmatmul.mubr.f32.gmra.mrb[0].mxu0 %v5073
        %v5156 = vpop.f32.mrb[0].mxu0
        %v5157 = vadd.f32 %v5061, %v5156
        %v5158 = vpop.f32.mrb[0].mxu0
        %5159 = vdwg.mxu0
        %v5160 = vadd.f32 %v3576, %v5142
        %v5161 = vadd.f32 %v3577, %v5147
        %v5162 = vadd.f32 %v3578, %v5152
        %v5163 = vadd.f32 %v3579, %v5157
        %v5164 = vld [vmem:[#allocation27] sm:$0x1]
        %v5165 = vld [vmem:[#allocation28] sm:$0x1]
        %v5166 = vsel %vm1702, %v5160, 0.0
        %5167 = vadd.xlane.f32.xlu0 %v5166
        %v5168 = vpop.xlane.xlu0 %5167
        %v5169 = vsel %vm1702, %v5161, 0.0
        %5170 = vadd.xlane.f32.xlu0 %v5169
        %v5171 = vpop.xlane.xlu0 %5170
        %v5172 = vsel %vm1702, %v5162, 0.0
        %5173 = vadd.xlane.f32.xlu0 %v5172
        %v5174 = vpop.xlane.xlu0 %5173
        %v5175 = vsel %vm1702, %v5163, 0.0
        %5176 = vadd.xlane.f32.xlu0 %v5175
        %v5177 = vpop.xlane.xlu0 %5176
        %v5178 = vmul.f32 %v5168, %v3109
        %v5179 = vmul.f32 %v5171, %v3109
        %v5180 = vmul.f32 %v5174, %v3109
        %v5181 = vmul.f32 %v5177, %v3109
        %v5182 = vsub.f32 %v5160, %v5178
        %v5183 = vsub.f32 %v5161, %v5179
        %v5184 = vsub.f32 %v5162, %v5180
        %v5185 = vsub.f32 %v5163, %v5181
        %v5186 = vmul.f32 %v5182, %v5182
        %v5187 = vmul.f32 %v5183, %v5183
        %v5188 = vmul.f32 %v5184, %v5184
        %v5189 = vmul.f32 %v5185, %v5185
        %v5190 = vsel %vm1702, %v5186, 0.0
        %5191 = vadd.xlane.f32.xlu0 %v5190
        %v5192 = vpop.xlane.xlu0 %5191
        %v5193 = vsel %vm1702, %v5187, 0.0
        %5194 = vadd.xlane.f32.xlu0 %v5193
        %v5195 = vpop.xlane.xlu0 %5194
        %v5196 = vsel %vm1702, %v5188, 0.0
        %5197 = vadd.xlane.f32.xlu0 %v5196
        %v5198 = vpop.xlane.xlu0 %5197
        %v5199 = vsel %vm1702, %v5189, 0.0
        %5200 = vadd.xlane.f32.xlu0 %v5199
        %v5201 = vpop.xlane.xlu0 %5200
        %v5202 = vmul.f32 %v5192, %v3109
        %v5203 = vmul.f32 %v5195, %v3109
        %v5204 = vmul.f32 %v5198, %v3109
        %v5205 = vmul.f32 %v5201, %v3109
        %v5206 = vadd.f32 %v5202, 1e-05
        %v5207 = vadd.f32 %v5203, 1e-05
        %v5208 = vadd.f32 %v5204, 1e-05
        %v5209 = vadd.f32 %v5205, 1e-05
        %v5210 = vrsqrt.pop %v5206
        %v5211 = vrsqrt.pop %v5207
        %v5212 = vrsqrt.pop %v5208
        %v5213 = vrsqrt.pop %v5209
        %v5214 = vmul.f32 %v5182, %v5210
        %v5215 = vmul.f32 %v5183, %v5211
        %v5216 = vmul.f32 %v5184, %v5212
        %v5217 = vmul.f32 %v5185, %v5213
        %v5219 = vlaneseq
        %v5220 = vshrl.u32 %v5219, 7
        %v5221 = vsub.s32 0, %v5220
        %v5222 = vrot.slane %v5164, %v5221
        %v5224 = vmul.f32 %v5214, %v5222
        %v5225 = vmul.f32 %v5215, %v5222
        %v5226 = vmul.f32 %v5216, %v5222
        %v5227 = vmul.f32 %v5217, %v5222
        %v5229 = vlaneseq
        %v5230 = vshrl.u32 %v5229, 7
        %v5231 = vsub.s32 0, %v5230
        %v5232 = vrot.slane %v5165, %v5231
        %v5234 = vadd.f32 %v5224, %v5232
        %v5235 = vadd.f32 %v5225, %v5232
        %v5236 = vadd.f32 %v5226, %v5232
        %v5237 = vadd.f32 %v5227, %v5232
        %v5238 = vld [vmem:[#allocation21] sm:$0xff]
        %v5239 = vld [vmem:[#allocation21 + $0x8] sm:$0xff]
        %v5240 = vld [vmem:[#allocation21 + $0x10] sm:$0xff]
        %v5241 = vld [vmem:[#allocation21 + $0x18] sm:$0xff]
        %v5242 = vld [vmem:[#allocation21 + $0x20] sm:$0xff]
        %v5243 = vld [vmem:[#allocation21 + $0x28] sm:$0xff]
        %v5244 = vld [vmem:[#allocation21 + $0x30] sm:$0xff]
        %v5245 = vld [vmem:[#allocation21 + $0x38] sm:$0xff]
        %v5246 = vld [vmem:[#allocation22] sm:$0x1]
        %v5248 = vlaneseq
        %v5249 = vshrl.u32 %v5248, 7
        %v5250 = vsub.s32 0, %v5249
        %v5251 = vrot.slane %v5246, %v5250
        %v5254 = vsel %vm1702, %v5234, 0
        %v5257 = vsel %vm1702, %v5235, 0
        %v5260 = vsel %vm1702, %v5236, 0
        %v5263 = vsel %vm1702, %v5237, 0
        %5265 = vmatprep.subr.mxu0 0.0
        %5266 = vmatpush1.msra.mxu0 %v5238
        %5267 = vmatprep.subr.mxu0 0.0
        %5268 = vmatpush1.msra.mxu0 %v5239
        %5269 = vmatprep.subr.mxu0 0.0
        %5270 = vmatpush1.msra.mxu0 %v5240
        %5271 = vmatprep.subr.mxu0 0.0
        %5272 = vmatpush1.msra.mxu0 %v5241
        %5273 = vmatprep.subr.mxu0 0.0
        %5274 = vmatpush1.msra.mxu0 %v5242
        %5275 = vmatprep.subr.mxu0 0.0
        %5276 = vmatpush1.msra.mxu0 %v5243
        %5277 = vmatprep.subr.mxu0 0.0
        %5278 = vmatpush1.msra.mxu0 %v5244
        %5279 = vmatprep.subr.mxu0 0.0
        %5280 = vmatpush1.msra.mxu0 %v5245
        %5281 = vmatprep.subr.mxu0 0.0
        %5282 = vmatpush1.msra.mxu0 0.0
        %5283 = vmatprep.subr.mxu0 0.0
        %5284 = vmatpush1.msra.mxu0 0.0
        %5285 = vmatprep.subr.mxu0 0.0
        %5286 = vmatpush1.msra.mxu0 0.0
        %5287 = vmatprep.subr.mxu0 0.0
        %5288 = vmatpush1.msra.mxu0 0.0
        %5289 = vmatprep.subr.mxu0 0.0
        %5290 = vmatpush1.msra.mxu0 0.0
        %5291 = vmatprep.subr.mxu0 0.0
        %5292 = vmatpush1.msra.mxu0 0.0
        %5293 = vmatprep.subr.mxu0 0.0
        %5294 = vmatpush1.msra.mxu0 0.0
        %5295 = vmatprep.subr.mxu0 0.0
        %5296 = vmatpush1.msra.mxu0 0.0
        %5297 = vmatprep.subr.mxu0 0.0
        %5298 = vmatpush1.msra.mxu0 0.0
        %5299 = vmatprep.subr.mxu0 0.0
        %5300 = vmatpush1.msra.mxu0 0.0
        %5301 = vmatprep.subr.mxu0 0.0
        %5302 = vmatpush1.msra.mxu0 0.0
        %5303 = vmatprep.subr.mxu0 0.0
        %5304 = vmatpush1.msra.mxu0 0.0
        %5305 = vmatprep.subr.mxu0 0.0
        %5306 = vmatpush1.msra.mxu0 0.0
        %5307 = vmatprep.subr.mxu0 0.0
        %5308 = vmatpush1.msra.mxu0 0.0
        %5309 = vmatprep.subr.mxu0 0.0
        %5310 = vmatpush1.msra.mxu0 0.0
        %5311 = vmatprep.subr.mxu0 0.0
        %5312 = vmatpush1.msra.mxu0 0.0
        %5313 = vmatprep.subr.mxu0 0.0
        %5314 = vmatpush1.msra.mxu0 0.0
        %5315 = vmatprep.subr.mxu0 0.0
        %5316 = vmatpush1.msra.mxu0 0.0
        %5317 = vmatprep.subr.mxu0 0.0
        %5318 = vmatpush1.msra.mxu0 0.0
        %5319 = vmatprep.subr.mxu0 0.0
        %5320 = vmatpush1.msra.mxu0 0.0
        %5321 = vmatprep.subr.mxu0 0.0
        %5322 = vmatpush1.msra.mxu0 0.0
        %5323 = vmatprep.subr.mxu0 0.0
        %5324 = vmatpush1.msra.mxu0 0.0
        %5325 = vmatprep.subr.mxu0 0.0
        %5326 = vmatpush1.msra.mxu0 0.0
        %5327 = vmatprep.subr.mxu0 0.0
        %5328 = vmatpush1.msra.mxu0 0.0
        %5329 = vmatprep.mubr.f32.mxu0 0.0
        %5330 = vmatmul.mubr.f32.gmra.mrb[0].mxu0 %v5254
        %v5331 = vpop.f32.mrb[0].mxu0
        %v5332 = vadd.f32 %v5251, %v5331
        %v5333 = vpop.f32.mrb[0].mxu0
        %5334 = vmatprep.mubr.f32.mxu0 0.0
        %5335 = vmatmul.mubr.f32.gmra.mrb[0].mxu0 %v5257
        %v5336 = vpop.f32.mrb[0].mxu0
        %v5337 = vadd.f32 %v5251, %v5336
        %v5338 = vpop.f32.mrb[0].mxu0
        %5339 = vmatprep.mubr.f32.mxu0 0.0
        %5340 = vmatmul.mubr.f32.gmra.mrb[0].mxu0 %v5260
        %v5341 = vpop.f32.mrb[0].mxu0
        %v5342 = vadd.f32 %v5251, %v5341
        %v5343 = vpop.f32.mrb[0].mxu0
        %5344 = vmatprep.mubr.f32.mxu0 0.0
        %5345 = vmatmul.mubr.f32.gmra.mrb[0].mxu0 %v5263
        %v5346 = vpop.f32.mrb[0].mxu0
        %v5347 = vadd.f32 %v5251, %v5346
        %v5348 = vpop.f32.mrb[0].mxu0
        %5349 = vdwg.mxu0
        %v5350 = vmul.f32 %v5332, 0.5
        %v5351 = vmul.f32 %v5337, 0.5
        %v5352 = vmul.f32 %v5342, 0.5
        %v5353 = vmul.f32 %v5347, 0.5
        %v5354 = vmul.f32 %v5332, 0.70710677
        %v5355 = vmul.f32 %v5337, 0.70710677
        %v5356 = vmul.f32 %v5342, 0.70710677
        %v5357 = vmul.f32 %v5347, 0.70710677
        %v5358 = vand.u32 2147483647, %v5354
        %v5359 = vand.u32 2147483647, %v5355
        %v5360 = vand.u32 2147483647, %v5356
        %v5361 = vand.u32 2147483647, %v5357
        %v5362 = vmul.f32 %v5358, 0.3275911
        %v5363 = vmul.f32 %v5359, 0.3275911
        %v5364 = vmul.f32 %v5360, 0.3275911
        %v5365 = vmul.f32 %v5361, 0.3275911
        %v5366 = vadd.f32 %v5362, 1.0
        %v5367 = vadd.f32 %v5363, 1.0
        %v5368 = vadd.f32 %v5364, 1.0
        %v5369 = vadd.f32 %v5365, 1.0
        %v5370 = vrcp.pop %v5366
        %v5371 = vmul.f32 1.0, %v5370
        %v5372 = vrcp.pop %v5367
        %v5373 = vmul.f32 1.0, %v5372
        %v5374 = vrcp.pop %v5368
        %v5375 = vmul.f32 1.0, %v5374
        %v5376 = vrcp.pop %v5369
        %v5377 = vmul.f32 1.0, %v5376
        %v5378 = vmul.f32 %v5371, 1.0614054
        %v5379 = vmul.f32 %v5373, 1.0614054
        %v5380 = vmul.f32 %v5375, 1.0614054
        %v5381 = vmul.f32 %v5377, 1.0614054
        %v5382 = vadd.f32 %v5378, -1.4531521
        %v5383 = vadd.f32 %v5379, -1.4531521
        %v5384 = vadd.f32 %v5380, -1.4531521
        %v5385 = vadd.f32 %v5381, -1.4531521
        %v5386 = vmul.f32 %v5382, %v5371
        %v5387 = vmul.f32 %v5383, %v5373
        %v5388 = vmul.f32 %v5384, %v5375
        %v5389 = vmul.f32 %v5385, %v5377
        %v5390 = vadd.f32 %v5386, 1.4214138
        %v5391 = vadd.f32 %v5387, 1.4214138
        %v5392 = vadd.f32 %v5388, 1.4214138
        %v5393 = vadd.f32 %v5389, 1.4214138
        %v5394 = vmul.f32 %v5390, %v5371
        %v5395 = vmul.f32 %v5391, %v5373
        %v5396 = vmul.f32 %v5392, %v5375
        %v5397 = vmul.f32 %v5393, %v5377
        %v5398 = vadd.f32 %v5394, -0.28449672
        %v5399 = vadd.f32 %v5395, -0.28449672
        %v5400 = vadd.f32 %v5396, -0.28449672
        %v5401 = vadd.f32 %v5397, -0.28449672
        %v5402 = vmul.f32 %v5398, %v5371
        %v5403 = vmul.f32 %v5399, %v5373
        %v5404 = vmul.f32 %v5400, %v5375
        %v5405 = vmul.f32 %v5401, %v5377
        %v5406 = vadd.f32 %v5402, 0.2548296
        %v5407 = vadd.f32 %v5403, 0.2548296
        %v5408 = vadd.f32 %v5404, 0.2548296
        %v5409 = vadd.f32 %v5405, 0.2548296
        %v5410 = vmul.f32 %v5406, %v5371
        %v5411 = vmul.f32 %v5407, %v5373
        %v5412 = vmul.f32 %v5408, %v5375
        %v5413 = vmul.f32 %v5409, %v5377
        %v5414 = vmul.f32 %v5358, %v5358
        %v5415 = vmul.f32 %v5359, %v5359
        %v5416 = vmul.f32 %v5360, %v5360
        %v5417 = vmul.f32 %v5361, %v5361
        %v5418 = vsub.f32 0.0, %v5414
        %v5419 = vsub.f32 0.0, %v5415
        %v5420 = vsub.f32 0.0, %v5416
        %v5421 = vsub.f32 0.0, %v5417
        %v5422 = vmul.f32 %v5418, 1.442695
        %v5423 = vpow.pop %v5422
        %v5424 = vmul.f32 %v5419, 1.442695
        %v5425 = vpow.pop %v5424
        %v5426 = vmul.f32 %v5420, 1.442695
        %v5427 = vpow.pop %v5426
        %v5428 = vmul.f32 %v5421, 1.442695
        %v5429 = vpow.pop %v5428
        %v5430 = vmul.f32 %v5410, %v5423
        %v5431 = vmul.f32 %v5411, %v5425
        %v5432 = vmul.f32 %v5412, %v5427
        %v5433 = vmul.f32 %v5413, %v5429
        %v5434 = vsub.f32 1.0, %v5430
        %v5435 = vsub.f32 1.0, %v5431
        %v5436 = vsub.f32 1.0, %v5432
        %v5437 = vsub.f32 1.0, %v5433
        %vm5438 = vcmp.ge.f32.partialorder %v5354, 0.0
        %vm5439 = vcmp.ge.f32.partialorder %v5355, 0.0
        %vm5440 = vcmp.ge.f32.partialorder %v5356, 0.0
        %vm5441 = vcmp.ge.f32.partialorder %v5357, 0.0
        %v5442 = vsub.f32 0.0, %v5434
        %v5443 = vsub.f32 0.0, %v5435
        %v5444 = vsub.f32 0.0, %v5436
        %v5445 = vsub.f32 0.0, %v5437
        %v5446 = vsel %vm5438, %v5434, %v5442
        %v5447 = vsel %vm5439, %v5435, %v5443
        %v5448 = vsel %vm5440, %v5436, %v5444
        %v5449 = vsel %vm5441, %v5437, %v5445
        %v5450 = vadd.f32 %v5446, 1.0
        %v5451 = vadd.f32 %v5447, 1.0
        %v5452 = vadd.f32 %v5448, 1.0
        %v5453 = vadd.f32 %v5449, 1.0
        %v5454 = vmul.f32 %v5350, %v5450
        %v5455 = vmul.f32 %v5351, %v5451
        %v5456 = vmul.f32 %v5352, %v5452
        %v5457 = vmul.f32 %v5353, %v5453
        %v5458 = vld [vmem:[#allocation24] sm:$0xff]
        %v5459 = vld [vmem:[#allocation24 + $0x8] sm:$0xff]
        %v5460 = vld [vmem:[#allocation24 + $0x10] sm:$0xff]
        %v5461 = vld [vmem:[#allocation24 + $0x18] sm:$0xff]
        %v5462 = vld [vmem:[#allocation24 + $0x20] sm:$0xff]
        %v5463 = vld [vmem:[#allocation24 + $0x28] sm:$0xff]
        %v5464 = vld [vmem:[#allocation24 + $0x30] sm:$0xff]
        %v5465 = vld [vmem:[#allocation24 + $0x38] sm:$0xff]
        %v5466 = vld [vmem:[#allocation25] sm:$0x1]
        %v5468 = vlaneseq
        %v5469 = vshrl.u32 %v5468, 7
        %v5470 = vsub.s32 0, %v5469
        %v5471 = vrot.slane %v5466, %v5470
        %v5474 = vsel %vm1702, %v5454, 0
        %v5477 = vsel %vm1702, %v5455, 0
        %v5480 = vsel %vm1702, %v5456, 0
        %v5483 = vsel %vm1702, %v5457, 0
        %5485 = vmatprep.subr.mxu0 0.0
        %5486 = vmatpush1.msra.mxu0 %v5458
        %5487 = vmatprep.subr.mxu0 0.0
        %5488 = vmatpush1.msra.mxu0 %v5459
        %5489 = vmatprep.subr.mxu0 0.0
        %5490 = vmatpush1.msra.mxu0 %v5460
        %5491 = vmatprep.subr.mxu0 0.0
        %5492 = vmatpush1.msra.mxu0 %v5461
        %5493 = vmatprep.subr.mxu0 0.0
        %5494 = vmatpush1.msra.mxu0 %v5462
        %5495 = vmatprep.subr.mxu0 0.0
        %5496 = vmatpush1.msra.mxu0 %v5463
        %5497 = vmatprep.subr.mxu0 0.0
        %5498 = vmatpush1.msra.mxu0 %v5464
        %5499 = vmatprep.subr.mxu0 0.0
        %5500 = vmatpush1.msra.mxu0 %v5465
        %5501 = vmatprep.subr.mxu0 0.0
        %5502 = vmatpush1.msra.mxu0 0.0
        %5503 = vmatprep.subr.mxu0 0.0
        %5504 = vmatpush1.msra.mxu0 0.0
        %5505 = vmatprep.subr.mxu0 0.0
        %5506 = vmatpush1.msra.mxu0 0.0
        %5507 = vmatprep.subr.mxu0 0.0
        %5508 = vmatpush1.msra.mxu0 0.0
        %5509 = vmatprep.subr.mxu0 0.0
        %5510 = vmatpush1.msra.mxu0 0.0
        %5511 = vmatprep.subr.mxu0 0.0
        %5512 = vmatpush1.msra.mxu0 0.0
        %5513 = vmatprep.subr.mxu0 0.0
        %5514 = vmatpush1.msra.mxu0 0.0
        %5515 = vmatprep.subr.mxu0 0.0
        %5516 = vmatpush1.msra.mxu0 0.0
        %5517 = vmatprep.subr.mxu0 0.0
        %5518 = vmatpush1.msra.mxu0 0.0
        %5519 = vmatprep.subr.mxu0 0.0
        %5520 = vmatpush1.msra.mxu0 0.0
        %5521 = vmatprep.subr.mxu0 0.0
        %5522 = vmatpush1.msra.mxu0 0.0
        %5523 = vmatprep.subr.mxu0 0.0
        %5524 = vmatpush1.msra.mxu0 0.0
        %5525 = vmatprep.subr.mxu0 0.0
        %5526 = vmatpush1.msra.mxu0 0.0
        %5527 = vmatprep.subr.mxu0 0.0
        %5528 = vmatpush1.msra.mxu0 0.0
        %5529 = vmatprep.subr.mxu0 0.0
        %5530 = vmatpush1.msra.mxu0 0.0
        %5531 = vmatprep.subr.mxu0 0.0
        %5532 = vmatpush1.msra.mxu0 0.0
        %5533 = vmatprep.subr.mxu0 0.0
        %5534 = vmatpush1.msra.mxu0 0.0
        %5535 = vmatprep.subr.mxu0 0.0
        %5536 = vmatpush1.msra.mxu0 0.0
        %5537 = vmatprep.subr.mxu0 0.0
        %5538 = vmatpush1.msra.mxu0 0.0
        %5539 = vmatprep.subr.mxu0 0.0
        %5540 = vmatpush1.msra.mxu0 0.0
        %5541 = vmatprep.subr.mxu0 0.0
        %5542 = vmatpush1.msra.mxu0 0.0
        %5543 = vmatprep.subr.mxu0 0.0
        %5544 = vmatpush1.msra.mxu0 0.0
        %5545 = vmatprep.subr.mxu0 0.0
        %5546 = vmatpush1.msra.mxu0 0.0
        %5547 = vmatprep.subr.mxu0 0.0
        %5548 = vmatpush1.msra.mxu0 0.0
        %5549 = vmatprep.mubr.f32.mxu0 0.0
        %5550 = vmatmul.mubr.f32.gmra.mrb[0].mxu0 %v5474
        %v5551 = vpop.f32.mrb[0].mxu0
        %v5552 = vadd.f32 %v5471, %v5551
        %v5553 = vpop.f32.mrb[0].mxu0
        %5554 = vmatprep.mubr.f32.mxu0 0.0
        %5555 = vmatmul.mubr.f32.gmra.mrb[0].mxu0 %v5477
        %v5556 = vpop.f32.mrb[0].mxu0
        %v5557 = vadd.f32 %v5471, %v5556
        %v5558 = vpop.f32.mrb[0].mxu0
        %5559 = vmatprep.mubr.f32.mxu0 0.0
        %5560 = vmatmul.mubr.f32.gmra.mrb[0].mxu0 %v5480
        %v5561 = vpop.f32.mrb[0].mxu0
        %v5562 = vadd.f32 %v5471, %v5561
        %v5563 = vpop.f32.mrb[0].mxu0
        %5564 = vmatprep.mubr.f32.mxu0 0.0
        %5565 = vmatmul.mubr.f32.gmra.mrb[0].mxu0 %v5483
        %v5566 = vpop.f32.mrb[0].mxu0
        %v5567 = vadd.f32 %v5471, %v5566
        %v5568 = vpop.f32.mrb[0].mxu0
        %5569 = vdwg.mxu0
        %v5570 = vadd.f32 %v5234, %v5552
        %v5571 = vadd.f32 %v5235, %v5557
        %v5572 = vadd.f32 %v5236, %v5562
        %v5573 = vadd.f32 %v5237, %v5567
        %v5574 = vld [vmem:[#allocation30] sm:$0x1]
        %v5575 = vld [vmem:[#allocation31] sm:$0x1]
        %v5576 = vsel %vm1702, %v5570, 0.0
        %5577 = vadd.xlane.f32.xlu0 %v5576
        %v5578 = vpop.xlane.xlu0 %5577
        %v5579 = vsel %vm1702, %v5571, 0.0
        %5580 = vadd.xlane.f32.xlu0 %v5579
        %v5581 = vpop.xlane.xlu0 %5580
        %v5582 = vsel %vm1702, %v5572, 0.0
        %5583 = vadd.xlane.f32.xlu0 %v5582
        %v5584 = vpop.xlane.xlu0 %5583
        %v5585 = vsel %vm1702, %v5573, 0.0
        %5586 = vadd.xlane.f32.xlu0 %v5585
        %v5587 = vpop.xlane.xlu0 %5586
        %v5588 = vmul.f32 %v5578, %v3109
        %v5589 = vmul.f32 %v5581, %v3109
        %v5590 = vmul.f32 %v5584, %v3109
        %v5591 = vmul.f32 %v5587, %v3109
        %v5592 = vsub.f32 %v5570, %v5588
        %v5593 = vsub.f32 %v5571, %v5589
        %v5594 = vsub.f32 %v5572, %v5590
        %v5595 = vsub.f32 %v5573, %v5591
        %v5596 = vmul.f32 %v5592, %v5592
        %v5597 = vmul.f32 %v5593, %v5593
        %v5598 = vmul.f32 %v5594, %v5594
        %v5599 = vmul.f32 %v5595, %v5595
        %v5600 = vsel %vm1702, %v5596, 0.0
        %5601 = vadd.xlane.f32.xlu0 %v5600
        %v5602 = vpop.xlane.xlu0 %5601
        %v5603 = vsel %vm1702, %v5597, 0.0
        %5604 = vadd.xlane.f32.xlu0 %v5603
        %v5605 = vpop.xlane.xlu0 %5604
        %v5606 = vsel %vm1702, %v5598, 0.0
        %5607 = vadd.xlane.f32.xlu0 %v5606
        %v5608 = vpop.xlane.xlu0 %5607
        %v5609 = vsel %vm1702, %v5599, 0.0
        %5610 = vadd.xlane.f32.xlu0 %v5609
        %v5611 = vpop.xlane.xlu0 %5610
        %v5612 = vmul.f32 %v5602, %v3109
        %v5613 = vmul.f32 %v5605, %v3109
        %v5614 = vmul.f32 %v5608, %v3109
        %v5615 = vmul.f32 %v5611, %v3109
        %v5616 = vadd.f32 %v5612, 1e-05
        %v5617 = vadd.f32 %v5613, 1e-05
        %v5618 = vadd.f32 %v5614, 1e-05
        %v5619 = vadd.f32 %v5615, 1e-05
        %v5620 = vrsqrt.pop %v5616
        %v5621 = vrsqrt.pop %v5617
        %v5622 = vrsqrt.pop %v5618
        %v5623 = vrsqrt.pop %v5619
        %v5624 = vmul.f32 %v5592, %v5620
        %v5625 = vmul.f32 %v5593, %v5621
        %v5626 = vmul.f32 %v5594, %v5622
        %v5627 = vmul.f32 %v5595, %v5623
        %v5629 = vlaneseq
        %v5630 = vshrl.u32 %v5629, 7
        %v5631 = vsub.s32 0, %v5630
        %v5632 = vrot.slane %v5574, %v5631
        %v5634 = vmul.f32 %v5624, %v5632
        %v5635 = vmul.f32 %v5625, %v5632
        %v5636 = vmul.f32 %v5626, %v5632
        %v5637 = vmul.f32 %v5627, %v5632
        %v5639 = vlaneseq
        %v5640 = vshrl.u32 %v5639, 7
        %v5641 = vsub.s32 0, %v5640
        %v5642 = vrot.slane %v5575, %v5641
        %v5644 = vadd.f32 %v5634, %v5642
        %v5645 = vadd.f32 %v5635, %v5642
        %v5646 = vadd.f32 %v5636, %v5642
        %v5647 = vadd.f32 %v5637, %v5642
        %v5648 = vld [vmem:[#allocation9] sm:$0xff]
        %v5649 = vld [vmem:[#allocation9 + $0x8] sm:$0xff]
        %v5650 = vld [vmem:[#allocation9 + $0x10] sm:$0xff]
        %v5651 = vld [vmem:[#allocation9 + $0x18] sm:$0xff]
        %v5652 = vld [vmem:[#allocation9 + $0x20] sm:$0xff]
        %v5653 = vld [vmem:[#allocation9 + $0x28] sm:$0xff]
        %v5654 = vld [vmem:[#allocation9 + $0x30] sm:$0xff]
        %v5655 = vld [vmem:[#allocation9 + $0x38] sm:$0xff]
        %v5656 = vld [vmem:[%s17] sm:$0x1]
        %v5658 = vlaneseq
        %v5659 = vshrl.u32 %v5658, 7
        %v5660 = vsub.s32 0, %v5659
        %v5661 = vrot.slane %v5656, %v5660
        %v5664 = vsel %vm1702, %v5644, 0
        %v5667 = vsel %vm1702, %v5645, 0
        %v5670 = vsel %vm1702, %v5646, 0
        %v5673 = vsel %vm1702, %v5647, 0
        %5675 = vmatprep.subr.mxu0 0.0
        %5676 = vmatpush1.msra.mxu0 %v5648
        %5677 = vmatprep.subr.mxu0 0.0
        %5678 = vmatpush1.msra.mxu0 %v5649
        %5679 = vmatprep.subr.mxu0 0.0
        %5680 = vmatpush1.msra.mxu0 %v5650
        %5681 = vmatprep.subr.mxu0 0.0
        %5682 = vmatpush1.msra.mxu0 %v5651
        %5683 = vmatprep.subr.mxu0 0.0
        %5684 = vmatpush1.msra.mxu0 %v5652
        %5685 = vmatprep.subr.mxu0 0.0
        %5686 = vmatpush1.msra.mxu0 %v5653
        %5687 = vmatprep.subr.mxu0 0.0
        %5688 = vmatpush1.msra.mxu0 %v5654
        %5689 = vmatprep.subr.mxu0 0.0
        %5690 = vmatpush1.msra.mxu0 %v5655
        %5691 = vmatprep.subr.mxu0 0.0
        %5692 = vmatpush1.msra.mxu0 0.0
        %5693 = vmatprep.subr.mxu0 0.0
        %5694 = vmatpush1.msra.mxu0 0.0
        %5695 = vmatprep.subr.mxu0 0.0
        %5696 = vmatpush1.msra.mxu0 0.0
        %5697 = vmatprep.subr.mxu0 0.0
        %5698 = vmatpush1.msra.mxu0 0.0
        %5699 = vmatprep.subr.mxu0 0.0
        %5700 = vmatpush1.msra.mxu0 0.0
        %5701 = vmatprep.subr.mxu0 0.0
        %5702 = vmatpush1.msra.mxu0 0.0
        %5703 = vmatprep.subr.mxu0 0.0
        %5704 = vmatpush1.msra.mxu0 0.0
        %5705 = vmatprep.subr.mxu0 0.0
        %5706 = vmatpush1.msra.mxu0 0.0
        %5707 = vmatprep.subr.mxu0 0.0
        %5708 = vmatpush1.msra.mxu0 0.0
        %5709 = vmatprep.subr.mxu0 0.0
        %5710 = vmatpush1.msra.mxu0 0.0
        %5711 = vmatprep.subr.mxu0 0.0
        %5712 = vmatpush1.msra.mxu0 0.0
        %5713 = vmatprep.subr.mxu0 0.0
        %5714 = vmatpush1.msra.mxu0 0.0
        %5715 = vmatprep.subr.mxu0 0.0
        %5716 = vmatpush1.msra.mxu0 0.0
        %5717 = vmatprep.subr.mxu0 0.0
        %5718 = vmatpush1.msra.mxu0 0.0
        %5719 = vmatprep.subr.mxu0 0.0
        %5720 = vmatpush1.msra.mxu0 0.0
        %5721 = vmatprep.subr.mxu0 0.0
        %5722 = vmatpush1.msra.mxu0 0.0
        %5723 = vmatprep.subr.mxu0 0.0
        %5724 = vmatpush1.msra.mxu0 0.0
        %5725 = vmatprep.subr.mxu0 0.0
        %5726 = vmatpush1.msra.mxu0 0.0
        %5727 = vmatprep.subr.mxu0 0.0
        %5728 = vmatpush1.msra.mxu0 0.0
        %5729 = vmatprep.subr.mxu0 0.0
        %5730 = vmatpush1.msra.mxu0 0.0
        %5731 = vmatprep.subr.mxu0 0.0
        %5732 = vmatpush1.msra.mxu0 0.0
        %5733 = vmatprep.subr.mxu0 0.0
        %5734 = vmatpush1.msra.mxu0 0.0
        %5735 = vmatprep.subr.mxu0 0.0
        %5736 = vmatpush1.msra.mxu0 0.0
        %5737 = vmatprep.subr.mxu0 0.0
        %5738 = vmatpush1.msra.mxu0 0.0
        %5739 = vmatprep.mubr.f32.mxu0 0.0
        %5740 = vmatmul.mubr.f32.gmra.mrb[0].mxu0 %v5664
        %v5741 = vpop.f32.mrb[0].mxu0
        %v5742 = vadd.f32 %v5661, %v5741
        %v5743 = vpop.f32.mrb[0].mxu0
        %5744 = vmatprep.mubr.f32.mxu0 0.0
        %5745 = vmatmul.mubr.f32.gmra.mrb[0].mxu0 %v5667
        %v5746 = vpop.f32.mrb[0].mxu0
        %v5747 = vadd.f32 %v5661, %v5746
        %v5748 = vpop.f32.mrb[0].mxu0
        %5749 = vmatprep.mubr.f32.mxu0 0.0
        %5750 = vmatmul.mubr.f32.gmra.mrb[0].mxu0 %v5670
        %v5751 = vpop.f32.mrb[0].mxu0
        %v5752 = vadd.f32 %v5661, %v5751
        %v5753 = vpop.f32.mrb[0].mxu0
        %5754 = vmatprep.mubr.f32.mxu0 0.0
        %5755 = vmatmul.mubr.f32.gmra.mrb[0].mxu0 %v5673
        %v5756 = vpop.f32.mrb[0].mxu0
        %v5757 = vadd.f32 %v5661, %v5756
        %v5758 = vpop.f32.mrb[0].mxu0
        %5759 = vdwg.mxu0
        %v5760 = vld [vmem:[%s19] sm:$0xff]
        %v5761 = vld [vmem:[%s19 + $0x8] sm:$0xff]
        %vm5762 = vcmask 130048
        %v5764 = vsel %vm5762, %v1452, 0
        %v5767 = vsel %vm5762, %v1453, 0
        %v5770 = vsel %vm5762, %v1454, 0
        %v5773 = vsel %vm5762, %v1455, 0
        %5775 = vmatprep.subr.mxu0 0.0
        %5776 = vmatpush1.msra.mxu0 %v5760
        %5777 = vmatprep.subr.mxu0 0.0
        %5778 = vmatpush1.msra.mxu0 %v5761
        %5779 = vmatprep.subr.mxu0 0.0
        %5780 = vmatpush1.msra.mxu0 0.0
        %5781 = vmatprep.subr.mxu0 0.0
        %5782 = vmatpush1.msra.mxu0 0.0
        %5783 = vmatprep.subr.mxu0 0.0
        %5784 = vmatpush1.msra.mxu0 0.0
        %5785 = vmatprep.subr.mxu0 0.0
        %5786 = vmatpush1.msra.mxu0 0.0
        %5787 = vmatprep.subr.mxu0 0.0
        %5788 = vmatpush1.msra.mxu0 0.0
        %5789 = vmatprep.subr.mxu0 0.0
        %5790 = vmatpush1.msra.mxu0 0.0
        %5791 = vmatprep.subr.mxu0 0.0
        %5792 = vmatpush1.msra.mxu0 0.0
        %5793 = vmatprep.subr.mxu0 0.0
        %5794 = vmatpush1.msra.mxu0 0.0
        %5795 = vmatprep.subr.mxu0 0.0
        %5796 = vmatpush1.msra.mxu0 0.0
        %5797 = vmatprep.subr.mxu0 0.0
        %5798 = vmatpush1.msra.mxu0 0.0
        %5799 = vmatprep.subr.mxu0 0.0
        %5800 = vmatpush1.msra.mxu0 0.0
        %5801 = vmatprep.subr.mxu0 0.0
        %5802 = vmatpush1.msra.mxu0 0.0
        %5803 = vmatprep.subr.mxu0 0.0
        %5804 = vmatpush1.msra.mxu0 0.0
        %5805 = vmatprep.subr.mxu0 0.0
        %5806 = vmatpush1.msra.mxu0 0.0
        %5807 = vmatprep.subr.mxu0 0.0
        %5808 = vmatpush1.msra.mxu0 0.0
        %5809 = vmatprep.subr.mxu0 0.0
        %5810 = vmatpush1.msra.mxu0 0.0
        %5811 = vmatprep.subr.mxu0 0.0
        %5812 = vmatpush1.msra.mxu0 0.0
        %5813 = vmatprep.subr.mxu0 0.0
        %5814 = vmatpush1.msra.mxu0 0.0
        %5815 = vmatprep.subr.mxu0 0.0
        %5816 = vmatpush1.msra.mxu0 0.0
        %5817 = vmatprep.subr.mxu0 0.0
        %5818 = vmatpush1.msra.mxu0 0.0
        %5819 = vmatprep.subr.mxu0 0.0
        %5820 = vmatpush1.msra.mxu0 0.0
        %5821 = vmatprep.subr.mxu0 0.0
        %5822 = vmatpush1.msra.mxu0 0.0
        %5823 = vmatprep.subr.mxu0 0.0
        %5824 = vmatpush1.msra.mxu0 0.0
        %5825 = vmatprep.subr.mxu0 0.0
        %5826 = vmatpush1.msra.mxu0 0.0
        %5827 = vmatprep.subr.mxu0 0.0
        %5828 = vmatpush1.msra.mxu0 0.0
        %5829 = vmatprep.subr.mxu0 0.0
        %5830 = vmatpush1.msra.mxu0 0.0
        %5831 = vmatprep.subr.mxu0 0.0
        %5832 = vmatpush1.msra.mxu0 0.0
        %5833 = vmatprep.subr.mxu0 0.0
        %5834 = vmatpush1.msra.mxu0 0.0
        %5835 = vmatprep.subr.mxu0 0.0
        %5836 = vmatpush1.msra.mxu0 0.0
        %5837 = vmatprep.subr.mxu0 0.0
        %5838 = vmatpush1.msra.mxu0 0.0
        %5839 = vmatprep.mubr.f32.mxu0 0.0
        %5840 = vmatmul.mubr.f32.gmra.mrb[0].mxu0 %v5764
        %v5841 = vpop.f32.mrb[0].mxu0
        %v5842 = vadd.f32 0.0, %v5841
        %v5843 = vpop.f32.mrb[0].mxu0
        %5844 = vmatprep.mubr.f32.mxu0 0.0
        %5845 = vmatmul.mubr.f32.gmra.mrb[0].mxu0 %v5767
        %v5846 = vpop.f32.mrb[0].mxu0
        %v5847 = vadd.f32 0.0, %v5846
        %v5848 = vpop.f32.mrb[0].mxu0
        %5849 = vmatprep.mubr.f32.mxu0 0.0
        %5850 = vmatmul.mubr.f32.gmra.mrb[0].mxu0 %v5770
        %v5851 = vpop.f32.mrb[0].mxu0
        %v5852 = vadd.f32 0.0, %v5851
        %v5853 = vpop.f32.mrb[0].mxu0
        %5854 = vmatprep.mubr.f32.mxu0 0.0
        %5855 = vmatmul.mubr.f32.gmra.mrb[0].mxu0 %v5773
        %v5856 = vpop.f32.mrb[0].mxu0
        %v5857 = vadd.f32 0.0, %v5856
        %v5858 = vpop.f32.mrb[0].mxu0
        %5859 = vdwg.mxu0
        %v5860 = vadd.f32 %v5742, %v5842
        %v5861 = vadd.f32 %v5747, %v5847
        %v5862 = vadd.f32 %v5752, %v5852
        %v5863 = vadd.f32 %v5757, %v5857
        %v5864 = vld [vmem:[%s21] sm:$0x1]
        %v5866 = vlaneseq
        %v5867 = vshrl.u32 %v5866, 7
        %v5868 = vsub.s32 0, %v5867
        %v5869 = vrot.slane %v5864, %v5868
        %v5871 = vadd.f32 %v5860, %v5869
        %v5872 = vadd.f32 %v5861, %v5869
        %v5873 = vadd.f32 %v5862, %v5869
        %v5874 = vadd.f32 %v5863, %v5869
        %v5875 = vxor.u32 %v5871, 2147483648
        %v5876 = vxor.u32 %v5872, 2147483648
        %v5877 = vxor.u32 %v5873, 2147483648
        %v5878 = vxor.u32 %v5874, 2147483648
        %v5879 = vmul.f32 %v5875, 1.442695
        %v5880 = vpow.pop %v5879
        %v5881 = vmul.f32 %v5876, 1.442695
        %v5882 = vpow.pop %v5881
        %v5883 = vmul.f32 %v5877, 1.442695
        %v5884 = vpow.pop %v5883
        %v5885 = vmul.f32 %v5878, 1.442695
        %v5886 = vpow.pop %v5885
        %v5887 = vadd.f32 %v5880, 1.0
        %v5888 = vadd.f32 %v5882, 1.0
        %v5889 = vadd.f32 %v5884, 1.0
        %v5890 = vadd.f32 %v5886, 1.0
        %v5891 = vrcp.pop %v5887
        %v5892 = vmul.f32 1.0, %v5891
        %v5893 = vrcp.pop %v5888
        %v5894 = vmul.f32 1.0, %v5893
        %v5895 = vrcp.pop %v5889
        %v5896 = vmul.f32 1.0, %v5895
        %v5897 = vrcp.pop %v5890
        %v5898 = vmul.f32 1.0, %v5897
        %v5899 = vtanh.pop %v5871
        %v5900 = vtanh.pop %v5872
        %v5901 = vtanh.pop %v5873
        %v5902 = vtanh.pop %v5874
        %5907 = vrot.lane.b32.xlu0 %v5899, 64
        %v5908 = vpop.permute.xlu0 %5907
        %5909 = vrot.lane.b32.xlu0 %v5900, 64
        %v5910 = vpop.permute.xlu0 %5909
        %5911 = vrot.lane.b32.xlu0 %v5901, 64
        %v5912 = vpop.permute.xlu0 %5911
        %5913 = vrot.lane.b32.xlu0 %v5902, 64
        %v5914 = vpop.permute.xlu0 %5913
        %v5919 = vmul.f32 %v5892, %v5908
        %v5920 = vmul.f32 %v5894, %v5910
        %v5921 = vmul.f32 %v5896, %v5912
        %v5922 = vmul.f32 %v5898, %v5914
        %v5923 = vld [vmem:[#allocation10] sm:$0xff]
        %v5924 = vld [vmem:[#allocation10 + $0x8] sm:$0xff]
        %v5925 = vld [vmem:[#allocation10 + $0x10] sm:$0xff]
        %v5926 = vld [vmem:[#allocation10 + $0x18] sm:$0xff]
        %v5927 = vld [vmem:[#allocation10 + $0x20] sm:$0xff]
        %v5928 = vld [vmem:[#allocation10 + $0x28] sm:$0xff]
        %v5929 = vld [vmem:[#allocation10 + $0x30] sm:$0xff]
        %v5930 = vld [vmem:[#allocation10 + $0x38] sm:$0xff]
        %v5931 = vld [vmem:[%s25] sm:$0x1]
        %v5933 = vlaneseq
        %v5934 = vshrl.u32 %v5933, 7
        %v5935 = vsub.s32 0, %v5934
        %v5936 = vrot.slane %v5931, %v5935
        %v5939 = vsel %vm1702, %v5919, 0
        %v5942 = vsel %vm1702, %v5920, 0
        %v5945 = vsel %vm1702, %v5921, 0
        %v5948 = vsel %vm1702, %v5922, 0
        %5950 = vmatprep.subr.mxu0 0.0
        %5951 = vmatpush1.msra.mxu0 %v5923
        %5952 = vmatprep.subr.mxu0 0.0
        %5953 = vmatpush1.msra.mxu0 %v5924
        %5954 = vmatprep.subr.mxu0 0.0
        %5955 = vmatpush1.msra.mxu0 %v5925
        %5956 = vmatprep.subr.mxu0 0.0
        %5957 = vmatpush1.msra.mxu0 %v5926
        %5958 = vmatprep.subr.mxu0 0.0
        %5959 = vmatpush1.msra.mxu0 %v5927
        %5960 = vmatprep.subr.mxu0 0.0
        %5961 = vmatpush1.msra.mxu0 %v5928
        %5962 = vmatprep.subr.mxu0 0.0
        %5963 = vmatpush1.msra.mxu0 %v5929
        %5964 = vmatprep.subr.mxu0 0.0
        %5965 = vmatpush1.msra.mxu0 %v5930
        %5966 = vmatprep.subr.mxu0 0.0
        %5967 = vmatpush1.msra.mxu0 0.0
        %5968 = vmatprep.subr.mxu0 0.0
        %5969 = vmatpush1.msra.mxu0 0.0
        %5970 = vmatprep.subr.mxu0 0.0
        %5971 = vmatpush1.msra.mxu0 0.0
        %5972 = vmatprep.subr.mxu0 0.0
        %5973 = vmatpush1.msra.mxu0 0.0
        %5974 = vmatprep.subr.mxu0 0.0
        %5975 = vmatpush1.msra.mxu0 0.0
        %5976 = vmatprep.subr.mxu0 0.0
        %5977 = vmatpush1.msra.mxu0 0.0
        %5978 = vmatprep.subr.mxu0 0.0
        %5979 = vmatpush1.msra.mxu0 0.0
        %5980 = vmatprep.subr.mxu0 0.0
        %5981 = vmatpush1.msra.mxu0 0.0
        %5982 = vmatprep.subr.mxu0 0.0
        %5983 = vmatpush1.msra.mxu0 0.0
        %5984 = vmatprep.subr.mxu0 0.0
        %5985 = vmatpush1.msra.mxu0 0.0
        %5986 = vmatprep.subr.mxu0 0.0
        %5987 = vmatpush1.msra.mxu0 0.0
        %5988 = vmatprep.subr.mxu0 0.0
        %5989 = vmatpush1.msra.mxu0 0.0
        %5990 = vmatprep.subr.mxu0 0.0
        %5991 = vmatpush1.msra.mxu0 0.0
        %5992 = vmatprep.subr.mxu0 0.0
        %5993 = vmatpush1.msra.mxu0 0.0
        %5994 = vmatprep.subr.mxu0 0.0
        %5995 = vmatpush1.msra.mxu0 0.0
        %5996 = vmatprep.subr.mxu0 0.0
        %5997 = vmatpush1.msra.mxu0 0.0
        %5998 = vmatprep.subr.mxu0 0.0
        %5999 = vmatpush1.msra.mxu0 0.0
        %6000 = vmatprep.subr.mxu0 0.0
        %6001 = vmatpush1.msra.mxu0 0.0
        %6002 = vmatprep.subr.mxu0 0.0
        %6003 = vmatpush1.msra.mxu0 0.0
        %6004 = vmatprep.subr.mxu0 0.0
        %6005 = vmatpush1.msra.mxu0 0.0
        %6006 = vmatprep.subr.mxu0 0.0
        %6007 = vmatpush1.msra.mxu0 0.0
        %6008 = vmatprep.subr.mxu0 0.0
        %6009 = vmatpush1.msra.mxu0 0.0
        %6010 = vmatprep.subr.mxu0 0.0
        %6011 = vmatpush1.msra.mxu0 0.0
        %6012 = vmatprep.subr.mxu0 0.0
        %6013 = vmatpush1.msra.mxu0 0.0
        %6014 = vmatprep.mubr.f32.mxu0 0.0
        %6015 = vmatmul.mubr.f32.gmra.mrb[0].mxu0 %v5939
        %v6016 = vpop.f32.mrb[0].mxu0
        %v6017 = vadd.f32 %v5936, %v6016
        %v6018 = vpop.f32.mrb[0].mxu0
        %6019 = vmatprep.mubr.f32.mxu0 0.0
        %6020 = vmatmul.mubr.f32.gmra.mrb[0].mxu0 %v5942
        %v6021 = vpop.f32.mrb[0].mxu0
        %v6022 = vadd.f32 %v5936, %v6021
        %v6023 = vpop.f32.mrb[0].mxu0
        %6024 = vmatprep.mubr.f32.mxu0 0.0
        %6025 = vmatmul.mubr.f32.gmra.mrb[0].mxu0 %v5945
        %v6026 = vpop.f32.mrb[0].mxu0
        %v6027 = vadd.f32 %v5936, %v6026
        %v6028 = vpop.f32.mrb[0].mxu0
        %6029 = vmatprep.mubr.f32.mxu0 0.0
        %6030 = vmatmul.mubr.f32.gmra.mrb[0].mxu0 %v5948
        %v6031 = vpop.f32.mrb[0].mxu0
        %v6032 = vadd.f32 %v5936, %v6031
        %v6033 = vpop.f32.mrb[0].mxu0
        %6034 = vdwg.mxu0
        %v6035 = vadd.f32 %v1448, %v6017
        %v6036 = vadd.f32 %v1449, %v6022
        %v6037 = vadd.f32 %v1450, %v6027
        %v6038 = vadd.f32 %v1451, %v6032
        %v6039 = vmul.f32 %v6035, 0.70710677
        %v6040 = vmul.f32 %v6036, 0.70710677
        %v6041 = vmul.f32 %v6037, 0.70710677
        %v6042 = vmul.f32 %v6038, 0.70710677
        %v6043 = vsel %vm1702, %v6039, %v6017
        %v6044 = vsel %vm1702, %v6040, %v6022
        %v6045 = vsel %vm1702, %v6041, %v6027
        %v6046 = vsel %vm1702, %v6042, %v6032
        %6047 = vst [vmem:[%s1447] sm:$0xff] %v6043
        %6048 = vst [vmem:[%s1447 + $0x8] sm:$0xff] %v6044
        %6049 = vst [vmem:[%s1447 + $0x10] sm:$0xff] %v6045
        %6050 = vst [vmem:[%s1447 + $0x18] sm:$0xff] %v6046
        %p6051 = scmp.lt.s32.totalorder %s101, 1
        %s6052 = scalar_select %p6051, %s101, 1
        %s6053 = smul.addr %s6052, 4
        %s6054 = smul.addr %s6053, 8
        %s6055 = scalar_lea.vmem %s75, %s6054
        // Predicated region
        $region249: #{residual_block_forward.1} parent=167 // pred_check
          %p6056 = pneg %p911
        $region250: #{residual_block_forward.1} parent=167 // pred_check_branch
          %6058 = sbr.rel (%p6056) target = $region252
        $region251: #{residual_block_forward.1} parent=167 // pred_region
          _
        $region252: #{residual_block_forward.1} parent=167 // pred_fallthru
          _
      $region168: #{residual_block_forward.1} parent=5 // pred_fallthru
        _
      %p6059 = scmp.le.s32.totalorder 2, %s96
      // Predicated region
      $region253: #{residual_block_forward.1} parent=5 // pred_check
        %p6060 = pneg %p6059
      $region254: #{residual_block_forward.1} parent=5 // pred_check_branch
        %6062 = sbr.rel (%p6060) target = $region256
      $region255: #{residual_block_forward.1} parent=5 // pred_region
        %s6063 = ssub.s32 %s96, 2
        // Predicated region
        $region257: #{residual_block_forward.1} parent=255 // pred_check
          %p6064 = pneg %p917
        $region258: #{residual_block_forward.1} parent=255 // pred_check_branch
          %6066 = sbr.rel (%p6064) target = $region260
        $region259: #{residual_block_forward.1} parent=255 // pred_region
          %p6067 = scmp.lt.s32.totalorder %s102, 1
          %s6068 = scalar_select %p6067, %s102, 1
          %s6069 = smul.addr %s6068, 4
          %s6070 = smul.addr %s6069, 8
          %s6071 = scalar_lea.vmem %s75, %s6070
        $region260: #{residual_block_forward.1} parent=255 // pred_fallthru
          _
      $region256: #{residual_block_forward.1} parent=5 // pred_fallthru
        _
    $region6: #{residual_block_forward.1} parent=1 // loop_footer
      %s100 = sadd.s32 1, %s96
    $region7: #{residual_block_forward.1} parent=1 // loop_footer_branch
      %95 = sbr.rel target = $region3
    $region8: #{residual_block_forward.1} parent=1 // loop_exit
      _
    %6072 = vsyncpa [#allocation3], 1
    %s6073 = scalar_lea.sflag [#allocation3], 1
    %6074 = vsyncpa %s6073, 1
    %6075 = vsyncpa [#allocation5], 1
    %s6076 = scalar_lea.sflag [#allocation5], 1
    %6077 = vsyncpa %s6076, 1
    %6078 = vsyncpa [#allocation8], 1
    %6079 = vsyncpa [#allocation11], 1
    %6080 = vsyncpa [#allocation14], 1
    %6081 = vsyncpa [#allocation17], 1
    %6082 = vsyncpa [#allocation20], 1
    %6083 = vsyncpa [#allocation23], 1
    %6084 = vsyncpa [#allocation26], 1
    %6085 = vsyncpa [#allocation29], 1
    %6086 = vsyncpa [#allocation32], 1

</llo_original>
